<compile_context>
chip_gen: v7x
topology: tpu7x:2x2x1
jax: 0.10.0
libtpu: 0.0.40
codegen_flags: <defaults>
</compile_context>

<pallas_src>
import jax
import jax.numpy as jnp
from jax.experimental import pallas as pl
from jax.experimental.pallas import tpu as pltpu

NEG_SLOPE = 0.01   # nn.LeakyReLU default
BN_EPS = 1e-5      # nn.BatchNorm2d default


# ---------------------------------------------------------------------------
# helpers
# ---------------------------------------------------------------------------
def _row_tile(m, cap=2048):
    """Largest power-of-two tile (>=8) dividing m and <= cap, else the full m."""
    t = 2048
    while t >= 8:
        if t <= cap and t <= m and m % t == 0:
            return t
        t //= 2
    return m


def _mm_bias(x, w, b):
    """x @ w + b on values already resident in vregs.

    For tiny contraction dims (K <= 8) a matmul would waste the MXU (K,N are a
    sliver of the systolic array and only add push/pop latency), so it is
    unrolled into K broadcast multiply-adds on the VPU instead.
    """
    k, n = w.shape
    if k <= 8:
        y = b                                     # (1, n) broadcasts up to (m, n)
        for kk in range(k):
            y = y + x[:, kk:kk + 1] * w[kk:kk + 1, :]
        return y
    return jnp.dot(x, w, preferred_element_type=jnp.float32) + b


# ---------------------------------------------------------------------------
# Kernel 1: fused head   y = tanh(x @ Wfc + bfc) @ W1_flat + b1   (+ BN1 stats)
# (everything fits in a single resident VMEM tile; one launch for the whole head)
# ---------------------------------------------------------------------------
def _head_kernel(x_ref, fcw_ref, fcb_ref, w1_ref, b1_ref, y_ref, sum_ref, sq_ref):
    h = jnp.tanh(_mm_bias(x_ref[...], fcw_ref[...], fcb_ref[...]))
    y = _mm_bias(h, w1_ref[...], b1_ref[...])
    y_ref[...] = y
    sum_ref[...] = jnp.sum(y, axis=0, keepdims=True)
    sq_ref[...] = jnp.sum(y * y, axis=0, keepdims=True)


def _head_call(x, fc_w, fc_b2, w1f, b1f):
    bsz = x.shape[0]
    n1 = w1f.shape[1]
    return pl.pallas_call(
        _head_kernel,
        out_shape=(jax.ShapeDtypeStruct((bsz, n1), jnp.float32),
                   jax.ShapeDtypeStruct((1, n1), jnp.float32),
                   jax.ShapeDtypeStruct((1, n1), jnp.float32)),
    )(x, fc_w, fc_b2, w1f, b1f)


# ---------------------------------------------------------------------------
# Kernel 2: fused deconv block
#   prologue : previous layer's BN affine + LeakyReLU (one read of the activation)
#   body     : deconv(k==stride) as a per-pixel matmul in the blocked layout
#   epilogue : per-column sum / sum-of-squares for THIS layer's BatchNorm
# ---------------------------------------------------------------------------
def _block_kernel(x_ref, scale_ref, shift_ref, w_ref, b_ref, y_ref, *stat_refs):
    x = x_ref[...] * scale_ref[...] + shift_ref[...]
    x = jnp.where(x > 0, x, NEG_SLOPE * x)
    y = _mm_bias(x, w_ref[...], b_ref[...])
    y_ref[...] = y
    if stat_refs:
        sum_ref, sq_ref = stat_refs

        @pl.when(pl.program_id(0) == 0)
        def _():
            sum_ref[...] = jnp.zeros_like(sum_ref)
            sq_ref[...] = jnp.zeros_like(sq_ref)

        sum_ref[...] += jnp.sum(y, axis=0, keepdims=True)
        sq_ref[...] += jnp.sum(y * y, axis=0, keepdims=True)


def _fused_block(x, scale, shift, w_flat, b_flat, *, want_stats):
    m, k = x.shape
    n = w_flat.shape[1]
    if want_stats:
        tm = _row_tile(m)                       # stats accumulate -> sequential grid
        sem = ("arbitrary",)
    else:
        # last layer has no stats output; keep >= 2 parallel grid steps when the
        # row count allows it so v7x's two TensorCores can split the work.
        tm = _row_tile(m, cap=m // 2 if m >= 16 else m)
        sem = ("parallel",)
    grid = (m // tm,)

    in_specs = [
        pl.BlockSpec((tm, k), lambda i: (i, 0)),
        pl.BlockSpec((1, k), lambda i: (0, 0)),
        pl.BlockSpec((1, k), lambda i: (0, 0)),
        pl.BlockSpec((k, n), lambda i: (0, 0)),
        pl.BlockSpec((1, n), lambda i: (0, 0)),
    ]
    if want_stats:
        out_shape = (jax.ShapeDtypeStruct((m, n), jnp.float32),
                     jax.ShapeDtypeStruct((1, n), jnp.float32),
                     jax.ShapeDtypeStruct((1, n), jnp.float32))
        out_specs = (pl.BlockSpec((tm, n), lambda i: (i, 0)),
                     pl.BlockSpec((1, n), lambda i: (0, 0)),
                     pl.BlockSpec((1, n), lambda i: (0, 0)))
    else:
        out_shape = jax.ShapeDtypeStruct((m, n), jnp.float32)
        out_specs = pl.BlockSpec((tm, n), lambda i: (i, 0))

    return pl.pallas_call(
        _block_kernel,
        out_shape=out_shape,
        grid=grid,
        in_specs=in_specs,
        out_specs=out_specs,
        compiler_params=pltpu.CompilerParams(dimension_semantics=sem),
    )(x, scale, shift, w_flat, b_flat)


# ---------------------------------------------------------------------------
# BatchNorm finalize (tiny JAX-level math on the (1, k2*C) column sums)
# ---------------------------------------------------------------------------
def _finalize_bn(csum, csq, rows, k2, gamma, beta):
    """Training-mode BN scale/shift from blocked column sums.

    csum/csq are per-column sums of a (rows, k2*C) blocked deconv output whose
    columns are ordered (di, dj, c); per-channel element count is rows*k2.
    Variance uses E[x^2]-mean^2 in f32 (activations are O(1) post-tanh/post-BN,
    so cancellation is negligible), clamped at 0 for safety.
    """
    c = gamma.shape[0]
    n = rows * k2
    s = csum.reshape(k2, c).sum(axis=0)
    q = csq.reshape(k2, c).sum(axis=0)
    mean = s / n
    var = jnp.maximum(q / n - mean * mean, 0.0)
    scale = gamma * jax.lax.rsqrt(var + BN_EPS)
    shift = beta - mean * scale
    return scale.reshape(1, c), shift.reshape(1, c)


def _flatten_deconv(w, b):
    # w: (Cin, Cout, k, k) PyTorch ConvTranspose2d layout; columns -> (di, dj, co)
    cin, cout, k, _ = w.shape
    w_flat = jnp.transpose(w, (0, 2, 3, 1)).reshape(cin, k * k * cout)
    b_flat = jnp.tile(b, k * k).reshape(1, k * k * cout)
    return w_flat, b_flat


# ---------------------------------------------------------------------------
# Full forward pass (matches Deconv2D_64.forward, training-mode BatchNorm)
# ---------------------------------------------------------------------------
def deconv2d_64_forward(x, params):
    bsz = x.shape[0]
    convs = params["convs"]
    bns = params["bns"]

    # ---- fused head: fc -> tanh -> deconv1 (k=4,s=4 on a 1x1 map) + BN1 stats
    w1, b1 = convs[0]
    k1, cout = w1.shape[2], w1.shape[1]
    w1f, b1f = _flatten_deconv(w1, b1)
    y, csum, csq = _head_call(x, params["fc_w"], params["fc_b"].reshape(1, -1),
                              w1f, b1f)

    rows, k2 = bsz, k1 * k1
    # ---- deconv blocks 2..5: BN+LeakyReLU prologue, matmul, stats epilogue ----
    for li in range(1, len(convs)):
        gamma, beta = bns[li - 1]
        scale, shift = _finalize_bn(csum, csq, rows, k2, gamma, beta)
        # contiguous "unblock" reshape (rows, k2*C) -> (rows*k2, C); the true
        # spatial interleave is deferred to the very end.
        h = y.reshape(rows * k2, cout)
        rows *= k2

        wc, bc = convs[li]
        kk, cout = wc.shape[2], wc.shape[1]
        wf, bf = _flatten_deconv(wc, bc)
        if li < len(convs) - 1:
            y, csum, csq = _fused_block(h, scale, shift, wf, bf, want_stats=True)
        else:
            y = _fused_block(h, scale, shift, wf, bf, want_stats=False)
        k2 = kk * kk

    # ---- single deferred spatial un-blocking of the FINAL tensor only --------
    # y rows ordered (b, d1i, d1j, ..., d4i, d4j), columns (d5i, d5j, co).
    oc = convs[-1][0].shape[1]
    ks = [w.shape[2] for w, _ in convs]
    a = y.reshape(bsz, ks[0], ks[0], -1)          # (B, H, W, blocked-rest)
    for kk in ks[1:]:
        b_, hh, ww, r = a.shape
        a = a.reshape(b_, hh, ww, kk, kk, r // (kk * kk))
        a = a.transpose(0, 1, 3, 2, 4, 5).reshape(b_, hh * kk, ww * kk, r // (kk * kk))
    # MetaActivation('identity') -> no-op
    return jnp.transpose(a, (0, 3, 1, 2))         # NCHW: (B, oc, 64, 64)


# ---------------------------------------------------------------------------
# Deterministic parameter init (shapes from the module __init__, ngf=2).
# ---------------------------------------------------------------------------
def init_params(key, in_dim=2, out_channels=1):
    ngf = 2
    hid = 2 * in_dim
    specs = [(hid, 16 * ngf, 4), (16 * ngf, 8 * ngf, 2), (8 * ngf, 4 * ngf, 2),
             (4 * ngf, 2 * ngf, 2), (2 * ngf, out_channels, 2)]
    keys = iter(jax.random.split(key, 2 + 4 * len(specs)))

    def nrm(shape, s=0.05):
        return (s * jax.random.normal(next(keys), shape)).astype(jnp.float32)

    params = {"fc_w": nrm((in_dim, hid)), "fc_b": nrm((hid,)),
              "convs": [], "bns": []}
    for li, (cin, cout, k) in enumerate(specs):
        params["convs"].append((nrm((cin, cout, k, k)), nrm((cout,))))
        if li < len(specs) - 1:
            params["bns"].append((1.0 + nrm((cout,), 0.01), nrm((cout,), 0.01)))
    return params


# ---------------------------------------------------------------------------
# Pure-JAX reference (same semantics), used to validate the Pallas pipeline.
# ---------------------------------------------------------------------------
def _ref_forward(x, params):
    h = jnp.tanh(x @ params["fc_w"] + params["fc_b"])
    a = h[:, :, None, None]                                # NCHW (B, 2*in_dim, 1, 1)
    convs, bns = params["convs"], params["bns"]
    for li, (w, b) in enumerate(convs):
        cout, k = w.shape[1], w.shape[2]
        bsz, _, hh, ww = a.shape
        y = jnp.einsum('bchw,cokl->bohwkl', a, w)
        y = y.transpose(0, 1, 2, 4, 3, 5).reshape(bsz, cout, hh * k, ww * k)
        y = y + b[None, :, None, None]
        if li < len(convs) - 1:
            gamma, beta = bns[li]
            mean = y.mean(axis=(0, 2, 3), keepdims=True)
            var = ((y - mean) ** 2).mean(axis=(0, 2, 3), keepdims=True)
            y = (y - mean) * jax.lax.rsqrt(var + BN_EPS)
            y = gamma[None, :, None, None] * y + beta[None, :, None, None]
            y = jnp.where(y > 0, y, NEG_SLOPE * y)
        a = y
    return a


if __name__ == "__main__":
    key = jax.random.PRNGKey(0)
    kp, kx = jax.random.split(key)

    in_dim, batch, out_channels = 2, 2, 1         # module defaults
    params = init_params(kp, in_dim=in_dim, out_channels=out_channels)
    x = jax.random.normal(kx, (batch, in_dim), dtype=jnp.float32)

    fwd = jax.jit(lambda xin: deconv2d_64_forward(xin, params))
    out = fwd(x)
    jax.block_until_ready(out)

    assert out.shape == (batch, out_channels, 64, 64), out.shape
    assert out.dtype == jnp.float32
    assert bool(jnp.all(jnp.isfinite(out)))

    ref = _ref_forward(x, params)
    assert bool(jnp.allclose(out, ref, rtol=1e-3, atol=1e-3)), (
        float(jnp.max(jnp.abs(out - ref))))

    print("KERNEL_OK")
</pallas_src>

<mosaic_0001>
module attributes {stable_mosaic.version = 11 : i64} {
  func.func @_head_kernel(%arg0: memref<2x2xf32, #tpu.memory_space<vmem>>, %arg1: memref<2x4xf32, #tpu.memory_space<vmem>>, %arg2: memref<1x4xf32, #tpu.memory_space<vmem>>, %arg3: memref<4x512xf32, #tpu.memory_space<vmem>>, %arg4: memref<1x512xf32, #tpu.memory_space<vmem>>, %arg5: memref<2x512xf32, #tpu.memory_space<vmem>>, %arg6: memref<1x512xf32, #tpu.memory_space<vmem>>, %arg7: memref<1x512xf32, #tpu.memory_space<vmem>>) attributes {dimension_semantics = [], scalar_prefetch = 0 : i64, scratch_operands = 0 : i64, tpu.core_type = #tpu.core_type<tc>} {
    %c0 = arith.constant 0 : index
    %c0_0 = arith.constant 0 : index
    %0 = vector.load %arg0[%c0, %c0_0] : memref<2x2xf32, #tpu.memory_space<vmem>>, vector<2x2xf32>
    %c0_1 = arith.constant 0 : index
    %c0_2 = arith.constant 0 : index
    %1 = vector.load %arg1[%c0_1, %c0_2] : memref<2x4xf32, #tpu.memory_space<vmem>>, vector<2x4xf32>
    %c0_3 = arith.constant 0 : index
    %c0_4 = arith.constant 0 : index
    %2 = vector.load %arg2[%c0_3, %c0_4] : memref<1x4xf32, #tpu.memory_space<vmem>>, vector<1x4xf32>
    %3 = vector.extract_strided_slice %0 {offsets = [0, 0], sizes = [2, 1], strides = [1, 1]} : vector<2x2xf32> to vector<2x1xf32>
    %4 = vector.extract_strided_slice %1 {offsets = [0, 0], sizes = [1, 4], strides = [1, 1]} : vector<2x4xf32> to vector<1x4xf32>
    %5 = vector.broadcast %3 : vector<2x1xf32> to vector<2x4xf32>
    %6 = vector.broadcast %4 : vector<1x4xf32> to vector<2x4xf32>
    %7 = arith.mulf %5, %6 : vector<2x4xf32>
    %8 = vector.broadcast %2 : vector<1x4xf32> to vector<2x4xf32>
    %9 = arith.addf %8, %7 : vector<2x4xf32>
    %10 = vector.extract_strided_slice %0 {offsets = [0, 1], sizes = [2, 1], strides = [1, 1]} : vector<2x2xf32> to vector<2x1xf32>
    %11 = vector.extract_strided_slice %1 {offsets = [1, 0], sizes = [1, 4], strides = [1, 1]} : vector<2x4xf32> to vector<1x4xf32>
    %12 = vector.broadcast %10 : vector<2x1xf32> to vector<2x4xf32>
    %13 = vector.broadcast %11 : vector<1x4xf32> to vector<2x4xf32>
    %14 = arith.mulf %12, %13 : vector<2x4xf32>
    %15 = arith.addf %9, %14 : vector<2x4xf32>
    %16 = math.tanh %15 : vector<2x4xf32>
    %c0_5 = arith.constant 0 : index
    %c0_6 = arith.constant 0 : index
    %17 = vector.load %arg3[%c0_5, %c0_6] : memref<4x512xf32, #tpu.memory_space<vmem>>, vector<4x512xf32>
    %c0_7 = arith.constant 0 : index
    %c0_8 = arith.constant 0 : index
    %18 = vector.load %arg4[%c0_7, %c0_8] : memref<1x512xf32, #tpu.memory_space<vmem>>, vector<1x512xf32>
    %19 = vector.extract_strided_slice %16 {offsets = [0, 0], sizes = [2, 1], strides = [1, 1]} : vector<2x4xf32> to vector<2x1xf32>
    %20 = vector.extract_strided_slice %17 {offsets = [0, 0], sizes = [1, 512], strides = [1, 1]} : vector<4x512xf32> to vector<1x512xf32>
    %21 = vector.broadcast %19 : vector<2x1xf32> to vector<2x512xf32>
    %22 = vector.broadcast %20 : vector<1x512xf32> to vector<2x512xf32>
    %23 = arith.mulf %21, %22 : vector<2x512xf32>
    %24 = vector.broadcast %18 : vector<1x512xf32> to vector<2x512xf32>
    %25 = arith.addf %24, %23 : vector<2x512xf32>
    %26 = vector.extract_strided_slice %16 {offsets = [0, 1], sizes = [2, 1], strides = [1, 1]} : vector<2x4xf32> to vector<2x1xf32>
    %27 = vector.extract_strided_slice %17 {offsets = [1, 0], sizes = [1, 512], strides = [1, 1]} : vector<4x512xf32> to vector<1x512xf32>
    %28 = vector.broadcast %26 : vector<2x1xf32> to vector<2x512xf32>
    %29 = vector.broadcast %27 : vector<1x512xf32> to vector<2x512xf32>
    %30 = arith.mulf %28, %29 : vector<2x512xf32>
    %31 = arith.addf %25, %30 : vector<2x512xf32>
    %32 = vector.extract_strided_slice %16 {offsets = [0, 2], sizes = [2, 1], strides = [1, 1]} : vector<2x4xf32> to vector<2x1xf32>
    %33 = vector.extract_strided_slice %17 {offsets = [2, 0], sizes = [1, 512], strides = [1, 1]} : vector<4x512xf32> to vector<1x512xf32>
    %34 = vector.broadcast %32 : vector<2x1xf32> to vector<2x512xf32>
    %35 = vector.broadcast %33 : vector<1x512xf32> to vector<2x512xf32>
    %36 = arith.mulf %34, %35 : vector<2x512xf32>
    %37 = arith.addf %31, %36 : vector<2x512xf32>
    %38 = vector.extract_strided_slice %16 {offsets = [0, 3], sizes = [2, 1], strides = [1, 1]} : vector<2x4xf32> to vector<2x1xf32>
    %39 = vector.extract_strided_slice %17 {offsets = [3, 0], sizes = [1, 512], strides = [1, 1]} : vector<4x512xf32> to vector<1x512xf32>
    %40 = vector.broadcast %38 : vector<2x1xf32> to vector<2x512xf32>
    %41 = vector.broadcast %39 : vector<1x512xf32> to vector<2x512xf32>
    %42 = arith.mulf %40, %41 : vector<2x512xf32>
    %43 = arith.addf %37, %42 : vector<2x512xf32>
    %c0_9 = arith.constant 0 : index
    %c0_10 = arith.constant 0 : index
    %44 = vector.load %arg5[%c0_9, %c0_10] : memref<2x512xf32, #tpu.memory_space<vmem>>, vector<2x512xf32>
    tpu.vector_store %arg5[%c0_9, %c0_10], %43 {strides = array<i32>} : memref<2x512xf32, #tpu.memory_space<vmem>>, vector<2x512xf32>,
    %cst = arith.constant dense<0.000000e+00> : vector<512xf32>
    %45 = vector.multi_reduction <add>, %43, %cst [0] : vector<2x512xf32> to vector<512xf32>
    %46 = vector.shape_cast %45 : vector<512xf32> to vector<1x512xf32>
    %c0_11 = arith.constant 0 : index
    %c0_12 = arith.constant 0 : index
    %47 = vector.load %arg6[%c0_11, %c0_12] : memref<1x512xf32, #tpu.memory_space<vmem>>, vector<1x512xf32>
    tpu.vector_store %arg6[%c0_11, %c0_12], %46 {strides = array<i32>} : memref<1x512xf32, #tpu.memory_space<vmem>>, vector<1x512xf32>,
    %48 = arith.mulf %43, %43 : vector<2x512xf32>
    %cst_13 = arith.constant dense<0.000000e+00> : vector<512xf32>
    %49 = vector.multi_reduction <add>, %48, %cst_13 [0] : vector<2x512xf32> to vector<512xf32>
    %50 = vector.shape_cast %49 : vector<512xf32> to vector<1x512xf32>
    %c0_14 = arith.constant 0 : index
    %c0_15 = arith.constant 0 : index
    %51 = vector.load %arg7[%c0_14, %c0_15] : memref<1x512xf32, #tpu.memory_space<vmem>>, vector<1x512xf32>
    tpu.vector_store %arg7[%c0_14, %c0_15], %50 {strides = array<i32>} : memref<1x512xf32, #tpu.memory_space<vmem>>, vector<1x512xf32>,
    return
  }
}

module attributes {stable_mosaic.version = 11 : i64} {
  func.func @_block_kernel(%arg0: i32, %arg1: memref<32x32xf32, #tpu.memory_space<vmem>>, %arg2: memref<1x32xf32, #tpu.memory_space<vmem>>, %arg3: memref<1x32xf32, #tpu.memory_space<vmem>>, %arg4: memref<32x64xf32, #tpu.memory_space<vmem>>, %arg5: memref<1x64xf32, #tpu.memory_space<vmem>>, %arg6: memref<32x64xf32, #tpu.memory_space<vmem>>, %arg7: memref<1x64xf32, #tpu.memory_space<vmem>>, %arg8: memref<1x64xf32, #tpu.memory_space<vmem>>) attributes {dimension_semantics = [#tpu.dimension_semantics<arbitrary>], iteration_bounds = array<i64: 1>, scalar_prefetch = 0 : i64, scratch_operands = 0 : i64, tpu.core_type = #tpu.core_type<tc>, window_params = [{transform_indices = @transform_0, window_bounds = array<i64: 32, 32>}, {pipeline_mode = #tpu.pipeline_mode<synchronous>, transform_indices = @transform_1, window_bounds = array<i64: 1, 32>}, {pipeline_mode = #tpu.pipeline_mode<synchronous>, transform_indices = @transform_2, window_bounds = array<i64: 1, 32>}, {pipeline_mode = #tpu.pipeline_mode<synchronous>, transform_indices = @transform_3, window_bounds = array<i64: 32, 64>}, {pipeline_mode = #tpu.pipeline_mode<synchronous>, transform_indices = @transform_4, window_bounds = array<i64: 1, 64>}, {transform_indices = @transform_5, window_bounds = array<i64: 32, 64>}, {pipeline_mode = #tpu.pipeline_mode<synchronous>, transform_indices = @transform_6, window_bounds = array<i64: 1, 64>}, {pipeline_mode = #tpu.pipeline_mode<synchronous>, transform_indices = @transform_7, window_bounds = array<i64: 1, 64>}]} {
    %c0 = arith.constant 0 : index
    %c0_0 = arith.constant 0 : index
    %0 = vector.load %arg1[%c0, %c0_0] : memref<32x32xf32, #tpu.memory_space<vmem>>, vector<32x32xf32>
    %c0_1 = arith.constant 0 : index
    %c0_2 = arith.constant 0 : index
    %1 = vector.load %arg2[%c0_1, %c0_2] : memref<1x32xf32, #tpu.memory_space<vmem>>, vector<1x32xf32>
    %2 = vector.broadcast %1 : vector<1x32xf32> to vector<32x32xf32>
    %3 = arith.mulf %0, %2 : vector<32x32xf32>
    %c0_3 = arith.constant 0 : index
    %c0_4 = arith.constant 0 : index
    %4 = vector.load %arg3[%c0_3, %c0_4] : memref<1x32xf32, #tpu.memory_space<vmem>>, vector<1x32xf32>
    %5 = vector.broadcast %4 : vector<1x32xf32> to vector<32x32xf32>
    %6 = arith.addf %3, %5 : vector<32x32xf32>
    %cst = arith.constant 0.000000e+00 : f32
    %7 = vector.broadcast %cst : f32 to vector<32x32xf32>
    %8 = arith.cmpf ogt, %6, %7 : vector<32x32xf32>
    %cst_5 = arith.constant 0.00999999977 : f32
    %9 = vector.broadcast %cst_5 : f32 to vector<32x32xf32>
    %10 = arith.mulf %9, %6 : vector<32x32xf32>
    %11 = arith.select %8, %6, %10 : vector<32x32xi1>, vector<32x32xf32>
    %c0_6 = arith.constant 0 : index
    %c0_7 = arith.constant 0 : index
    %12 = vector.load %arg4[%c0_6, %c0_7] : memref<32x64xf32, #tpu.memory_space<vmem>>, vector<32x64xf32>
    %c0_8 = arith.constant 0 : index
    %c0_9 = arith.constant 0 : index
    %13 = vector.load %arg5[%c0_8, %c0_9] : memref<1x64xf32, #tpu.memory_space<vmem>>, vector<1x64xf32>
    %cst_10 = arith.constant dense<0.000000e+00> : vector<32x64xf32>
    %14 = tpu.matmul %11, %12, %cst_10 {dimension_numbers = #tpu.dot_dimension_numbers<[1], [0], [0], [1], [0, 0, 1, 1], [], []>} : vector<32x32xf32>, vector<32x64xf32>, vector<32x64xf32> -> vector<32x64xf32>
    %15 = vector.broadcast %13 : vector<1x64xf32> to vector<32x64xf32>
    %16 = arith.addf %14, %15 : vector<32x64xf32>
    %c0_11 = arith.constant 0 : index
    %c0_12 = arith.constant 0 : index
    %17 = vector.load %arg6[%c0_11, %c0_12] : memref<32x64xf32, #tpu.memory_space<vmem>>, vector<32x64xf32>
    tpu.vector_store %arg6[%c0_11, %c0_12], %16 {strides = array<i32>} : memref<32x64xf32, #tpu.memory_space<vmem>>, vector<32x64xf32>,
    %c0_i32 = arith.constant 0 : i32
    %18 = arith.cmpi eq, %arg0, %c0_i32 : i32
    %19 = arith.extui %18 : i1 to i32
    %c0_i32_13 = arith.constant 0 : i32
    %20 = arith.cmpi ne, %19, %c0_i32_13 : i32
    scf.if %20 {
      %cst_24 = arith.constant 0.000000e+00 : f32
      %32 = vector.broadcast %cst_24 : f32 to vector<1x64xf32>
      %c0_25 = arith.constant 0 : index
      %c0_26 = arith.constant 0 : index
      %33 = vector.load %arg7[%c0_25, %c0_26] : memref<1x64xf32, #tpu.memory_space<vmem>>, vector<1x64xf32>
      tpu.vector_store %arg7[%c0_25, %c0_26], %32 {strides = array<i32>} : memref<1x64xf32, #tpu.memory_space<vmem>>, vector<1x64xf32>,
      %cst_27 = arith.constant 0.000000e+00 : f32
      %34 = vector.broadcast %cst_27 : f32 to vector<1x64xf32>
      %c0_28 = arith.constant 0 : index
      %c0_29 = arith.constant 0 : index
      %35 = vector.load %arg8[%c0_28, %c0_29] : memref<1x64xf32, #tpu.memory_space<vmem>>, vector<1x64xf32>
      tpu.vector_store %arg8[%c0_28, %c0_29], %34 {strides = array<i32>} : memref<1x64xf32, #tpu.memory_space<vmem>>, vector<1x64xf32>,
    } else {
    }
    %c0_14 = arith.constant 0 : index
    %c0_15 = arith.constant 0 : index
    %21 = vector.load %arg7[%c0_14, %c0_15] : memref<1x64xf32, #tpu.memory_space<vmem>>, vector<1x64xf32>
    %cst_16 = arith.constant dense<0.000000e+00> : vector<64xf32>
    %22 = vector.multi_reduction <add>, %16, %cst_16 [0] : vector<32x64xf32> to vector<64xf32>
    %23 = vector.shape_cast %22 : vector<64xf32> to vector<1x64xf32>
    %24 = arith.addf %21, %23 : vector<1x64xf32>
    %c0_17 = arith.constant 0 : index
    %c0_18 = arith.constant 0 : index
    %25 = vector.load %arg7[%c0_17, %c0_18] : memref<1x64xf32, #tpu.memory_space<vmem>>, vector<1x64xf32>
    tpu.vector_store %arg7[%c0_17, %c0_18], %24 {strides = array<i32>} : memref<1x64xf32, #tpu.memory_space<vmem>>, vector<1x64xf32>,
    %c0_19 = arith.constant 0 : index
    %c0_20 = arith.constant 0 : index
    %26 = vector.load %arg8[%c0_19, %c0_20] : memref<1x64xf32, #tpu.memory_space<vmem>>, vector<1x64xf32>
    %27 = arith.mulf %16, %16 : vector<32x64xf32>
    %cst_21 = arith.constant dense<0.000000e+00> : vector<64xf32>
    %28 = vector.multi_reduction <add>, %27, %cst_21 [0] : vector<32x64xf32> to vector<64xf32>
    %29 = vector.shape_cast %28 : vector<64xf32> to vector<1x64xf32>
    %30 = arith.addf %26, %29 : vector<1x64xf32>
    %c0_22 = arith.constant 0 : index
    %c0_23 = arith.constant 0 : index
    %31 = vector.load %arg8[%c0_22, %c0_23] : memref<1x64xf32, #tpu.memory_space<vmem>>, vector<1x64xf32>
    tpu.vector_store %arg8[%c0_22, %c0_23], %30 {strides = array<i32>} : memref<1x64xf32, #tpu.memory_space<vmem>>, vector<1x64xf32>,
    return
  }
  func.func @transform_0(%arg0: i32) -> (i32, i32) {
    %c0_i32 = arith.constant 0 : i32
    %c0_i32_0 = arith.constant 0 : i32
    return %arg0, %c0_i32 : i32, i32
  }
  func.func @transform_1(%arg0: i32) -> (i32, i32) {
    %c0_i32 = arith.constant 0 : i32
    %c0_i32_0 = arith.constant 0 : i32
    %c0_i32_1 = arith.constant 0 : i32
    return %c0_i32, %c0_i32_0 : i32, i32
  }
  func.func @transform_2(%arg0: i32) -> (i32, i32) {
    %c0_i32 = arith.constant 0 : i32
    %c0_i32_0 = arith.constant 0 : i32
    %c0_i32_1 = arith.constant 0 : i32
    return %c0_i32, %c0_i32_0 : i32, i32
  }
  func.func @transform_3(%arg0: i32) -> (i32, i32) {
    %c0_i32 = arith.constant 0 : i32
    %c0_i32_0 = arith.constant 0 : i32
    %c0_i32_1 = arith.constant 0 : i32
    return %c0_i32, %c0_i32_0 : i32, i32
  }
  func.func @transform_4(%arg0: i32) -> (i32, i32) {
    %c0_i32 = arith.constant 0 : i32
    %c0_i32_0 = arith.constant 0 : i32
    %c0_i32_1 = arith.constant 0 : i32
    return %c0_i32, %c0_i32_0 : i32, i32
  }
  func.func @transform_5(%arg0: i32) -> (i32, i32) {
    %c0_i32 = arith.constant 0 : i32
    %c0_i32_0 = arith.constant 0 : i32
    return %arg0, %c0_i32 : i32, i32
  }
  func.func @transform_6(%arg0: i32) -> (i32, i32) {
    %c0_i32 = arith.constant 0 : i32
    %c0_i32_0 = arith.constant 0 : i32
    %c0_i32_1 = arith.constant 0 : i32
    return %c0_i32, %c0_i32_0 : i32, i32
  }
  func.func @transform_7(%arg0: i32) -> (i32, i32) {
    %c0_i32 = arith.constant 0 : i32
    %c0_i32_0 = arith.constant 0 : i32
    %c0_i32_1 = arith.constant 0 : i32
    return %c0_i32, %c0_i32_0 : i32, i32
  }
}

module attributes {stable_mosaic.version = 11 : i64} {
  func.func @_block_kernel(%arg0: i32, %arg1: memref<128x16xf32, #tpu.memory_space<vmem>>, %arg2: memref<1x16xf32, #tpu.memory_space<vmem>>, %arg3: memref<1x16xf32, #tpu.memory_space<vmem>>, %arg4: memref<16x32xf32, #tpu.memory_space<vmem>>, %arg5: memref<1x32xf32, #tpu.memory_space<vmem>>, %arg6: memref<128x32xf32, #tpu.memory_space<vmem>>, %arg7: memref<1x32xf32, #tpu.memory_space<vmem>>, %arg8: memref<1x32xf32, #tpu.memory_space<vmem>>) attributes {dimension_semantics = [#tpu.dimension_semantics<arbitrary>], iteration_bounds = array<i64: 1>, scalar_prefetch = 0 : i64, scratch_operands = 0 : i64, tpu.core_type = #tpu.core_type<tc>, window_params = [{transform_indices = @transform_0, window_bounds = array<i64: 128, 16>}, {pipeline_mode = #tpu.pipeline_mode<synchronous>, transform_indices = @transform_1, window_bounds = array<i64: 1, 16>}, {pipeline_mode = #tpu.pipeline_mode<synchronous>, transform_indices = @transform_2, window_bounds = array<i64: 1, 16>}, {pipeline_mode = #tpu.pipeline_mode<synchronous>, transform_indices = @transform_3, window_bounds = array<i64: 16, 32>}, {pipeline_mode = #tpu.pipeline_mode<synchronous>, transform_indices = @transform_4, window_bounds = array<i64: 1, 32>}, {transform_indices = @transform_5, window_bounds = array<i64: 128, 32>}, {pipeline_mode = #tpu.pipeline_mode<synchronous>, transform_indices = @transform_6, window_bounds = array<i64: 1, 32>}, {pipeline_mode = #tpu.pipeline_mode<synchronous>, transform_indices = @transform_7, window_bounds = array<i64: 1, 32>}]} {
    %c0 = arith.constant 0 : index
    %c0_0 = arith.constant 0 : index
    %0 = vector.load %arg1[%c0, %c0_0] : memref<128x16xf32, #tpu.memory_space<vmem>>, vector<128x16xf32>
    %c0_1 = arith.constant 0 : index
    %c0_2 = arith.constant 0 : index
    %1 = vector.load %arg2[%c0_1, %c0_2] : memref<1x16xf32, #tpu.memory_space<vmem>>, vector<1x16xf32>
    %2 = vector.broadcast %1 : vector<1x16xf32> to vector<128x16xf32>
    %3 = arith.mulf %0, %2 : vector<128x16xf32>
    %c0_3 = arith.constant 0 : index
    %c0_4 = arith.constant 0 : index
    %4 = vector.load %arg3[%c0_3, %c0_4] : memref<1x16xf32, #tpu.memory_space<vmem>>, vector<1x16xf32>
    %5 = vector.broadcast %4 : vector<1x16xf32> to vector<128x16xf32>
    %6 = arith.addf %3, %5 : vector<128x16xf32>
    %cst = arith.constant 0.000000e+00 : f32
    %7 = vector.broadcast %cst : f32 to vector<128x16xf32>
    %8 = arith.cmpf ogt, %6, %7 : vector<128x16xf32>
    %cst_5 = arith.constant 0.00999999977 : f32
    %9 = vector.broadcast %cst_5 : f32 to vector<128x16xf32>
    %10 = arith.mulf %9, %6 : vector<128x16xf32>
    %11 = arith.select %8, %6, %10 : vector<128x16xi1>, vector<128x16xf32>
    %c0_6 = arith.constant 0 : index
    %c0_7 = arith.constant 0 : index
    %12 = vector.load %arg4[%c0_6, %c0_7] : memref<16x32xf32, #tpu.memory_space<vmem>>, vector<16x32xf32>
    %c0_8 = arith.constant 0 : index
    %c0_9 = arith.constant 0 : index
    %13 = vector.load %arg5[%c0_8, %c0_9] : memref<1x32xf32, #tpu.memory_space<vmem>>, vector<1x32xf32>
    %cst_10 = arith.constant dense<0.000000e+00> : vector<128x32xf32>
    %14 = tpu.matmul %11, %12, %cst_10 {dimension_numbers = #tpu.dot_dimension_numbers<[1], [0], [0], [1], [0, 0, 1, 1], [], []>} : vector<128x16xf32>, vector<16x32xf32>, vector<128x32xf32> -> vector<128x32xf32>
    %15 = vector.broadcast %13 : vector<1x32xf32> to vector<128x32xf32>
    %16 = arith.addf %14, %15 : vector<128x32xf32>
    %c0_11 = arith.constant 0 : index
    %c0_12 = arith.constant 0 : index
    %17 = vector.load %arg6[%c0_11, %c0_12] : memref<128x32xf32, #tpu.memory_space<vmem>>, vector<128x32xf32>
    tpu.vector_store %arg6[%c0_11, %c0_12], %16 {strides = array<i32>} : memref<128x32xf32, #tpu.memory_space<vmem>>, vector<128x32xf32>,
    %c0_i32 = arith.constant 0 : i32
    %18 = arith.cmpi eq, %arg0, %c0_i32 : i32
    %19 = arith.extui %18 : i1 to i32
    %c0_i32_13 = arith.constant 0 : i32
    %20 = arith.cmpi ne, %19, %c0_i32_13 : i32
    scf.if %20 {
      %cst_24 = arith.constant 0.000000e+00 : f32
      %32 = vector.broadcast %cst_24 : f32 to vector<1x32xf32>
      %c0_25 = arith.constant 0 : index
      %c0_26 = arith.constant 0 : index
      %33 = vector.load %arg7[%c0_25, %c0_26] : memref<1x32xf32, #tpu.memory_space<vmem>>, vector<1x32xf32>
      tpu.vector_store %arg7[%c0_25, %c0_26], %32 {strides = array<i32>} : memref<1x32xf32, #tpu.memory_space<vmem>>, vector<1x32xf32>,
      %cst_27 = arith.constant 0.000000e+00 : f32
      %34 = vector.broadcast %cst_27 : f32 to vector<1x32xf32>
      %c0_28 = arith.constant 0 : index
      %c0_29 = arith.constant 0 : index
      %35 = vector.load %arg8[%c0_28, %c0_29] : memref<1x32xf32, #tpu.memory_space<vmem>>, vector<1x32xf32>
      tpu.vector_store %arg8[%c0_28, %c0_29], %34 {strides = array<i32>} : memref<1x32xf32, #tpu.memory_space<vmem>>, vector<1x32xf32>,
    } else {
    }
    %c0_14 = arith.constant 0 : index
    %c0_15 = arith.constant 0 : index
    %21 = vector.load %arg7[%c0_14, %c0_15] : memref<1x32xf32, #tpu.memory_space<vmem>>, vector<1x32xf32>
    %cst_16 = arith.constant dense<0.000000e+00> : vector<32xf32>
    %22 = vector.multi_reduction <add>, %16, %cst_16 [0] : vector<128x32xf32> to vector<32xf32>
    %23 = vector.shape_cast %22 : vector<32xf32> to vector<1x32xf32>
    %24 = arith.addf %21, %23 : vector<1x32xf32>
    %c0_17 = arith.constant 0 : index
    %c0_18 = arith.constant 0 : index
    %25 = vector.load %arg7[%c0_17, %c0_18] : memref<1x32xf32, #tpu.memory_space<vmem>>, vector<1x32xf32>
    tpu.vector_store %arg7[%c0_17, %c0_18], %24 {strides = array<i32>} : memref<1x32xf32, #tpu.memory_space<vmem>>, vector<1x32xf32>,
    %c0_19 = arith.constant 0 : index
    %c0_20 = arith.constant 0 : index
    %26 = vector.load %arg8[%c0_19, %c0_20] : memref<1x32xf32, #tpu.memory_space<vmem>>, vector<1x32xf32>
    %27 = arith.mulf %16, %16 : vector<128x32xf32>
    %cst_21 = arith.constant dense<0.000000e+00> : vector<32xf32>
    %28 = vector.multi_reduction <add>, %27, %cst_21 [0] : vector<128x32xf32> to vector<32xf32>
    %29 = vector.shape_cast %28 : vector<32xf32> to vector<1x32xf32>
    %30 = arith.addf %26, %29 : vector<1x32xf32>
    %c0_22 = arith.constant 0 : index
    %c0_23 = arith.constant 0 : index
    %31 = vector.load %arg8[%c0_22, %c0_23] : memref<1x32xf32, #tpu.memory_space<vmem>>, vector<1x32xf32>
    tpu.vector_store %arg8[%c0_22, %c0_23], %30 {strides = array<i32>} : memref<1x32xf32, #tpu.memory_space<vmem>>, vector<1x32xf32>,
    return
  }
  func.func @transform_0(%arg0: i32) -> (i32, i32) {
    %c0_i32 = arith.constant 0 : i32
    %c0_i32_0 = arith.constant 0 : i32
    return %arg0, %c0_i32 : i32, i32
  }
  func.func @transform_1(%arg0: i32) -> (i32, i32) {
    %c0_i32 = arith.constant 0 : i32
    %c0_i32_0 = arith.constant 0 : i32
    %c0_i32_1 = arith.constant 0 : i32
    return %c0_i32, %c0_i32_0 : i32, i32
  }
  func.func @transform_2(%arg0: i32) -> (i32, i32) {
    %c0_i32 = arith.constant 0 : i32
    %c0_i32_0 = arith.constant 0 : i32
    %c0_i32_1 = arith.constant 0 : i32
    return %c0_i32, %c0_i32_0 : i32, i32
  }
  func.func @transform_3(%arg0: i32) -> (i32, i32) {
    %c0_i32 = arith.constant 0 : i32
    %c0_i32_0 = arith.constant 0 : i32
    %c0_i32_1 = arith.constant 0 : i32
    return %c0_i32, %c0_i32_0 : i32, i32
  }
  func.func @transform_4(%arg0: i32) -> (i32, i32) {
    %c0_i32 = arith.constant 0 : i32
    %c0_i32_0 = arith.constant 0 : i32
    %c0_i32_1 = arith.constant 0 : i32
    return %c0_i32, %c0_i32_0 : i32, i32
  }
  func.func @transform_5(%arg0: i32) -> (i32, i32) {
    %c0_i32 = arith.constant 0 : i32
    %c0_i32_0 = arith.constant 0 : i32
    return %arg0, %c0_i32 : i32, i32
  }
  func.func @transform_6(%arg0: i32) -> (i32, i32) {
    %c0_i32 = arith.constant 0 : i32
    %c0_i32_0 = arith.constant 0 : i32
    %c0_i32_1 = arith.constant 0 : i32
    return %c0_i32, %c0_i32_0 : i32, i32
  }
  func.func @transform_7(%arg0: i32) -> (i32, i32) {
    %c0_i32 = arith.constant 0 : i32
    %c0_i32_0 = arith.constant 0 : i32
    %c0_i32_1 = arith.constant 0 : i32
    return %c0_i32, %c0_i32_0 : i32, i32
  }
}

module attributes {stable_mosaic.version = 11 : i64} {
  func.func @_block_kernel(%arg0: i32, %arg1: memref<512x8xf32, #tpu.memory_space<vmem>>, %arg2: memref<1x8xf32, #tpu.memory_space<vmem>>, %arg3: memref<1x8xf32, #tpu.memory_space<vmem>>, %arg4: memref<8x16xf32, #tpu.memory_space<vmem>>, %arg5: memref<1x16xf32, #tpu.memory_space<vmem>>, %arg6: memref<512x16xf32, #tpu.memory_space<vmem>>, %arg7: memref<1x16xf32, #tpu.memory_space<vmem>>, %arg8: memref<1x16xf32, #tpu.memory_space<vmem>>) attributes {dimension_semantics = [#tpu.dimension_semantics<arbitrary>], iteration_bounds = array<i64: 1>, scalar_prefetch = 0 : i64, scratch_operands = 0 : i64, tpu.core_type = #tpu.core_type<tc>, window_params = [{transform_indices = @transform_0, window_bounds = array<i64: 512, 8>}, {pipeline_mode = #tpu.pipeline_mode<synchronous>, transform_indices = @transform_1, window_bounds = array<i64: 1, 8>}, {pipeline_mode = #tpu.pipeline_mode<synchronous>, transform_indices = @transform_2, window_bounds = array<i64: 1, 8>}, {pipeline_mode = #tpu.pipeline_mode<synchronous>, transform_indices = @transform_3, window_bounds = array<i64: 8, 16>}, {pipeline_mode = #tpu.pipeline_mode<synchronous>, transform_indices = @transform_4, window_bounds = array<i64: 1, 16>}, {transform_indices = @transform_5, window_bounds = array<i64: 512, 16>}, {pipeline_mode = #tpu.pipeline_mode<synchronous>, transform_indices = @transform_6, window_bounds = array<i64: 1, 16>}, {pipeline_mode = #tpu.pipeline_mode<synchronous>, transform_indices = @transform_7, window_bounds = array<i64: 1, 16>}]} {
    %c0 = arith.constant 0 : index
    %c0_0 = arith.constant 0 : index
    %0 = vector.load %arg1[%c0, %c0_0] : memref<512x8xf32, #tpu.memory_space<vmem>>, vector<512x8xf32>
    %c0_1 = arith.constant 0 : index
    %c0_2 = arith.constant 0 : index
    %1 = vector.load %arg2[%c0_1, %c0_2] : memref<1x8xf32, #tpu.memory_space<vmem>>, vector<1x8xf32>
    %2 = vector.broadcast %1 : vector<1x8xf32> to vector<512x8xf32>
    %3 = arith.mulf %0, %2 : vector<512x8xf32>
    %c0_3 = arith.constant 0 : index
    %c0_4 = arith.constant 0 : index
    %4 = vector.load %arg3[%c0_3, %c0_4] : memref<1x8xf32, #tpu.memory_space<vmem>>, vector<1x8xf32>
    %5 = vector.broadcast %4 : vector<1x8xf32> to vector<512x8xf32>
    %6 = arith.addf %3, %5 : vector<512x8xf32>
    %cst = arith.constant 0.000000e+00 : f32
    %7 = vector.broadcast %cst : f32 to vector<512x8xf32>
    %8 = arith.cmpf ogt, %6, %7 : vector<512x8xf32>
    %cst_5 = arith.constant 0.00999999977 : f32
    %9 = vector.broadcast %cst_5 : f32 to vector<512x8xf32>
    %10 = arith.mulf %9, %6 : vector<512x8xf32>
    %11 = arith.select %8, %6, %10 : vector<512x8xi1>, vector<512x8xf32>
    %c0_6 = arith.constant 0 : index
    %c0_7 = arith.constant 0 : index
    %12 = vector.load %arg4[%c0_6, %c0_7] : memref<8x16xf32, #tpu.memory_space<vmem>>, vector<8x16xf32>
    %c0_8 = arith.constant 0 : index
    %c0_9 = arith.constant 0 : index
    %13 = vector.load %arg5[%c0_8, %c0_9] : memref<1x16xf32, #tpu.memory_space<vmem>>, vector<1x16xf32>
    %14 = vector.extract_strided_slice %11 {offsets = [0, 0], sizes = [512, 1], strides = [1, 1]} : vector<512x8xf32> to vector<512x1xf32>
    %15 = vector.extract_strided_slice %12 {offsets = [0, 0], sizes = [1, 16], strides = [1, 1]} : vector<8x16xf32> to vector<1x16xf32>
    %16 = vector.broadcast %14 : vector<512x1xf32> to vector<512x16xf32>
    %17 = vector.broadcast %15 : vector<1x16xf32> to vector<512x16xf32>
    %18 = arith.mulf %16, %17 : vector<512x16xf32>
    %19 = vector.broadcast %13 : vector<1x16xf32> to vector<512x16xf32>
    %20 = arith.addf %19, %18 : vector<512x16xf32>
    %21 = vector.extract_strided_slice %11 {offsets = [0, 1], sizes = [512, 1], strides = [1, 1]} : vector<512x8xf32> to vector<512x1xf32>
    %22 = vector.extract_strided_slice %12 {offsets = [1, 0], sizes = [1, 16], strides = [1, 1]} : vector<8x16xf32> to vector<1x16xf32>
    %23 = vector.broadcast %21 : vector<512x1xf32> to vector<512x16xf32>
    %24 = vector.broadcast %22 : vector<1x16xf32> to vector<512x16xf32>
    %25 = arith.mulf %23, %24 : vector<512x16xf32>
    %26 = arith.addf %20, %25 : vector<512x16xf32>
    %27 = vector.extract_strided_slice %11 {offsets = [0, 2], sizes = [512, 1], strides = [1, 1]} : vector<512x8xf32> to vector<512x1xf32>
    %28 = vector.extract_strided_slice %12 {offsets = [2, 0], sizes = [1, 16], strides = [1, 1]} : vector<8x16xf32> to vector<1x16xf32>
    %29 = vector.broadcast %27 : vector<512x1xf32> to vector<512x16xf32>
    %30 = vector.broadcast %28 : vector<1x16xf32> to vector<512x16xf32>
    %31 = arith.mulf %29, %30 : vector<512x16xf32>
    %32 = arith.addf %26, %31 : vector<512x16xf32>
    %33 = vector.extract_strided_slice %11 {offsets = [0, 3], sizes = [512, 1], strides = [1, 1]} : vector<512x8xf32> to vector<512x1xf32>
    %34 = vector.extract_strided_slice %12 {offsets = [3, 0], sizes = [1, 16], strides = [1, 1]} : vector<8x16xf32> to vector<1x16xf32>
    %35 = vector.broadcast %33 : vector<512x1xf32> to vector<512x16xf32>
    %36 = vector.broadcast %34 : vector<1x16xf32> to vector<512x16xf32>
    %37 = arith.mulf %35, %36 : vector<512x16xf32>
    %38 = arith.addf %32, %37 : vector<512x16xf32>
    %39 = vector.extract_strided_slice %11 {offsets = [0, 4], sizes = [512, 1], strides = [1, 1]} : vector<512x8xf32> to vector<512x1xf32>
    %40 = vector.extract_strided_slice %12 {offsets = [4, 0], sizes = [1, 16], strides = [1, 1]} : vector<8x16xf32> to vector<1x16xf32>
    %41 = vector.broadcast %39 : vector<512x1xf32> to vector<512x16xf32>
    %42 = vector.broadcast %40 : vector<1x16xf32> to vector<512x16xf32>
    %43 = arith.mulf %41, %42 : vector<512x16xf32>
    %44 = arith.addf %38, %43 : vector<512x16xf32>
    %45 = vector.extract_strided_slice %11 {offsets = [0, 5], sizes = [512, 1], strides = [1, 1]} : vector<512x8xf32> to vector<512x1xf32>
    %46 = vector.extract_strided_slice %12 {offsets = [5, 0], sizes = [1, 16], strides = [1, 1]} : vector<8x16xf32> to vector<1x16xf32>
    %47 = vector.broadcast %45 : vector<512x1xf32> to vector<512x16xf32>
    %48 = vector.broadcast %46 : vector<1x16xf32> to vector<512x16xf32>
    %49 = arith.mulf %47, %48 : vector<512x16xf32>
    %50 = arith.addf %44, %49 : vector<512x16xf32>
    %51 = vector.extract_strided_slice %11 {offsets = [0, 6], sizes = [512, 1], strides = [1, 1]} : vector<512x8xf32> to vector<512x1xf32>
    %52 = vector.extract_strided_slice %12 {offsets = [6, 0], sizes = [1, 16], strides = [1, 1]} : vector<8x16xf32> to vector<1x16xf32>
    %53 = vector.broadcast %51 : vector<512x1xf32> to vector<512x16xf32>
    %54 = vector.broadcast %52 : vector<1x16xf32> to vector<512x16xf32>
    %55 = arith.mulf %53, %54 : vector<512x16xf32>
    %56 = arith.addf %50, %55 : vector<512x16xf32>
    %57 = vector.extract_strided_slice %11 {offsets = [0, 7], sizes = [512, 1], strides = [1, 1]} : vector<512x8xf32> to vector<512x1xf32>
    %58 = vector.extract_strided_slice %12 {offsets = [7, 0], sizes = [1, 16], strides = [1, 1]} : vector<8x16xf32> to vector<1x16xf32>
    %59 = vector.broadcast %57 : vector<512x1xf32> to vector<512x16xf32>
    %60 = vector.broadcast %58 : vector<1x16xf32> to vector<512x16xf32>
    %61 = arith.mulf %59, %60 : vector<512x16xf32>
    %62 = arith.addf %56, %61 : vector<512x16xf32>
    %c0_10 = arith.constant 0 : index
    %c0_11 = arith.constant 0 : index
    %63 = vector.load %arg6[%c0_10, %c0_11] : memref<512x16xf32, #tpu.memory_space<vmem>>, vector<512x16xf32>
    tpu.vector_store %arg6[%c0_10, %c0_11], %62 {strides = array<i32>} : memref<512x16xf32, #tpu.memory_space<vmem>>, vector<512x16xf32>,
    %c0_i32 = arith.constant 0 : i32
    %64 = arith.cmpi eq, %arg0, %c0_i32 : i32
    %65 = arith.extui %64 : i1 to i32
    %c0_i32_12 = arith.constant 0 : i32
    %66 = arith.cmpi ne, %65, %c0_i32_12 : i32
    scf.if %66 {
      %cst_23 = arith.constant 0.000000e+00 : f32
      %78 = vector.broadcast %cst_23 : f32 to vector<1x16xf32>
      %c0_24 = arith.constant 0 : index
      %c0_25 = arith.constant 0 : index
      %79 = vector.load %arg7[%c0_24, %c0_25] : memref<1x16xf32, #tpu.memory_space<vmem>>, vector<1x16xf32>
      tpu.vector_store %arg7[%c0_24, %c0_25], %78 {strides = array<i32>} : memref<1x16xf32, #tpu.memory_space<vmem>>, vector<1x16xf32>,
      %cst_26 = arith.constant 0.000000e+00 : f32
      %80 = vector.broadcast %cst_26 : f32 to vector<1x16xf32>
      %c0_27 = arith.constant 0 : index
      %c0_28 = arith.constant 0 : index
      %81 = vector.load %arg8[%c0_27, %c0_28] : memref<1x16xf32, #tpu.memory_space<vmem>>, vector<1x16xf32>
      tpu.vector_store %arg8[%c0_27, %c0_28], %80 {strides = array<i32>} : memref<1x16xf32, #tpu.memory_space<vmem>>, vector<1x16xf32>,
    } else {
    }
    %c0_13 = arith.constant 0 : index
    %c0_14 = arith.constant 0 : index
    %67 = vector.load %arg7[%c0_13, %c0_14] : memref<1x16xf32, #tpu.memory_space<vmem>>, vector<1x16xf32>
    %cst_15 = arith.constant dense<0.000000e+00> : vector<16xf32>
    %68 = vector.multi_reduction <add>, %62, %cst_15 [0] : vector<512x16xf32> to vector<16xf32>
    %69 = vector.shape_cast %68 : vector<16xf32> to vector<1x16xf32>
    %70 = arith.addf %67, %69 : vector<1x16xf32>
    %c0_16 = arith.constant 0 : index
    %c0_17 = arith.constant 0 : index
    %71 = vector.load %arg7[%c0_16, %c0_17] : memref<1x16xf32, #tpu.memory_space<vmem>>, vector<1x16xf32>
    tpu.vector_store %arg7[%c0_16, %c0_17], %70 {strides = array<i32>} : memref<1x16xf32, #tpu.memory_space<vmem>>, vector<1x16xf32>,
    %c0_18 = arith.constant 0 : index
    %c0_19 = arith.constant 0 : index
    %72 = vector.load %arg8[%c0_18, %c0_19] : memref<1x16xf32, #tpu.memory_space<vmem>>, vector<1x16xf32>
    %73 = arith.mulf %62, %62 : vector<512x16xf32>
    %cst_20 = arith.constant dense<0.000000e+00> : vector<16xf32>
    %74 = vector.multi_reduction <add>, %73, %cst_20 [0] : vector<512x16xf32> to vector<16xf32>
    %75 = vector.shape_cast %74 : vector<16xf32> to vector<1x16xf32>
    %76 = arith.addf %72, %75 : vector<1x16xf32>
    %c0_21 = arith.constant 0 : index
    %c0_22 = arith.constant 0 : index
    %77 = vector.load %arg8[%c0_21, %c0_22] : memref<1x16xf32, #tpu.memory_space<vmem>>, vector<1x16xf32>
    tpu.vector_store %arg8[%c0_21, %c0_22], %76 {strides = array<i32>} : memref<1x16xf32, #tpu.memory_space<vmem>>, vector<1x16xf32>,
    return
  }
  func.func @transform_0(%arg0: i32) -> (i32, i32) {
    %c0_i32 = arith.constant 0 : i32
    %c0_i32_0 = arith.constant 0 : i32
    return %arg0, %c0_i32 : i32, i32
  }
  func.func @transform_1(%arg0: i32) -> (i32, i32) {
    %c0_i32 = arith.constant 0 : i32
    %c0_i32_0 = arith.constant 0 : i32
    %c0_i32_1 = arith.constant 0 : i32
    return %c0_i32, %c0_i32_0 : i32, i32
  }
  func.func @transform_2(%arg0: i32) -> (i32, i32) {
    %c0_i32 = arith.constant 0 : i32
    %c0_i32_0 = arith.constant 0 : i32
    %c0_i32_1 = arith.constant 0 : i32
    return %c0_i32, %c0_i32_0 : i32, i32
  }
  func.func @transform_3(%arg0: i32) -> (i32, i32) {
    %c0_i32 = arith.constant 0 : i32
    %c0_i32_0 = arith.constant 0 : i32
    %c0_i32_1 = arith.constant 0 : i32
    return %c0_i32, %c0_i32_0 : i32, i32
  }
  func.func @transform_4(%arg0: i32) -> (i32, i32) {
    %c0_i32 = arith.constant 0 : i32
    %c0_i32_0 = arith.constant 0 : i32
    %c0_i32_1 = arith.constant 0 : i32
    return %c0_i32, %c0_i32_0 : i32, i32
  }
  func.func @transform_5(%arg0: i32) -> (i32, i32) {
    %c0_i32 = arith.constant 0 : i32
    %c0_i32_0 = arith.constant 0 : i32
    return %arg0, %c0_i32 : i32, i32
  }
  func.func @transform_6(%arg0: i32) -> (i32, i32) {
    %c0_i32 = arith.constant 0 : i32
    %c0_i32_0 = arith.constant 0 : i32
    %c0_i32_1 = arith.constant 0 : i32
    return %c0_i32, %c0_i32_0 : i32, i32
  }
  func.func @transform_7(%arg0: i32) -> (i32, i32) {
    %c0_i32 = arith.constant 0 : i32
    %c0_i32_0 = arith.constant 0 : i32
    %c0_i32_1 = arith.constant 0 : i32
    return %c0_i32, %c0_i32_0 : i32, i32
  }
}

module attributes {stable_mosaic.version = 11 : i64} {
  func.func @_block_kernel(%arg0: i32, %arg1: memref<1024x4xf32, #tpu.memory_space<vmem>>, %arg2: memref<1x4xf32, #tpu.memory_space<vmem>>, %arg3: memref<1x4xf32, #tpu.memory_space<vmem>>, %arg4: memref<4x4xf32, #tpu.memory_space<vmem>>, %arg5: memref<1x4xf32, #tpu.memory_space<vmem>>, %arg6: memref<1024x4xf32, #tpu.memory_space<vmem>>) attributes {dimension_semantics = [#tpu.dimension_semantics<parallel>], iteration_bounds = array<i64: 2>, scalar_prefetch = 0 : i64, scratch_operands = 0 : i64, tpu.core_type = #tpu.core_type<tc>, window_params = [{transform_indices = @transform_0, window_bounds = array<i64: 1024, 4>}, {pipeline_mode = #tpu.pipeline_mode<synchronous>, transform_indices = @transform_1, window_bounds = array<i64: 1, 4>}, {pipeline_mode = #tpu.pipeline_mode<synchronous>, transform_indices = @transform_2, window_bounds = array<i64: 1, 4>}, {pipeline_mode = #tpu.pipeline_mode<synchronous>, transform_indices = @transform_3, window_bounds = array<i64: 4, 4>}, {pipeline_mode = #tpu.pipeline_mode<synchronous>, transform_indices = @transform_4, window_bounds = array<i64: 1, 4>}, {transform_indices = @transform_5, window_bounds = array<i64: 1024, 4>}]} {
    %c0 = arith.constant 0 : index
    %c0_0 = arith.constant 0 : index
    %0 = vector.load %arg1[%c0, %c0_0] : memref<1024x4xf32, #tpu.memory_space<vmem>>, vector<1024x4xf32>
    %c0_1 = arith.constant 0 : index
    %c0_2 = arith.constant 0 : index
    %1 = vector.load %arg2[%c0_1, %c0_2] : memref<1x4xf32, #tpu.memory_space<vmem>>, vector<1x4xf32>
    %2 = vector.broadcast %1 : vector<1x4xf32> to vector<1024x4xf32>
    %3 = arith.mulf %0, %2 : vector<1024x4xf32>
    %c0_3 = arith.constant 0 : index
    %c0_4 = arith.constant 0 : index
    %4 = vector.load %arg3[%c0_3, %c0_4] : memref<1x4xf32, #tpu.memory_space<vmem>>, vector<1x4xf32>
    %5 = vector.broadcast %4 : vector<1x4xf32> to vector<1024x4xf32>
    %6 = arith.addf %3, %5 : vector<1024x4xf32>
    %cst = arith.constant 0.000000e+00 : f32
    %7 = vector.broadcast %cst : f32 to vector<1024x4xf32>
    %8 = arith.cmpf ogt, %6, %7 : vector<1024x4xf32>
    %cst_5 = arith.constant 0.00999999977 : f32
    %9 = vector.broadcast %cst_5 : f32 to vector<1024x4xf32>
    %10 = arith.mulf %9, %6 : vector<1024x4xf32>
    %11 = arith.select %8, %6, %10 : vector<1024x4xi1>, vector<1024x4xf32>
    %c0_6 = arith.constant 0 : index
    %c0_7 = arith.constant 0 : index
    %12 = vector.load %arg4[%c0_6, %c0_7] : memref<4x4xf32, #tpu.memory_space<vmem>>, vector<4x4xf32>
    %c0_8 = arith.constant 0 : index
    %c0_9 = arith.constant 0 : index
    %13 = vector.load %arg5[%c0_8, %c0_9] : memref<1x4xf32, #tpu.memory_space<vmem>>, vector<1x4xf32>
    %14 = vector.extract_strided_slice %11 {offsets = [0, 0], sizes = [1024, 1], strides = [1, 1]} : vector<1024x4xf32> to vector<1024x1xf32>
    %15 = vector.extract_strided_slice %12 {offsets = [0, 0], sizes = [1, 4], strides = [1, 1]} : vector<4x4xf32> to vector<1x4xf32>
    %16 = vector.broadcast %14 : vector<1024x1xf32> to vector<1024x4xf32>
    %17 = vector.broadcast %15 : vector<1x4xf32> to vector<1024x4xf32>
    %18 = arith.mulf %16, %17 : vector<1024x4xf32>
    %19 = vector.broadcast %13 : vector<1x4xf32> to vector<1024x4xf32>
    %20 = arith.addf %19, %18 : vector<1024x4xf32>
    %21 = vector.extract_strided_slice %11 {offsets = [0, 1], sizes = [1024, 1], strides = [1, 1]} : vector<1024x4xf32> to vector<1024x1xf32>
    %22 = vector.extract_strided_slice %12 {offsets = [1, 0], sizes = [1, 4], strides = [1, 1]} : vector<4x4xf32> to vector<1x4xf32>
    %23 = vector.broadcast %21 : vector<1024x1xf32> to vector<1024x4xf32>
    %24 = vector.broadcast %22 : vector<1x4xf32> to vector<1024x4xf32>
    %25 = arith.mulf %23, %24 : vector<1024x4xf32>
    %26 = arith.addf %20, %25 : vector<1024x4xf32>
    %27 = vector.extract_strided_slice %11 {offsets = [0, 2], sizes = [1024, 1], strides = [1, 1]} : vector<1024x4xf32> to vector<1024x1xf32>
    %28 = vector.extract_strided_slice %12 {offsets = [2, 0], sizes = [1, 4], strides = [1, 1]} : vector<4x4xf32> to vector<1x4xf32>
    %29 = vector.broadcast %27 : vector<1024x1xf32> to vector<1024x4xf32>
    %30 = vector.broadcast %28 : vector<1x4xf32> to vector<1024x4xf32>
    %31 = arith.mulf %29, %30 : vector<1024x4xf32>
    %32 = arith.addf %26, %31 : vector<1024x4xf32>
    %33 = vector.extract_strided_slice %11 {offsets = [0, 3], sizes = [1024, 1], strides = [1, 1]} : vector<1024x4xf32> to vector<1024x1xf32>
    %34 = vector.extract_strided_slice %12 {offsets = [3, 0], sizes = [1, 4], strides = [1, 1]} : vector<4x4xf32> to vector<1x4xf32>
    %35 = vector.broadcast %33 : vector<1024x1xf32> to vector<1024x4xf32>
    %36 = vector.broadcast %34 : vector<1x4xf32> to vector<1024x4xf32>
    %37 = arith.mulf %35, %36 : vector<1024x4xf32>
    %38 = arith.addf %32, %37 : vector<1024x4xf32>
    %c0_10 = arith.constant 0 : index
    %c0_11 = arith.constant 0 : index
    %39 = vector.load %arg6[%c0_10, %c0_11] : memref<1024x4xf32, #tpu.memory_space<vmem>>, vector<1024x4xf32>
    tpu.vector_store %arg6[%c0_10, %c0_11], %38 {strides = array<i32>} : memref<1024x4xf32, #tpu.memory_space<vmem>>, vector<1024x4xf32>,
    return
  }
  func.func @transform_0(%arg0: i32) -> (i32, i32) {
    %c0_i32 = arith.constant 0 : i32
    %c0_i32_0 = arith.constant 0 : i32
    return %arg0, %c0_i32 : i32, i32
  }
  func.func @transform_1(%arg0: i32) -> (i32, i32) {
    %c0_i32 = arith.constant 0 : i32
    %c0_i32_0 = arith.constant 0 : i32
    %c0_i32_1 = arith.constant 0 : i32
    return %c0_i32, %c0_i32_0 : i32, i32
  }
  func.func @transform_2(%arg0: i32) -> (i32, i32) {
    %c0_i32 = arith.constant 0 : i32
    %c0_i32_0 = arith.constant 0 : i32
    %c0_i32_1 = arith.constant 0 : i32
    return %c0_i32, %c0_i32_0 : i32, i32
  }
  func.func @transform_3(%arg0: i32) -> (i32, i32) {
    %c0_i32 = arith.constant 0 : i32
    %c0_i32_0 = arith.constant 0 : i32
    %c0_i32_1 = arith.constant 0 : i32
    return %c0_i32, %c0_i32_0 : i32, i32
  }
  func.func @transform_4(%arg0: i32) -> (i32, i32) {
    %c0_i32 = arith.constant 0 : i32
    %c0_i32_0 = arith.constant 0 : i32
    %c0_i32_1 = arith.constant 0 : i32
    return %c0_i32, %c0_i32_0 : i32, i32
  }
  func.func @transform_5(%arg0: i32) -> (i32, i32) {
    %c0_i32 = arith.constant 0 : i32
    %c0_i32_0 = arith.constant 0 : i32
    return %arg0, %c0_i32 : i32, i32
  }
}

</mosaic_0001>

<llo_original>
// kernel: tile.27
$region0: #{tile.27}
  %s0 = inlined_call_operand.vmem [shape: f32[4,8], index: 0, kind: input, shape index: {}]
  %s1 = inlined_call_operand.vmem [shape: f32[1,32], index: 1, kind: output, shape index: {}]
  $region1: #{tile.27} parent=0
    #allocation0 [shape = 'u8[4096]{0}', space=vmem, size = 0x1000, scoped, tag = 'scoped mem for output reshape']
    #allocation1 [shape = 'u8[4096]{0}', space=vmem, size = 0x1000, scoped, tag = 'scoped mem for input reshape']
    %s3 = sshllo.u32 0, 4
    %v4 = vld [vmem:[%s0] sm:%s3]
    %5 = vst [vmem:[#allocation1] sm:%s3] %v4
    %v6 = vld [vmem:[#allocation1] sm:$0x1]
    %vm7 = vcmask 64512
    %8 = vst.msk [vmem:[#allocation0] sm:$0x1] %vm7, %v6
    %s9 = scalar_lea.vmem [#allocation1], 3
    %v10 = vld [vmem:[%s9] sm:$0x1]
    %11 = vrot.lane.b32.xlu0 %v10, 24
    %v12 = vpop.permute.xlu0 %11
    %vm13 = vcmask 261312
    %14 = vst.msk [vmem:[#allocation0] sm:$0x1] %vm13, %v12
    %s15 = scalar_lea.vmem [#allocation1], 2
    %v16 = vld [vmem:[%s15] sm:$0x1]
    %17 = vrot.lane.b32.xlu0 %v16, 16
    %v18 = vpop.permute.xlu0 %17
    %vm19 = vcmask 195712
    %20 = vst.msk [vmem:[#allocation0] sm:$0x1] %vm19, %v18
    %s21 = scalar_lea.vmem [#allocation1], 1
    %v22 = vld [vmem:[%s21] sm:$0x1]
    %23 = vrot.lane.b32.xlu0 %v22, 8
    %v24 = vpop.permute.xlu0 %23
    %vm25 = vcmask 130112
    %26 = vst.msk [vmem:[#allocation0] sm:$0x1] %vm25, %v24
    %s28 = sshllo.u32 0, 1
    %v30 = vld [vmem:[#allocation0] sm:%s28]
    %s31 = sshllo.u32 0, 1
    %32 = vst [vmem:[%s1] sm:%s31] %v30

// kernel: tile.23
$region0: #{tile.23}
  %s0 = inlined_call_operand.vmem [shape: f32[4,16], index: 0, kind: input, shape index: {}]
  %s1 = inlined_call_operand.vmem [shape: f32[1,64], index: 1, kind: output, shape index: {}]
  $region1: #{tile.23} parent=0
    #allocation0 [shape = 'u8[4096]{0}', space=vmem, size = 0x1000, scoped, tag = 'scoped mem for output reshape']
    #allocation1 [shape = 'u8[4096]{0}', space=vmem, size = 0x1000, scoped, tag = 'scoped mem for input reshape']
    %s3 = sshllo.u32 0, 4
    %v4 = vld [vmem:[%s0] sm:%s3]
    %5 = vst [vmem:[#allocation1] sm:%s3] %v4
    %v6 = vld [vmem:[#allocation1] sm:$0x1]
    %vm7 = vcmask 130048
    %8 = vst.msk [vmem:[#allocation0] sm:$0x1] %vm7, %v6
    %s9 = scalar_lea.vmem [#allocation1], 3
    %v10 = vld [vmem:[%s9] sm:$0x1]
    %11 = vrot.lane.b32.xlu0 %v10, 48
    %v12 = vpop.permute.xlu0 %11
    %vm13 = vcmask 523648
    %14 = vst.msk [vmem:[#allocation0] sm:$0x1] %vm13, %v12
    %s15 = scalar_lea.vmem [#allocation1], 2
    %v16 = vld [vmem:[%s15] sm:$0x1]
    %17 = vrot.lane.b32.xlu0 %v16, 32
    %v18 = vpop.permute.xlu0 %17
    %vm19 = vcmask 392448
    %20 = vst.msk [vmem:[#allocation0] sm:$0x1] %vm19, %v18
    %s21 = scalar_lea.vmem [#allocation1], 1
    %v22 = vld [vmem:[%s21] sm:$0x1]
    %23 = vrot.lane.b32.xlu0 %v22, 16
    %v24 = vpop.permute.xlu0 %23
    %vm25 = vcmask 261248
    %26 = vst.msk [vmem:[#allocation0] sm:$0x1] %vm25, %v24
    %s28 = sshllo.u32 0, 1
    %v30 = vld [vmem:[#allocation0] sm:%s28]
    %s31 = sshllo.u32 0, 1
    %32 = vst [vmem:[%s1] sm:%s31] %v30

// kernel: tile.26
$region0: #{tile.26}
  #allocation2 [shape = 's32[1]{0}', space=sflag, size = 0x4, scoped, tag = 'scoped memory for tile.26']
  %s0 = inlined_call_operand.hbm [shape: f32[8], index: 0, kind: input, shape index: {}]
  %s1 = inlined_call_operand.vmem [shape: f32[4,8], index: 1, kind: output, shape index: {}]
  $region1: #{tile.26} parent=0
    #allocation0 [shape = 'u8[512]{0}', space=vmem, size = 0x400, scoped, tag = 'operand span for operand 0']
    #allocation1 [shape = 's32[1]{0}', space=sflag, size = 0x4, scoped, tag = 'scoped memory for tile.26']
    %2 = vsyncpa [#allocation1], 0
    // Predicated region
    $region2: #{tile.26} parent=1 // pred_check
      _
    $region3: #{tile.26} parent=1 // pred_check_branch
      %4 = sbr.rel (0) target = $region5
    $region4: #{tile.26} parent=1 // pred_region
      %s6 = ssub.s32 16, 16
      %7 = vsyncadd [#allocation1], %s6
      %s9 = sshll.u32 [#allocation0], 4
      %s10 = int_to_ptr.vmem [resolvable:$true] %s9
      %12 = dma.hbm_to_vmem [thread:$0]  %s0, 16, %s10, [#allocation1]
    $region5: #{tile.26} parent=1 // pred_fallthru
      _
    // Predicated region
    $region6: #{tile.26} parent=1 // pred_check
      _
    $region7: #{tile.26} parent=1 // pred_check_branch
      %14 = sbr.rel (0) target = $region9
    $region8: #{tile.26} parent=1 // pred_region
      %15 = dma.done [#allocation1], 16
    $region9: #{tile.26} parent=1 // pred_fallthru
      _
    %v16 = vld [vmem:[#allocation0] ss:$0 sm:$0xff]
    %17 = vst [vmem:[%s1] sm:$0xf] %v16
    %18 = vsyncpa [#allocation1], 1

// kernel: tile.22
$region0: #{tile.22}
  #allocation2 [shape = 's32[1]{0}', space=sflag, size = 0x4, scoped, tag = 'scoped memory for tile.22']
  %s0 = inlined_call_operand.hbm [shape: f32[16], index: 0, kind: input, shape index: {}]
  %s1 = inlined_call_operand.vmem [shape: f32[4,16], index: 1, kind: output, shape index: {}]
  $region1: #{tile.22} parent=0
    #allocation0 [shape = 'u8[512]{0}', space=vmem, size = 0x400, scoped, tag = 'operand span for operand 0']
    #allocation1 [shape = 's32[1]{0}', space=sflag, size = 0x4, scoped, tag = 'scoped memory for tile.22']
    %2 = vsyncpa [#allocation1], 0
    // Predicated region
    $region2: #{tile.22} parent=1 // pred_check
      _
    $region3: #{tile.22} parent=1 // pred_check_branch
      %4 = sbr.rel (0) target = $region5
    $region4: #{tile.22} parent=1 // pred_region
      %s6 = ssub.s32 16, 16
      %7 = vsyncadd [#allocation1], %s6
      %s9 = sshll.u32 [#allocation0], 4
      %s10 = int_to_ptr.vmem [resolvable:$true] %s9
      %12 = dma.hbm_to_vmem [thread:$0]  %s0, 16, %s10, [#allocation1]
    $region5: #{tile.22} parent=1 // pred_fallthru
      _
    // Predicated region
    $region6: #{tile.22} parent=1 // pred_check
      _
    $region7: #{tile.22} parent=1 // pred_check_branch
      %14 = sbr.rel (0) target = $region9
    $region8: #{tile.22} parent=1 // pred_region
      %15 = dma.done [#allocation1], 16
    $region9: #{tile.22} parent=1 // pred_fallthru
      _
    %v16 = vld [vmem:[#allocation0] ss:$0 sm:$0xff]
    %17 = vst [vmem:[%s1] sm:$0xf] %v16
    %18 = vsyncpa [#allocation1], 1

// kernel: tile.18
$region0: #{tile.18}
  #allocation2 [shape = 's32[1]{0}', space=sflag, size = 0x4, scoped, tag = 'scoped memory for tile.18']
  %s0 = inlined_call_operand.hbm [shape: f32[32], index: 0, kind: input, shape index: {}]
  %s1 = inlined_call_operand.vmem [shape: f32[16,32], index: 1, kind: output, shape index: {}]
  $region1: #{tile.18} parent=0
    #allocation0 [shape = 'u8[512]{0}', space=vmem, size = 0x400, scoped, tag = 'operand span for operand 0']
    #allocation1 [shape = 's32[1]{0}', space=sflag, size = 0x4, scoped, tag = 'scoped memory for tile.18']
    %2 = vsyncpa [#allocation1], 0
    // Predicated region
    $region2: #{tile.18} parent=1 // pred_check
      _
    $region3: #{tile.18} parent=1 // pred_check_branch
      %4 = sbr.rel (0) target = $region5
    $region4: #{tile.18} parent=1 // pred_region
      %s6 = ssub.s32 16, 16
      %7 = vsyncadd [#allocation1], %s6
      %s9 = sshll.u32 [#allocation0], 4
      %s10 = int_to_ptr.vmem [resolvable:$true] %s9
      %12 = dma.hbm_to_vmem [thread:$0]  %s0, 16, %s10, [#allocation1]
    $region5: #{tile.18} parent=1 // pred_fallthru
      _
    // Predicated region
    $region6: #{tile.18} parent=1 // pred_check
      _
    $region7: #{tile.18} parent=1 // pred_check_branch
      %14 = sbr.rel (0) target = $region9
    $region8: #{tile.18} parent=1 // pred_region
      %15 = dma.done [#allocation1], 16
    $region9: #{tile.18} parent=1 // pred_fallthru
      _
    %v16 = vld [vmem:[#allocation0] ss:$0 sm:$0xff]
    %17 = vst [vmem:[%s1] sm:$0xff] %v16
    %s18 = scalar_lea.vmem %s1, 8
    %19 = vst [vmem:[%s18] sm:$0xff] %v16
    %20 = vsyncpa [#allocation1], 1

// kernel: tile.30
$region0: #{tile.30}
  #allocation2 [shape = 's32[1]{0}', space=sflag, size = 0x4, scoped, tag = 'scoped memory for tile.30']
  %s0 = inlined_call_operand.hbm [shape: f32[4], index: 0, kind: input, shape index: {}]
  %s1 = inlined_call_operand.vmem [shape: f32[4,4], index: 1, kind: output, shape index: {}]
  $region1: #{tile.30} parent=0
    #allocation0 [shape = 'u8[512]{0}', space=vmem, size = 0x400, scoped, tag = 'operand span for operand 0']
    #allocation1 [shape = 's32[1]{0}', space=sflag, size = 0x4, scoped, tag = 'scoped memory for tile.30']
    %2 = vsyncpa [#allocation1], 0
    // Predicated region
    $region2: #{tile.30} parent=1 // pred_check
      _
    $region3: #{tile.30} parent=1 // pred_check_branch
      %4 = sbr.rel (0) target = $region5
    $region4: #{tile.30} parent=1 // pred_region
      %s6 = ssub.s32 16, 16
      %7 = vsyncadd [#allocation1], %s6
      %s9 = sshll.u32 [#allocation0], 4
      %s10 = int_to_ptr.vmem [resolvable:$true] %s9
      %12 = dma.hbm_to_vmem [thread:$0]  %s0, 16, %s10, [#allocation1]
    $region5: #{tile.30} parent=1 // pred_fallthru
      _
    // Predicated region
    $region6: #{tile.30} parent=1 // pred_check
      _
    $region7: #{tile.30} parent=1 // pred_check_branch
      %14 = sbr.rel (0) target = $region9
    $region8: #{tile.30} parent=1 // pred_region
      %15 = dma.done [#allocation1], 16
    $region9: #{tile.30} parent=1 // pred_fallthru
      _
    %v16 = vld [vmem:[#allocation0] ss:$0 sm:$0xff]
    %17 = vst [vmem:[%s1] sm:$0xf] %v16
    %18 = vsyncpa [#allocation1], 1

// kernel: tile.31
$region0: #{tile.31}
  %s0 = inlined_call_operand.vmem [shape: f32[4,4], index: 0, kind: input, shape index: {}]
  %s1 = inlined_call_operand.vmem [shape: f32[1,16], index: 1, kind: output, shape index: {}]
  $region1: #{tile.31} parent=0
    #allocation0 [shape = 'u8[4096]{0}', space=vmem, size = 0x1000, scoped, tag = 'scoped mem for output reshape']
    #allocation1 [shape = 'u8[4096]{0}', space=vmem, size = 0x1000, scoped, tag = 'scoped mem for input reshape']
    %s3 = sshllo.u32 0, 4
    %v4 = vld [vmem:[%s0] sm:%s3]
    %5 = vst [vmem:[#allocation1] sm:%s3] %v4
    %v6 = vld [vmem:[#allocation1] sm:$0x1]
    %vm7 = vcmask 31744
    %8 = vst.msk [vmem:[#allocation0] sm:$0x1] %vm7, %v6
    %s9 = scalar_lea.vmem [#allocation1], 3
    %v10 = vld [vmem:[%s9] sm:$0x1]
    %11 = vrot.lane.b32.xlu0 %v10, 12
    %v12 = vpop.permute.xlu0 %11
    %vm13 = vcmask 130144
    %14 = vst.msk [vmem:[#allocation0] sm:$0x1] %vm13, %v12
    %s15 = scalar_lea.vmem [#allocation1], 2
    %v16 = vld [vmem:[%s15] sm:$0x1]
    %17 = vrot.lane.b32.xlu0 %v16, 8
    %v18 = vpop.permute.xlu0 %17
    %vm19 = vcmask 97344
    %20 = vst.msk [vmem:[#allocation0] sm:$0x1] %vm19, %v18
    %s21 = scalar_lea.vmem [#allocation1], 1
    %v22 = vld [vmem:[%s21] sm:$0x1]
    %23 = vrot.lane.b32.xlu0 %v22, 4
    %v24 = vpop.permute.xlu0 %23
    %vm25 = vcmask 64544
    %26 = vst.msk [vmem:[#allocation0] sm:$0x1] %vm25, %v24
    %s28 = sshllo.u32 0, 1
    %v30 = vld [vmem:[#allocation0] sm:%s28]
    %s31 = sshllo.u32 0, 1
    %32 = vst [vmem:[%s1] sm:%s31] %v30

// kernel: tile.19
$region0: #{tile.19}
  %s0 = inlined_call_operand.vmem [shape: f32[16,32], index: 0, kind: input, shape index: {}]
  %s1 = inlined_call_operand.vmem [shape: f32[1,512], index: 1, kind: output, shape index: {}]
  $region1: #{tile.19} parent=0
    #allocation0 [shape = 'u8[16384]{0}', space=vmem, size = 0x4000, scoped, tag = 'scoped mem for output reshape']
    %v2 = vld [vmem:[%s0] ss:$4 sm:$0xf]
    %vm3 = vcmask 261120
    %4 = vst.msk [vmem:[#allocation0] ss:$8 sm:$0xf] %vm3, %v2
    %s5 = scalar_lea.vmem %s0, 3
    %v6 = vld [vmem:[%s5] ss:$4 sm:$0xf]
    %7 = vrot.lane.b32.xlu0 %v6, 96
    %v8 = vpop.permute.xlu0 %7
    %vm9 = vcmask 1048320
    %10 = vst.msk [vmem:[#allocation0] ss:$8 sm:$0xf] %vm9, %v8
    %s11 = scalar_lea.vmem %s0, 2
    %v12 = vld [vmem:[%s11] ss:$4 sm:$0xf]
    %13 = vrot.lane.b32.xlu0 %v12, 64
    %v14 = vpop.permute.xlu0 %13
    %vm15 = vcmask 785920
    %16 = vst.msk [vmem:[#allocation0] ss:$8 sm:$0xf] %vm15, %v14
    %s17 = scalar_lea.vmem %s0, 1
    %v18 = vld [vmem:[%s17] ss:$4 sm:$0xf]
    %19 = vrot.lane.b32.xlu0 %v18, 32
    %v20 = vpop.permute.xlu0 %19
    %vm21 = vcmask 523520
    %22 = vst.msk [vmem:[#allocation0] ss:$8 sm:$0xf] %vm21, %v20
    %s24 = sshllo.u32 0, 1
    %v26 = vld [vmem:[#allocation0] sm:%s24]
    %s27 = sshllo.u32 0, 1
    %28 = vst [vmem:[%s1] sm:%s27] %v26
    %s29 = scalar_lea.vmem [#allocation0], 8
    %v30 = vld [vmem:[%s29] sm:%s24]
    %s31 = sshllo.u32 0, 1
    %s32 = scalar_lea.vmem %s1, 1
    %33 = vst [vmem:[%s32] sm:%s31] %v30
    %s34 = scalar_lea.vmem [#allocation0], 16
    %v35 = vld [vmem:[%s34] sm:%s24]
    %s36 = sshllo.u32 0, 1
    %s37 = smul.addr 1, 2
    %s38 = scalar_lea.vmem %s1, %s37
    %39 = vst [vmem:[%s38] sm:%s36] %v35
    %s40 = scalar_lea.vmem [#allocation0], 24
    %v41 = vld [vmem:[%s40] sm:%s24]
    %s42 = sshllo.u32 0, 1
    %s43 = smul.addr 1, 3
    %s44 = scalar_lea.vmem %s1, %s43
    %45 = vst [vmem:[%s44] sm:%s42] %v41

// kernel: _lambda_.6
$region0: #{_lambda_.6}
  #allocation0 [shape = 'u32[]', space=smem, size = 0x4, offset = 0x4, fixed_abs, tag = 'smem constant byte address 0x4 - core index']
  #allocation1 [shape = 'u32[144,128]{1,0:T(1,128)}', space=vmem, size = 0x12000, scoped, tag = 'internal scratch']
  %s0 = inlined_call_operand.vmem [shape: f32[32,32], index: 0, kind: input, shape index: {}]
  %s1 = inlined_call_operand.vmem [shape: f32[1,32], index: 1, kind: input, shape index: {}]
  %s2 = inlined_call_operand.vmem [shape: f32[1,32], index: 2, kind: input, shape index: {}]
  %s3 = inlined_call_operand.hbm [shape: f32[32,64], index: 3, kind: input, shape index: {}]
  %s4 = inlined_call_operand.vmem [shape: f32[1,64], index: 4, kind: input, shape index: {}]
  %s5 = inlined_call_operand.vmem [shape: f32[32,64], index: 5, kind: output, shape index: {0}]
  %s6 = inlined_call_operand.vmem [shape: f32[1,64], index: 6, kind: output, shape index: {1}]
  %s7 = inlined_call_operand.vmem [shape: f32[1,64], index: 7, kind: output, shape index: {2}]
  %8 = xla_tuple %s5, %s6, %s7
  %s9 = sld [smem:[#allocation0]]
  $region54: #{_lambda_.6} parent=0
    _
  %s11 = ssub.s32 1, %s9
  %s12 = scalar_select 0, %s11, %s9
  $region1: #{_lambda_.6} parent=0
    #allocation2 [shape = 'u8[16384]{0}', space=vmem, size = 0x4000, scoped, tag = 'input window, operand 3, single buffered']
    #allocation3 [shape = 's32[1]{0}', space=sflag, size = 0x4, scoped, tag = 'scoped memory for _lambda_.6']
    %13 = vsyncpa [#allocation3], 0
    // Predicated region
    $region2: #{_lambda_.6} parent=1 // pred_check
      _
    $region3: #{_lambda_.6} parent=1 // pred_check_branch
      %15 = sbr.rel (0) target = $region5
    $region4: #{_lambda_.6} parent=1 // pred_region
      _
    $region5: #{_lambda_.6} parent=1 // pred_fallthru
      _
    // Predicated region
    $region6: #{_lambda_.6} parent=1 // pred_check
      _
    $region7: #{_lambda_.6} parent=1 // pred_check_branch
      %17 = sbr.rel (0) target = $region9
    $region8: #{_lambda_.6} parent=1 // pred_region
      _
    $region9: #{_lambda_.6} parent=1 // pred_fallthru
      _
    // Predicated region
    $region10: #{_lambda_.6} parent=1 // pred_check
      _
    $region11: #{_lambda_.6} parent=1 // pred_check_branch
      %19 = sbr.rel (0) target = $region13
    $region12: #{_lambda_.6} parent=1 // pred_region
      _
    $region13: #{_lambda_.6} parent=1 // pred_fallthru
      _
    // Predicated region
    $region14: #{_lambda_.6} parent=1 // pred_check
      _
    $region15: #{_lambda_.6} parent=1 // pred_check_branch
      %21 = sbr.rel (0) target = $region17
    $region16: #{_lambda_.6} parent=1 // pred_region
      %s23 = ssub.s32 512, 512
      %24 = vsyncadd [#allocation3], %s23
      %s25 = sshll.u32 [#allocation2], 4
      %s26 = int_to_ptr.vmem [resolvable:$true] %s25
      %31 = dma.hbm_to_vmem [thread:$0]  %s3, 512, %s26, [#allocation3], 128, 128, 8
    $region17: #{_lambda_.6} parent=1 // pred_fallthru
      _
    // Predicated region
    $region18: #{_lambda_.6} parent=1 // pred_check
      _
    $region19: #{_lambda_.6} parent=1 // pred_check_branch
      %33 = sbr.rel (0) target = $region21
    $region20: #{_lambda_.6} parent=1 // pred_region
      _
    $region21: #{_lambda_.6} parent=1 // pred_fallthru
      _
    // Predicated region
    $region22: #{_lambda_.6} parent=1 // pred_check
      _
    $region23: #{_lambda_.6} parent=1 // pred_check_branch
      %35 = sbr.rel (0) target = $region25
    $region24: #{_lambda_.6} parent=1 // pred_region
      %36 = dma.done [#allocation3], 512
    $region25: #{_lambda_.6} parent=1 // pred_fallthru
      _
    %v37 = vld [vmem:[%s0] sm:$0xff]
    %v38 = vld [vmem:[%s0 + $0x8] sm:$0xff]
    %v39 = vld [vmem:[%s0 + $0x10] sm:$0xff]
    %v40 = vld [vmem:[%s0 + $0x18] sm:$0xff]
    %v41 = vld [vmem:[%s1] sm:$0x1]
    %v43 = vlaneseq
    %v44 = vshrl.u32 %v43, 7
    %v45 = vsub.s32 0, %v44
    %v46 = vrot.slane %v41, %v45
    %v48 = vmul.f32 %v37, %v46
    %v49 = vmul.f32 %v38, %v46
    %v50 = vmul.f32 %v39, %v46
    %v51 = vmul.f32 %v40, %v46
    %v52 = vld [vmem:[%s2] sm:$0x1]
    %v54 = vlaneseq
    %v55 = vshrl.u32 %v54, 7
    %v56 = vsub.s32 0, %v55
    %v57 = vrot.slane %v52, %v56
    %v59 = vadd.f32 %v48, %v57
    %v60 = vadd.f32 %v49, %v57
    %v61 = vadd.f32 %v50, %v57
    %v62 = vadd.f32 %v51, %v57
    %vm63 = vcmp.gt.f32.partialorder %v59, 0.0
    %vm64 = vcmp.gt.f32.partialorder %v60, 0.0
    %vm65 = vcmp.gt.f32.partialorder %v61, 0.0
    %vm66 = vcmp.gt.f32.partialorder %v62, 0.0
    %v67 = vmul.f32 %v59, 0.01
    %v68 = vmul.f32 %v60, 0.01
    %v69 = vmul.f32 %v61, 0.01
    %v70 = vmul.f32 %v62, 0.01
    %v71 = vsel %vm63, %v59, %v67
    %v72 = vsel %vm64, %v60, %v68
    %v73 = vsel %vm65, %v61, %v69
    %v74 = vsel %vm66, %v62, %v70
    %v75 = vld [vmem:[#allocation2] sm:$0xff]
    %v76 = vld [vmem:[#allocation2 + $0x8] sm:$0xff]
    %v77 = vld [vmem:[#allocation2 + $0x10] sm:$0xff]
    %v78 = vld [vmem:[#allocation2 + $0x18] sm:$0xff]
    %v79 = vld [vmem:[%s4] sm:$0x1]
    %v81 = vlaneseq
    %v82 = vshrl.u32 %v81, 7
    %v83 = vsub.s32 0, %v82
    %v84 = vrot.slane %v79, %v83
    %vm86 = vcmask 261120
    %v88 = vsel %vm86, %v71, 0
    %v91 = vsel %vm86, %v72, 0
    %v94 = vsel %vm86, %v73, 0
    %v97 = vsel %vm86, %v74, 0
    %99 = vmatprep.subr.mxu0 0.0
    %100 = vmatpush1.msra.mxu0 %v75
    %101 = vmatprep.subr.mxu0 0.0
    %102 = vmatpush1.msra.mxu0 %v76
    %103 = vmatprep.subr.mxu0 0.0
    %104 = vmatpush1.msra.mxu0 %v77
    %105 = vmatprep.subr.mxu0 0.0
    %106 = vmatpush1.msra.mxu0 %v78
    %107 = vmatprep.subr.mxu0 0.0
    %108 = vmatpush1.msra.mxu0 0.0
    %109 = vmatprep.subr.mxu0 0.0
    %110 = vmatpush1.msra.mxu0 0.0
    %111 = vmatprep.subr.mxu0 0.0
    %112 = vmatpush1.msra.mxu0 0.0
    %113 = vmatprep.subr.mxu0 0.0
    %114 = vmatpush1.msra.mxu0 0.0
    %115 = vmatprep.subr.mxu0 0.0
    %116 = vmatpush1.msra.mxu0 0.0
    %117 = vmatprep.subr.mxu0 0.0
    %118 = vmatpush1.msra.mxu0 0.0
    %119 = vmatprep.subr.mxu0 0.0
    %120 = vmatpush1.msra.mxu0 0.0
    %121 = vmatprep.subr.mxu0 0.0
    %122 = vmatpush1.msra.mxu0 0.0
    %123 = vmatprep.subr.mxu0 0.0
    %124 = vmatpush1.msra.mxu0 0.0
    %125 = vmatprep.subr.mxu0 0.0
    %126 = vmatpush1.msra.mxu0 0.0
    %127 = vmatprep.subr.mxu0 0.0
    %128 = vmatpush1.msra.mxu0 0.0
    %129 = vmatprep.subr.mxu0 0.0
    %130 = vmatpush1.msra.mxu0 0.0
    %131 = vmatprep.subr.mxu0 0.0
    %132 = vmatpush1.msra.mxu0 0.0
    %133 = vmatprep.subr.mxu0 0.0
    %134 = vmatpush1.msra.mxu0 0.0
    %135 = vmatprep.subr.mxu0 0.0
    %136 = vmatpush1.msra.mxu0 0.0
    %137 = vmatprep.subr.mxu0 0.0
    %138 = vmatpush1.msra.mxu0 0.0
    %139 = vmatprep.subr.mxu0 0.0
    %140 = vmatpush1.msra.mxu0 0.0
    %141 = vmatprep.subr.mxu0 0.0
    %142 = vmatpush1.msra.mxu0 0.0
    %143 = vmatprep.subr.mxu0 0.0
    %144 = vmatpush1.msra.mxu0 0.0
    %145 = vmatprep.subr.mxu0 0.0
    %146 = vmatpush1.msra.mxu0 0.0
    %147 = vmatprep.subr.mxu0 0.0
    %148 = vmatpush1.msra.mxu0 0.0
    %149 = vmatprep.subr.mxu0 0.0
    %150 = vmatpush1.msra.mxu0 0.0
    %151 = vmatprep.subr.mxu0 0.0
    %152 = vmatpush1.msra.mxu0 0.0
    %153 = vmatprep.subr.mxu0 0.0
    %154 = vmatpush1.msra.mxu0 0.0
    %155 = vmatprep.subr.mxu0 0.0
    %156 = vmatpush1.msra.mxu0 0.0
    %157 = vmatprep.subr.mxu0 0.0
    %158 = vmatpush1.msra.mxu0 0.0
    %159 = vmatprep.subr.mxu0 0.0
    %160 = vmatpush1.msra.mxu0 0.0
    %161 = vmatprep.subr.mxu0 0.0
    %162 = vmatpush1.msra.mxu0 0.0
    %163 = vmatprep.mubr.f32.mxu0 0.0
    %164 = vmatmul.mubr.f32.gmra.mrb[0].mxu0 %v88
    %v165 = vpop.f32.mrb[0].mxu0
    %v166 = vadd.f32 %v84, %v165
    %v167 = vpop.f32.mrb[0].mxu0
    %168 = vmatprep.mubr.f32.mxu0 0.0
    %169 = vmatmul.mubr.f32.gmra.mrb[0].mxu0 %v91
    %v170 = vpop.f32.mrb[0].mxu0
    %v171 = vadd.f32 %v84, %v170
    %v172 = vpop.f32.mrb[0].mxu0
    %173 = vmatprep.mubr.f32.mxu0 0.0
    %174 = vmatmul.mubr.f32.gmra.mrb[0].mxu0 %v94
    %v175 = vpop.f32.mrb[0].mxu0
    %v176 = vadd.f32 %v84, %v175
    %v177 = vpop.f32.mrb[0].mxu0
    %178 = vmatprep.mubr.f32.mxu0 0.0
    %179 = vmatmul.mubr.f32.gmra.mrb[0].mxu0 %v97
    %v180 = vpop.f32.mrb[0].mxu0
    %v181 = vadd.f32 %v84, %v180
    %v182 = vpop.f32.mrb[0].mxu0
    %183 = vdwg.mxu0
    %vm184 = vcmask 523264
    %185 = vst.msk [vmem:[%s5] sm:$0xff] %vm184, %v166
    %186 = vst.msk [vmem:[%s5 + $0x8] sm:$0xff] %vm184, %v171
    %187 = vst.msk [vmem:[%s5 + $0x10] sm:$0xff] %vm184, %v176
    %188 = vst.msk [vmem:[%s5 + $0x18] sm:$0xff] %vm184, %v181
    %p189 = scmp.eq.s32.totalorder 0, 0
    // Predicated region
    $region26: #{_lambda_.6} parent=1 // pred_check
      %p190 = pneg %p189
    $region27: #{_lambda_.6} parent=1 // pred_check_branch
      %192 = sbr.rel (%p190) target = $region29
    $region28: #{_lambda_.6} parent=1 // pred_region
      %vm193 = vcmask 516096
      %194 = vst.msk [vmem:[%s6] sm:$0x1] %vm193, 0.0
      %195 = vst.msk [vmem:[%s7] sm:$0x1] %vm193, 0.0
    $region29: #{_lambda_.6} parent=1 // pred_fallthru
      _
    %v196 = vld [vmem:[%s6] sm:$0x1]
    %v197 = vsel %vm184, %v166, 0.0
    %v198 = vsel %vm184, %v171, 0.0
    %v199 = vadd.f32 %v197, %v198
    %v200 = vsel %vm184, %v176, 0.0
    %v201 = vadd.f32 %v199, %v200
    %v202 = vsel %vm184, %v181, 0.0
    %v203 = vadd.f32 %v201, %v202
    %v204 = vrot.slane %v203, 4
    %v205 = vadd.f32 %v203, %v204
    %v206 = vrot.slane %v205, 2
    %v207 = vadd.f32 %v205, %v206
    %v208 = vrot.slane %v207, 1
    %v209 = vadd.f32 %v207, %v208
    %v210 = vadd.f32 %v196, %v209
    %vm211 = vcmask 516096
    %212 = vst.msk [vmem:[%s6] sm:$0x1] %vm211, %v210
    %v213 = vld [vmem:[%s7] sm:$0x1]
    %v214 = vmul.f32 %v166, %v166
    %v215 = vmul.f32 %v171, %v171
    %v216 = vmul.f32 %v176, %v176
    %v217 = vmul.f32 %v181, %v181
    %v218 = vsel %vm184, %v214, 0.0
    %v219 = vsel %vm184, %v215, 0.0
    %v220 = vadd.f32 %v218, %v219
    %v221 = vsel %vm184, %v216, 0.0
    %v222 = vadd.f32 %v220, %v221
    %v223 = vsel %vm184, %v217, 0.0
    %v224 = vadd.f32 %v222, %v223
    %v225 = vrot.slane %v224, 4
    %v226 = vadd.f32 %v224, %v225
    %v227 = vrot.slane %v226, 2
    %v228 = vadd.f32 %v226, %v227
    %v229 = vrot.slane %v228, 1
    %v230 = vadd.f32 %v228, %v229
    %v231 = vadd.f32 %v213, %v230
    %232 = vst.msk [vmem:[%s7] sm:$0x1] %vm211, %v231
    // Predicated region
    $region30: #{_lambda_.6} parent=1 // pred_check
      _
    $region31: #{_lambda_.6} parent=1 // pred_check_branch
      %234 = sbr.rel (0) target = $region33
    $region32: #{_lambda_.6} parent=1 // pred_region
      _
    $region33: #{_lambda_.6} parent=1 // pred_fallthru
      _
    // Predicated region
    $region34: #{_lambda_.6} parent=1 // pred_check
      _
    $region35: #{_lambda_.6} parent=1 // pred_check_branch
      %236 = sbr.rel (0) target = $region37
    $region36: #{_lambda_.6} parent=1 // pred_region
      _
    $region37: #{_lambda_.6} parent=1 // pred_fallthru
      _
    // Predicated region
    $region38: #{_lambda_.6} parent=1 // pred_check
      _
    $region39: #{_lambda_.6} parent=1 // pred_check_branch
      %238 = sbr.rel (0) target = $region41
    $region40: #{_lambda_.6} parent=1 // pred_region
      _
    $region41: #{_lambda_.6} parent=1 // pred_fallthru
      _
    // Predicated region
    $region42: #{_lambda_.6} parent=1 // pred_check
      _
    $region43: #{_lambda_.6} parent=1 // pred_check_branch
      %240 = sbr.rel (0) target = $region45
    $region44: #{_lambda_.6} parent=1 // pred_region
      _
    $region45: #{_lambda_.6} parent=1 // pred_fallthru
      _
    // Predicated region
    $region46: #{_lambda_.6} parent=1 // pred_check
      _
    $region47: #{_lambda_.6} parent=1 // pred_check_branch
      %242 = sbr.rel (0) target = $region49
    $region48: #{_lambda_.6} parent=1 // pred_region
      _
    $region49: #{_lambda_.6} parent=1 // pred_fallthru
      _
    // Predicated region
    $region50: #{_lambda_.6} parent=1 // pred_check
      _
    $region51: #{_lambda_.6} parent=1 // pred_check_branch
      %244 = sbr.rel (0) target = $region53
    $region52: #{_lambda_.6} parent=1 // pred_region
      _
    $region53: #{_lambda_.6} parent=1 // pred_fallthru
      _
    %245 = vsyncpa [#allocation3], 1

// kernel: _lambda_.7
$region0: #{_lambda_.7}
  #allocation0 [shape = 'u32[]', space=smem, size = 0x4, offset = 0x4, fixed_abs, tag = 'smem constant byte address 0x4 - core index']
  #allocation1 [shape = 'u32[144,128]{1,0:T(1,128)}', space=vmem, size = 0x12000, scoped, tag = 'internal scratch']
  %s0 = inlined_call_operand.vmem [shape: f32[128,16], index: 0, kind: input, shape index: {}]
  %s1 = inlined_call_operand.vmem [shape: f32[1,16], index: 1, kind: input, shape index: {}]
  %s2 = inlined_call_operand.vmem [shape: f32[1,16], index: 2, kind: input, shape index: {}]
  %s3 = inlined_call_operand.hbm [shape: f32[16,32], index: 3, kind: input, shape index: {}]
  %s4 = inlined_call_operand.vmem [shape: f32[1,32], index: 4, kind: input, shape index: {}]
  %s5 = inlined_call_operand.vmem [shape: f32[128,32], index: 5, kind: output, shape index: {0}]
  %s6 = inlined_call_operand.vmem [shape: f32[1,32], index: 6, kind: output, shape index: {1}]
  %s7 = inlined_call_operand.vmem [shape: f32[1,32], index: 7, kind: output, shape index: {2}]
  %8 = xla_tuple %s5, %s6, %s7
  %s9 = sld [smem:[#allocation0]]
  $region54: #{_lambda_.7} parent=0
    _
  %s11 = ssub.s32 1, %s9
  %s12 = scalar_select 0, %s11, %s9
  $region1: #{_lambda_.7} parent=0
    #allocation2 [shape = 'u8[8192]{0}', space=vmem, size = 0x2000, scoped, tag = 'input window, operand 3, single buffered']
    #allocation3 [shape = 's32[1]{0}', space=sflag, size = 0x4, scoped, tag = 'scoped memory for _lambda_.7']
    %13 = vsyncpa [#allocation3], 0
    // Predicated region
    $region2: #{_lambda_.7} parent=1 // pred_check
      _
    $region3: #{_lambda_.7} parent=1 // pred_check_branch
      %15 = sbr.rel (0) target = $region5
    $region4: #{_lambda_.7} parent=1 // pred_region
      _
    $region5: #{_lambda_.7} parent=1 // pred_fallthru
      _
    // Predicated region
    $region6: #{_lambda_.7} parent=1 // pred_check
      _
    $region7: #{_lambda_.7} parent=1 // pred_check_branch
      %17 = sbr.rel (0) target = $region9
    $region8: #{_lambda_.7} parent=1 // pred_region
      _
    $region9: #{_lambda_.7} parent=1 // pred_fallthru
      _
    // Predicated region
    $region10: #{_lambda_.7} parent=1 // pred_check
      _
    $region11: #{_lambda_.7} parent=1 // pred_check_branch
      %19 = sbr.rel (0) target = $region13
    $region12: #{_lambda_.7} parent=1 // pred_region
      _
    $region13: #{_lambda_.7} parent=1 // pred_fallthru
      _
    // Predicated region
    $region14: #{_lambda_.7} parent=1 // pred_check
      _
    $region15: #{_lambda_.7} parent=1 // pred_check_branch
      %21 = sbr.rel (0) target = $region17
    $region16: #{_lambda_.7} parent=1 // pred_region
      %s23 = ssub.s32 256, 256
      %24 = vsyncadd [#allocation3], %s23
      %s25 = sshll.u32 [#allocation2], 4
      %s26 = int_to_ptr.vmem [resolvable:$true] %s25
      %31 = dma.hbm_to_vmem [thread:$0]  %s3, 256, %s26, [#allocation3], 128, 128, 8
    $region17: #{_lambda_.7} parent=1 // pred_fallthru
      _
    // Predicated region
    $region18: #{_lambda_.7} parent=1 // pred_check
      _
    $region19: #{_lambda_.7} parent=1 // pred_check_branch
      %33 = sbr.rel (0) target = $region21
    $region20: #{_lambda_.7} parent=1 // pred_region
      _
    $region21: #{_lambda_.7} parent=1 // pred_fallthru
      _
    // Predicated region
    $region22: #{_lambda_.7} parent=1 // pred_check
      _
    $region23: #{_lambda_.7} parent=1 // pred_check_branch
      %35 = sbr.rel (0) target = $region25
    $region24: #{_lambda_.7} parent=1 // pred_region
      %36 = dma.done [#allocation3], 256
    $region25: #{_lambda_.7} parent=1 // pred_fallthru
      _
    %v37 = vld [vmem:[%s0] sm:$0xff]
    %v38 = vld [vmem:[%s0 + $0x8] sm:$0xff]
    %v39 = vld [vmem:[%s0 + $0x10] sm:$0xff]
    %v40 = vld [vmem:[%s0 + $0x18] sm:$0xff]
    %v41 = vld [vmem:[%s0 + $0x20] sm:$0xff]
    %v42 = vld [vmem:[%s0 + $0x28] sm:$0xff]
    %v43 = vld [vmem:[%s0 + $0x30] sm:$0xff]
    %v44 = vld [vmem:[%s0 + $0x38] sm:$0xff]
    %v45 = vld [vmem:[%s0 + $0x40] sm:$0xff]
    %v46 = vld [vmem:[%s0 + $0x48] sm:$0xff]
    %v47 = vld [vmem:[%s0 + $0x50] sm:$0xff]
    %v48 = vld [vmem:[%s0 + $0x58] sm:$0xff]
    %v49 = vld [vmem:[%s0 + $0x60] sm:$0xff]
    %v50 = vld [vmem:[%s0 + $0x68] sm:$0xff]
    %v51 = vld [vmem:[%s0 + $0x70] sm:$0xff]
    %v52 = vld [vmem:[%s0 + $0x78] sm:$0xff]
    %v53 = vld [vmem:[%s1] sm:$0x1]
    %v55 = vlaneseq
    %v56 = vshrl.u32 %v55, 7
    %v57 = vsub.s32 0, %v56
    %v58 = vrot.slane %v53, %v57
    %v60 = vmul.f32 %v37, %v58
    %v61 = vmul.f32 %v38, %v58
    %v62 = vmul.f32 %v39, %v58
    %v63 = vmul.f32 %v40, %v58
    %v64 = vmul.f32 %v41, %v58
    %v65 = vmul.f32 %v42, %v58
    %v66 = vmul.f32 %v43, %v58
    %v67 = vmul.f32 %v44, %v58
    %v68 = vmul.f32 %v45, %v58
    %v69 = vmul.f32 %v46, %v58
    %v70 = vmul.f32 %v47, %v58
    %v71 = vmul.f32 %v48, %v58
    %v72 = vmul.f32 %v49, %v58
    %v73 = vmul.f32 %v50, %v58
    %v74 = vmul.f32 %v51, %v58
    %v75 = vmul.f32 %v52, %v58
    %v76 = vld [vmem:[%s2] sm:$0x1]
    %v78 = vlaneseq
    %v79 = vshrl.u32 %v78, 7
    %v80 = vsub.s32 0, %v79
    %v81 = vrot.slane %v76, %v80
    %v83 = vadd.f32 %v60, %v81
    %v84 = vadd.f32 %v61, %v81
    %v85 = vadd.f32 %v62, %v81
    %v86 = vadd.f32 %v63, %v81
    %v87 = vadd.f32 %v64, %v81
    %v88 = vadd.f32 %v65, %v81
    %v89 = vadd.f32 %v66, %v81
    %v90 = vadd.f32 %v67, %v81
    %v91 = vadd.f32 %v68, %v81
    %v92 = vadd.f32 %v69, %v81
    %v93 = vadd.f32 %v70, %v81
    %v94 = vadd.f32 %v71, %v81
    %v95 = vadd.f32 %v72, %v81
    %v96 = vadd.f32 %v73, %v81
    %v97 = vadd.f32 %v74, %v81
    %v98 = vadd.f32 %v75, %v81
    %vm99 = vcmp.gt.f32.partialorder %v83, 0.0
    %vm100 = vcmp.gt.f32.partialorder %v84, 0.0
    %vm101 = vcmp.gt.f32.partialorder %v85, 0.0
    %vm102 = vcmp.gt.f32.partialorder %v86, 0.0
    %vm103 = vcmp.gt.f32.partialorder %v87, 0.0
    %vm104 = vcmp.gt.f32.partialorder %v88, 0.0
    %vm105 = vcmp.gt.f32.partialorder %v89, 0.0
    %vm106 = vcmp.gt.f32.partialorder %v90, 0.0
    %vm107 = vcmp.gt.f32.partialorder %v91, 0.0
    %vm108 = vcmp.gt.f32.partialorder %v92, 0.0
    %vm109 = vcmp.gt.f32.partialorder %v93, 0.0
    %vm110 = vcmp.gt.f32.partialorder %v94, 0.0
    %vm111 = vcmp.gt.f32.partialorder %v95, 0.0
    %vm112 = vcmp.gt.f32.partialorder %v96, 0.0
    %vm113 = vcmp.gt.f32.partialorder %v97, 0.0
    %vm114 = vcmp.gt.f32.partialorder %v98, 0.0
    %v115 = vmul.f32 %v83, 0.01
    %v116 = vmul.f32 %v84, 0.01
    %v117 = vmul.f32 %v85, 0.01
    %v118 = vmul.f32 %v86, 0.01
    %v119 = vmul.f32 %v87, 0.01
    %v120 = vmul.f32 %v88, 0.01
    %v121 = vmul.f32 %v89, 0.01
    %v122 = vmul.f32 %v90, 0.01
    %v123 = vmul.f32 %v91, 0.01
    %v124 = vmul.f32 %v92, 0.01
    %v125 = vmul.f32 %v93, 0.01
    %v126 = vmul.f32 %v94, 0.01
    %v127 = vmul.f32 %v95, 0.01
    %v128 = vmul.f32 %v96, 0.01
    %v129 = vmul.f32 %v97, 0.01
    %v130 = vmul.f32 %v98, 0.01
    %v131 = vsel %vm99, %v83, %v115
    %v132 = vsel %vm100, %v84, %v116
    %v133 = vsel %vm101, %v85, %v117
    %v134 = vsel %vm102, %v86, %v118
    %v135 = vsel %vm103, %v87, %v119
    %v136 = vsel %vm104, %v88, %v120
    %v137 = vsel %vm105, %v89, %v121
    %v138 = vsel %vm106, %v90, %v122
    %v139 = vsel %vm107, %v91, %v123
    %v140 = vsel %vm108, %v92, %v124
    %v141 = vsel %vm109, %v93, %v125
    %v142 = vsel %vm110, %v94, %v126
    %v143 = vsel %vm111, %v95, %v127
    %v144 = vsel %vm112, %v96, %v128
    %v145 = vsel %vm113, %v97, %v129
    %v146 = vsel %vm114, %v98, %v130
    %v147 = vld [vmem:[#allocation2] sm:$0xff]
    %v148 = vld [vmem:[#allocation2 + $0x8] sm:$0xff]
    %v149 = vld [vmem:[%s4] sm:$0x1]
    %v151 = vlaneseq
    %v152 = vshrl.u32 %v151, 7
    %v153 = vsub.s32 0, %v152
    %v154 = vrot.slane %v149, %v153
    %vm156 = vcmask 130048
    %v158 = vsel %vm156, %v131, 0
    %v161 = vsel %vm156, %v132, 0
    %v164 = vsel %vm156, %v133, 0
    %v167 = vsel %vm156, %v134, 0
    %v170 = vsel %vm156, %v135, 0
    %v173 = vsel %vm156, %v136, 0
    %v176 = vsel %vm156, %v137, 0
    %v179 = vsel %vm156, %v138, 0
    %v182 = vsel %vm156, %v139, 0
    %v185 = vsel %vm156, %v140, 0
    %v188 = vsel %vm156, %v141, 0
    %v191 = vsel %vm156, %v142, 0
    %v194 = vsel %vm156, %v143, 0
    %v197 = vsel %vm156, %v144, 0
    %v200 = vsel %vm156, %v145, 0
    %v203 = vsel %vm156, %v146, 0
    %205 = vmatprep.subr.mxu0 0.0
    %206 = vmatpush1.msra.mxu0 %v147
    %207 = vmatprep.subr.mxu0 0.0
    %208 = vmatpush1.msra.mxu0 %v148
    %209 = vmatprep.subr.mxu0 0.0
    %210 = vmatpush1.msra.mxu0 0.0
    %211 = vmatprep.subr.mxu0 0.0
    %212 = vmatpush1.msra.mxu0 0.0
    %213 = vmatprep.subr.mxu0 0.0
    %214 = vmatpush1.msra.mxu0 0.0
    %215 = vmatprep.subr.mxu0 0.0
    %216 = vmatpush1.msra.mxu0 0.0
    %217 = vmatprep.subr.mxu0 0.0
    %218 = vmatpush1.msra.mxu0 0.0
    %219 = vmatprep.subr.mxu0 0.0
    %220 = vmatpush1.msra.mxu0 0.0
    %221 = vmatprep.subr.mxu0 0.0
    %222 = vmatpush1.msra.mxu0 0.0
    %223 = vmatprep.subr.mxu0 0.0
    %224 = vmatpush1.msra.mxu0 0.0
    %225 = vmatprep.subr.mxu0 0.0
    %226 = vmatpush1.msra.mxu0 0.0
    %227 = vmatprep.subr.mxu0 0.0
    %228 = vmatpush1.msra.mxu0 0.0
    %229 = vmatprep.subr.mxu0 0.0
    %230 = vmatpush1.msra.mxu0 0.0
    %231 = vmatprep.subr.mxu0 0.0
    %232 = vmatpush1.msra.mxu0 0.0
    %233 = vmatprep.subr.mxu0 0.0
    %234 = vmatpush1.msra.mxu0 0.0
    %235 = vmatprep.subr.mxu0 0.0
    %236 = vmatpush1.msra.mxu0 0.0
    %237 = vmatprep.subr.mxu0 0.0
    %238 = vmatpush1.msra.mxu0 0.0
    %239 = vmatprep.subr.mxu0 0.0
    %240 = vmatpush1.msra.mxu0 0.0
    %241 = vmatprep.subr.mxu0 0.0
    %242 = vmatpush1.msra.mxu0 0.0
    %243 = vmatprep.subr.mxu0 0.0
    %244 = vmatpush1.msra.mxu0 0.0
    %245 = vmatprep.subr.mxu0 0.0
    %246 = vmatpush1.msra.mxu0 0.0
    %247 = vmatprep.subr.mxu0 0.0
    %248 = vmatpush1.msra.mxu0 0.0
    %249 = vmatprep.subr.mxu0 0.0
    %250 = vmatpush1.msra.mxu0 0.0
    %251 = vmatprep.subr.mxu0 0.0
    %252 = vmatpush1.msra.mxu0 0.0
    %253 = vmatprep.subr.mxu0 0.0
    %254 = vmatpush1.msra.mxu0 0.0
    %255 = vmatprep.subr.mxu0 0.0
    %256 = vmatpush1.msra.mxu0 0.0
    %257 = vmatprep.subr.mxu0 0.0
    %258 = vmatpush1.msra.mxu0 0.0
    %259 = vmatprep.subr.mxu0 0.0
    %260 = vmatpush1.msra.mxu0 0.0
    %261 = vmatprep.subr.mxu0 0.0
    %262 = vmatpush1.msra.mxu0 0.0
    %263 = vmatprep.subr.mxu0 0.0
    %264 = vmatpush1.msra.mxu0 0.0
    %265 = vmatprep.subr.mxu0 0.0
    %266 = vmatpush1.msra.mxu0 0.0
    %267 = vmatprep.subr.mxu0 0.0
    %268 = vmatpush1.msra.mxu0 0.0
    %269 = vmatprep.mubr.f32.mxu0 0.0
    %270 = vmatmul.mubr.f32.gmra.mrb[0].mxu0 %v158
    %v271 = vpop.f32.mrb[0].mxu0
    %v272 = vadd.f32 %v154, %v271
    %v273 = vpop.f32.mrb[0].mxu0
    %274 = vmatprep.mubr.f32.mxu0 0.0
    %275 = vmatmul.mubr.f32.gmra.mrb[0].mxu0 %v161
    %v276 = vpop.f32.mrb[0].mxu0
    %v277 = vadd.f32 %v154, %v276
    %v278 = vpop.f32.mrb[0].mxu0
    %279 = vmatprep.mubr.f32.mxu0 0.0
    %280 = vmatmul.mubr.f32.gmra.mrb[0].mxu0 %v164
    %v281 = vpop.f32.mrb[0].mxu0
    %v282 = vadd.f32 %v154, %v281
    %v283 = vpop.f32.mrb[0].mxu0
    %284 = vmatprep.mubr.f32.mxu0 0.0
    %285 = vmatmul.mubr.f32.gmra.mrb[0].mxu0 %v167
    %v286 = vpop.f32.mrb[0].mxu0
    %v287 = vadd.f32 %v154, %v286
    %v288 = vpop.f32.mrb[0].mxu0
    %289 = vmatprep.mubr.f32.mxu0 0.0
    %290 = vmatmul.mubr.f32.gmra.mrb[0].mxu0 %v170
    %v291 = vpop.f32.mrb[0].mxu0
    %v292 = vadd.f32 %v154, %v291
    %v293 = vpop.f32.mrb[0].mxu0
    %294 = vmatprep.mubr.f32.mxu0 0.0
    %295 = vmatmul.mubr.f32.gmra.mrb[0].mxu0 %v173
    %v296 = vpop.f32.mrb[0].mxu0
    %v297 = vadd.f32 %v154, %v296
    %v298 = vpop.f32.mrb[0].mxu0
    %299 = vmatprep.mubr.f32.mxu0 0.0
    %300 = vmatmul.mubr.f32.gmra.mrb[0].mxu0 %v176
    %v301 = vpop.f32.mrb[0].mxu0
    %v302 = vadd.f32 %v154, %v301
    %v303 = vpop.f32.mrb[0].mxu0
    %304 = vmatprep.mubr.f32.mxu0 0.0
    %305 = vmatmul.mubr.f32.gmra.mrb[0].mxu0 %v179
    %v306 = vpop.f32.mrb[0].mxu0
    %v307 = vadd.f32 %v154, %v306
    %v308 = vpop.f32.mrb[0].mxu0
    %309 = vmatprep.mubr.f32.mxu0 0.0
    %310 = vmatmul.mubr.f32.gmra.mrb[0].mxu0 %v182
    %v311 = vpop.f32.mrb[0].mxu0
    %v312 = vadd.f32 %v154, %v311
    %v313 = vpop.f32.mrb[0].mxu0
    %314 = vmatprep.mubr.f32.mxu0 0.0
    %315 = vmatmul.mubr.f32.gmra.mrb[0].mxu0 %v185
    %v316 = vpop.f32.mrb[0].mxu0
    %v317 = vadd.f32 %v154, %v316
    %v318 = vpop.f32.mrb[0].mxu0
    %319 = vmatprep.mubr.f32.mxu0 0.0
    %320 = vmatmul.mubr.f32.gmra.mrb[0].mxu0 %v188
    %v321 = vpop.f32.mrb[0].mxu0
    %v322 = vadd.f32 %v154, %v321
    %v323 = vpop.f32.mrb[0].mxu0
    %324 = vmatprep.mubr.f32.mxu0 0.0
    %325 = vmatmul.mubr.f32.gmra.mrb[0].mxu0 %v191
    %v326 = vpop.f32.mrb[0].mxu0
    %v327 = vadd.f32 %v154, %v326
    %v328 = vpop.f32.mrb[0].mxu0
    %329 = vmatprep.mubr.f32.mxu0 0.0
    %330 = vmatmul.mubr.f32.gmra.mrb[0].mxu0 %v194
    %v331 = vpop.f32.mrb[0].mxu0
    %v332 = vadd.f32 %v154, %v331
    %v333 = vpop.f32.mrb[0].mxu0
    %334 = vmatprep.mubr.f32.mxu0 0.0
    %335 = vmatmul.mubr.f32.gmra.mrb[0].mxu0 %v197
    %v336 = vpop.f32.mrb[0].mxu0
    %v337 = vadd.f32 %v154, %v336
    %v338 = vpop.f32.mrb[0].mxu0
    %339 = vmatprep.mubr.f32.mxu0 0.0
    %340 = vmatmul.mubr.f32.gmra.mrb[0].mxu0 %v200
    %v341 = vpop.f32.mrb[0].mxu0
    %v342 = vadd.f32 %v154, %v341
    %v343 = vpop.f32.mrb[0].mxu0
    %344 = vmatprep.mubr.f32.mxu0 0.0
    %345 = vmatmul.mubr.f32.gmra.mrb[0].mxu0 %v203
    %v346 = vpop.f32.mrb[0].mxu0
    %v347 = vadd.f32 %v154, %v346
    %v348 = vpop.f32.mrb[0].mxu0
    %349 = vdwg.mxu0
    %vm350 = vcmask 261120
    %351 = vst.msk [vmem:[%s5] sm:$0xff] %vm350, %v272
    %352 = vst.msk [vmem:[%s5 + $0x8] sm:$0xff] %vm350, %v277
    %353 = vst.msk [vmem:[%s5 + $0x10] sm:$0xff] %vm350, %v282
    %354 = vst.msk [vmem:[%s5 + $0x18] sm:$0xff] %vm350, %v287
    %355 = vst.msk [vmem:[%s5 + $0x20] sm:$0xff] %vm350, %v292
    %356 = vst.msk [vmem:[%s5 + $0x28] sm:$0xff] %vm350, %v297
    %357 = vst.msk [vmem:[%s5 + $0x30] sm:$0xff] %vm350, %v302
    %358 = vst.msk [vmem:[%s5 + $0x38] sm:$0xff] %vm350, %v307
    %359 = vst.msk [vmem:[%s5 + $0x40] sm:$0xff] %vm350, %v312
    %360 = vst.msk [vmem:[%s5 + $0x48] sm:$0xff] %vm350, %v317
    %361 = vst.msk [vmem:[%s5 + $0x50] sm:$0xff] %vm350, %v322
    %362 = vst.msk [vmem:[%s5 + $0x58] sm:$0xff] %vm350, %v327
    %363 = vst.msk [vmem:[%s5 + $0x60] sm:$0xff] %vm350, %v332
    %364 = vst.msk [vmem:[%s5 + $0x68] sm:$0xff] %vm350, %v337
    %365 = vst.msk [vmem:[%s5 + $0x70] sm:$0xff] %vm350, %v342
    %366 = vst.msk [vmem:[%s5 + $0x78] sm:$0xff] %vm350, %v347
    %p367 = scmp.eq.s32.totalorder 0, 0
    // Predicated region
    $region26: #{_lambda_.7} parent=1 // pred_check
      %p368 = pneg %p367
    $region27: #{_lambda_.7} parent=1 // pred_check_branch
      %370 = sbr.rel (%p368) target = $region29
    $region28: #{_lambda_.7} parent=1 // pred_region
      %vm371 = vcmask 253952
      %372 = vst.msk [vmem:[%s6] sm:$0x1] %vm371, 0.0
      %373 = vst.msk [vmem:[%s7] sm:$0x1] %vm371, 0.0
    $region29: #{_lambda_.7} parent=1 // pred_fallthru
      _
    %v374 = vld [vmem:[%s6] sm:$0x1]
    %v375 = vsel %vm350, %v272, 0.0
    %v376 = vsel %vm350, %v277, 0.0
    %v377 = vadd.f32 %v375, %v376
    %v378 = vsel %vm350, %v282, 0.0
    %v379 = vadd.f32 %v377, %v378
    %v380 = vsel %vm350, %v287, 0.0
    %v381 = vadd.f32 %v379, %v380
    %v382 = vsel %vm350, %v292, 0.0
    %v383 = vadd.f32 %v381, %v382
    %v384 = vsel %vm350, %v297, 0.0
    %v385 = vadd.f32 %v383, %v384
    %v386 = vsel %vm350, %v302, 0.0
    %v387 = vadd.f32 %v385, %v386
    %v388 = vsel %vm350, %v307, 0.0
    %v389 = vadd.f32 %v387, %v388
    %v390 = vsel %vm350, %v312, 0.0
    %v391 = vadd.f32 %v389, %v390
    %v392 = vsel %vm350, %v317, 0.0
    %v393 = vadd.f32 %v391, %v392
    %v394 = vsel %vm350, %v322, 0.0
    %v395 = vadd.f32 %v393, %v394
    %v396 = vsel %vm350, %v327, 0.0
    %v397 = vadd.f32 %v395, %v396
    %v398 = vsel %vm350, %v332, 0.0
    %v399 = vadd.f32 %v397, %v398
    %v400 = vsel %vm350, %v337, 0.0
    %v401 = vadd.f32 %v399, %v400
    %v402 = vsel %vm350, %v342, 0.0
    %v403 = vadd.f32 %v401, %v402
    %v404 = vsel %vm350, %v347, 0.0
    %v405 = vadd.f32 %v403, %v404
    %v406 = vrot.slane %v405, 4
    %v407 = vadd.f32 %v405, %v406
    %v408 = vrot.slane %v407, 2
    %v409 = vadd.f32 %v407, %v408
    %v410 = vrot.slane %v409, 1
    %v411 = vadd.f32 %v409, %v410
    %v412 = vadd.f32 %v374, %v411
    %vm413 = vcmask 253952
    %414 = vst.msk [vmem:[%s6] sm:$0x1] %vm413, %v412
    %v415 = vld [vmem:[%s7] sm:$0x1]
    %v416 = vmul.f32 %v272, %v272
    %v417 = vmul.f32 %v277, %v277
    %v418 = vmul.f32 %v282, %v282
    %v419 = vmul.f32 %v287, %v287
    %v420 = vmul.f32 %v292, %v292
    %v421 = vmul.f32 %v297, %v297
    %v422 = vmul.f32 %v302, %v302
    %v423 = vmul.f32 %v307, %v307
    %v424 = vmul.f32 %v312, %v312
    %v425 = vmul.f32 %v317, %v317
    %v426 = vmul.f32 %v322, %v322
    %v427 = vmul.f32 %v327, %v327
    %v428 = vmul.f32 %v332, %v332
    %v429 = vmul.f32 %v337, %v337
    %v430 = vmul.f32 %v342, %v342
    %v431 = vmul.f32 %v347, %v347
    %v432 = vsel %vm350, %v416, 0.0
    %v433 = vsel %vm350, %v417, 0.0
    %v434 = vadd.f32 %v432, %v433
    %v435 = vsel %vm350, %v418, 0.0
    %v436 = vadd.f32 %v434, %v435
    %v437 = vsel %vm350, %v419, 0.0
    %v438 = vadd.f32 %v436, %v437
    %v439 = vsel %vm350, %v420, 0.0
    %v440 = vadd.f32 %v438, %v439
    %v441 = vsel %vm350, %v421, 0.0
    %v442 = vadd.f32 %v440, %v441
    %v443 = vsel %vm350, %v422, 0.0
    %v444 = vadd.f32 %v442, %v443
    %v445 = vsel %vm350, %v423, 0.0
    %v446 = vadd.f32 %v444, %v445
    %v447 = vsel %vm350, %v424, 0.0
    %v448 = vadd.f32 %v446, %v447
    %v449 = vsel %vm350, %v425, 0.0
    %v450 = vadd.f32 %v448, %v449
    %v451 = vsel %vm350, %v426, 0.0
    %v452 = vadd.f32 %v450, %v451
    %v453 = vsel %vm350, %v427, 0.0
    %v454 = vadd.f32 %v452, %v453
    %v455 = vsel %vm350, %v428, 0.0
    %v456 = vadd.f32 %v454, %v455
    %v457 = vsel %vm350, %v429, 0.0
    %v458 = vadd.f32 %v456, %v457
    %v459 = vsel %vm350, %v430, 0.0
    %v460 = vadd.f32 %v458, %v459
    %v461 = vsel %vm350, %v431, 0.0
    %v462 = vadd.f32 %v460, %v461
    %v463 = vrot.slane %v462, 4
    %v464 = vadd.f32 %v462, %v463
    %v465 = vrot.slane %v464, 2
    %v466 = vadd.f32 %v464, %v465
    %v467 = vrot.slane %v466, 1
    %v468 = vadd.f32 %v466, %v467
    %v469 = vadd.f32 %v415, %v468
    %470 = vst.msk [vmem:[%s7] sm:$0x1] %vm413, %v469
    // Predicated region
    $region30: #{_lambda_.7} parent=1 // pred_check
      _
    $region31: #{_lambda_.7} parent=1 // pred_check_branch
      %472 = sbr.rel (0) target = $region33
    $region32: #{_lambda_.7} parent=1 // pred_region
      _
    $region33: #{_lambda_.7} parent=1 // pred_fallthru
      _
    // Predicated region
    $region34: #{_lambda_.7} parent=1 // pred_check
      _
    $region35: #{_lambda_.7} parent=1 // pred_check_branch
      %474 = sbr.rel (0) target = $region37
    $region36: #{_lambda_.7} parent=1 // pred_region
      _
    $region37: #{_lambda_.7} parent=1 // pred_fallthru
      _
    // Predicated region
    $region38: #{_lambda_.7} parent=1 // pred_check
      _
    $region39: #{_lambda_.7} parent=1 // pred_check_branch
      %476 = sbr.rel (0) target = $region41
    $region40: #{_lambda_.7} parent=1 // pred_region
      _
    $region41: #{_lambda_.7} parent=1 // pred_fallthru
      _
    // Predicated region
    $region42: #{_lambda_.7} parent=1 // pred_check
      _
    $region43: #{_lambda_.7} parent=1 // pred_check_branch
      %478 = sbr.rel (0) target = $region45
    $region44: #{_lambda_.7} parent=1 // pred_region
      _
    $region45: #{_lambda_.7} parent=1 // pred_fallthru
      _
    // Predicated region
    $region46: #{_lambda_.7} parent=1 // pred_check
      _
    $region47: #{_lambda_.7} parent=1 // pred_check_branch
      %480 = sbr.rel (0) target = $region49
    $region48: #{_lambda_.7} parent=1 // pred_region
      _
    $region49: #{_lambda_.7} parent=1 // pred_fallthru
      _
    // Predicated region
    $region50: #{_lambda_.7} parent=1 // pred_check
      _
    $region51: #{_lambda_.7} parent=1 // pred_check_branch
      %482 = sbr.rel (0) target = $region53
    $region52: #{_lambda_.7} parent=1 // pred_region
      _
    $region53: #{_lambda_.7} parent=1 // pred_fallthru
      _
    %483 = vsyncpa [#allocation3], 1

// kernel: _lambda_.5
$region0: #{_lambda_.5}
  #allocation0 [shape = 'u32[]', space=smem, size = 0x4, offset = 0x4, fixed_abs, tag = 'smem constant byte address 0x4 - core index']
  #allocation1 [shape = 'u32[144,128]{1,0:T(1,128)}', space=vmem, size = 0x12000, scoped, tag = 'internal scratch']
  %s0 = inlined_call_operand.hbm [shape: f32[2,2], index: 0, kind: input, shape index: {}]
  %s1 = inlined_call_operand.hbm [shape: f32[2,4], index: 1, kind: input, shape index: {}]
  %s2 = inlined_call_operand.hbm [shape: f32[1,4], index: 2, kind: input, shape index: {}]
  %s3 = inlined_call_operand.hbm [shape: f32[4,512], index: 3, kind: input, shape index: {}]
  %s4 = inlined_call_operand.vmem [shape: f32[1,512], index: 4, kind: input, shape index: {}]
  %s5 = inlined_call_operand.vmem [shape: f32[2,512], index: 5, kind: output, shape index: {0}]
  %s6 = inlined_call_operand.vmem [shape: f32[1,512], index: 6, kind: output, shape index: {1}]
  %s7 = inlined_call_operand.vmem [shape: f32[1,512], index: 7, kind: output, shape index: {2}]
  %8 = xla_tuple %s5, %s6, %s7
  %s9 = sld [smem:[#allocation0]]
  $region62: #{_lambda_.5} parent=0
    _
  %s11 = ssub.s32 1, %s9
  %s12 = scalar_select 0, %s11, %s9
  $region1: #{_lambda_.5} parent=0
    #allocation2 [shape = 'u8[1024]{0}', space=vmem, size = 0x400, scoped, tag = 'input window, operand 0, single buffered']
    #allocation3 [shape = 's32[1]{0}', space=sflag, size = 0x4, scoped, tag = 'scoped memory for _lambda_.5']
    #allocation4 [shape = 'u8[1024]{0}', space=vmem, size = 0x400, scoped, tag = 'input window, operand 1, single buffered']
    #allocation5 [shape = 's32[1]{0}', space=sflag, size = 0x4, scoped, tag = 'scoped memory for _lambda_.5']
    #allocation6 [shape = 'u8[512]{0}', space=vmem, size = 0x400, scoped, tag = 'input window, operand 2, single buffered']
    #allocation7 [shape = 'u8[8192]{0}', space=vmem, size = 0x2000, scoped, tag = 'input window, operand 3, single buffered']
    #allocation8 [shape = 's32[1]{0}', space=sflag, size = 0x4, scoped, tag = 'scoped memory for _lambda_.5']
    %13 = vsyncpa [#allocation3], 0
    %14 = vsyncpa [#allocation5], 0
    %15 = vsyncpa [#allocation8], 0
    // Predicated region
    $region2: #{_lambda_.5} parent=1 // pred_check
      _
    $region3: #{_lambda_.5} parent=1 // pred_check_branch
      %17 = sbr.rel (0) target = $region5
    $region4: #{_lambda_.5} parent=1 // pred_region
      %s19 = ssub.s32 32, 32
      %20 = vsyncadd [#allocation3], %s19
      %s22 = sshll.u32 [#allocation2], 4
      %s23 = int_to_ptr.vmem [resolvable:$true] %s22
      %25 = dma.hbm_to_vmem [thread:$0]  %s0, 32, %s23, [#allocation3]
    $region5: #{_lambda_.5} parent=1 // pred_fallthru
      _
    // Predicated region
    $region6: #{_lambda_.5} parent=1 // pred_check
      _
    $region7: #{_lambda_.5} parent=1 // pred_check_branch
      %27 = sbr.rel (0) target = $region9
    $region8: #{_lambda_.5} parent=1 // pred_region
      %s29 = ssub.s32 32, 32
      %30 = vsyncadd [#allocation5], %s29
      %s32 = sshll.u32 [#allocation4], 4
      %s33 = int_to_ptr.vmem [resolvable:$true] %s32
      %35 = dma.hbm_to_vmem [thread:$0]  %s1, 32, %s33, [#allocation5]
    $region9: #{_lambda_.5} parent=1 // pred_fallthru
      _
    // Predicated region
    $region10: #{_lambda_.5} parent=1 // pred_check
      _
    $region11: #{_lambda_.5} parent=1 // pred_check_branch
      %37 = sbr.rel (0) target = $region13
    $region12: #{_lambda_.5} parent=1 // pred_region
      %s39 = ssub.s32 16, 16
      %40 = vsyncadd [#allocation5], %s39
      %s42 = sshll.u32 [#allocation6], 4
      %s43 = int_to_ptr.vmem [resolvable:$true] %s42
      %45 = dma.hbm_to_vmem [thread:$0]  %s2, 16, %s43, [#allocation5]
    $region13: #{_lambda_.5} parent=1 // pred_fallthru
      _
    // Predicated region
    $region14: #{_lambda_.5} parent=1 // pred_check
      _
    $region15: #{_lambda_.5} parent=1 // pred_check_branch
      %47 = sbr.rel (0) target = $region17
    $region16: #{_lambda_.5} parent=1 // pred_region
      %s49 = ssub.s32 256, 256
      %50 = vsyncadd [#allocation8], %s49
      %s52 = sshll.u32 [#allocation7], 4
      %s53 = int_to_ptr.vmem [resolvable:$true] %s52
      %55 = dma.hbm_to_vmem [thread:$0]  %s3, 256, %s53, [#allocation8]
    $region17: #{_lambda_.5} parent=1 // pred_fallthru
      _
    // Predicated region
    $region18: #{_lambda_.5} parent=1 // pred_check
      _
    $region19: #{_lambda_.5} parent=1 // pred_check_branch
      %57 = sbr.rel (0) target = $region21
    $region20: #{_lambda_.5} parent=1 // pred_region
      _
    $region21: #{_lambda_.5} parent=1 // pred_fallthru
      _
    // Predicated region
    $region22: #{_lambda_.5} parent=1 // pred_check
      _
    $region23: #{_lambda_.5} parent=1 // pred_check_branch
      %59 = sbr.rel (0) target = $region25
    $region24: #{_lambda_.5} parent=1 // pred_region
      %60 = dma.done [#allocation3], 32
    $region25: #{_lambda_.5} parent=1 // pred_fallthru
      _
    // Predicated region
    $region26: #{_lambda_.5} parent=1 // pred_check
      _
    $region27: #{_lambda_.5} parent=1 // pred_check_branch
      %62 = sbr.rel (0) target = $region29
    $region28: #{_lambda_.5} parent=1 // pred_region
      %63 = dma.done [#allocation5], 32
    $region29: #{_lambda_.5} parent=1 // pred_fallthru
      _
    // Predicated region
    $region30: #{_lambda_.5} parent=1 // pred_check
      _
    $region31: #{_lambda_.5} parent=1 // pred_check_branch
      %65 = sbr.rel (0) target = $region33
    $region32: #{_lambda_.5} parent=1 // pred_region
      %66 = dma.done [#allocation5], 16
    $region33: #{_lambda_.5} parent=1 // pred_fallthru
      _
    // Predicated region
    $region34: #{_lambda_.5} parent=1 // pred_check
      _
    $region35: #{_lambda_.5} parent=1 // pred_check_branch
      %68 = sbr.rel (0) target = $region37
    $region36: #{_lambda_.5} parent=1 // pred_region
      %69 = dma.done [#allocation8], 256
    $region37: #{_lambda_.5} parent=1 // pred_fallthru
      _
    %v70 = vld [vmem:[#allocation2] sm:$0x3]
    %v71 = vld [vmem:[#allocation4] sm:$0x3]
    %v72 = vld [vmem:[#allocation6] sm:$0x1]
    %74 = vset.pattern.permute.xlu0 0
    %75 = vperm.xlu0 %74, %v70
    %v76 = vpop.permute.xlu0 %75
    %v78 = vlaneseq
    %v79 = vshrl.u32 %v78, 7
    %v80 = vsub.s32 0, %v79
    %v81 = vrot.slane %v71, %v80
    %v82 = vmul.f32 %v76, %v81
    %v84 = vlaneseq
    %v85 = vshrl.u32 %v84, 7
    %v86 = vsub.s32 0, %v85
    %v87 = vrot.slane %v72, %v86
    %v89 = vadd.f32 %v87, %v82
    %90 = vset.pattern.permute.xlu0 1
    %91 = vperm.xlu0 %90, %v70
    %v92 = vpop.permute.xlu0 %91
    %v94 = vlaneseq
    %v95 = vshrl.u32 %v94, 7
    %v96 = vsub.s32 1, %v95
    %v97 = vrot.slane %v71, %v96
    %v98 = vmul.f32 %v92, %v97
    %v99 = vadd.f32 %v89, %v98
    %v100 = vtanh.pop %v99
    %v101 = vld [vmem:[#allocation7] sm:$0xff]
    %v102 = vld [vmem:[#allocation7 + $0x8] sm:$0xff]
    %v103 = vld [vmem:[%s4] sm:$0xf]
    %105 = vset.pattern.permute.xlu0 0
    %106 = vperm.xlu0 %105, %v100
    %v107 = vpop.permute.xlu0 %106
    %v111 = vlaneseq
    %v112 = vshrl.u32 %v111, 7
    %v113 = vsub.s32 0, %v112
    %v114 = vrot.slane %v101, %v113
    %v115 = vlaneseq
    %v116 = vshrl.u32 %v115, 7
    %v117 = vsub.s32 4, %v116
    %v118 = vrot.slane %v101, %v117
    %v119 = vlaneseq
    %v120 = vshrl.u32 %v119, 7
    %v121 = vsub.s32 0, %v120
    %v122 = vrot.slane %v102, %v121
    %v123 = vlaneseq
    %v124 = vshrl.u32 %v123, 7
    %v125 = vsub.s32 4, %v124
    %v126 = vrot.slane %v102, %v125
    %v131 = vlaneseq
    %v132 = vshrl.u32 %v131, 7
    %v133 = vsub.s32 0, %v132
    %v134 = vrot.slane %v114, %v133
    %v135 = vlaneseq
    %v136 = vshrl.u32 %v135, 7
    %v137 = vsub.s32 0, %v136
    %v138 = vrot.slane %v118, %v137
    %v139 = vlaneseq
    %v140 = vshrl.u32 %v139, 7
    %v141 = vsub.s32 0, %v140
    %v142 = vrot.slane %v122, %v141
    %v143 = vlaneseq
    %v144 = vshrl.u32 %v143, 7
    %v145 = vsub.s32 0, %v144
    %v146 = vrot.slane %v126, %v145
    %v147 = vmul.f32 %v107, %v134
    %v148 = vmul.f32 %v107, %v138
    %v149 = vmul.f32 %v107, %v142
    %v150 = vmul.f32 %v107, %v146
    %v152 = vlaneseq
    %v153 = vshrl.u32 %v152, 7
    %v154 = vsub.s32 0, %v153
    %v155 = vrot.slane %v103, %v154
    %v156 = vlaneseq
    %v157 = vshrl.u32 %v156, 7
    %v158 = vsub.s32 1, %v157
    %v159 = vrot.slane %v103, %v158
    %v160 = vlaneseq
    %v161 = vshrl.u32 %v160, 7
    %v162 = vsub.s32 2, %v161
    %v163 = vrot.slane %v103, %v162
    %v164 = vlaneseq
    %v165 = vshrl.u32 %v164, 7
    %v166 = vsub.s32 3, %v165
    %v167 = vrot.slane %v103, %v166
    %v172 = vadd.f32 %v155, %v147
    %v173 = vadd.f32 %v159, %v148
    %v174 = vadd.f32 %v163, %v149
    %v175 = vadd.f32 %v167, %v150
    %176 = vset.pattern.permute.xlu0 1
    %177 = vperm.xlu0 %176, %v100
    %v178 = vpop.permute.xlu0 %177
    %v180 = vlaneseq
    %v181 = vshrl.u32 %v180, 7
    %v182 = vsub.s32 1, %v181
    %v183 = vrot.slane %v101, %v182
    %v184 = vlaneseq
    %v185 = vshrl.u32 %v184, 7
    %v186 = vsub.s32 5, %v185
    %v187 = vrot.slane %v101, %v186
    %v188 = vlaneseq
    %v189 = vshrl.u32 %v188, 7
    %v190 = vsub.s32 1, %v189
    %v191 = vrot.slane %v102, %v190
    %v192 = vlaneseq
    %v193 = vshrl.u32 %v192, 7
    %v194 = vsub.s32 5, %v193
    %v195 = vrot.slane %v102, %v194
    %v200 = vlaneseq
    %v201 = vshrl.u32 %v200, 7
    %v202 = vsub.s32 1, %v201
    %v203 = vrot.slane %v183, %v202
    %v204 = vlaneseq
    %v205 = vshrl.u32 %v204, 7
    %v206 = vsub.s32 1, %v205
    %v207 = vrot.slane %v187, %v206
    %v208 = vlaneseq
    %v209 = vshrl.u32 %v208, 7
    %v210 = vsub.s32 1, %v209
    %v211 = vrot.slane %v191, %v210
    %v212 = vlaneseq
    %v213 = vshrl.u32 %v212, 7
    %v214 = vsub.s32 1, %v213
    %v215 = vrot.slane %v195, %v214
    %v216 = vmul.f32 %v178, %v203
    %v217 = vmul.f32 %v178, %v207
    %v218 = vmul.f32 %v178, %v211
    %v219 = vmul.f32 %v178, %v215
    %v220 = vadd.f32 %v172, %v216
    %v221 = vadd.f32 %v173, %v217
    %v222 = vadd.f32 %v174, %v218
    %v223 = vadd.f32 %v175, %v219
    %224 = vset.pattern.permute.xlu0 2
    %225 = vperm.xlu0 %224, %v100
    %v226 = vpop.permute.xlu0 %225
    %v228 = vlaneseq
    %v229 = vshrl.u32 %v228, 7
    %v230 = vsub.s32 2, %v229
    %v231 = vrot.slane %v101, %v230
    %v232 = vlaneseq
    %v233 = vshrl.u32 %v232, 7
    %v234 = vsub.s32 6, %v233
    %v235 = vrot.slane %v101, %v234
    %v236 = vlaneseq
    %v237 = vshrl.u32 %v236, 7
    %v238 = vsub.s32 2, %v237
    %v239 = vrot.slane %v102, %v238
    %v240 = vlaneseq
    %v241 = vshrl.u32 %v240, 7
    %v242 = vsub.s32 6, %v241
    %v243 = vrot.slane %v102, %v242
    %v248 = vlaneseq
    %v249 = vshrl.u32 %v248, 7
    %v250 = vsub.s32 2, %v249
    %v251 = vrot.slane %v231, %v250
    %v252 = vlaneseq
    %v253 = vshrl.u32 %v252, 7
    %v254 = vsub.s32 2, %v253
    %v255 = vrot.slane %v235, %v254
    %v256 = vlaneseq
    %v257 = vshrl.u32 %v256, 7
    %v258 = vsub.s32 2, %v257
    %v259 = vrot.slane %v239, %v258
    %v260 = vlaneseq
    %v261 = vshrl.u32 %v260, 7
    %v262 = vsub.s32 2, %v261
    %v263 = vrot.slane %v243, %v262
    %v264 = vmul.f32 %v226, %v251
    %v265 = vmul.f32 %v226, %v255
    %v266 = vmul.f32 %v226, %v259
    %v267 = vmul.f32 %v226, %v263
    %v268 = vadd.f32 %v220, %v264
    %v269 = vadd.f32 %v221, %v265
    %v270 = vadd.f32 %v222, %v266
    %v271 = vadd.f32 %v223, %v267
    %272 = vset.pattern.permute.xlu0 3
    %273 = vperm.xlu0 %272, %v100
    %v274 = vpop.permute.xlu0 %273
    %v276 = vlaneseq
    %v277 = vshrl.u32 %v276, 7
    %v278 = vsub.s32 3, %v277
    %v279 = vrot.slane %v101, %v278
    %v280 = vlaneseq
    %v281 = vshrl.u32 %v280, 7
    %v282 = vsub.s32 7, %v281
    %v283 = vrot.slane %v101, %v282
    %v284 = vlaneseq
    %v285 = vshrl.u32 %v284, 7
    %v286 = vsub.s32 3, %v285
    %v287 = vrot.slane %v102, %v286
    %v288 = vlaneseq
    %v289 = vshrl.u32 %v288, 7
    %v290 = vsub.s32 7, %v289
    %v291 = vrot.slane %v102, %v290
    %v296 = vlaneseq
    %v297 = vshrl.u32 %v296, 7
    %v298 = vsub.s32 3, %v297
    %v299 = vrot.slane %v279, %v298
    %v300 = vlaneseq
    %v301 = vshrl.u32 %v300, 7
    %v302 = vsub.s32 3, %v301
    %v303 = vrot.slane %v283, %v302
    %v304 = vlaneseq
    %v305 = vshrl.u32 %v304, 7
    %v306 = vsub.s32 3, %v305
    %v307 = vrot.slane %v287, %v306
    %v308 = vlaneseq
    %v309 = vshrl.u32 %v308, 7
    %v310 = vsub.s32 3, %v309
    %v311 = vrot.slane %v291, %v310
    %v312 = vmul.f32 %v274, %v299
    %v313 = vmul.f32 %v274, %v303
    %v314 = vmul.f32 %v274, %v307
    %v315 = vmul.f32 %v274, %v311
    %v316 = vadd.f32 %v268, %v312
    %v317 = vadd.f32 %v269, %v313
    %v318 = vadd.f32 %v270, %v314
    %v319 = vadd.f32 %v271, %v315
    %v324 = vcombine.low %v316, %v317
    %v325 = vcombine.low %v318, %v319
    %v327 = vunpack.c.l.s4 1983009808
    %v328 = vunpack.c.0.s8 %v327
    %v329 = vlaneseq
    %v330 = vshrl.u32 %v329, 7
    %v331 = vsub.s32 %v328, %v330
    %v332 = vrot.slane %v324, %v331
    %v334 = vunpack.c.l.s4 1983009808
    %v335 = vunpack.c.0.s8 %v334
    %v336 = vlaneseq
    %v337 = vshrl.u32 %v336, 7
    %v338 = vsub.s32 %v335, %v337
    %v339 = vrot.slane %v325, %v338
    %v340 = vcombine.low %v332, %v339
    %342 = vst [vmem:[%s5] sm:$0xff] %v340
    %vm343 = vcmask 1041408
    %v344 = vsel %vm343, %v316, 0.0
    %v345 = vrot.slane %v344, 4
    %v346 = vadd.f32 %v344, %v345
    %v347 = vrot.slane %v346, 2
    %v348 = vadd.f32 %v346, %v347
    %v349 = vrot.slane %v348, 1
    %v350 = vadd.f32 %v348, %v349
    %v351 = vsel %vm343, %v317, 0.0
    %v352 = vrot.slane %v351, 4
    %v353 = vadd.f32 %v351, %v352
    %v354 = vrot.slane %v353, 2
    %v355 = vadd.f32 %v353, %v354
    %v356 = vrot.slane %v355, 1
    %v357 = vadd.f32 %v355, %v356
    %v358 = vsel %vm343, %v318, 0.0
    %v359 = vrot.slane %v358, 4
    %v360 = vadd.f32 %v358, %v359
    %v361 = vrot.slane %v360, 2
    %v362 = vadd.f32 %v360, %v361
    %v363 = vrot.slane %v362, 1
    %v364 = vadd.f32 %v362, %v363
    %v365 = vsel %vm343, %v319, 0.0
    %v366 = vrot.slane %v365, 4
    %v367 = vadd.f32 %v365, %v366
    %v368 = vrot.slane %v367, 2
    %v369 = vadd.f32 %v367, %v368
    %v370 = vrot.slane %v369, 1
    %v371 = vadd.f32 %v369, %v370
    %v376 = vcombine.low %v350, %v357
    %v377 = vcombine.low %v364, %v371
    %v379 = vunpack.c.l.s4 1966171168
    %v380 = vunpack.c.0.s8 %v379
    %v381 = vlaneseq
    %v382 = vshrl.u32 %v381, 7
    %v383 = vsub.s32 %v380, %v382
    %v384 = vrot.slane %v376, %v383
    %v386 = vunpack.c.l.s4 1966171168
    %v387 = vunpack.c.0.s8 %v386
    %v388 = vlaneseq
    %v389 = vshrl.u32 %v388, 7
    %v390 = vsub.s32 %v387, %v389
    %v391 = vrot.slane %v377, %v390
    %v392 = vcombine.low %v384, %v391
    %v394 = vunpack.c.l.s4 1966171168
    %v395 = vunpack.c.0.s8 %v394
    %v396 = vlaneseq
    %v397 = vshrl.u32 %v396, 7
    %v398 = vsub.s32 %v395, %v397
    %v399 = vrot.slane %v392, %v398
    %v401 = vlaneseq
    %vm402 = vcmp.ge.s32.totalorder %v401, 0
    %vm403 = vcmp.lt.s32.totalorder %v401, 512
    %vm404 = vmand %vm402, %vm403
    %405 = vst.msk [vmem:[%s6] sm:$0xf] %vm404, %v399
    %v406 = vmul.f32 %v316, %v316
    %v407 = vmul.f32 %v317, %v317
    %v408 = vmul.f32 %v318, %v318
    %v409 = vmul.f32 %v319, %v319
    %v410 = vsel %vm343, %v406, 0.0
    %v411 = vrot.slane %v410, 4
    %v412 = vadd.f32 %v410, %v411
    %v413 = vrot.slane %v412, 2
    %v414 = vadd.f32 %v412, %v413
    %v415 = vrot.slane %v414, 1
    %v416 = vadd.f32 %v414, %v415
    %v417 = vsel %vm343, %v407, 0.0
    %v418 = vrot.slane %v417, 4
    %v419 = vadd.f32 %v417, %v418
    %v420 = vrot.slane %v419, 2
    %v421 = vadd.f32 %v419, %v420
    %v422 = vrot.slane %v421, 1
    %v423 = vadd.f32 %v421, %v422
    %v424 = vsel %vm343, %v408, 0.0
    %v425 = vrot.slane %v424, 4
    %v426 = vadd.f32 %v424, %v425
    %v427 = vrot.slane %v426, 2
    %v428 = vadd.f32 %v426, %v427
    %v429 = vrot.slane %v428, 1
    %v430 = vadd.f32 %v428, %v429
    %v431 = vsel %vm343, %v409, 0.0
    %v432 = vrot.slane %v431, 4
    %v433 = vadd.f32 %v431, %v432
    %v434 = vrot.slane %v433, 2
    %v435 = vadd.f32 %v433, %v434
    %v436 = vrot.slane %v435, 1
    %v437 = vadd.f32 %v435, %v436
    %v442 = vcombine.low %v416, %v423
    %v443 = vcombine.low %v430, %v437
    %v445 = vunpack.c.l.s4 1966171168
    %v446 = vunpack.c.0.s8 %v445
    %v447 = vlaneseq
    %v448 = vshrl.u32 %v447, 7
    %v449 = vsub.s32 %v446, %v448
    %v450 = vrot.slane %v442, %v449
    %v452 = vunpack.c.l.s4 1966171168
    %v453 = vunpack.c.0.s8 %v452
    %v454 = vlaneseq
    %v455 = vshrl.u32 %v454, 7
    %v456 = vsub.s32 %v453, %v455
    %v457 = vrot.slane %v443, %v456
    %v458 = vcombine.low %v450, %v457
    %v460 = vunpack.c.l.s4 1966171168
    %v461 = vunpack.c.0.s8 %v460
    %v462 = vlaneseq
    %v463 = vshrl.u32 %v462, 7
    %v464 = vsub.s32 %v461, %v463
    %v465 = vrot.slane %v458, %v464
    %467 = vst.msk [vmem:[%s7] sm:$0xf] %vm404, %v465
    // Predicated region
    $region38: #{_lambda_.5} parent=1 // pred_check
      _
    $region39: #{_lambda_.5} parent=1 // pred_check_branch
      %469 = sbr.rel (0) target = $region41
    $region40: #{_lambda_.5} parent=1 // pred_region
      _
    $region41: #{_lambda_.5} parent=1 // pred_fallthru
      _
    // Predicated region
    $region42: #{_lambda_.5} parent=1 // pred_check
      _
    $region43: #{_lambda_.5} parent=1 // pred_check_branch
      %471 = sbr.rel (0) target = $region45
    $region44: #{_lambda_.5} parent=1 // pred_region
      _
    $region45: #{_lambda_.5} parent=1 // pred_fallthru
      _
    // Predicated region
    $region46: #{_lambda_.5} parent=1 // pred_check
      _
    $region47: #{_lambda_.5} parent=1 // pred_check_branch
      %473 = sbr.rel (0) target = $region49
    $region48: #{_lambda_.5} parent=1 // pred_region
      _
    $region49: #{_lambda_.5} parent=1 // pred_fallthru
      _
    // Predicated region
    $region50: #{_lambda_.5} parent=1 // pred_check
      _
    $region51: #{_lambda_.5} parent=1 // pred_check_branch
      %475 = sbr.rel (0) target = $region53
    $region52: #{_lambda_.5} parent=1 // pred_region
      _
    $region53: #{_lambda_.5} parent=1 // pred_fallthru
      _
    // Predicated region
    $region54: #{_lambda_.5} parent=1 // pred_check
      _
    $region55: #{_lambda_.5} parent=1 // pred_check_branch
      %477 = sbr.rel (0) target = $region57
    $region56: #{_lambda_.5} parent=1 // pred_region
      _
    $region57: #{_lambda_.5} parent=1 // pred_fallthru
      _
    // Predicated region
    $region58: #{_lambda_.5} parent=1 // pred_check
      _
    $region59: #{_lambda_.5} parent=1 // pred_check_branch
      %479 = sbr.rel (0) target = $region61
    $region60: #{_lambda_.5} parent=1 // pred_region
      _
    $region61: #{_lambda_.5} parent=1 // pred_fallthru
      _
    %480 = vsyncpa [#allocation3], 1
    %481 = vsyncpa [#allocation5], 1
    %482 = vsyncpa [#allocation8], 1

// kernel: _lambda_.8
$region0: #{_lambda_.8}
  #allocation0 [shape = 'u32[]', space=smem, size = 0x4, offset = 0x4, fixed_abs, tag = 'smem constant byte address 0x4 - core index']
  #allocation1 [shape = 'u32[144,128]{1,0:T(1,128)}', space=vmem, size = 0x12000, scoped, tag = 'internal scratch']
  %s0 = inlined_call_operand.vmem [shape: f32[512,8], index: 0, kind: input, shape index: {}]
  %s1 = inlined_call_operand.vmem [shape: f32[1,8], index: 1, kind: input, shape index: {}]
  %s2 = inlined_call_operand.vmem [shape: f32[1,8], index: 2, kind: input, shape index: {}]
  %s3 = inlined_call_operand.hbm [shape: f32[8,16], index: 3, kind: input, shape index: {}]
  %s4 = inlined_call_operand.vmem [shape: f32[1,16], index: 4, kind: input, shape index: {}]
  %s5 = inlined_call_operand.vmem [shape: f32[512,16], index: 5, kind: output, shape index: {0}]
  %s6 = inlined_call_operand.vmem [shape: f32[1,16], index: 6, kind: output, shape index: {1}]
  %s7 = inlined_call_operand.vmem [shape: f32[1,16], index: 7, kind: output, shape index: {2}]
  %8 = xla_tuple %s5, %s6, %s7
  %s9 = sld [smem:[#allocation0]]
  $region54: #{_lambda_.8} parent=0
    _
  %s11 = ssub.s32 1, %s9
  %s12 = scalar_select 0, %s11, %s9
  $region1: #{_lambda_.8} parent=0
    #allocation2 [shape = 'u8[4096]{0}', space=vmem, size = 0x1000, scoped, tag = 'input window, operand 3, single buffered']
    #allocation3 [shape = 's32[1]{0}', space=sflag, size = 0x4, scoped, tag = 'scoped memory for _lambda_.8']
    %13 = vsyncpa [#allocation3], 0
    // Predicated region
    $region2: #{_lambda_.8} parent=1 // pred_check
      _
    $region3: #{_lambda_.8} parent=1 // pred_check_branch
      %15 = sbr.rel (0) target = $region5
    $region4: #{_lambda_.8} parent=1 // pred_region
      _
    $region5: #{_lambda_.8} parent=1 // pred_fallthru
      _
    // Predicated region
    $region6: #{_lambda_.8} parent=1 // pred_check
      _
    $region7: #{_lambda_.8} parent=1 // pred_check_branch
      %17 = sbr.rel (0) target = $region9
    $region8: #{_lambda_.8} parent=1 // pred_region
      _
    $region9: #{_lambda_.8} parent=1 // pred_fallthru
      _
    // Predicated region
    $region10: #{_lambda_.8} parent=1 // pred_check
      _
    $region11: #{_lambda_.8} parent=1 // pred_check_branch
      %19 = sbr.rel (0) target = $region13
    $region12: #{_lambda_.8} parent=1 // pred_region
      _
    $region13: #{_lambda_.8} parent=1 // pred_fallthru
      _
    // Predicated region
    $region14: #{_lambda_.8} parent=1 // pred_check
      _
    $region15: #{_lambda_.8} parent=1 // pred_check_branch
      %21 = sbr.rel (0) target = $region17
    $region16: #{_lambda_.8} parent=1 // pred_region
      %s23 = ssub.s32 128, 128
      %24 = vsyncadd [#allocation3], %s23
      %s26 = sshll.u32 [#allocation2], 4
      %s27 = int_to_ptr.vmem [resolvable:$true] %s26
      %29 = dma.hbm_to_vmem [thread:$0]  %s3, 128, %s27, [#allocation3]
    $region17: #{_lambda_.8} parent=1 // pred_fallthru
      _
    // Predicated region
    $region18: #{_lambda_.8} parent=1 // pred_check
      _
    $region19: #{_lambda_.8} parent=1 // pred_check_branch
      %31 = sbr.rel (0) target = $region21
    $region20: #{_lambda_.8} parent=1 // pred_region
      _
    $region21: #{_lambda_.8} parent=1 // pred_fallthru
      _
    // Predicated region
    $region22: #{_lambda_.8} parent=1 // pred_check
      _
    $region23: #{_lambda_.8} parent=1 // pred_check_branch
      %33 = sbr.rel (0) target = $region25
    $region24: #{_lambda_.8} parent=1 // pred_region
      %34 = dma.done [#allocation3], 128
    $region25: #{_lambda_.8} parent=1 // pred_fallthru
      _
    %v35 = vld [vmem:[%s0] sm:$0xff]
    %v36 = vld [vmem:[%s0 + $0x8] sm:$0xff]
    %v37 = vld [vmem:[%s0 + $0x10] sm:$0xff]
    %v38 = vld [vmem:[%s0 + $0x18] sm:$0xff]
    %v39 = vld [vmem:[%s0 + $0x20] sm:$0xff]
    %v40 = vld [vmem:[%s0 + $0x28] sm:$0xff]
    %v41 = vld [vmem:[%s0 + $0x30] sm:$0xff]
    %v42 = vld [vmem:[%s0 + $0x38] sm:$0xff]
    %v43 = vld [vmem:[%s0 + $0x40] sm:$0xff]
    %v44 = vld [vmem:[%s0 + $0x48] sm:$0xff]
    %v45 = vld [vmem:[%s0 + $0x50] sm:$0xff]
    %v46 = vld [vmem:[%s0 + $0x58] sm:$0xff]
    %v47 = vld [vmem:[%s0 + $0x60] sm:$0xff]
    %v48 = vld [vmem:[%s0 + $0x68] sm:$0xff]
    %v49 = vld [vmem:[%s0 + $0x70] sm:$0xff]
    %v50 = vld [vmem:[%s0 + $0x78] sm:$0xff]
    %v51 = vld [vmem:[%s0 + $0x80] sm:$0xff]
    %v52 = vld [vmem:[%s0 + $0x88] sm:$0xff]
    %v53 = vld [vmem:[%s0 + $0x90] sm:$0xff]
    %v54 = vld [vmem:[%s0 + $0x98] sm:$0xff]
    %v55 = vld [vmem:[%s0 + $0xa0] sm:$0xff]
    %v56 = vld [vmem:[%s0 + $0xa8] sm:$0xff]
    %v57 = vld [vmem:[%s0 + $0xb0] sm:$0xff]
    %v58 = vld [vmem:[%s0 + $0xb8] sm:$0xff]
    %v59 = vld [vmem:[%s0 + $0xc0] sm:$0xff]
    %v60 = vld [vmem:[%s0 + $0xc8] sm:$0xff]
    %v61 = vld [vmem:[%s0 + $0xd0] sm:$0xff]
    %v62 = vld [vmem:[%s0 + $0xd8] sm:$0xff]
    %v63 = vld [vmem:[%s0 + $0xe0] sm:$0xff]
    %v64 = vld [vmem:[%s0 + $0xe8] sm:$0xff]
    %v65 = vld [vmem:[%s0 + $0xf0] sm:$0xff]
    %v66 = vld [vmem:[%s0 + $0xf8] sm:$0xff]
    %v67 = vld [vmem:[%s0 + $0x100] sm:$0xff]
    %v68 = vld [vmem:[%s0 + $0x108] sm:$0xff]
    %v69 = vld [vmem:[%s0 + $0x110] sm:$0xff]
    %v70 = vld [vmem:[%s0 + $0x118] sm:$0xff]
    %v71 = vld [vmem:[%s0 + $0x120] sm:$0xff]
    %v72 = vld [vmem:[%s0 + $0x128] sm:$0xff]
    %v73 = vld [vmem:[%s0 + $0x130] sm:$0xff]
    %v74 = vld [vmem:[%s0 + $0x138] sm:$0xff]
    %v75 = vld [vmem:[%s0 + $0x140] sm:$0xff]
    %v76 = vld [vmem:[%s0 + $0x148] sm:$0xff]
    %v77 = vld [vmem:[%s0 + $0x150] sm:$0xff]
    %v78 = vld [vmem:[%s0 + $0x158] sm:$0xff]
    %v79 = vld [vmem:[%s0 + $0x160] sm:$0xff]
    %v80 = vld [vmem:[%s0 + $0x168] sm:$0xff]
    %v81 = vld [vmem:[%s0 + $0x170] sm:$0xff]
    %v82 = vld [vmem:[%s0 + $0x178] sm:$0xff]
    %v83 = vld [vmem:[%s0 + $0x180] sm:$0xff]
    %v84 = vld [vmem:[%s0 + $0x188] sm:$0xff]
    %v85 = vld [vmem:[%s0 + $0x190] sm:$0xff]
    %v86 = vld [vmem:[%s0 + $0x198] sm:$0xff]
    %v87 = vld [vmem:[%s0 + $0x1a0] sm:$0xff]
    %v88 = vld [vmem:[%s0 + $0x1a8] sm:$0xff]
    %v89 = vld [vmem:[%s0 + $0x1b0] sm:$0xff]
    %v90 = vld [vmem:[%s0 + $0x1b8] sm:$0xff]
    %v91 = vld [vmem:[%s0 + $0x1c0] sm:$0xff]
    %v92 = vld [vmem:[%s0 + $0x1c8] sm:$0xff]
    %v93 = vld [vmem:[%s0 + $0x1d0] sm:$0xff]
    %v94 = vld [vmem:[%s0 + $0x1d8] sm:$0xff]
    %v95 = vld [vmem:[%s0 + $0x1e0] sm:$0xff]
    %v96 = vld [vmem:[%s0 + $0x1e8] sm:$0xff]
    %v97 = vld [vmem:[%s0 + $0x1f0] sm:$0xff]
    %v98 = vld [vmem:[%s0 + $0x1f8] sm:$0xff]
    %v99 = vld [vmem:[%s1] sm:$0x1]
    %v101 = vlaneseq
    %v102 = vshrl.u32 %v101, 7
    %v103 = vsub.s32 0, %v102
    %v104 = vrot.slane %v99, %v103
    %v106 = vmul.f32 %v35, %v104
    %v107 = vmul.f32 %v36, %v104
    %v108 = vmul.f32 %v37, %v104
    %v109 = vmul.f32 %v38, %v104
    %v110 = vmul.f32 %v39, %v104
    %v111 = vmul.f32 %v40, %v104
    %v112 = vmul.f32 %v41, %v104
    %v113 = vmul.f32 %v42, %v104
    %v114 = vmul.f32 %v43, %v104
    %v115 = vmul.f32 %v44, %v104
    %v116 = vmul.f32 %v45, %v104
    %v117 = vmul.f32 %v46, %v104
    %v118 = vmul.f32 %v47, %v104
    %v119 = vmul.f32 %v48, %v104
    %v120 = vmul.f32 %v49, %v104
    %v121 = vmul.f32 %v50, %v104
    %v122 = vmul.f32 %v51, %v104
    %v123 = vmul.f32 %v52, %v104
    %v124 = vmul.f32 %v53, %v104
    %v125 = vmul.f32 %v54, %v104
    %v126 = vmul.f32 %v55, %v104
    %v127 = vmul.f32 %v56, %v104
    %v128 = vmul.f32 %v57, %v104
    %v129 = vmul.f32 %v58, %v104
    %v130 = vmul.f32 %v59, %v104
    %v131 = vmul.f32 %v60, %v104
    %v132 = vmul.f32 %v61, %v104
    %v133 = vmul.f32 %v62, %v104
    %v134 = vmul.f32 %v63, %v104
    %v135 = vmul.f32 %v64, %v104
    %v136 = vmul.f32 %v65, %v104
    %v137 = vmul.f32 %v66, %v104
    %v138 = vmul.f32 %v67, %v104
    %v139 = vmul.f32 %v68, %v104
    %v140 = vmul.f32 %v69, %v104
    %v141 = vmul.f32 %v70, %v104
    %v142 = vmul.f32 %v71, %v104
    %v143 = vmul.f32 %v72, %v104
    %v144 = vmul.f32 %v73, %v104
    %v145 = vmul.f32 %v74, %v104
    %v146 = vmul.f32 %v75, %v104
    %v147 = vmul.f32 %v76, %v104
    %v148 = vmul.f32 %v77, %v104
    %v149 = vmul.f32 %v78, %v104
    %v150 = vmul.f32 %v79, %v104
    %v151 = vmul.f32 %v80, %v104
    %v152 = vmul.f32 %v81, %v104
    %v153 = vmul.f32 %v82, %v104
    %v154 = vmul.f32 %v83, %v104
    %v155 = vmul.f32 %v84, %v104
    %v156 = vmul.f32 %v85, %v104
    %v157 = vmul.f32 %v86, %v104
    %v158 = vmul.f32 %v87, %v104
    %v159 = vmul.f32 %v88, %v104
    %v160 = vmul.f32 %v89, %v104
    %v161 = vmul.f32 %v90, %v104
    %v162 = vmul.f32 %v91, %v104
    %v163 = vmul.f32 %v92, %v104
    %v164 = vmul.f32 %v93, %v104
    %v165 = vmul.f32 %v94, %v104
    %v166 = vmul.f32 %v95, %v104
    %v167 = vmul.f32 %v96, %v104
    %v168 = vmul.f32 %v97, %v104
    %v169 = vmul.f32 %v98, %v104
    %v170 = vld [vmem:[%s2] sm:$0x1]
    %v172 = vlaneseq
    %v173 = vshrl.u32 %v172, 7
    %v174 = vsub.s32 0, %v173
    %v175 = vrot.slane %v170, %v174
    %v177 = vadd.f32 %v106, %v175
    %v178 = vadd.f32 %v107, %v175
    %v179 = vadd.f32 %v108, %v175
    %v180 = vadd.f32 %v109, %v175
    %v181 = vadd.f32 %v110, %v175
    %v182 = vadd.f32 %v111, %v175
    %v183 = vadd.f32 %v112, %v175
    %v184 = vadd.f32 %v113, %v175
    %v185 = vadd.f32 %v114, %v175
    %v186 = vadd.f32 %v115, %v175
    %v187 = vadd.f32 %v116, %v175
    %v188 = vadd.f32 %v117, %v175
    %v189 = vadd.f32 %v118, %v175
    %v190 = vadd.f32 %v119, %v175
    %v191 = vadd.f32 %v120, %v175
    %v192 = vadd.f32 %v121, %v175
    %v193 = vadd.f32 %v122, %v175
    %v194 = vadd.f32 %v123, %v175
    %v195 = vadd.f32 %v124, %v175
    %v196 = vadd.f32 %v125, %v175
    %v197 = vadd.f32 %v126, %v175
    %v198 = vadd.f32 %v127, %v175
    %v199 = vadd.f32 %v128, %v175
    %v200 = vadd.f32 %v129, %v175
    %v201 = vadd.f32 %v130, %v175
    %v202 = vadd.f32 %v131, %v175
    %v203 = vadd.f32 %v132, %v175
    %v204 = vadd.f32 %v133, %v175
    %v205 = vadd.f32 %v134, %v175
    %v206 = vadd.f32 %v135, %v175
    %v207 = vadd.f32 %v136, %v175
    %v208 = vadd.f32 %v137, %v175
    %v209 = vadd.f32 %v138, %v175
    %v210 = vadd.f32 %v139, %v175
    %v211 = vadd.f32 %v140, %v175
    %v212 = vadd.f32 %v141, %v175
    %v213 = vadd.f32 %v142, %v175
    %v214 = vadd.f32 %v143, %v175
    %v215 = vadd.f32 %v144, %v175
    %v216 = vadd.f32 %v145, %v175
    %v217 = vadd.f32 %v146, %v175
    %v218 = vadd.f32 %v147, %v175
    %v219 = vadd.f32 %v148, %v175
    %v220 = vadd.f32 %v149, %v175
    %v221 = vadd.f32 %v150, %v175
    %v222 = vadd.f32 %v151, %v175
    %v223 = vadd.f32 %v152, %v175
    %v224 = vadd.f32 %v153, %v175
    %v225 = vadd.f32 %v154, %v175
    %v226 = vadd.f32 %v155, %v175
    %v227 = vadd.f32 %v156, %v175
    %v228 = vadd.f32 %v157, %v175
    %v229 = vadd.f32 %v158, %v175
    %v230 = vadd.f32 %v159, %v175
    %v231 = vadd.f32 %v160, %v175
    %v232 = vadd.f32 %v161, %v175
    %v233 = vadd.f32 %v162, %v175
    %v234 = vadd.f32 %v163, %v175
    %v235 = vadd.f32 %v164, %v175
    %v236 = vadd.f32 %v165, %v175
    %v237 = vadd.f32 %v166, %v175
    %v238 = vadd.f32 %v167, %v175
    %v239 = vadd.f32 %v168, %v175
    %v240 = vadd.f32 %v169, %v175
    %vm241 = vcmp.gt.f32.partialorder %v177, 0.0
    %vm242 = vcmp.gt.f32.partialorder %v178, 0.0
    %vm243 = vcmp.gt.f32.partialorder %v179, 0.0
    %vm244 = vcmp.gt.f32.partialorder %v180, 0.0
    %vm245 = vcmp.gt.f32.partialorder %v181, 0.0
    %vm246 = vcmp.gt.f32.partialorder %v182, 0.0
    %vm247 = vcmp.gt.f32.partialorder %v183, 0.0
    %vm248 = vcmp.gt.f32.partialorder %v184, 0.0
    %vm249 = vcmp.gt.f32.partialorder %v185, 0.0
    %vm250 = vcmp.gt.f32.partialorder %v186, 0.0
    %vm251 = vcmp.gt.f32.partialorder %v187, 0.0
    %vm252 = vcmp.gt.f32.partialorder %v188, 0.0
    %vm253 = vcmp.gt.f32.partialorder %v189, 0.0
    %vm254 = vcmp.gt.f32.partialorder %v190, 0.0
    %vm255 = vcmp.gt.f32.partialorder %v191, 0.0
    %vm256 = vcmp.gt.f32.partialorder %v192, 0.0
    %vm257 = vcmp.gt.f32.partialorder %v193, 0.0
    %vm258 = vcmp.gt.f32.partialorder %v194, 0.0
    %vm259 = vcmp.gt.f32.partialorder %v195, 0.0
    %vm260 = vcmp.gt.f32.partialorder %v196, 0.0
    %vm261 = vcmp.gt.f32.partialorder %v197, 0.0
    %vm262 = vcmp.gt.f32.partialorder %v198, 0.0
    %vm263 = vcmp.gt.f32.partialorder %v199, 0.0
    %vm264 = vcmp.gt.f32.partialorder %v200, 0.0
    %vm265 = vcmp.gt.f32.partialorder %v201, 0.0
    %vm266 = vcmp.gt.f32.partialorder %v202, 0.0
    %vm267 = vcmp.gt.f32.partialorder %v203, 0.0
    %vm268 = vcmp.gt.f32.partialorder %v204, 0.0
    %vm269 = vcmp.gt.f32.partialorder %v205, 0.0
    %vm270 = vcmp.gt.f32.partialorder %v206, 0.0
    %vm271 = vcmp.gt.f32.partialorder %v207, 0.0
    %vm272 = vcmp.gt.f32.partialorder %v208, 0.0
    %vm273 = vcmp.gt.f32.partialorder %v209, 0.0
    %vm274 = vcmp.gt.f32.partialorder %v210, 0.0
    %vm275 = vcmp.gt.f32.partialorder %v211, 0.0
    %vm276 = vcmp.gt.f32.partialorder %v212, 0.0
    %vm277 = vcmp.gt.f32.partialorder %v213, 0.0
    %vm278 = vcmp.gt.f32.partialorder %v214, 0.0
    %vm279 = vcmp.gt.f32.partialorder %v215, 0.0
    %vm280 = vcmp.gt.f32.partialorder %v216, 0.0
    %vm281 = vcmp.gt.f32.partialorder %v217, 0.0
    %vm282 = vcmp.gt.f32.partialorder %v218, 0.0
    %vm283 = vcmp.gt.f32.partialorder %v219, 0.0
    %vm284 = vcmp.gt.f32.partialorder %v220, 0.0
    %vm285 = vcmp.gt.f32.partialorder %v221, 0.0
    %vm286 = vcmp.gt.f32.partialorder %v222, 0.0
    %vm287 = vcmp.gt.f32.partialorder %v223, 0.0
    %vm288 = vcmp.gt.f32.partialorder %v224, 0.0
    %vm289 = vcmp.gt.f32.partialorder %v225, 0.0
    %vm290 = vcmp.gt.f32.partialorder %v226, 0.0
    %vm291 = vcmp.gt.f32.partialorder %v227, 0.0
    %vm292 = vcmp.gt.f32.partialorder %v228, 0.0
    %vm293 = vcmp.gt.f32.partialorder %v229, 0.0
    %vm294 = vcmp.gt.f32.partialorder %v230, 0.0
    %vm295 = vcmp.gt.f32.partialorder %v231, 0.0
    %vm296 = vcmp.gt.f32.partialorder %v232, 0.0
    %vm297 = vcmp.gt.f32.partialorder %v233, 0.0
    %vm298 = vcmp.gt.f32.partialorder %v234, 0.0
    %vm299 = vcmp.gt.f32.partialorder %v235, 0.0
    %vm300 = vcmp.gt.f32.partialorder %v236, 0.0
    %vm301 = vcmp.gt.f32.partialorder %v237, 0.0
    %vm302 = vcmp.gt.f32.partialorder %v238, 0.0
    %vm303 = vcmp.gt.f32.partialorder %v239, 0.0
    %vm304 = vcmp.gt.f32.partialorder %v240, 0.0
    %v305 = vmul.f32 %v177, 0.01
    %v306 = vmul.f32 %v178, 0.01
    %v307 = vmul.f32 %v179, 0.01
    %v308 = vmul.f32 %v180, 0.01
    %v309 = vmul.f32 %v181, 0.01
    %v310 = vmul.f32 %v182, 0.01
    %v311 = vmul.f32 %v183, 0.01
    %v312 = vmul.f32 %v184, 0.01
    %v313 = vmul.f32 %v185, 0.01
    %v314 = vmul.f32 %v186, 0.01
    %v315 = vmul.f32 %v187, 0.01
    %v316 = vmul.f32 %v188, 0.01
    %v317 = vmul.f32 %v189, 0.01
    %v318 = vmul.f32 %v190, 0.01
    %v319 = vmul.f32 %v191, 0.01
    %v320 = vmul.f32 %v192, 0.01
    %v321 = vmul.f32 %v193, 0.01
    %v322 = vmul.f32 %v194, 0.01
    %v323 = vmul.f32 %v195, 0.01
    %v324 = vmul.f32 %v196, 0.01
    %v325 = vmul.f32 %v197, 0.01
    %v326 = vmul.f32 %v198, 0.01
    %v327 = vmul.f32 %v199, 0.01
    %v328 = vmul.f32 %v200, 0.01
    %v329 = vmul.f32 %v201, 0.01
    %v330 = vmul.f32 %v202, 0.01
    %v331 = vmul.f32 %v203, 0.01
    %v332 = vmul.f32 %v204, 0.01
    %v333 = vmul.f32 %v205, 0.01
    %v334 = vmul.f32 %v206, 0.01
    %v335 = vmul.f32 %v207, 0.01
    %v336 = vmul.f32 %v208, 0.01
    %v337 = vmul.f32 %v209, 0.01
    %v338 = vmul.f32 %v210, 0.01
    %v339 = vmul.f32 %v211, 0.01
    %v340 = vmul.f32 %v212, 0.01
    %v341 = vmul.f32 %v213, 0.01
    %v342 = vmul.f32 %v214, 0.01
    %v343 = vmul.f32 %v215, 0.01
    %v344 = vmul.f32 %v216, 0.01
    %v345 = vmul.f32 %v217, 0.01
    %v346 = vmul.f32 %v218, 0.01
    %v347 = vmul.f32 %v219, 0.01
    %v348 = vmul.f32 %v220, 0.01
    %v349 = vmul.f32 %v221, 0.01
    %v350 = vmul.f32 %v222, 0.01
    %v351 = vmul.f32 %v223, 0.01
    %v352 = vmul.f32 %v224, 0.01
    %v353 = vmul.f32 %v225, 0.01
    %v354 = vmul.f32 %v226, 0.01
    %v355 = vmul.f32 %v227, 0.01
    %v356 = vmul.f32 %v228, 0.01
    %v357 = vmul.f32 %v229, 0.01
    %v358 = vmul.f32 %v230, 0.01
    %v359 = vmul.f32 %v231, 0.01
    %v360 = vmul.f32 %v232, 0.01
    %v361 = vmul.f32 %v233, 0.01
    %v362 = vmul.f32 %v234, 0.01
    %v363 = vmul.f32 %v235, 0.01
    %v364 = vmul.f32 %v236, 0.01
    %v365 = vmul.f32 %v237, 0.01
    %v366 = vmul.f32 %v238, 0.01
    %v367 = vmul.f32 %v239, 0.01
    %v368 = vmul.f32 %v240, 0.01
    %v369 = vsel %vm241, %v177, %v305
    %v370 = vsel %vm242, %v178, %v306
    %v371 = vsel %vm243, %v179, %v307
    %v372 = vsel %vm244, %v180, %v308
    %v373 = vsel %vm245, %v181, %v309
    %v374 = vsel %vm246, %v182, %v310
    %v375 = vsel %vm247, %v183, %v311
    %v376 = vsel %vm248, %v184, %v312
    %v377 = vsel %vm249, %v185, %v313
    %v378 = vsel %vm250, %v186, %v314
    %v379 = vsel %vm251, %v187, %v315
    %v380 = vsel %vm252, %v188, %v316
    %v381 = vsel %vm253, %v189, %v317
    %v382 = vsel %vm254, %v190, %v318
    %v383 = vsel %vm255, %v191, %v319
    %v384 = vsel %vm256, %v192, %v320
    %v385 = vsel %vm257, %v193, %v321
    %v386 = vsel %vm258, %v194, %v322
    %v387 = vsel %vm259, %v195, %v323
    %v388 = vsel %vm260, %v196, %v324
    %v389 = vsel %vm261, %v197, %v325
    %v390 = vsel %vm262, %v198, %v326
    %v391 = vsel %vm263, %v199, %v327
    %v392 = vsel %vm264, %v200, %v328
    %v393 = vsel %vm265, %v201, %v329
    %v394 = vsel %vm266, %v202, %v330
    %v395 = vsel %vm267, %v203, %v331
    %v396 = vsel %vm268, %v204, %v332
    %v397 = vsel %vm269, %v205, %v333
    %v398 = vsel %vm270, %v206, %v334
    %v399 = vsel %vm271, %v207, %v335
    %v400 = vsel %vm272, %v208, %v336
    %v401 = vsel %vm273, %v209, %v337
    %v402 = vsel %vm274, %v210, %v338
    %v403 = vsel %vm275, %v211, %v339
    %v404 = vsel %vm276, %v212, %v340
    %v405 = vsel %vm277, %v213, %v341
    %v406 = vsel %vm278, %v214, %v342
    %v407 = vsel %vm279, %v215, %v343
    %v408 = vsel %vm280, %v216, %v344
    %v409 = vsel %vm281, %v217, %v345
    %v410 = vsel %vm282, %v218, %v346
    %v411 = vsel %vm283, %v219, %v347
    %v412 = vsel %vm284, %v220, %v348
    %v413 = vsel %vm285, %v221, %v349
    %v414 = vsel %vm286, %v222, %v350
    %v415 = vsel %vm287, %v223, %v351
    %v416 = vsel %vm288, %v224, %v352
    %v417 = vsel %vm289, %v225, %v353
    %v418 = vsel %vm290, %v226, %v354
    %v419 = vsel %vm291, %v227, %v355
    %v420 = vsel %vm292, %v228, %v356
    %v421 = vsel %vm293, %v229, %v357
    %v422 = vsel %vm294, %v230, %v358
    %v423 = vsel %vm295, %v231, %v359
    %v424 = vsel %vm296, %v232, %v360
    %v425 = vsel %vm297, %v233, %v361
    %v426 = vsel %vm298, %v234, %v362
    %v427 = vsel %vm299, %v235, %v363
    %v428 = vsel %vm300, %v236, %v364
    %v429 = vsel %vm301, %v237, %v365
    %v430 = vsel %vm302, %v238, %v366
    %v431 = vsel %vm303, %v239, %v367
    %v432 = vsel %vm304, %v240, %v368
    %v433 = vld [vmem:[#allocation2] sm:$0xff]
    %v434 = vld [vmem:[%s4] sm:$0x1]
    %436 = vset.pattern.permute.xlu0 0
    %437 = vperm.xlu0 %436, %v369
    %v438 = vpop.permute.xlu0 %437
    %441 = vset.pattern.permute.xlu0 0
    %442 = vperm.xlu0 %441, %v370
    %v443 = vpop.permute.xlu0 %442
    %446 = vset.pattern.permute.xlu0 0
    %447 = vperm.xlu0 %446, %v371
    %v448 = vpop.permute.xlu0 %447
    %451 = vset.pattern.permute.xlu0 0
    %452 = vperm.xlu0 %451, %v372
    %v453 = vpop.permute.xlu0 %452
    %456 = vset.pattern.permute.xlu0 0
    %457 = vperm.xlu0 %456, %v373
    %v458 = vpop.permute.xlu0 %457
    %461 = vset.pattern.permute.xlu0 0
    %462 = vperm.xlu0 %461, %v374
    %v463 = vpop.permute.xlu0 %462
    %466 = vset.pattern.permute.xlu0 0
    %467 = vperm.xlu0 %466, %v375
    %v468 = vpop.permute.xlu0 %467
    %471 = vset.pattern.permute.xlu0 0
    %472 = vperm.xlu0 %471, %v376
    %v473 = vpop.permute.xlu0 %472
    %476 = vset.pattern.permute.xlu0 0
    %477 = vperm.xlu0 %476, %v377
    %v478 = vpop.permute.xlu0 %477
    %481 = vset.pattern.permute.xlu0 0
    %482 = vperm.xlu0 %481, %v378
    %v483 = vpop.permute.xlu0 %482
    %486 = vset.pattern.permute.xlu0 0
    %487 = vperm.xlu0 %486, %v379
    %v488 = vpop.permute.xlu0 %487
    %491 = vset.pattern.permute.xlu0 0
    %492 = vperm.xlu0 %491, %v380
    %v493 = vpop.permute.xlu0 %492
    %496 = vset.pattern.permute.xlu0 0
    %497 = vperm.xlu0 %496, %v381
    %v498 = vpop.permute.xlu0 %497
    %501 = vset.pattern.permute.xlu0 0
    %502 = vperm.xlu0 %501, %v382
    %v503 = vpop.permute.xlu0 %502
    %506 = vset.pattern.permute.xlu0 0
    %507 = vperm.xlu0 %506, %v383
    %v508 = vpop.permute.xlu0 %507
    %511 = vset.pattern.permute.xlu0 0
    %512 = vperm.xlu0 %511, %v384
    %v513 = vpop.permute.xlu0 %512
    %516 = vset.pattern.permute.xlu0 0
    %517 = vperm.xlu0 %516, %v385
    %v518 = vpop.permute.xlu0 %517
    %521 = vset.pattern.permute.xlu0 0
    %522 = vperm.xlu0 %521, %v386
    %v523 = vpop.permute.xlu0 %522
    %526 = vset.pattern.permute.xlu0 0
    %527 = vperm.xlu0 %526, %v387
    %v528 = vpop.permute.xlu0 %527
    %531 = vset.pattern.permute.xlu0 0
    %532 = vperm.xlu0 %531, %v388
    %v533 = vpop.permute.xlu0 %532
    %536 = vset.pattern.permute.xlu0 0
    %537 = vperm.xlu0 %536, %v389
    %v538 = vpop.permute.xlu0 %537
    %541 = vset.pattern.permute.xlu0 0
    %542 = vperm.xlu0 %541, %v390
    %v543 = vpop.permute.xlu0 %542
    %546 = vset.pattern.permute.xlu0 0
    %547 = vperm.xlu0 %546, %v391
    %v548 = vpop.permute.xlu0 %547
    %551 = vset.pattern.permute.xlu0 0
    %552 = vperm.xlu0 %551, %v392
    %v553 = vpop.permute.xlu0 %552
    %556 = vset.pattern.permute.xlu0 0
    %557 = vperm.xlu0 %556, %v393
    %v558 = vpop.permute.xlu0 %557
    %561 = vset.pattern.permute.xlu0 0
    %562 = vperm.xlu0 %561, %v394
    %v563 = vpop.permute.xlu0 %562
    %566 = vset.pattern.permute.xlu0 0
    %567 = vperm.xlu0 %566, %v395
    %v568 = vpop.permute.xlu0 %567
    %571 = vset.pattern.permute.xlu0 0
    %572 = vperm.xlu0 %571, %v396
    %v573 = vpop.permute.xlu0 %572
    %576 = vset.pattern.permute.xlu0 0
    %577 = vperm.xlu0 %576, %v397
    %v578 = vpop.permute.xlu0 %577
    %581 = vset.pattern.permute.xlu0 0
    %582 = vperm.xlu0 %581, %v398
    %v583 = vpop.permute.xlu0 %582
    %586 = vset.pattern.permute.xlu0 0
    %587 = vperm.xlu0 %586, %v399
    %v588 = vpop.permute.xlu0 %587
    %591 = vset.pattern.permute.xlu0 0
    %592 = vperm.xlu0 %591, %v400
    %v593 = vpop.permute.xlu0 %592
    %596 = vset.pattern.permute.xlu0 0
    %597 = vperm.xlu0 %596, %v401
    %v598 = vpop.permute.xlu0 %597
    %601 = vset.pattern.permute.xlu0 0
    %602 = vperm.xlu0 %601, %v402
    %v603 = vpop.permute.xlu0 %602
    %606 = vset.pattern.permute.xlu0 0
    %607 = vperm.xlu0 %606, %v403
    %v608 = vpop.permute.xlu0 %607
    %611 = vset.pattern.permute.xlu0 0
    %612 = vperm.xlu0 %611, %v404
    %v613 = vpop.permute.xlu0 %612
    %616 = vset.pattern.permute.xlu0 0
    %617 = vperm.xlu0 %616, %v405
    %v618 = vpop.permute.xlu0 %617
    %621 = vset.pattern.permute.xlu0 0
    %622 = vperm.xlu0 %621, %v406
    %v623 = vpop.permute.xlu0 %622
    %626 = vset.pattern.permute.xlu0 0
    %627 = vperm.xlu0 %626, %v407
    %v628 = vpop.permute.xlu0 %627
    %631 = vset.pattern.permute.xlu0 0
    %632 = vperm.xlu0 %631, %v408
    %v633 = vpop.permute.xlu0 %632
    %636 = vset.pattern.permute.xlu0 0
    %637 = vperm.xlu0 %636, %v409
    %v638 = vpop.permute.xlu0 %637
    %641 = vset.pattern.permute.xlu0 0
    %642 = vperm.xlu0 %641, %v410
    %v643 = vpop.permute.xlu0 %642
    %646 = vset.pattern.permute.xlu0 0
    %647 = vperm.xlu0 %646, %v411
    %v648 = vpop.permute.xlu0 %647
    %651 = vset.pattern.permute.xlu0 0
    %652 = vperm.xlu0 %651, %v412
    %v653 = vpop.permute.xlu0 %652
    %656 = vset.pattern.permute.xlu0 0
    %657 = vperm.xlu0 %656, %v413
    %v658 = vpop.permute.xlu0 %657
    %661 = vset.pattern.permute.xlu0 0
    %662 = vperm.xlu0 %661, %v414
    %v663 = vpop.permute.xlu0 %662
    %666 = vset.pattern.permute.xlu0 0
    %667 = vperm.xlu0 %666, %v415
    %v668 = vpop.permute.xlu0 %667
    %671 = vset.pattern.permute.xlu0 0
    %672 = vperm.xlu0 %671, %v416
    %v673 = vpop.permute.xlu0 %672
    %676 = vset.pattern.permute.xlu0 0
    %677 = vperm.xlu0 %676, %v417
    %v678 = vpop.permute.xlu0 %677
    %681 = vset.pattern.permute.xlu0 0
    %682 = vperm.xlu0 %681, %v418
    %v683 = vpop.permute.xlu0 %682
    %686 = vset.pattern.permute.xlu0 0
    %687 = vperm.xlu0 %686, %v419
    %v688 = vpop.permute.xlu0 %687
    %691 = vset.pattern.permute.xlu0 0
    %692 = vperm.xlu0 %691, %v420
    %v693 = vpop.permute.xlu0 %692
    %696 = vset.pattern.permute.xlu0 0
    %697 = vperm.xlu0 %696, %v421
    %v698 = vpop.permute.xlu0 %697
    %701 = vset.pattern.permute.xlu0 0
    %702 = vperm.xlu0 %701, %v422
    %v703 = vpop.permute.xlu0 %702
    %706 = vset.pattern.permute.xlu0 0
    %707 = vperm.xlu0 %706, %v423
    %v708 = vpop.permute.xlu0 %707
    %711 = vset.pattern.permute.xlu0 0
    %712 = vperm.xlu0 %711, %v424
    %v713 = vpop.permute.xlu0 %712
    %716 = vset.pattern.permute.xlu0 0
    %717 = vperm.xlu0 %716, %v425
    %v718 = vpop.permute.xlu0 %717
    %721 = vset.pattern.permute.xlu0 0
    %722 = vperm.xlu0 %721, %v426
    %v723 = vpop.permute.xlu0 %722
    %726 = vset.pattern.permute.xlu0 0
    %727 = vperm.xlu0 %726, %v427
    %v728 = vpop.permute.xlu0 %727
    %731 = vset.pattern.permute.xlu0 0
    %732 = vperm.xlu0 %731, %v428
    %v733 = vpop.permute.xlu0 %732
    %736 = vset.pattern.permute.xlu0 0
    %737 = vperm.xlu0 %736, %v429
    %v738 = vpop.permute.xlu0 %737
    %741 = vset.pattern.permute.xlu0 0
    %742 = vperm.xlu0 %741, %v430
    %v743 = vpop.permute.xlu0 %742
    %746 = vset.pattern.permute.xlu0 0
    %747 = vperm.xlu0 %746, %v431
    %v748 = vpop.permute.xlu0 %747
    %751 = vset.pattern.permute.xlu0 0
    %752 = vperm.xlu0 %751, %v432
    %v753 = vpop.permute.xlu0 %752
    %v755 = vlaneseq
    %v756 = vshrl.u32 %v755, 7
    %v757 = vsub.s32 0, %v756
    %v758 = vrot.slane %v433, %v757
    %v759 = vmul.f32 %v438, %v758
    %v760 = vmul.f32 %v443, %v758
    %v761 = vmul.f32 %v448, %v758
    %v762 = vmul.f32 %v453, %v758
    %v763 = vmul.f32 %v458, %v758
    %v764 = vmul.f32 %v463, %v758
    %v765 = vmul.f32 %v468, %v758
    %v766 = vmul.f32 %v473, %v758
    %v767 = vmul.f32 %v478, %v758
    %v768 = vmul.f32 %v483, %v758
    %v769 = vmul.f32 %v488, %v758
    %v770 = vmul.f32 %v493, %v758
    %v771 = vmul.f32 %v498, %v758
    %v772 = vmul.f32 %v503, %v758
    %v773 = vmul.f32 %v508, %v758
    %v774 = vmul.f32 %v513, %v758
    %v775 = vmul.f32 %v518, %v758
    %v776 = vmul.f32 %v523, %v758
    %v777 = vmul.f32 %v528, %v758
    %v778 = vmul.f32 %v533, %v758
    %v779 = vmul.f32 %v538, %v758
    %v780 = vmul.f32 %v543, %v758
    %v781 = vmul.f32 %v548, %v758
    %v782 = vmul.f32 %v553, %v758
    %v783 = vmul.f32 %v558, %v758
    %v784 = vmul.f32 %v563, %v758
    %v785 = vmul.f32 %v568, %v758
    %v786 = vmul.f32 %v573, %v758
    %v787 = vmul.f32 %v578, %v758
    %v788 = vmul.f32 %v583, %v758
    %v789 = vmul.f32 %v588, %v758
    %v790 = vmul.f32 %v593, %v758
    %v791 = vmul.f32 %v598, %v758
    %v792 = vmul.f32 %v603, %v758
    %v793 = vmul.f32 %v608, %v758
    %v794 = vmul.f32 %v613, %v758
    %v795 = vmul.f32 %v618, %v758
    %v796 = vmul.f32 %v623, %v758
    %v797 = vmul.f32 %v628, %v758
    %v798 = vmul.f32 %v633, %v758
    %v799 = vmul.f32 %v638, %v758
    %v800 = vmul.f32 %v643, %v758
    %v801 = vmul.f32 %v648, %v758
    %v802 = vmul.f32 %v653, %v758
    %v803 = vmul.f32 %v658, %v758
    %v804 = vmul.f32 %v663, %v758
    %v805 = vmul.f32 %v668, %v758
    %v806 = vmul.f32 %v673, %v758
    %v807 = vmul.f32 %v678, %v758
    %v808 = vmul.f32 %v683, %v758
    %v809 = vmul.f32 %v688, %v758
    %v810 = vmul.f32 %v693, %v758
    %v811 = vmul.f32 %v698, %v758
    %v812 = vmul.f32 %v703, %v758
    %v813 = vmul.f32 %v708, %v758
    %v814 = vmul.f32 %v713, %v758
    %v815 = vmul.f32 %v718, %v758
    %v816 = vmul.f32 %v723, %v758
    %v817 = vmul.f32 %v728, %v758
    %v818 = vmul.f32 %v733, %v758
    %v819 = vmul.f32 %v738, %v758
    %v820 = vmul.f32 %v743, %v758
    %v821 = vmul.f32 %v748, %v758
    %v822 = vmul.f32 %v753, %v758
    %v824 = vlaneseq
    %v825 = vshrl.u32 %v824, 7
    %v826 = vsub.s32 0, %v825
    %v827 = vrot.slane %v434, %v826
    %v829 = vadd.f32 %v827, %v759
    %v830 = vadd.f32 %v827, %v760
    %v831 = vadd.f32 %v827, %v761
    %v832 = vadd.f32 %v827, %v762
    %v833 = vadd.f32 %v827, %v763
    %v834 = vadd.f32 %v827, %v764
    %v835 = vadd.f32 %v827, %v765
    %v836 = vadd.f32 %v827, %v766
    %v837 = vadd.f32 %v827, %v767
    %v838 = vadd.f32 %v827, %v768
    %v839 = vadd.f32 %v827, %v769
    %v840 = vadd.f32 %v827, %v770
    %v841 = vadd.f32 %v827, %v771
    %v842 = vadd.f32 %v827, %v772
    %v843 = vadd.f32 %v827, %v773
    %v844 = vadd.f32 %v827, %v774
    %v845 = vadd.f32 %v827, %v775
    %v846 = vadd.f32 %v827, %v776
    %v847 = vadd.f32 %v827, %v777
    %v848 = vadd.f32 %v827, %v778
    %v849 = vadd.f32 %v827, %v779
    %v850 = vadd.f32 %v827, %v780
    %v851 = vadd.f32 %v827, %v781
    %v852 = vadd.f32 %v827, %v782
    %v853 = vadd.f32 %v827, %v783
    %v854 = vadd.f32 %v827, %v784
    %v855 = vadd.f32 %v827, %v785
    %v856 = vadd.f32 %v827, %v786
    %v857 = vadd.f32 %v827, %v787
    %v858 = vadd.f32 %v827, %v788
    %v859 = vadd.f32 %v827, %v789
    %v860 = vadd.f32 %v827, %v790
    %v861 = vadd.f32 %v827, %v791
    %v862 = vadd.f32 %v827, %v792
    %v863 = vadd.f32 %v827, %v793
    %v864 = vadd.f32 %v827, %v794
    %v865 = vadd.f32 %v827, %v795
    %v866 = vadd.f32 %v827, %v796
    %v867 = vadd.f32 %v827, %v797
    %v868 = vadd.f32 %v827, %v798
    %v869 = vadd.f32 %v827, %v799
    %v870 = vadd.f32 %v827, %v800
    %v871 = vadd.f32 %v827, %v801
    %v872 = vadd.f32 %v827, %v802
    %v873 = vadd.f32 %v827, %v803
    %v874 = vadd.f32 %v827, %v804
    %v875 = vadd.f32 %v827, %v805
    %v876 = vadd.f32 %v827, %v806
    %v877 = vadd.f32 %v827, %v807
    %v878 = vadd.f32 %v827, %v808
    %v879 = vadd.f32 %v827, %v809
    %v880 = vadd.f32 %v827, %v810
    %v881 = vadd.f32 %v827, %v811
    %v882 = vadd.f32 %v827, %v812
    %v883 = vadd.f32 %v827, %v813
    %v884 = vadd.f32 %v827, %v814
    %v885 = vadd.f32 %v827, %v815
    %v886 = vadd.f32 %v827, %v816
    %v887 = vadd.f32 %v827, %v817
    %v888 = vadd.f32 %v827, %v818
    %v889 = vadd.f32 %v827, %v819
    %v890 = vadd.f32 %v827, %v820
    %v891 = vadd.f32 %v827, %v821
    %v892 = vadd.f32 %v827, %v822
    %893 = vset.pattern.permute.xlu0 1
    %894 = vperm.xlu0 %893, %v369
    %v895 = vpop.permute.xlu0 %894
    %897 = vset.pattern.permute.xlu0 1
    %898 = vperm.xlu0 %897, %v370
    %v899 = vpop.permute.xlu0 %898
    %901 = vset.pattern.permute.xlu0 1
    %902 = vperm.xlu0 %901, %v371
    %v903 = vpop.permute.xlu0 %902
    %905 = vset.pattern.permute.xlu0 1
    %906 = vperm.xlu0 %905, %v372
    %v907 = vpop.permute.xlu0 %906
    %909 = vset.pattern.permute.xlu0 1
    %910 = vperm.xlu0 %909, %v373
    %v911 = vpop.permute.xlu0 %910
    %913 = vset.pattern.permute.xlu0 1
    %914 = vperm.xlu0 %913, %v374
    %v915 = vpop.permute.xlu0 %914
    %917 = vset.pattern.permute.xlu0 1
    %918 = vperm.xlu0 %917, %v375
    %v919 = vpop.permute.xlu0 %918
    %921 = vset.pattern.permute.xlu0 1
    %922 = vperm.xlu0 %921, %v376
    %v923 = vpop.permute.xlu0 %922
    %925 = vset.pattern.permute.xlu0 1
    %926 = vperm.xlu0 %925, %v377
    %v927 = vpop.permute.xlu0 %926
    %929 = vset.pattern.permute.xlu0 1
    %930 = vperm.xlu0 %929, %v378
    %v931 = vpop.permute.xlu0 %930
    %933 = vset.pattern.permute.xlu0 1
    %934 = vperm.xlu0 %933, %v379
    %v935 = vpop.permute.xlu0 %934
    %937 = vset.pattern.permute.xlu0 1
    %938 = vperm.xlu0 %937, %v380
    %v939 = vpop.permute.xlu0 %938
    %941 = vset.pattern.permute.xlu0 1
    %942 = vperm.xlu0 %941, %v381
    %v943 = vpop.permute.xlu0 %942
    %945 = vset.pattern.permute.xlu0 1
    %946 = vperm.xlu0 %945, %v382
    %v947 = vpop.permute.xlu0 %946
    %949 = vset.pattern.permute.xlu0 1
    %950 = vperm.xlu0 %949, %v383
    %v951 = vpop.permute.xlu0 %950
    %953 = vset.pattern.permute.xlu0 1
    %954 = vperm.xlu0 %953, %v384
    %v955 = vpop.permute.xlu0 %954
    %957 = vset.pattern.permute.xlu0 1
    %958 = vperm.xlu0 %957, %v385
    %v959 = vpop.permute.xlu0 %958
    %961 = vset.pattern.permute.xlu0 1
    %962 = vperm.xlu0 %961, %v386
    %v963 = vpop.permute.xlu0 %962
    %965 = vset.pattern.permute.xlu0 1
    %966 = vperm.xlu0 %965, %v387
    %v967 = vpop.permute.xlu0 %966
    %969 = vset.pattern.permute.xlu0 1
    %970 = vperm.xlu0 %969, %v388
    %v971 = vpop.permute.xlu0 %970
    %973 = vset.pattern.permute.xlu0 1
    %974 = vperm.xlu0 %973, %v389
    %v975 = vpop.permute.xlu0 %974
    %977 = vset.pattern.permute.xlu0 1
    %978 = vperm.xlu0 %977, %v390
    %v979 = vpop.permute.xlu0 %978
    %981 = vset.pattern.permute.xlu0 1
    %982 = vperm.xlu0 %981, %v391
    %v983 = vpop.permute.xlu0 %982
    %985 = vset.pattern.permute.xlu0 1
    %986 = vperm.xlu0 %985, %v392
    %v987 = vpop.permute.xlu0 %986
    %989 = vset.pattern.permute.xlu0 1
    %990 = vperm.xlu0 %989, %v393
    %v991 = vpop.permute.xlu0 %990
    %993 = vset.pattern.permute.xlu0 1
    %994 = vperm.xlu0 %993, %v394
    %v995 = vpop.permute.xlu0 %994
    %997 = vset.pattern.permute.xlu0 1
    %998 = vperm.xlu0 %997, %v395
    %v999 = vpop.permute.xlu0 %998
    %1001 = vset.pattern.permute.xlu0 1
    %1002 = vperm.xlu0 %1001, %v396
    %v1003 = vpop.permute.xlu0 %1002
    %1005 = vset.pattern.permute.xlu0 1
    %1006 = vperm.xlu0 %1005, %v397
    %v1007 = vpop.permute.xlu0 %1006
    %1009 = vset.pattern.permute.xlu0 1
    %1010 = vperm.xlu0 %1009, %v398
    %v1011 = vpop.permute.xlu0 %1010
    %1013 = vset.pattern.permute.xlu0 1
    %1014 = vperm.xlu0 %1013, %v399
    %v1015 = vpop.permute.xlu0 %1014
    %1017 = vset.pattern.permute.xlu0 1
    %1018 = vperm.xlu0 %1017, %v400
    %v1019 = vpop.permute.xlu0 %1018
    %1021 = vset.pattern.permute.xlu0 1
    %1022 = vperm.xlu0 %1021, %v401
    %v1023 = vpop.permute.xlu0 %1022
    %1025 = vset.pattern.permute.xlu0 1
    %1026 = vperm.xlu0 %1025, %v402
    %v1027 = vpop.permute.xlu0 %1026
    %1029 = vset.pattern.permute.xlu0 1
    %1030 = vperm.xlu0 %1029, %v403
    %v1031 = vpop.permute.xlu0 %1030
    %1033 = vset.pattern.permute.xlu0 1
    %1034 = vperm.xlu0 %1033, %v404
    %v1035 = vpop.permute.xlu0 %1034
    %1037 = vset.pattern.permute.xlu0 1
    %1038 = vperm.xlu0 %1037, %v405
    %v1039 = vpop.permute.xlu0 %1038
    %1041 = vset.pattern.permute.xlu0 1
    %1042 = vperm.xlu0 %1041, %v406
    %v1043 = vpop.permute.xlu0 %1042
    %1045 = vset.pattern.permute.xlu0 1
    %1046 = vperm.xlu0 %1045, %v407
    %v1047 = vpop.permute.xlu0 %1046
    %1049 = vset.pattern.permute.xlu0 1
    %1050 = vperm.xlu0 %1049, %v408
    %v1051 = vpop.permute.xlu0 %1050
    %1053 = vset.pattern.permute.xlu0 1
    %1054 = vperm.xlu0 %1053, %v409
    %v1055 = vpop.permute.xlu0 %1054
    %1057 = vset.pattern.permute.xlu0 1
    %1058 = vperm.xlu0 %1057, %v410
    %v1059 = vpop.permute.xlu0 %1058
    %1061 = vset.pattern.permute.xlu0 1
    %1062 = vperm.xlu0 %1061, %v411
    %v1063 = vpop.permute.xlu0 %1062
    %1065 = vset.pattern.permute.xlu0 1
    %1066 = vperm.xlu0 %1065, %v412
    %v1067 = vpop.permute.xlu0 %1066
    %1069 = vset.pattern.permute.xlu0 1
    %1070 = vperm.xlu0 %1069, %v413
    %v1071 = vpop.permute.xlu0 %1070
    %1073 = vset.pattern.permute.xlu0 1
    %1074 = vperm.xlu0 %1073, %v414
    %v1075 = vpop.permute.xlu0 %1074
    %1077 = vset.pattern.permute.xlu0 1
    %1078 = vperm.xlu0 %1077, %v415
    %v1079 = vpop.permute.xlu0 %1078
    %1081 = vset.pattern.permute.xlu0 1
    %1082 = vperm.xlu0 %1081, %v416
    %v1083 = vpop.permute.xlu0 %1082
    %1085 = vset.pattern.permute.xlu0 1
    %1086 = vperm.xlu0 %1085, %v417
    %v1087 = vpop.permute.xlu0 %1086
    %1089 = vset.pattern.permute.xlu0 1
    %1090 = vperm.xlu0 %1089, %v418
    %v1091 = vpop.permute.xlu0 %1090
    %1093 = vset.pattern.permute.xlu0 1
    %1094 = vperm.xlu0 %1093, %v419
    %v1095 = vpop.permute.xlu0 %1094
    %1097 = vset.pattern.permute.xlu0 1
    %1098 = vperm.xlu0 %1097, %v420
    %v1099 = vpop.permute.xlu0 %1098
    %1101 = vset.pattern.permute.xlu0 1
    %1102 = vperm.xlu0 %1101, %v421
    %v1103 = vpop.permute.xlu0 %1102
    %1105 = vset.pattern.permute.xlu0 1
    %1106 = vperm.xlu0 %1105, %v422
    %v1107 = vpop.permute.xlu0 %1106
    %1109 = vset.pattern.permute.xlu0 1
    %1110 = vperm.xlu0 %1109, %v423
    %v1111 = vpop.permute.xlu0 %1110
    %1113 = vset.pattern.permute.xlu0 1
    %1114 = vperm.xlu0 %1113, %v424
    %v1115 = vpop.permute.xlu0 %1114
    %1117 = vset.pattern.permute.xlu0 1
    %1118 = vperm.xlu0 %1117, %v425
    %v1119 = vpop.permute.xlu0 %1118
    %1121 = vset.pattern.permute.xlu0 1
    %1122 = vperm.xlu0 %1121, %v426
    %v1123 = vpop.permute.xlu0 %1122
    %1125 = vset.pattern.permute.xlu0 1
    %1126 = vperm.xlu0 %1125, %v427
    %v1127 = vpop.permute.xlu0 %1126
    %1129 = vset.pattern.permute.xlu0 1
    %1130 = vperm.xlu0 %1129, %v428
    %v1131 = vpop.permute.xlu0 %1130
    %1133 = vset.pattern.permute.xlu0 1
    %1134 = vperm.xlu0 %1133, %v429
    %v1135 = vpop.permute.xlu0 %1134
    %1137 = vset.pattern.permute.xlu0 1
    %1138 = vperm.xlu0 %1137, %v430
    %v1139 = vpop.permute.xlu0 %1138
    %1141 = vset.pattern.permute.xlu0 1
    %1142 = vperm.xlu0 %1141, %v431
    %v1143 = vpop.permute.xlu0 %1142
    %1145 = vset.pattern.permute.xlu0 1
    %1146 = vperm.xlu0 %1145, %v432
    %v1147 = vpop.permute.xlu0 %1146
    %v1149 = vlaneseq
    %v1150 = vshrl.u32 %v1149, 7
    %v1151 = vsub.s32 1, %v1150
    %v1152 = vrot.slane %v433, %v1151
    %v1153 = vmul.f32 %v895, %v1152
    %v1154 = vmul.f32 %v899, %v1152
    %v1155 = vmul.f32 %v903, %v1152
    %v1156 = vmul.f32 %v907, %v1152
    %v1157 = vmul.f32 %v911, %v1152
    %v1158 = vmul.f32 %v915, %v1152
    %v1159 = vmul.f32 %v919, %v1152
    %v1160 = vmul.f32 %v923, %v1152
    %v1161 = vmul.f32 %v927, %v1152
    %v1162 = vmul.f32 %v931, %v1152
    %v1163 = vmul.f32 %v935, %v1152
    %v1164 = vmul.f32 %v939, %v1152
    %v1165 = vmul.f32 %v943, %v1152
    %v1166 = vmul.f32 %v947, %v1152
    %v1167 = vmul.f32 %v951, %v1152
    %v1168 = vmul.f32 %v955, %v1152
    %v1169 = vmul.f32 %v959, %v1152
    %v1170 = vmul.f32 %v963, %v1152
    %v1171 = vmul.f32 %v967, %v1152
    %v1172 = vmul.f32 %v971, %v1152
    %v1173 = vmul.f32 %v975, %v1152
    %v1174 = vmul.f32 %v979, %v1152
    %v1175 = vmul.f32 %v983, %v1152
    %v1176 = vmul.f32 %v987, %v1152
    %v1177 = vmul.f32 %v991, %v1152
    %v1178 = vmul.f32 %v995, %v1152
    %v1179 = vmul.f32 %v999, %v1152
    %v1180 = vmul.f32 %v1003, %v1152
    %v1181 = vmul.f32 %v1007, %v1152
    %v1182 = vmul.f32 %v1011, %v1152
    %v1183 = vmul.f32 %v1015, %v1152
    %v1184 = vmul.f32 %v1019, %v1152
    %v1185 = vmul.f32 %v1023, %v1152
    %v1186 = vmul.f32 %v1027, %v1152
    %v1187 = vmul.f32 %v1031, %v1152
    %v1188 = vmul.f32 %v1035, %v1152
    %v1189 = vmul.f32 %v1039, %v1152
    %v1190 = vmul.f32 %v1043, %v1152
    %v1191 = vmul.f32 %v1047, %v1152
    %v1192 = vmul.f32 %v1051, %v1152
    %v1193 = vmul.f32 %v1055, %v1152
    %v1194 = vmul.f32 %v1059, %v1152
    %v1195 = vmul.f32 %v1063, %v1152
    %v1196 = vmul.f32 %v1067, %v1152
    %v1197 = vmul.f32 %v1071, %v1152
    %v1198 = vmul.f32 %v1075, %v1152
    %v1199 = vmul.f32 %v1079, %v1152
    %v1200 = vmul.f32 %v1083, %v1152
    %v1201 = vmul.f32 %v1087, %v1152
    %v1202 = vmul.f32 %v1091, %v1152
    %v1203 = vmul.f32 %v1095, %v1152
    %v1204 = vmul.f32 %v1099, %v1152
    %v1205 = vmul.f32 %v1103, %v1152
    %v1206 = vmul.f32 %v1107, %v1152
    %v1207 = vmul.f32 %v1111, %v1152
    %v1208 = vmul.f32 %v1115, %v1152
    %v1209 = vmul.f32 %v1119, %v1152
    %v1210 = vmul.f32 %v1123, %v1152
    %v1211 = vmul.f32 %v1127, %v1152
    %v1212 = vmul.f32 %v1131, %v1152
    %v1213 = vmul.f32 %v1135, %v1152
    %v1214 = vmul.f32 %v1139, %v1152
    %v1215 = vmul.f32 %v1143, %v1152
    %v1216 = vmul.f32 %v1147, %v1152
    %v1217 = vadd.f32 %v829, %v1153
    %v1218 = vadd.f32 %v830, %v1154
    %v1219 = vadd.f32 %v831, %v1155
    %v1220 = vadd.f32 %v832, %v1156
    %v1221 = vadd.f32 %v833, %v1157
    %v1222 = vadd.f32 %v834, %v1158
    %v1223 = vadd.f32 %v835, %v1159
    %v1224 = vadd.f32 %v836, %v1160
    %v1225 = vadd.f32 %v837, %v1161
    %v1226 = vadd.f32 %v838, %v1162
    %v1227 = vadd.f32 %v839, %v1163
    %v1228 = vadd.f32 %v840, %v1164
    %v1229 = vadd.f32 %v841, %v1165
    %v1230 = vadd.f32 %v842, %v1166
    %v1231 = vadd.f32 %v843, %v1167
    %v1232 = vadd.f32 %v844, %v1168
    %v1233 = vadd.f32 %v845, %v1169
    %v1234 = vadd.f32 %v846, %v1170
    %v1235 = vadd.f32 %v847, %v1171
    %v1236 = vadd.f32 %v848, %v1172
    %v1237 = vadd.f32 %v849, %v1173
    %v1238 = vadd.f32 %v850, %v1174
    %v1239 = vadd.f32 %v851, %v1175
    %v1240 = vadd.f32 %v852, %v1176
    %v1241 = vadd.f32 %v853, %v1177
    %v1242 = vadd.f32 %v854, %v1178
    %v1243 = vadd.f32 %v855, %v1179
    %v1244 = vadd.f32 %v856, %v1180
    %v1245 = vadd.f32 %v857, %v1181
    %v1246 = vadd.f32 %v858, %v1182
    %v1247 = vadd.f32 %v859, %v1183
    %v1248 = vadd.f32 %v860, %v1184
    %v1249 = vadd.f32 %v861, %v1185
    %v1250 = vadd.f32 %v862, %v1186
    %v1251 = vadd.f32 %v863, %v1187
    %v1252 = vadd.f32 %v864, %v1188
    %v1253 = vadd.f32 %v865, %v1189
    %v1254 = vadd.f32 %v866, %v1190
    %v1255 = vadd.f32 %v867, %v1191
    %v1256 = vadd.f32 %v868, %v1192
    %v1257 = vadd.f32 %v869, %v1193
    %v1258 = vadd.f32 %v870, %v1194
    %v1259 = vadd.f32 %v871, %v1195
    %v1260 = vadd.f32 %v872, %v1196
    %v1261 = vadd.f32 %v873, %v1197
    %v1262 = vadd.f32 %v874, %v1198
    %v1263 = vadd.f32 %v875, %v1199
    %v1264 = vadd.f32 %v876, %v1200
    %v1265 = vadd.f32 %v877, %v1201
    %v1266 = vadd.f32 %v878, %v1202
    %v1267 = vadd.f32 %v879, %v1203
    %v1268 = vadd.f32 %v880, %v1204
    %v1269 = vadd.f32 %v881, %v1205
    %v1270 = vadd.f32 %v882, %v1206
    %v1271 = vadd.f32 %v883, %v1207
    %v1272 = vadd.f32 %v884, %v1208
    %v1273 = vadd.f32 %v885, %v1209
    %v1274 = vadd.f32 %v886, %v1210
    %v1275 = vadd.f32 %v887, %v1211
    %v1276 = vadd.f32 %v888, %v1212
    %v1277 = vadd.f32 %v889, %v1213
    %v1278 = vadd.f32 %v890, %v1214
    %v1279 = vadd.f32 %v891, %v1215
    %v1280 = vadd.f32 %v892, %v1216
    %1281 = vset.pattern.permute.xlu0 2
    %1282 = vperm.xlu0 %1281, %v369
    %v1283 = vpop.permute.xlu0 %1282
    %1285 = vset.pattern.permute.xlu0 2
    %1286 = vperm.xlu0 %1285, %v370
    %v1287 = vpop.permute.xlu0 %1286
    %1289 = vset.pattern.permute.xlu0 2
    %1290 = vperm.xlu0 %1289, %v371
    %v1291 = vpop.permute.xlu0 %1290
    %1293 = vset.pattern.permute.xlu0 2
    %1294 = vperm.xlu0 %1293, %v372
    %v1295 = vpop.permute.xlu0 %1294
    %1297 = vset.pattern.permute.xlu0 2
    %1298 = vperm.xlu0 %1297, %v373
    %v1299 = vpop.permute.xlu0 %1298
    %1301 = vset.pattern.permute.xlu0 2
    %1302 = vperm.xlu0 %1301, %v374
    %v1303 = vpop.permute.xlu0 %1302
    %1305 = vset.pattern.permute.xlu0 2
    %1306 = vperm.xlu0 %1305, %v375
    %v1307 = vpop.permute.xlu0 %1306
    %1309 = vset.pattern.permute.xlu0 2
    %1310 = vperm.xlu0 %1309, %v376
    %v1311 = vpop.permute.xlu0 %1310
    %1313 = vset.pattern.permute.xlu0 2
    %1314 = vperm.xlu0 %1313, %v377
    %v1315 = vpop.permute.xlu0 %1314
    %1317 = vset.pattern.permute.xlu0 2
    %1318 = vperm.xlu0 %1317, %v378
    %v1319 = vpop.permute.xlu0 %1318
    %1321 = vset.pattern.permute.xlu0 2
    %1322 = vperm.xlu0 %1321, %v379
    %v1323 = vpop.permute.xlu0 %1322
    %1325 = vset.pattern.permute.xlu0 2
    %1326 = vperm.xlu0 %1325, %v380
    %v1327 = vpop.permute.xlu0 %1326
    %1329 = vset.pattern.permute.xlu0 2
    %1330 = vperm.xlu0 %1329, %v381
    %v1331 = vpop.permute.xlu0 %1330
    %1333 = vset.pattern.permute.xlu0 2
    %1334 = vperm.xlu0 %1333, %v382
    %v1335 = vpop.permute.xlu0 %1334
    %1337 = vset.pattern.permute.xlu0 2
    %1338 = vperm.xlu0 %1337, %v383
    %v1339 = vpop.permute.xlu0 %1338
    %1341 = vset.pattern.permute.xlu0 2
    %1342 = vperm.xlu0 %1341, %v384
    %v1343 = vpop.permute.xlu0 %1342
    %1345 = vset.pattern.permute.xlu0 2
    %1346 = vperm.xlu0 %1345, %v385
    %v1347 = vpop.permute.xlu0 %1346
    %1349 = vset.pattern.permute.xlu0 2
    %1350 = vperm.xlu0 %1349, %v386
    %v1351 = vpop.permute.xlu0 %1350
    %1353 = vset.pattern.permute.xlu0 2
    %1354 = vperm.xlu0 %1353, %v387
    %v1355 = vpop.permute.xlu0 %1354
    %1357 = vset.pattern.permute.xlu0 2
    %1358 = vperm.xlu0 %1357, %v388
    %v1359 = vpop.permute.xlu0 %1358
    %1361 = vset.pattern.permute.xlu0 2
    %1362 = vperm.xlu0 %1361, %v389
    %v1363 = vpop.permute.xlu0 %1362
    %1365 = vset.pattern.permute.xlu0 2
    %1366 = vperm.xlu0 %1365, %v390
    %v1367 = vpop.permute.xlu0 %1366
    %1369 = vset.pattern.permute.xlu0 2
    %1370 = vperm.xlu0 %1369, %v391
    %v1371 = vpop.permute.xlu0 %1370
    %1373 = vset.pattern.permute.xlu0 2
    %1374 = vperm.xlu0 %1373, %v392
    %v1375 = vpop.permute.xlu0 %1374
    %1377 = vset.pattern.permute.xlu0 2
    %1378 = vperm.xlu0 %1377, %v393
    %v1379 = vpop.permute.xlu0 %1378
    %1381 = vset.pattern.permute.xlu0 2
    %1382 = vperm.xlu0 %1381, %v394
    %v1383 = vpop.permute.xlu0 %1382
    %1385 = vset.pattern.permute.xlu0 2
    %1386 = vperm.xlu0 %1385, %v395
    %v1387 = vpop.permute.xlu0 %1386
    %1389 = vset.pattern.permute.xlu0 2
    %1390 = vperm.xlu0 %1389, %v396
    %v1391 = vpop.permute.xlu0 %1390
    %1393 = vset.pattern.permute.xlu0 2
    %1394 = vperm.xlu0 %1393, %v397
    %v1395 = vpop.permute.xlu0 %1394
    %1397 = vset.pattern.permute.xlu0 2
    %1398 = vperm.xlu0 %1397, %v398
    %v1399 = vpop.permute.xlu0 %1398
    %1401 = vset.pattern.permute.xlu0 2
    %1402 = vperm.xlu0 %1401, %v399
    %v1403 = vpop.permute.xlu0 %1402
    %1405 = vset.pattern.permute.xlu0 2
    %1406 = vperm.xlu0 %1405, %v400
    %v1407 = vpop.permute.xlu0 %1406
    %1409 = vset.pattern.permute.xlu0 2
    %1410 = vperm.xlu0 %1409, %v401
    %v1411 = vpop.permute.xlu0 %1410
    %1413 = vset.pattern.permute.xlu0 2
    %1414 = vperm.xlu0 %1413, %v402
    %v1415 = vpop.permute.xlu0 %1414
    %1417 = vset.pattern.permute.xlu0 2
    %1418 = vperm.xlu0 %1417, %v403
    %v1419 = vpop.permute.xlu0 %1418
    %1421 = vset.pattern.permute.xlu0 2
    %1422 = vperm.xlu0 %1421, %v404
    %v1423 = vpop.permute.xlu0 %1422
    %1425 = vset.pattern.permute.xlu0 2
    %1426 = vperm.xlu0 %1425, %v405
    %v1427 = vpop.permute.xlu0 %1426
    %1429 = vset.pattern.permute.xlu0 2
    %1430 = vperm.xlu0 %1429, %v406
    %v1431 = vpop.permute.xlu0 %1430
    %1433 = vset.pattern.permute.xlu0 2
    %1434 = vperm.xlu0 %1433, %v407
    %v1435 = vpop.permute.xlu0 %1434
    %1437 = vset.pattern.permute.xlu0 2
    %1438 = vperm.xlu0 %1437, %v408
    %v1439 = vpop.permute.xlu0 %1438
    %1441 = vset.pattern.permute.xlu0 2
    %1442 = vperm.xlu0 %1441, %v409
    %v1443 = vpop.permute.xlu0 %1442
    %1445 = vset.pattern.permute.xlu0 2
    %1446 = vperm.xlu0 %1445, %v410
    %v1447 = vpop.permute.xlu0 %1446
    %1449 = vset.pattern.permute.xlu0 2
    %1450 = vperm.xlu0 %1449, %v411
    %v1451 = vpop.permute.xlu0 %1450
    %1453 = vset.pattern.permute.xlu0 2
    %1454 = vperm.xlu0 %1453, %v412
    %v1455 = vpop.permute.xlu0 %1454
    %1457 = vset.pattern.permute.xlu0 2
    %1458 = vperm.xlu0 %1457, %v413
    %v1459 = vpop.permute.xlu0 %1458
    %1461 = vset.pattern.permute.xlu0 2
    %1462 = vperm.xlu0 %1461, %v414
    %v1463 = vpop.permute.xlu0 %1462
    %1465 = vset.pattern.permute.xlu0 2
    %1466 = vperm.xlu0 %1465, %v415
    %v1467 = vpop.permute.xlu0 %1466
    %1469 = vset.pattern.permute.xlu0 2
    %1470 = vperm.xlu0 %1469, %v416
    %v1471 = vpop.permute.xlu0 %1470
    %1473 = vset.pattern.permute.xlu0 2
    %1474 = vperm.xlu0 %1473, %v417
    %v1475 = vpop.permute.xlu0 %1474
    %1477 = vset.pattern.permute.xlu0 2
    %1478 = vperm.xlu0 %1477, %v418
    %v1479 = vpop.permute.xlu0 %1478
    %1481 = vset.pattern.permute.xlu0 2
    %1482 = vperm.xlu0 %1481, %v419
    %v1483 = vpop.permute.xlu0 %1482
    %1485 = vset.pattern.permute.xlu0 2
    %1486 = vperm.xlu0 %1485, %v420
    %v1487 = vpop.permute.xlu0 %1486
    %1489 = vset.pattern.permute.xlu0 2
    %1490 = vperm.xlu0 %1489, %v421
    %v1491 = vpop.permute.xlu0 %1490
    %1493 = vset.pattern.permute.xlu0 2
    %1494 = vperm.xlu0 %1493, %v422
    %v1495 = vpop.permute.xlu0 %1494
    %1497 = vset.pattern.permute.xlu0 2
    %1498 = vperm.xlu0 %1497, %v423
    %v1499 = vpop.permute.xlu0 %1498
    %1501 = vset.pattern.permute.xlu0 2
    %1502 = vperm.xlu0 %1501, %v424
    %v1503 = vpop.permute.xlu0 %1502
    %1505 = vset.pattern.permute.xlu0 2
    %1506 = vperm.xlu0 %1505, %v425
    %v1507 = vpop.permute.xlu0 %1506
    %1509 = vset.pattern.permute.xlu0 2
    %1510 = vperm.xlu0 %1509, %v426
    %v1511 = vpop.permute.xlu0 %1510
    %1513 = vset.pattern.permute.xlu0 2
    %1514 = vperm.xlu0 %1513, %v427
    %v1515 = vpop.permute.xlu0 %1514
    %1517 = vset.pattern.permute.xlu0 2
    %1518 = vperm.xlu0 %1517, %v428
    %v1519 = vpop.permute.xlu0 %1518
    %1521 = vset.pattern.permute.xlu0 2
    %1522 = vperm.xlu0 %1521, %v429
    %v1523 = vpop.permute.xlu0 %1522
    %1525 = vset.pattern.permute.xlu0 2
    %1526 = vperm.xlu0 %1525, %v430
    %v1527 = vpop.permute.xlu0 %1526
    %1529 = vset.pattern.permute.xlu0 2
    %1530 = vperm.xlu0 %1529, %v431
    %v1531 = vpop.permute.xlu0 %1530
    %1533 = vset.pattern.permute.xlu0 2
    %1534 = vperm.xlu0 %1533, %v432
    %v1535 = vpop.permute.xlu0 %1534
    %v1537 = vlaneseq
    %v1538 = vshrl.u32 %v1537, 7
    %v1539 = vsub.s32 2, %v1538
    %v1540 = vrot.slane %v433, %v1539
    %v1541 = vmul.f32 %v1283, %v1540
    %v1542 = vmul.f32 %v1287, %v1540
    %v1543 = vmul.f32 %v1291, %v1540
    %v1544 = vmul.f32 %v1295, %v1540
    %v1545 = vmul.f32 %v1299, %v1540
    %v1546 = vmul.f32 %v1303, %v1540
    %v1547 = vmul.f32 %v1307, %v1540
    %v1548 = vmul.f32 %v1311, %v1540
    %v1549 = vmul.f32 %v1315, %v1540
    %v1550 = vmul.f32 %v1319, %v1540
    %v1551 = vmul.f32 %v1323, %v1540
    %v1552 = vmul.f32 %v1327, %v1540
    %v1553 = vmul.f32 %v1331, %v1540
    %v1554 = vmul.f32 %v1335, %v1540
    %v1555 = vmul.f32 %v1339, %v1540
    %v1556 = vmul.f32 %v1343, %v1540
    %v1557 = vmul.f32 %v1347, %v1540
    %v1558 = vmul.f32 %v1351, %v1540
    %v1559 = vmul.f32 %v1355, %v1540
    %v1560 = vmul.f32 %v1359, %v1540
    %v1561 = vmul.f32 %v1363, %v1540
    %v1562 = vmul.f32 %v1367, %v1540
    %v1563 = vmul.f32 %v1371, %v1540
    %v1564 = vmul.f32 %v1375, %v1540
    %v1565 = vmul.f32 %v1379, %v1540
    %v1566 = vmul.f32 %v1383, %v1540
    %v1567 = vmul.f32 %v1387, %v1540
    %v1568 = vmul.f32 %v1391, %v1540
    %v1569 = vmul.f32 %v1395, %v1540
    %v1570 = vmul.f32 %v1399, %v1540
    %v1571 = vmul.f32 %v1403, %v1540
    %v1572 = vmul.f32 %v1407, %v1540
    %v1573 = vmul.f32 %v1411, %v1540
    %v1574 = vmul.f32 %v1415, %v1540
    %v1575 = vmul.f32 %v1419, %v1540
    %v1576 = vmul.f32 %v1423, %v1540
    %v1577 = vmul.f32 %v1427, %v1540
    %v1578 = vmul.f32 %v1431, %v1540
    %v1579 = vmul.f32 %v1435, %v1540
    %v1580 = vmul.f32 %v1439, %v1540
    %v1581 = vmul.f32 %v1443, %v1540
    %v1582 = vmul.f32 %v1447, %v1540
    %v1583 = vmul.f32 %v1451, %v1540
    %v1584 = vmul.f32 %v1455, %v1540
    %v1585 = vmul.f32 %v1459, %v1540
    %v1586 = vmul.f32 %v1463, %v1540
    %v1587 = vmul.f32 %v1467, %v1540
    %v1588 = vmul.f32 %v1471, %v1540
    %v1589 = vmul.f32 %v1475, %v1540
    %v1590 = vmul.f32 %v1479, %v1540
    %v1591 = vmul.f32 %v1483, %v1540
    %v1592 = vmul.f32 %v1487, %v1540
    %v1593 = vmul.f32 %v1491, %v1540
    %v1594 = vmul.f32 %v1495, %v1540
    %v1595 = vmul.f32 %v1499, %v1540
    %v1596 = vmul.f32 %v1503, %v1540
    %v1597 = vmul.f32 %v1507, %v1540
    %v1598 = vmul.f32 %v1511, %v1540
    %v1599 = vmul.f32 %v1515, %v1540
    %v1600 = vmul.f32 %v1519, %v1540
    %v1601 = vmul.f32 %v1523, %v1540
    %v1602 = vmul.f32 %v1527, %v1540
    %v1603 = vmul.f32 %v1531, %v1540
    %v1604 = vmul.f32 %v1535, %v1540
    %v1605 = vadd.f32 %v1217, %v1541
    %v1606 = vadd.f32 %v1218, %v1542
    %v1607 = vadd.f32 %v1219, %v1543
    %v1608 = vadd.f32 %v1220, %v1544
    %v1609 = vadd.f32 %v1221, %v1545
    %v1610 = vadd.f32 %v1222, %v1546
    %v1611 = vadd.f32 %v1223, %v1547
    %v1612 = vadd.f32 %v1224, %v1548
    %v1613 = vadd.f32 %v1225, %v1549
    %v1614 = vadd.f32 %v1226, %v1550
    %v1615 = vadd.f32 %v1227, %v1551
    %v1616 = vadd.f32 %v1228, %v1552
    %v1617 = vadd.f32 %v1229, %v1553
    %v1618 = vadd.f32 %v1230, %v1554
    %v1619 = vadd.f32 %v1231, %v1555
    %v1620 = vadd.f32 %v1232, %v1556
    %v1621 = vadd.f32 %v1233, %v1557
    %v1622 = vadd.f32 %v1234, %v1558
    %v1623 = vadd.f32 %v1235, %v1559
    %v1624 = vadd.f32 %v1236, %v1560
    %v1625 = vadd.f32 %v1237, %v1561
    %v1626 = vadd.f32 %v1238, %v1562
    %v1627 = vadd.f32 %v1239, %v1563
    %v1628 = vadd.f32 %v1240, %v1564
    %v1629 = vadd.f32 %v1241, %v1565
    %v1630 = vadd.f32 %v1242, %v1566
    %v1631 = vadd.f32 %v1243, %v1567
    %v1632 = vadd.f32 %v1244, %v1568
    %v1633 = vadd.f32 %v1245, %v1569
    %v1634 = vadd.f32 %v1246, %v1570
    %v1635 = vadd.f32 %v1247, %v1571
    %v1636 = vadd.f32 %v1248, %v1572
    %v1637 = vadd.f32 %v1249, %v1573
    %v1638 = vadd.f32 %v1250, %v1574
    %v1639 = vadd.f32 %v1251, %v1575
    %v1640 = vadd.f32 %v1252, %v1576
    %v1641 = vadd.f32 %v1253, %v1577
    %v1642 = vadd.f32 %v1254, %v1578
    %v1643 = vadd.f32 %v1255, %v1579
    %v1644 = vadd.f32 %v1256, %v1580
    %v1645 = vadd.f32 %v1257, %v1581
    %v1646 = vadd.f32 %v1258, %v1582
    %v1647 = vadd.f32 %v1259, %v1583
    %v1648 = vadd.f32 %v1260, %v1584
    %v1649 = vadd.f32 %v1261, %v1585
    %v1650 = vadd.f32 %v1262, %v1586
    %v1651 = vadd.f32 %v1263, %v1587
    %v1652 = vadd.f32 %v1264, %v1588
    %v1653 = vadd.f32 %v1265, %v1589
    %v1654 = vadd.f32 %v1266, %v1590
    %v1655 = vadd.f32 %v1267, %v1591
    %v1656 = vadd.f32 %v1268, %v1592
    %v1657 = vadd.f32 %v1269, %v1593
    %v1658 = vadd.f32 %v1270, %v1594
    %v1659 = vadd.f32 %v1271, %v1595
    %v1660 = vadd.f32 %v1272, %v1596
    %v1661 = vadd.f32 %v1273, %v1597
    %v1662 = vadd.f32 %v1274, %v1598
    %v1663 = vadd.f32 %v1275, %v1599
    %v1664 = vadd.f32 %v1276, %v1600
    %v1665 = vadd.f32 %v1277, %v1601
    %v1666 = vadd.f32 %v1278, %v1602
    %v1667 = vadd.f32 %v1279, %v1603
    %v1668 = vadd.f32 %v1280, %v1604
    %1669 = vset.pattern.permute.xlu0 3
    %1670 = vperm.xlu0 %1669, %v369
    %v1671 = vpop.permute.xlu0 %1670
    %1673 = vset.pattern.permute.xlu0 3
    %1674 = vperm.xlu0 %1673, %v370
    %v1675 = vpop.permute.xlu0 %1674
    %1677 = vset.pattern.permute.xlu0 3
    %1678 = vperm.xlu0 %1677, %v371
    %v1679 = vpop.permute.xlu0 %1678
    %1681 = vset.pattern.permute.xlu0 3
    %1682 = vperm.xlu0 %1681, %v372
    %v1683 = vpop.permute.xlu0 %1682
    %1685 = vset.pattern.permute.xlu0 3
    %1686 = vperm.xlu0 %1685, %v373
    %v1687 = vpop.permute.xlu0 %1686
    %1689 = vset.pattern.permute.xlu0 3
    %1690 = vperm.xlu0 %1689, %v374
    %v1691 = vpop.permute.xlu0 %1690
    %1693 = vset.pattern.permute.xlu0 3
    %1694 = vperm.xlu0 %1693, %v375
    %v1695 = vpop.permute.xlu0 %1694
    %1697 = vset.pattern.permute.xlu0 3
    %1698 = vperm.xlu0 %1697, %v376
    %v1699 = vpop.permute.xlu0 %1698
    %1701 = vset.pattern.permute.xlu0 3
    %1702 = vperm.xlu0 %1701, %v377
    %v1703 = vpop.permute.xlu0 %1702
    %1705 = vset.pattern.permute.xlu0 3
    %1706 = vperm.xlu0 %1705, %v378
    %v1707 = vpop.permute.xlu0 %1706
    %1709 = vset.pattern.permute.xlu0 3
    %1710 = vperm.xlu0 %1709, %v379
    %v1711 = vpop.permute.xlu0 %1710
    %1713 = vset.pattern.permute.xlu0 3
    %1714 = vperm.xlu0 %1713, %v380
    %v1715 = vpop.permute.xlu0 %1714
    %1717 = vset.pattern.permute.xlu0 3
    %1718 = vperm.xlu0 %1717, %v381
    %v1719 = vpop.permute.xlu0 %1718
    %1721 = vset.pattern.permute.xlu0 3
    %1722 = vperm.xlu0 %1721, %v382
    %v1723 = vpop.permute.xlu0 %1722
    %1725 = vset.pattern.permute.xlu0 3
    %1726 = vperm.xlu0 %1725, %v383
    %v1727 = vpop.permute.xlu0 %1726
    %1729 = vset.pattern.permute.xlu0 3
    %1730 = vperm.xlu0 %1729, %v384
    %v1731 = vpop.permute.xlu0 %1730
    %1733 = vset.pattern.permute.xlu0 3
    %1734 = vperm.xlu0 %1733, %v385
    %v1735 = vpop.permute.xlu0 %1734
    %1737 = vset.pattern.permute.xlu0 3
    %1738 = vperm.xlu0 %1737, %v386
    %v1739 = vpop.permute.xlu0 %1738
    %1741 = vset.pattern.permute.xlu0 3
    %1742 = vperm.xlu0 %1741, %v387
    %v1743 = vpop.permute.xlu0 %1742
    %1745 = vset.pattern.permute.xlu0 3
    %1746 = vperm.xlu0 %1745, %v388
    %v1747 = vpop.permute.xlu0 %1746
    %1749 = vset.pattern.permute.xlu0 3
    %1750 = vperm.xlu0 %1749, %v389
    %v1751 = vpop.permute.xlu0 %1750
    %1753 = vset.pattern.permute.xlu0 3
    %1754 = vperm.xlu0 %1753, %v390
    %v1755 = vpop.permute.xlu0 %1754
    %1757 = vset.pattern.permute.xlu0 3
    %1758 = vperm.xlu0 %1757, %v391
    %v1759 = vpop.permute.xlu0 %1758
    %1761 = vset.pattern.permute.xlu0 3
    %1762 = vperm.xlu0 %1761, %v392
    %v1763 = vpop.permute.xlu0 %1762
    %1765 = vset.pattern.permute.xlu0 3
    %1766 = vperm.xlu0 %1765, %v393
    %v1767 = vpop.permute.xlu0 %1766
    %1769 = vset.pattern.permute.xlu0 3
    %1770 = vperm.xlu0 %1769, %v394
    %v1771 = vpop.permute.xlu0 %1770
    %1773 = vset.pattern.permute.xlu0 3
    %1774 = vperm.xlu0 %1773, %v395
    %v1775 = vpop.permute.xlu0 %1774
    %1777 = vset.pattern.permute.xlu0 3
    %1778 = vperm.xlu0 %1777, %v396
    %v1779 = vpop.permute.xlu0 %1778
    %1781 = vset.pattern.permute.xlu0 3
    %1782 = vperm.xlu0 %1781, %v397
    %v1783 = vpop.permute.xlu0 %1782
    %1785 = vset.pattern.permute.xlu0 3
    %1786 = vperm.xlu0 %1785, %v398
    %v1787 = vpop.permute.xlu0 %1786
    %1789 = vset.pattern.permute.xlu0 3
    %1790 = vperm.xlu0 %1789, %v399
    %v1791 = vpop.permute.xlu0 %1790
    %1793 = vset.pattern.permute.xlu0 3
    %1794 = vperm.xlu0 %1793, %v400
    %v1795 = vpop.permute.xlu0 %1794
    %1797 = vset.pattern.permute.xlu0 3
    %1798 = vperm.xlu0 %1797, %v401
    %v1799 = vpop.permute.xlu0 %1798
    %1801 = vset.pattern.permute.xlu0 3
    %1802 = vperm.xlu0 %1801, %v402
    %v1803 = vpop.permute.xlu0 %1802
    %1805 = vset.pattern.permute.xlu0 3
    %1806 = vperm.xlu0 %1805, %v403
    %v1807 = vpop.permute.xlu0 %1806
    %1809 = vset.pattern.permute.xlu0 3
    %1810 = vperm.xlu0 %1809, %v404
    %v1811 = vpop.permute.xlu0 %1810
    %1813 = vset.pattern.permute.xlu0 3
    %1814 = vperm.xlu0 %1813, %v405
    %v1815 = vpop.permute.xlu0 %1814
    %1817 = vset.pattern.permute.xlu0 3
    %1818 = vperm.xlu0 %1817, %v406
    %v1819 = vpop.permute.xlu0 %1818
    %1821 = vset.pattern.permute.xlu0 3
    %1822 = vperm.xlu0 %1821, %v407
    %v1823 = vpop.permute.xlu0 %1822
    %1825 = vset.pattern.permute.xlu0 3
    %1826 = vperm.xlu0 %1825, %v408
    %v1827 = vpop.permute.xlu0 %1826
    %1829 = vset.pattern.permute.xlu0 3
    %1830 = vperm.xlu0 %1829, %v409
    %v1831 = vpop.permute.xlu0 %1830
    %1833 = vset.pattern.permute.xlu0 3
    %1834 = vperm.xlu0 %1833, %v410
    %v1835 = vpop.permute.xlu0 %1834
    %1837 = vset.pattern.permute.xlu0 3
    %1838 = vperm.xlu0 %1837, %v411
    %v1839 = vpop.permute.xlu0 %1838
    %1841 = vset.pattern.permute.xlu0 3
    %1842 = vperm.xlu0 %1841, %v412
    %v1843 = vpop.permute.xlu0 %1842
    %1845 = vset.pattern.permute.xlu0 3
    %1846 = vperm.xlu0 %1845, %v413
    %v1847 = vpop.permute.xlu0 %1846
    %1849 = vset.pattern.permute.xlu0 3
    %1850 = vperm.xlu0 %1849, %v414
    %v1851 = vpop.permute.xlu0 %1850
    %1853 = vset.pattern.permute.xlu0 3
    %1854 = vperm.xlu0 %1853, %v415
    %v1855 = vpop.permute.xlu0 %1854
    %1857 = vset.pattern.permute.xlu0 3
    %1858 = vperm.xlu0 %1857, %v416
    %v1859 = vpop.permute.xlu0 %1858
    %1861 = vset.pattern.permute.xlu0 3
    %1862 = vperm.xlu0 %1861, %v417
    %v1863 = vpop.permute.xlu0 %1862
    %1865 = vset.pattern.permute.xlu0 3
    %1866 = vperm.xlu0 %1865, %v418
    %v1867 = vpop.permute.xlu0 %1866
    %1869 = vset.pattern.permute.xlu0 3
    %1870 = vperm.xlu0 %1869, %v419
    %v1871 = vpop.permute.xlu0 %1870
    %1873 = vset.pattern.permute.xlu0 3
    %1874 = vperm.xlu0 %1873, %v420
    %v1875 = vpop.permute.xlu0 %1874
    %1877 = vset.pattern.permute.xlu0 3
    %1878 = vperm.xlu0 %1877, %v421
    %v1879 = vpop.permute.xlu0 %1878
    %1881 = vset.pattern.permute.xlu0 3
    %1882 = vperm.xlu0 %1881, %v422
    %v1883 = vpop.permute.xlu0 %1882
    %1885 = vset.pattern.permute.xlu0 3
    %1886 = vperm.xlu0 %1885, %v423
    %v1887 = vpop.permute.xlu0 %1886
    %1889 = vset.pattern.permute.xlu0 3
    %1890 = vperm.xlu0 %1889, %v424
    %v1891 = vpop.permute.xlu0 %1890
    %1893 = vset.pattern.permute.xlu0 3
    %1894 = vperm.xlu0 %1893, %v425
    %v1895 = vpop.permute.xlu0 %1894
    %1897 = vset.pattern.permute.xlu0 3
    %1898 = vperm.xlu0 %1897, %v426
    %v1899 = vpop.permute.xlu0 %1898
    %1901 = vset.pattern.permute.xlu0 3
    %1902 = vperm.xlu0 %1901, %v427
    %v1903 = vpop.permute.xlu0 %1902
    %1905 = vset.pattern.permute.xlu0 3
    %1906 = vperm.xlu0 %1905, %v428
    %v1907 = vpop.permute.xlu0 %1906
    %1909 = vset.pattern.permute.xlu0 3
    %1910 = vperm.xlu0 %1909, %v429
    %v1911 = vpop.permute.xlu0 %1910
    %1913 = vset.pattern.permute.xlu0 3
    %1914 = vperm.xlu0 %1913, %v430
    %v1915 = vpop.permute.xlu0 %1914
    %1917 = vset.pattern.permute.xlu0 3
    %1918 = vperm.xlu0 %1917, %v431
    %v1919 = vpop.permute.xlu0 %1918
    %1921 = vset.pattern.permute.xlu0 3
    %1922 = vperm.xlu0 %1921, %v432
    %v1923 = vpop.permute.xlu0 %1922
    %v1925 = vlaneseq
    %v1926 = vshrl.u32 %v1925, 7
    %v1927 = vsub.s32 3, %v1926
    %v1928 = vrot.slane %v433, %v1927
    %v1929 = vmul.f32 %v1671, %v1928
    %v1930 = vmul.f32 %v1675, %v1928
    %v1931 = vmul.f32 %v1679, %v1928
    %v1932 = vmul.f32 %v1683, %v1928
    %v1933 = vmul.f32 %v1687, %v1928
    %v1934 = vmul.f32 %v1691, %v1928
    %v1935 = vmul.f32 %v1695, %v1928
    %v1936 = vmul.f32 %v1699, %v1928
    %v1937 = vmul.f32 %v1703, %v1928
    %v1938 = vmul.f32 %v1707, %v1928
    %v1939 = vmul.f32 %v1711, %v1928
    %v1940 = vmul.f32 %v1715, %v1928
    %v1941 = vmul.f32 %v1719, %v1928
    %v1942 = vmul.f32 %v1723, %v1928
    %v1943 = vmul.f32 %v1727, %v1928
    %v1944 = vmul.f32 %v1731, %v1928
    %v1945 = vmul.f32 %v1735, %v1928
    %v1946 = vmul.f32 %v1739, %v1928
    %v1947 = vmul.f32 %v1743, %v1928
    %v1948 = vmul.f32 %v1747, %v1928
    %v1949 = vmul.f32 %v1751, %v1928
    %v1950 = vmul.f32 %v1755, %v1928
    %v1951 = vmul.f32 %v1759, %v1928
    %v1952 = vmul.f32 %v1763, %v1928
    %v1953 = vmul.f32 %v1767, %v1928
    %v1954 = vmul.f32 %v1771, %v1928
    %v1955 = vmul.f32 %v1775, %v1928
    %v1956 = vmul.f32 %v1779, %v1928
    %v1957 = vmul.f32 %v1783, %v1928
    %v1958 = vmul.f32 %v1787, %v1928
    %v1959 = vmul.f32 %v1791, %v1928
    %v1960 = vmul.f32 %v1795, %v1928
    %v1961 = vmul.f32 %v1799, %v1928
    %v1962 = vmul.f32 %v1803, %v1928
    %v1963 = vmul.f32 %v1807, %v1928
    %v1964 = vmul.f32 %v1811, %v1928
    %v1965 = vmul.f32 %v1815, %v1928
    %v1966 = vmul.f32 %v1819, %v1928
    %v1967 = vmul.f32 %v1823, %v1928
    %v1968 = vmul.f32 %v1827, %v1928
    %v1969 = vmul.f32 %v1831, %v1928
    %v1970 = vmul.f32 %v1835, %v1928
    %v1971 = vmul.f32 %v1839, %v1928
    %v1972 = vmul.f32 %v1843, %v1928
    %v1973 = vmul.f32 %v1847, %v1928
    %v1974 = vmul.f32 %v1851, %v1928
    %v1975 = vmul.f32 %v1855, %v1928
    %v1976 = vmul.f32 %v1859, %v1928
    %v1977 = vmul.f32 %v1863, %v1928
    %v1978 = vmul.f32 %v1867, %v1928
    %v1979 = vmul.f32 %v1871, %v1928
    %v1980 = vmul.f32 %v1875, %v1928
    %v1981 = vmul.f32 %v1879, %v1928
    %v1982 = vmul.f32 %v1883, %v1928
    %v1983 = vmul.f32 %v1887, %v1928
    %v1984 = vmul.f32 %v1891, %v1928
    %v1985 = vmul.f32 %v1895, %v1928
    %v1986 = vmul.f32 %v1899, %v1928
    %v1987 = vmul.f32 %v1903, %v1928
    %v1988 = vmul.f32 %v1907, %v1928
    %v1989 = vmul.f32 %v1911, %v1928
    %v1990 = vmul.f32 %v1915, %v1928
    %v1991 = vmul.f32 %v1919, %v1928
    %v1992 = vmul.f32 %v1923, %v1928
    %v1993 = vadd.f32 %v1605, %v1929
    %v1994 = vadd.f32 %v1606, %v1930
    %v1995 = vadd.f32 %v1607, %v1931
    %v1996 = vadd.f32 %v1608, %v1932
    %v1997 = vadd.f32 %v1609, %v1933
    %v1998 = vadd.f32 %v1610, %v1934
    %v1999 = vadd.f32 %v1611, %v1935
    %v2000 = vadd.f32 %v1612, %v1936
    %v2001 = vadd.f32 %v1613, %v1937
    %v2002 = vadd.f32 %v1614, %v1938
    %v2003 = vadd.f32 %v1615, %v1939
    %v2004 = vadd.f32 %v1616, %v1940
    %v2005 = vadd.f32 %v1617, %v1941
    %v2006 = vadd.f32 %v1618, %v1942
    %v2007 = vadd.f32 %v1619, %v1943
    %v2008 = vadd.f32 %v1620, %v1944
    %v2009 = vadd.f32 %v1621, %v1945
    %v2010 = vadd.f32 %v1622, %v1946
    %v2011 = vadd.f32 %v1623, %v1947
    %v2012 = vadd.f32 %v1624, %v1948
    %v2013 = vadd.f32 %v1625, %v1949
    %v2014 = vadd.f32 %v1626, %v1950
    %v2015 = vadd.f32 %v1627, %v1951
    %v2016 = vadd.f32 %v1628, %v1952
    %v2017 = vadd.f32 %v1629, %v1953
    %v2018 = vadd.f32 %v1630, %v1954
    %v2019 = vadd.f32 %v1631, %v1955
    %v2020 = vadd.f32 %v1632, %v1956
    %v2021 = vadd.f32 %v1633, %v1957
    %v2022 = vadd.f32 %v1634, %v1958
    %v2023 = vadd.f32 %v1635, %v1959
    %v2024 = vadd.f32 %v1636, %v1960
    %v2025 = vadd.f32 %v1637, %v1961
    %v2026 = vadd.f32 %v1638, %v1962
    %v2027 = vadd.f32 %v1639, %v1963
    %v2028 = vadd.f32 %v1640, %v1964
    %v2029 = vadd.f32 %v1641, %v1965
    %v2030 = vadd.f32 %v1642, %v1966
    %v2031 = vadd.f32 %v1643, %v1967
    %v2032 = vadd.f32 %v1644, %v1968
    %v2033 = vadd.f32 %v1645, %v1969
    %v2034 = vadd.f32 %v1646, %v1970
    %v2035 = vadd.f32 %v1647, %v1971
    %v2036 = vadd.f32 %v1648, %v1972
    %v2037 = vadd.f32 %v1649, %v1973
    %v2038 = vadd.f32 %v1650, %v1974
    %v2039 = vadd.f32 %v1651, %v1975
    %v2040 = vadd.f32 %v1652, %v1976
    %v2041 = vadd.f32 %v1653, %v1977
    %v2042 = vadd.f32 %v1654, %v1978
    %v2043 = vadd.f32 %v1655, %v1979
    %v2044 = vadd.f32 %v1656, %v1980
    %v2045 = vadd.f32 %v1657, %v1981
    %v2046 = vadd.f32 %v1658, %v1982
    %v2047 = vadd.f32 %v1659, %v1983
    %v2048 = vadd.f32 %v1660, %v1984
    %v2049 = vadd.f32 %v1661, %v1985
    %v2050 = vadd.f32 %v1662, %v1986
    %v2051 = vadd.f32 %v1663, %v1987
    %v2052 = vadd.f32 %v1664, %v1988
    %v2053 = vadd.f32 %v1665, %v1989
    %v2054 = vadd.f32 %v1666, %v1990
    %v2055 = vadd.f32 %v1667, %v1991
    %v2056 = vadd.f32 %v1668, %v1992
    %2057 = vset.pattern.permute.xlu0 4
    %2058 = vperm.xlu0 %2057, %v369
    %v2059 = vpop.permute.xlu0 %2058
    %2061 = vset.pattern.permute.xlu0 4
    %2062 = vperm.xlu0 %2061, %v370
    %v2063 = vpop.permute.xlu0 %2062
    %2065 = vset.pattern.permute.xlu0 4
    %2066 = vperm.xlu0 %2065, %v371
    %v2067 = vpop.permute.xlu0 %2066
    %2069 = vset.pattern.permute.xlu0 4
    %2070 = vperm.xlu0 %2069, %v372
    %v2071 = vpop.permute.xlu0 %2070
    %2073 = vset.pattern.permute.xlu0 4
    %2074 = vperm.xlu0 %2073, %v373
    %v2075 = vpop.permute.xlu0 %2074
    %2077 = vset.pattern.permute.xlu0 4
    %2078 = vperm.xlu0 %2077, %v374
    %v2079 = vpop.permute.xlu0 %2078
    %2081 = vset.pattern.permute.xlu0 4
    %2082 = vperm.xlu0 %2081, %v375
    %v2083 = vpop.permute.xlu0 %2082
    %2085 = vset.pattern.permute.xlu0 4
    %2086 = vperm.xlu0 %2085, %v376
    %v2087 = vpop.permute.xlu0 %2086
    %2089 = vset.pattern.permute.xlu0 4
    %2090 = vperm.xlu0 %2089, %v377
    %v2091 = vpop.permute.xlu0 %2090
    %2093 = vset.pattern.permute.xlu0 4
    %2094 = vperm.xlu0 %2093, %v378
    %v2095 = vpop.permute.xlu0 %2094
    %2097 = vset.pattern.permute.xlu0 4
    %2098 = vperm.xlu0 %2097, %v379
    %v2099 = vpop.permute.xlu0 %2098
    %2101 = vset.pattern.permute.xlu0 4
    %2102 = vperm.xlu0 %2101, %v380
    %v2103 = vpop.permute.xlu0 %2102
    %2105 = vset.pattern.permute.xlu0 4
    %2106 = vperm.xlu0 %2105, %v381
    %v2107 = vpop.permute.xlu0 %2106
    %2109 = vset.pattern.permute.xlu0 4
    %2110 = vperm.xlu0 %2109, %v382
    %v2111 = vpop.permute.xlu0 %2110
    %2113 = vset.pattern.permute.xlu0 4
    %2114 = vperm.xlu0 %2113, %v383
    %v2115 = vpop.permute.xlu0 %2114
    %2117 = vset.pattern.permute.xlu0 4
    %2118 = vperm.xlu0 %2117, %v384
    %v2119 = vpop.permute.xlu0 %2118
    %2121 = vset.pattern.permute.xlu0 4
    %2122 = vperm.xlu0 %2121, %v385
    %v2123 = vpop.permute.xlu0 %2122
    %2125 = vset.pattern.permute.xlu0 4
    %2126 = vperm.xlu0 %2125, %v386
    %v2127 = vpop.permute.xlu0 %2126
    %2129 = vset.pattern.permute.xlu0 4
    %2130 = vperm.xlu0 %2129, %v387
    %v2131 = vpop.permute.xlu0 %2130
    %2133 = vset.pattern.permute.xlu0 4
    %2134 = vperm.xlu0 %2133, %v388
    %v2135 = vpop.permute.xlu0 %2134
    %2137 = vset.pattern.permute.xlu0 4
    %2138 = vperm.xlu0 %2137, %v389
    %v2139 = vpop.permute.xlu0 %2138
    %2141 = vset.pattern.permute.xlu0 4
    %2142 = vperm.xlu0 %2141, %v390
    %v2143 = vpop.permute.xlu0 %2142
    %2145 = vset.pattern.permute.xlu0 4
    %2146 = vperm.xlu0 %2145, %v391
    %v2147 = vpop.permute.xlu0 %2146
    %2149 = vset.pattern.permute.xlu0 4
    %2150 = vperm.xlu0 %2149, %v392
    %v2151 = vpop.permute.xlu0 %2150
    %2153 = vset.pattern.permute.xlu0 4
    %2154 = vperm.xlu0 %2153, %v393
    %v2155 = vpop.permute.xlu0 %2154
    %2157 = vset.pattern.permute.xlu0 4
    %2158 = vperm.xlu0 %2157, %v394
    %v2159 = vpop.permute.xlu0 %2158
    %2161 = vset.pattern.permute.xlu0 4
    %2162 = vperm.xlu0 %2161, %v395
    %v2163 = vpop.permute.xlu0 %2162
    %2165 = vset.pattern.permute.xlu0 4
    %2166 = vperm.xlu0 %2165, %v396
    %v2167 = vpop.permute.xlu0 %2166
    %2169 = vset.pattern.permute.xlu0 4
    %2170 = vperm.xlu0 %2169, %v397
    %v2171 = vpop.permute.xlu0 %2170
    %2173 = vset.pattern.permute.xlu0 4
    %2174 = vperm.xlu0 %2173, %v398
    %v2175 = vpop.permute.xlu0 %2174
    %2177 = vset.pattern.permute.xlu0 4
    %2178 = vperm.xlu0 %2177, %v399
    %v2179 = vpop.permute.xlu0 %2178
    %2181 = vset.pattern.permute.xlu0 4
    %2182 = vperm.xlu0 %2181, %v400
    %v2183 = vpop.permute.xlu0 %2182
    %2185 = vset.pattern.permute.xlu0 4
    %2186 = vperm.xlu0 %2185, %v401
    %v2187 = vpop.permute.xlu0 %2186
    %2189 = vset.pattern.permute.xlu0 4
    %2190 = vperm.xlu0 %2189, %v402
    %v2191 = vpop.permute.xlu0 %2190
    %2193 = vset.pattern.permute.xlu0 4
    %2194 = vperm.xlu0 %2193, %v403
    %v2195 = vpop.permute.xlu0 %2194
    %2197 = vset.pattern.permute.xlu0 4
    %2198 = vperm.xlu0 %2197, %v404
    %v2199 = vpop.permute.xlu0 %2198
    %2201 = vset.pattern.permute.xlu0 4
    %2202 = vperm.xlu0 %2201, %v405
    %v2203 = vpop.permute.xlu0 %2202
    %2205 = vset.pattern.permute.xlu0 4
    %2206 = vperm.xlu0 %2205, %v406
    %v2207 = vpop.permute.xlu0 %2206
    %2209 = vset.pattern.permute.xlu0 4
    %2210 = vperm.xlu0 %2209, %v407
    %v2211 = vpop.permute.xlu0 %2210
    %2213 = vset.pattern.permute.xlu0 4
    %2214 = vperm.xlu0 %2213, %v408
    %v2215 = vpop.permute.xlu0 %2214
    %2217 = vset.pattern.permute.xlu0 4
    %2218 = vperm.xlu0 %2217, %v409
    %v2219 = vpop.permute.xlu0 %2218
    %2221 = vset.pattern.permute.xlu0 4
    %2222 = vperm.xlu0 %2221, %v410
    %v2223 = vpop.permute.xlu0 %2222
    %2225 = vset.pattern.permute.xlu0 4
    %2226 = vperm.xlu0 %2225, %v411
    %v2227 = vpop.permute.xlu0 %2226
    %2229 = vset.pattern.permute.xlu0 4
    %2230 = vperm.xlu0 %2229, %v412
    %v2231 = vpop.permute.xlu0 %2230
    %2233 = vset.pattern.permute.xlu0 4
    %2234 = vperm.xlu0 %2233, %v413
    %v2235 = vpop.permute.xlu0 %2234
    %2237 = vset.pattern.permute.xlu0 4
    %2238 = vperm.xlu0 %2237, %v414
    %v2239 = vpop.permute.xlu0 %2238
    %2241 = vset.pattern.permute.xlu0 4
    %2242 = vperm.xlu0 %2241, %v415
    %v2243 = vpop.permute.xlu0 %2242
    %2245 = vset.pattern.permute.xlu0 4
    %2246 = vperm.xlu0 %2245, %v416
    %v2247 = vpop.permute.xlu0 %2246
    %2249 = vset.pattern.permute.xlu0 4
    %2250 = vperm.xlu0 %2249, %v417
    %v2251 = vpop.permute.xlu0 %2250
    %2253 = vset.pattern.permute.xlu0 4
    %2254 = vperm.xlu0 %2253, %v418
    %v2255 = vpop.permute.xlu0 %2254
    %2257 = vset.pattern.permute.xlu0 4
    %2258 = vperm.xlu0 %2257, %v419
    %v2259 = vpop.permute.xlu0 %2258
    %2261 = vset.pattern.permute.xlu0 4
    %2262 = vperm.xlu0 %2261, %v420
    %v2263 = vpop.permute.xlu0 %2262
    %2265 = vset.pattern.permute.xlu0 4
    %2266 = vperm.xlu0 %2265, %v421
    %v2267 = vpop.permute.xlu0 %2266
    %2269 = vset.pattern.permute.xlu0 4
    %2270 = vperm.xlu0 %2269, %v422
    %v2271 = vpop.permute.xlu0 %2270
    %2273 = vset.pattern.permute.xlu0 4
    %2274 = vperm.xlu0 %2273, %v423
    %v2275 = vpop.permute.xlu0 %2274
    %2277 = vset.pattern.permute.xlu0 4
    %2278 = vperm.xlu0 %2277, %v424
    %v2279 = vpop.permute.xlu0 %2278
    %2281 = vset.pattern.permute.xlu0 4
    %2282 = vperm.xlu0 %2281, %v425
    %v2283 = vpop.permute.xlu0 %2282
    %2285 = vset.pattern.permute.xlu0 4
    %2286 = vperm.xlu0 %2285, %v426
    %v2287 = vpop.permute.xlu0 %2286
    %2289 = vset.pattern.permute.xlu0 4
    %2290 = vperm.xlu0 %2289, %v427
    %v2291 = vpop.permute.xlu0 %2290
    %2293 = vset.pattern.permute.xlu0 4
    %2294 = vperm.xlu0 %2293, %v428
    %v2295 = vpop.permute.xlu0 %2294
    %2297 = vset.pattern.permute.xlu0 4
    %2298 = vperm.xlu0 %2297, %v429
    %v2299 = vpop.permute.xlu0 %2298
    %2301 = vset.pattern.permute.xlu0 4
    %2302 = vperm.xlu0 %2301, %v430
    %v2303 = vpop.permute.xlu0 %2302
    %2305 = vset.pattern.permute.xlu0 4
    %2306 = vperm.xlu0 %2305, %v431
    %v2307 = vpop.permute.xlu0 %2306
    %2309 = vset.pattern.permute.xlu0 4
    %2310 = vperm.xlu0 %2309, %v432
    %v2311 = vpop.permute.xlu0 %2310
    %v2313 = vlaneseq
    %v2314 = vshrl.u32 %v2313, 7
    %v2315 = vsub.s32 4, %v2314
    %v2316 = vrot.slane %v433, %v2315
    %v2317 = vmul.f32 %v2059, %v2316
    %v2318 = vmul.f32 %v2063, %v2316
    %v2319 = vmul.f32 %v2067, %v2316
    %v2320 = vmul.f32 %v2071, %v2316
    %v2321 = vmul.f32 %v2075, %v2316
    %v2322 = vmul.f32 %v2079, %v2316
    %v2323 = vmul.f32 %v2083, %v2316
    %v2324 = vmul.f32 %v2087, %v2316
    %v2325 = vmul.f32 %v2091, %v2316
    %v2326 = vmul.f32 %v2095, %v2316
    %v2327 = vmul.f32 %v2099, %v2316
    %v2328 = vmul.f32 %v2103, %v2316
    %v2329 = vmul.f32 %v2107, %v2316
    %v2330 = vmul.f32 %v2111, %v2316
    %v2331 = vmul.f32 %v2115, %v2316
    %v2332 = vmul.f32 %v2119, %v2316
    %v2333 = vmul.f32 %v2123, %v2316
    %v2334 = vmul.f32 %v2127, %v2316
    %v2335 = vmul.f32 %v2131, %v2316
    %v2336 = vmul.f32 %v2135, %v2316
    %v2337 = vmul.f32 %v2139, %v2316
    %v2338 = vmul.f32 %v2143, %v2316
    %v2339 = vmul.f32 %v2147, %v2316
    %v2340 = vmul.f32 %v2151, %v2316
    %v2341 = vmul.f32 %v2155, %v2316
    %v2342 = vmul.f32 %v2159, %v2316
    %v2343 = vmul.f32 %v2163, %v2316
    %v2344 = vmul.f32 %v2167, %v2316
    %v2345 = vmul.f32 %v2171, %v2316
    %v2346 = vmul.f32 %v2175, %v2316
    %v2347 = vmul.f32 %v2179, %v2316
    %v2348 = vmul.f32 %v2183, %v2316
    %v2349 = vmul.f32 %v2187, %v2316
    %v2350 = vmul.f32 %v2191, %v2316
    %v2351 = vmul.f32 %v2195, %v2316
    %v2352 = vmul.f32 %v2199, %v2316
    %v2353 = vmul.f32 %v2203, %v2316
    %v2354 = vmul.f32 %v2207, %v2316
    %v2355 = vmul.f32 %v2211, %v2316
    %v2356 = vmul.f32 %v2215, %v2316
    %v2357 = vmul.f32 %v2219, %v2316
    %v2358 = vmul.f32 %v2223, %v2316
    %v2359 = vmul.f32 %v2227, %v2316
    %v2360 = vmul.f32 %v2231, %v2316
    %v2361 = vmul.f32 %v2235, %v2316
    %v2362 = vmul.f32 %v2239, %v2316
    %v2363 = vmul.f32 %v2243, %v2316
    %v2364 = vmul.f32 %v2247, %v2316
    %v2365 = vmul.f32 %v2251, %v2316
    %v2366 = vmul.f32 %v2255, %v2316
    %v2367 = vmul.f32 %v2259, %v2316
    %v2368 = vmul.f32 %v2263, %v2316
    %v2369 = vmul.f32 %v2267, %v2316
    %v2370 = vmul.f32 %v2271, %v2316
    %v2371 = vmul.f32 %v2275, %v2316
    %v2372 = vmul.f32 %v2279, %v2316
    %v2373 = vmul.f32 %v2283, %v2316
    %v2374 = vmul.f32 %v2287, %v2316
    %v2375 = vmul.f32 %v2291, %v2316
    %v2376 = vmul.f32 %v2295, %v2316
    %v2377 = vmul.f32 %v2299, %v2316
    %v2378 = vmul.f32 %v2303, %v2316
    %v2379 = vmul.f32 %v2307, %v2316
    %v2380 = vmul.f32 %v2311, %v2316
    %v2381 = vadd.f32 %v1993, %v2317
    %v2382 = vadd.f32 %v1994, %v2318
    %v2383 = vadd.f32 %v1995, %v2319
    %v2384 = vadd.f32 %v1996, %v2320
    %v2385 = vadd.f32 %v1997, %v2321
    %v2386 = vadd.f32 %v1998, %v2322
    %v2387 = vadd.f32 %v1999, %v2323
    %v2388 = vadd.f32 %v2000, %v2324
    %v2389 = vadd.f32 %v2001, %v2325
    %v2390 = vadd.f32 %v2002, %v2326
    %v2391 = vadd.f32 %v2003, %v2327
    %v2392 = vadd.f32 %v2004, %v2328
    %v2393 = vadd.f32 %v2005, %v2329
    %v2394 = vadd.f32 %v2006, %v2330
    %v2395 = vadd.f32 %v2007, %v2331
    %v2396 = vadd.f32 %v2008, %v2332
    %v2397 = vadd.f32 %v2009, %v2333
    %v2398 = vadd.f32 %v2010, %v2334
    %v2399 = vadd.f32 %v2011, %v2335
    %v2400 = vadd.f32 %v2012, %v2336
    %v2401 = vadd.f32 %v2013, %v2337
    %v2402 = vadd.f32 %v2014, %v2338
    %v2403 = vadd.f32 %v2015, %v2339
    %v2404 = vadd.f32 %v2016, %v2340
    %v2405 = vadd.f32 %v2017, %v2341
    %v2406 = vadd.f32 %v2018, %v2342
    %v2407 = vadd.f32 %v2019, %v2343
    %v2408 = vadd.f32 %v2020, %v2344
    %v2409 = vadd.f32 %v2021, %v2345
    %v2410 = vadd.f32 %v2022, %v2346
    %v2411 = vadd.f32 %v2023, %v2347
    %v2412 = vadd.f32 %v2024, %v2348
    %v2413 = vadd.f32 %v2025, %v2349
    %v2414 = vadd.f32 %v2026, %v2350
    %v2415 = vadd.f32 %v2027, %v2351
    %v2416 = vadd.f32 %v2028, %v2352
    %v2417 = vadd.f32 %v2029, %v2353
    %v2418 = vadd.f32 %v2030, %v2354
    %v2419 = vadd.f32 %v2031, %v2355
    %v2420 = vadd.f32 %v2032, %v2356
    %v2421 = vadd.f32 %v2033, %v2357
    %v2422 = vadd.f32 %v2034, %v2358
    %v2423 = vadd.f32 %v2035, %v2359
    %v2424 = vadd.f32 %v2036, %v2360
    %v2425 = vadd.f32 %v2037, %v2361
    %v2426 = vadd.f32 %v2038, %v2362
    %v2427 = vadd.f32 %v2039, %v2363
    %v2428 = vadd.f32 %v2040, %v2364
    %v2429 = vadd.f32 %v2041, %v2365
    %v2430 = vadd.f32 %v2042, %v2366
    %v2431 = vadd.f32 %v2043, %v2367
    %v2432 = vadd.f32 %v2044, %v2368
    %v2433 = vadd.f32 %v2045, %v2369
    %v2434 = vadd.f32 %v2046, %v2370
    %v2435 = vadd.f32 %v2047, %v2371
    %v2436 = vadd.f32 %v2048, %v2372
    %v2437 = vadd.f32 %v2049, %v2373
    %v2438 = vadd.f32 %v2050, %v2374
    %v2439 = vadd.f32 %v2051, %v2375
    %v2440 = vadd.f32 %v2052, %v2376
    %v2441 = vadd.f32 %v2053, %v2377
    %v2442 = vadd.f32 %v2054, %v2378
    %v2443 = vadd.f32 %v2055, %v2379
    %v2444 = vadd.f32 %v2056, %v2380
    %2445 = vset.pattern.permute.xlu0 5
    %2446 = vperm.xlu0 %2445, %v369
    %v2447 = vpop.permute.xlu0 %2446
    %2449 = vset.pattern.permute.xlu0 5
    %2450 = vperm.xlu0 %2449, %v370
    %v2451 = vpop.permute.xlu0 %2450
    %2453 = vset.pattern.permute.xlu0 5
    %2454 = vperm.xlu0 %2453, %v371
    %v2455 = vpop.permute.xlu0 %2454
    %2457 = vset.pattern.permute.xlu0 5
    %2458 = vperm.xlu0 %2457, %v372
    %v2459 = vpop.permute.xlu0 %2458
    %2461 = vset.pattern.permute.xlu0 5
    %2462 = vperm.xlu0 %2461, %v373
    %v2463 = vpop.permute.xlu0 %2462
    %2465 = vset.pattern.permute.xlu0 5
    %2466 = vperm.xlu0 %2465, %v374
    %v2467 = vpop.permute.xlu0 %2466
    %2469 = vset.pattern.permute.xlu0 5
    %2470 = vperm.xlu0 %2469, %v375
    %v2471 = vpop.permute.xlu0 %2470
    %2473 = vset.pattern.permute.xlu0 5
    %2474 = vperm.xlu0 %2473, %v376
    %v2475 = vpop.permute.xlu0 %2474
    %2477 = vset.pattern.permute.xlu0 5
    %2478 = vperm.xlu0 %2477, %v377
    %v2479 = vpop.permute.xlu0 %2478
    %2481 = vset.pattern.permute.xlu0 5
    %2482 = vperm.xlu0 %2481, %v378
    %v2483 = vpop.permute.xlu0 %2482
    %2485 = vset.pattern.permute.xlu0 5
    %2486 = vperm.xlu0 %2485, %v379
    %v2487 = vpop.permute.xlu0 %2486
    %2489 = vset.pattern.permute.xlu0 5
    %2490 = vperm.xlu0 %2489, %v380
    %v2491 = vpop.permute.xlu0 %2490
    %2493 = vset.pattern.permute.xlu0 5
    %2494 = vperm.xlu0 %2493, %v381
    %v2495 = vpop.permute.xlu0 %2494
    %2497 = vset.pattern.permute.xlu0 5
    %2498 = vperm.xlu0 %2497, %v382
    %v2499 = vpop.permute.xlu0 %2498
    %2501 = vset.pattern.permute.xlu0 5
    %2502 = vperm.xlu0 %2501, %v383
    %v2503 = vpop.permute.xlu0 %2502
    %2505 = vset.pattern.permute.xlu0 5
    %2506 = vperm.xlu0 %2505, %v384
    %v2507 = vpop.permute.xlu0 %2506
    %2509 = vset.pattern.permute.xlu0 5
    %2510 = vperm.xlu0 %2509, %v385
    %v2511 = vpop.permute.xlu0 %2510
    %2513 = vset.pattern.permute.xlu0 5
    %2514 = vperm.xlu0 %2513, %v386
    %v2515 = vpop.permute.xlu0 %2514
    %2517 = vset.pattern.permute.xlu0 5
    %2518 = vperm.xlu0 %2517, %v387
    %v2519 = vpop.permute.xlu0 %2518
    %2521 = vset.pattern.permute.xlu0 5
    %2522 = vperm.xlu0 %2521, %v388
    %v2523 = vpop.permute.xlu0 %2522
    %2525 = vset.pattern.permute.xlu0 5
    %2526 = vperm.xlu0 %2525, %v389
    %v2527 = vpop.permute.xlu0 %2526
    %2529 = vset.pattern.permute.xlu0 5
    %2530 = vperm.xlu0 %2529, %v390
    %v2531 = vpop.permute.xlu0 %2530
    %2533 = vset.pattern.permute.xlu0 5
    %2534 = vperm.xlu0 %2533, %v391
    %v2535 = vpop.permute.xlu0 %2534
    %2537 = vset.pattern.permute.xlu0 5
    %2538 = vperm.xlu0 %2537, %v392
    %v2539 = vpop.permute.xlu0 %2538
    %2541 = vset.pattern.permute.xlu0 5
    %2542 = vperm.xlu0 %2541, %v393
    %v2543 = vpop.permute.xlu0 %2542
    %2545 = vset.pattern.permute.xlu0 5
    %2546 = vperm.xlu0 %2545, %v394
    %v2547 = vpop.permute.xlu0 %2546
    %2549 = vset.pattern.permute.xlu0 5
    %2550 = vperm.xlu0 %2549, %v395
    %v2551 = vpop.permute.xlu0 %2550
    %2553 = vset.pattern.permute.xlu0 5
    %2554 = vperm.xlu0 %2553, %v396
    %v2555 = vpop.permute.xlu0 %2554
    %2557 = vset.pattern.permute.xlu0 5
    %2558 = vperm.xlu0 %2557, %v397
    %v2559 = vpop.permute.xlu0 %2558
    %2561 = vset.pattern.permute.xlu0 5
    %2562 = vperm.xlu0 %2561, %v398
    %v2563 = vpop.permute.xlu0 %2562
    %2565 = vset.pattern.permute.xlu0 5
    %2566 = vperm.xlu0 %2565, %v399
    %v2567 = vpop.permute.xlu0 %2566
    %2569 = vset.pattern.permute.xlu0 5
    %2570 = vperm.xlu0 %2569, %v400
    %v2571 = vpop.permute.xlu0 %2570
    %2573 = vset.pattern.permute.xlu0 5
    %2574 = vperm.xlu0 %2573, %v401
    %v2575 = vpop.permute.xlu0 %2574
    %2577 = vset.pattern.permute.xlu0 5
    %2578 = vperm.xlu0 %2577, %v402
    %v2579 = vpop.permute.xlu0 %2578
    %2581 = vset.pattern.permute.xlu0 5
    %2582 = vperm.xlu0 %2581, %v403
    %v2583 = vpop.permute.xlu0 %2582
    %2585 = vset.pattern.permute.xlu0 5
    %2586 = vperm.xlu0 %2585, %v404
    %v2587 = vpop.permute.xlu0 %2586
    %2589 = vset.pattern.permute.xlu0 5
    %2590 = vperm.xlu0 %2589, %v405
    %v2591 = vpop.permute.xlu0 %2590
    %2593 = vset.pattern.permute.xlu0 5
    %2594 = vperm.xlu0 %2593, %v406
    %v2595 = vpop.permute.xlu0 %2594
    %2597 = vset.pattern.permute.xlu0 5
    %2598 = vperm.xlu0 %2597, %v407
    %v2599 = vpop.permute.xlu0 %2598
    %2601 = vset.pattern.permute.xlu0 5
    %2602 = vperm.xlu0 %2601, %v408
    %v2603 = vpop.permute.xlu0 %2602
    %2605 = vset.pattern.permute.xlu0 5
    %2606 = vperm.xlu0 %2605, %v409
    %v2607 = vpop.permute.xlu0 %2606
    %2609 = vset.pattern.permute.xlu0 5
    %2610 = vperm.xlu0 %2609, %v410
    %v2611 = vpop.permute.xlu0 %2610
    %2613 = vset.pattern.permute.xlu0 5
    %2614 = vperm.xlu0 %2613, %v411
    %v2615 = vpop.permute.xlu0 %2614
    %2617 = vset.pattern.permute.xlu0 5
    %2618 = vperm.xlu0 %2617, %v412
    %v2619 = vpop.permute.xlu0 %2618
    %2621 = vset.pattern.permute.xlu0 5
    %2622 = vperm.xlu0 %2621, %v413
    %v2623 = vpop.permute.xlu0 %2622
    %2625 = vset.pattern.permute.xlu0 5
    %2626 = vperm.xlu0 %2625, %v414
    %v2627 = vpop.permute.xlu0 %2626
    %2629 = vset.pattern.permute.xlu0 5
    %2630 = vperm.xlu0 %2629, %v415
    %v2631 = vpop.permute.xlu0 %2630
    %2633 = vset.pattern.permute.xlu0 5
    %2634 = vperm.xlu0 %2633, %v416
    %v2635 = vpop.permute.xlu0 %2634
    %2637 = vset.pattern.permute.xlu0 5
    %2638 = vperm.xlu0 %2637, %v417
    %v2639 = vpop.permute.xlu0 %2638
    %2641 = vset.pattern.permute.xlu0 5
    %2642 = vperm.xlu0 %2641, %v418
    %v2643 = vpop.permute.xlu0 %2642
    %2645 = vset.pattern.permute.xlu0 5
    %2646 = vperm.xlu0 %2645, %v419
    %v2647 = vpop.permute.xlu0 %2646
    %2649 = vset.pattern.permute.xlu0 5
    %2650 = vperm.xlu0 %2649, %v420
    %v2651 = vpop.permute.xlu0 %2650
    %2653 = vset.pattern.permute.xlu0 5
    %2654 = vperm.xlu0 %2653, %v421
    %v2655 = vpop.permute.xlu0 %2654
    %2657 = vset.pattern.permute.xlu0 5
    %2658 = vperm.xlu0 %2657, %v422
    %v2659 = vpop.permute.xlu0 %2658
    %2661 = vset.pattern.permute.xlu0 5
    %2662 = vperm.xlu0 %2661, %v423
    %v2663 = vpop.permute.xlu0 %2662
    %2665 = vset.pattern.permute.xlu0 5
    %2666 = vperm.xlu0 %2665, %v424
    %v2667 = vpop.permute.xlu0 %2666
    %2669 = vset.pattern.permute.xlu0 5
    %2670 = vperm.xlu0 %2669, %v425
    %v2671 = vpop.permute.xlu0 %2670
    %2673 = vset.pattern.permute.xlu0 5
    %2674 = vperm.xlu0 %2673, %v426
    %v2675 = vpop.permute.xlu0 %2674
    %2677 = vset.pattern.permute.xlu0 5
    %2678 = vperm.xlu0 %2677, %v427
    %v2679 = vpop.permute.xlu0 %2678
    %2681 = vset.pattern.permute.xlu0 5
    %2682 = vperm.xlu0 %2681, %v428
    %v2683 = vpop.permute.xlu0 %2682
    %2685 = vset.pattern.permute.xlu0 5
    %2686 = vperm.xlu0 %2685, %v429
    %v2687 = vpop.permute.xlu0 %2686
    %2689 = vset.pattern.permute.xlu0 5
    %2690 = vperm.xlu0 %2689, %v430
    %v2691 = vpop.permute.xlu0 %2690
    %2693 = vset.pattern.permute.xlu0 5
    %2694 = vperm.xlu0 %2693, %v431
    %v2695 = vpop.permute.xlu0 %2694
    %2697 = vset.pattern.permute.xlu0 5
    %2698 = vperm.xlu0 %2697, %v432
    %v2699 = vpop.permute.xlu0 %2698
    %v2701 = vlaneseq
    %v2702 = vshrl.u32 %v2701, 7
    %v2703 = vsub.s32 5, %v2702
    %v2704 = vrot.slane %v433, %v2703
    %v2705 = vmul.f32 %v2447, %v2704
    %v2706 = vmul.f32 %v2451, %v2704
    %v2707 = vmul.f32 %v2455, %v2704
    %v2708 = vmul.f32 %v2459, %v2704
    %v2709 = vmul.f32 %v2463, %v2704
    %v2710 = vmul.f32 %v2467, %v2704
    %v2711 = vmul.f32 %v2471, %v2704
    %v2712 = vmul.f32 %v2475, %v2704
    %v2713 = vmul.f32 %v2479, %v2704
    %v2714 = vmul.f32 %v2483, %v2704
    %v2715 = vmul.f32 %v2487, %v2704
    %v2716 = vmul.f32 %v2491, %v2704
    %v2717 = vmul.f32 %v2495, %v2704
    %v2718 = vmul.f32 %v2499, %v2704
    %v2719 = vmul.f32 %v2503, %v2704
    %v2720 = vmul.f32 %v2507, %v2704
    %v2721 = vmul.f32 %v2511, %v2704
    %v2722 = vmul.f32 %v2515, %v2704
    %v2723 = vmul.f32 %v2519, %v2704
    %v2724 = vmul.f32 %v2523, %v2704
    %v2725 = vmul.f32 %v2527, %v2704
    %v2726 = vmul.f32 %v2531, %v2704
    %v2727 = vmul.f32 %v2535, %v2704
    %v2728 = vmul.f32 %v2539, %v2704
    %v2729 = vmul.f32 %v2543, %v2704
    %v2730 = vmul.f32 %v2547, %v2704
    %v2731 = vmul.f32 %v2551, %v2704
    %v2732 = vmul.f32 %v2555, %v2704
    %v2733 = vmul.f32 %v2559, %v2704
    %v2734 = vmul.f32 %v2563, %v2704
    %v2735 = vmul.f32 %v2567, %v2704
    %v2736 = vmul.f32 %v2571, %v2704
    %v2737 = vmul.f32 %v2575, %v2704
    %v2738 = vmul.f32 %v2579, %v2704
    %v2739 = vmul.f32 %v2583, %v2704
    %v2740 = vmul.f32 %v2587, %v2704
    %v2741 = vmul.f32 %v2591, %v2704
    %v2742 = vmul.f32 %v2595, %v2704
    %v2743 = vmul.f32 %v2599, %v2704
    %v2744 = vmul.f32 %v2603, %v2704
    %v2745 = vmul.f32 %v2607, %v2704
    %v2746 = vmul.f32 %v2611, %v2704
    %v2747 = vmul.f32 %v2615, %v2704
    %v2748 = vmul.f32 %v2619, %v2704
    %v2749 = vmul.f32 %v2623, %v2704
    %v2750 = vmul.f32 %v2627, %v2704
    %v2751 = vmul.f32 %v2631, %v2704
    %v2752 = vmul.f32 %v2635, %v2704
    %v2753 = vmul.f32 %v2639, %v2704
    %v2754 = vmul.f32 %v2643, %v2704
    %v2755 = vmul.f32 %v2647, %v2704
    %v2756 = vmul.f32 %v2651, %v2704
    %v2757 = vmul.f32 %v2655, %v2704
    %v2758 = vmul.f32 %v2659, %v2704
    %v2759 = vmul.f32 %v2663, %v2704
    %v2760 = vmul.f32 %v2667, %v2704
    %v2761 = vmul.f32 %v2671, %v2704
    %v2762 = vmul.f32 %v2675, %v2704
    %v2763 = vmul.f32 %v2679, %v2704
    %v2764 = vmul.f32 %v2683, %v2704
    %v2765 = vmul.f32 %v2687, %v2704
    %v2766 = vmul.f32 %v2691, %v2704
    %v2767 = vmul.f32 %v2695, %v2704
    %v2768 = vmul.f32 %v2699, %v2704
    %v2769 = vadd.f32 %v2381, %v2705
    %v2770 = vadd.f32 %v2382, %v2706
    %v2771 = vadd.f32 %v2383, %v2707
    %v2772 = vadd.f32 %v2384, %v2708
    %v2773 = vadd.f32 %v2385, %v2709
    %v2774 = vadd.f32 %v2386, %v2710
    %v2775 = vadd.f32 %v2387, %v2711
    %v2776 = vadd.f32 %v2388, %v2712
    %v2777 = vadd.f32 %v2389, %v2713
    %v2778 = vadd.f32 %v2390, %v2714
    %v2779 = vadd.f32 %v2391, %v2715
    %v2780 = vadd.f32 %v2392, %v2716
    %v2781 = vadd.f32 %v2393, %v2717
    %v2782 = vadd.f32 %v2394, %v2718
    %v2783 = vadd.f32 %v2395, %v2719
    %v2784 = vadd.f32 %v2396, %v2720
    %v2785 = vadd.f32 %v2397, %v2721
    %v2786 = vadd.f32 %v2398, %v2722
    %v2787 = vadd.f32 %v2399, %v2723
    %v2788 = vadd.f32 %v2400, %v2724
    %v2789 = vadd.f32 %v2401, %v2725
    %v2790 = vadd.f32 %v2402, %v2726
    %v2791 = vadd.f32 %v2403, %v2727
    %v2792 = vadd.f32 %v2404, %v2728
    %v2793 = vadd.f32 %v2405, %v2729
    %v2794 = vadd.f32 %v2406, %v2730
    %v2795 = vadd.f32 %v2407, %v2731
    %v2796 = vadd.f32 %v2408, %v2732
    %v2797 = vadd.f32 %v2409, %v2733
    %v2798 = vadd.f32 %v2410, %v2734
    %v2799 = vadd.f32 %v2411, %v2735
    %v2800 = vadd.f32 %v2412, %v2736
    %v2801 = vadd.f32 %v2413, %v2737
    %v2802 = vadd.f32 %v2414, %v2738
    %v2803 = vadd.f32 %v2415, %v2739
    %v2804 = vadd.f32 %v2416, %v2740
    %v2805 = vadd.f32 %v2417, %v2741
    %v2806 = vadd.f32 %v2418, %v2742
    %v2807 = vadd.f32 %v2419, %v2743
    %v2808 = vadd.f32 %v2420, %v2744
    %v2809 = vadd.f32 %v2421, %v2745
    %v2810 = vadd.f32 %v2422, %v2746
    %v2811 = vadd.f32 %v2423, %v2747
    %v2812 = vadd.f32 %v2424, %v2748
    %v2813 = vadd.f32 %v2425, %v2749
    %v2814 = vadd.f32 %v2426, %v2750
    %v2815 = vadd.f32 %v2427, %v2751
    %v2816 = vadd.f32 %v2428, %v2752
    %v2817 = vadd.f32 %v2429, %v2753
    %v2818 = vadd.f32 %v2430, %v2754
    %v2819 = vadd.f32 %v2431, %v2755
    %v2820 = vadd.f32 %v2432, %v2756
    %v2821 = vadd.f32 %v2433, %v2757
    %v2822 = vadd.f32 %v2434, %v2758
    %v2823 = vadd.f32 %v2435, %v2759
    %v2824 = vadd.f32 %v2436, %v2760
    %v2825 = vadd.f32 %v2437, %v2761
    %v2826 = vadd.f32 %v2438, %v2762
    %v2827 = vadd.f32 %v2439, %v2763
    %v2828 = vadd.f32 %v2440, %v2764
    %v2829 = vadd.f32 %v2441, %v2765
    %v2830 = vadd.f32 %v2442, %v2766
    %v2831 = vadd.f32 %v2443, %v2767
    %v2832 = vadd.f32 %v2444, %v2768
    %2833 = vset.pattern.permute.xlu0 6
    %2834 = vperm.xlu0 %2833, %v369
    %v2835 = vpop.permute.xlu0 %2834
    %2837 = vset.pattern.permute.xlu0 6
    %2838 = vperm.xlu0 %2837, %v370
    %v2839 = vpop.permute.xlu0 %2838
    %2841 = vset.pattern.permute.xlu0 6
    %2842 = vperm.xlu0 %2841, %v371
    %v2843 = vpop.permute.xlu0 %2842
    %2845 = vset.pattern.permute.xlu0 6
    %2846 = vperm.xlu0 %2845, %v372
    %v2847 = vpop.permute.xlu0 %2846
    %2849 = vset.pattern.permute.xlu0 6
    %2850 = vperm.xlu0 %2849, %v373
    %v2851 = vpop.permute.xlu0 %2850
    %2853 = vset.pattern.permute.xlu0 6
    %2854 = vperm.xlu0 %2853, %v374
    %v2855 = vpop.permute.xlu0 %2854
    %2857 = vset.pattern.permute.xlu0 6
    %2858 = vperm.xlu0 %2857, %v375
    %v2859 = vpop.permute.xlu0 %2858
    %2861 = vset.pattern.permute.xlu0 6
    %2862 = vperm.xlu0 %2861, %v376
    %v2863 = vpop.permute.xlu0 %2862
    %2865 = vset.pattern.permute.xlu0 6
    %2866 = vperm.xlu0 %2865, %v377
    %v2867 = vpop.permute.xlu0 %2866
    %2869 = vset.pattern.permute.xlu0 6
    %2870 = vperm.xlu0 %2869, %v378
    %v2871 = vpop.permute.xlu0 %2870
    %2873 = vset.pattern.permute.xlu0 6
    %2874 = vperm.xlu0 %2873, %v379
    %v2875 = vpop.permute.xlu0 %2874
    %2877 = vset.pattern.permute.xlu0 6
    %2878 = vperm.xlu0 %2877, %v380
    %v2879 = vpop.permute.xlu0 %2878
    %2881 = vset.pattern.permute.xlu0 6
    %2882 = vperm.xlu0 %2881, %v381
    %v2883 = vpop.permute.xlu0 %2882
    %2885 = vset.pattern.permute.xlu0 6
    %2886 = vperm.xlu0 %2885, %v382
    %v2887 = vpop.permute.xlu0 %2886
    %2889 = vset.pattern.permute.xlu0 6
    %2890 = vperm.xlu0 %2889, %v383
    %v2891 = vpop.permute.xlu0 %2890
    %2893 = vset.pattern.permute.xlu0 6
    %2894 = vperm.xlu0 %2893, %v384
    %v2895 = vpop.permute.xlu0 %2894
    %2897 = vset.pattern.permute.xlu0 6
    %2898 = vperm.xlu0 %2897, %v385
    %v2899 = vpop.permute.xlu0 %2898
    %2901 = vset.pattern.permute.xlu0 6
    %2902 = vperm.xlu0 %2901, %v386
    %v2903 = vpop.permute.xlu0 %2902
    %2905 = vset.pattern.permute.xlu0 6
    %2906 = vperm.xlu0 %2905, %v387
    %v2907 = vpop.permute.xlu0 %2906
    %2909 = vset.pattern.permute.xlu0 6
    %2910 = vperm.xlu0 %2909, %v388
    %v2911 = vpop.permute.xlu0 %2910
    %2913 = vset.pattern.permute.xlu0 6
    %2914 = vperm.xlu0 %2913, %v389
    %v2915 = vpop.permute.xlu0 %2914
    %2917 = vset.pattern.permute.xlu0 6
    %2918 = vperm.xlu0 %2917, %v390
    %v2919 = vpop.permute.xlu0 %2918
    %2921 = vset.pattern.permute.xlu0 6
    %2922 = vperm.xlu0 %2921, %v391
    %v2923 = vpop.permute.xlu0 %2922
    %2925 = vset.pattern.permute.xlu0 6
    %2926 = vperm.xlu0 %2925, %v392
    %v2927 = vpop.permute.xlu0 %2926
    %2929 = vset.pattern.permute.xlu0 6
    %2930 = vperm.xlu0 %2929, %v393
    %v2931 = vpop.permute.xlu0 %2930
    %2933 = vset.pattern.permute.xlu0 6
    %2934 = vperm.xlu0 %2933, %v394
    %v2935 = vpop.permute.xlu0 %2934
    %2937 = vset.pattern.permute.xlu0 6
    %2938 = vperm.xlu0 %2937, %v395
    %v2939 = vpop.permute.xlu0 %2938
    %2941 = vset.pattern.permute.xlu0 6
    %2942 = vperm.xlu0 %2941, %v396
    %v2943 = vpop.permute.xlu0 %2942
    %2945 = vset.pattern.permute.xlu0 6
    %2946 = vperm.xlu0 %2945, %v397
    %v2947 = vpop.permute.xlu0 %2946
    %2949 = vset.pattern.permute.xlu0 6
    %2950 = vperm.xlu0 %2949, %v398
    %v2951 = vpop.permute.xlu0 %2950
    %2953 = vset.pattern.permute.xlu0 6
    %2954 = vperm.xlu0 %2953, %v399
    %v2955 = vpop.permute.xlu0 %2954
    %2957 = vset.pattern.permute.xlu0 6
    %2958 = vperm.xlu0 %2957, %v400
    %v2959 = vpop.permute.xlu0 %2958
    %2961 = vset.pattern.permute.xlu0 6
    %2962 = vperm.xlu0 %2961, %v401
    %v2963 = vpop.permute.xlu0 %2962
    %2965 = vset.pattern.permute.xlu0 6
    %2966 = vperm.xlu0 %2965, %v402
    %v2967 = vpop.permute.xlu0 %2966
    %2969 = vset.pattern.permute.xlu0 6
    %2970 = vperm.xlu0 %2969, %v403
    %v2971 = vpop.permute.xlu0 %2970
    %2973 = vset.pattern.permute.xlu0 6
    %2974 = vperm.xlu0 %2973, %v404
    %v2975 = vpop.permute.xlu0 %2974
    %2977 = vset.pattern.permute.xlu0 6
    %2978 = vperm.xlu0 %2977, %v405
    %v2979 = vpop.permute.xlu0 %2978
    %2981 = vset.pattern.permute.xlu0 6
    %2982 = vperm.xlu0 %2981, %v406
    %v2983 = vpop.permute.xlu0 %2982
    %2985 = vset.pattern.permute.xlu0 6
    %2986 = vperm.xlu0 %2985, %v407
    %v2987 = vpop.permute.xlu0 %2986
    %2989 = vset.pattern.permute.xlu0 6
    %2990 = vperm.xlu0 %2989, %v408
    %v2991 = vpop.permute.xlu0 %2990
    %2993 = vset.pattern.permute.xlu0 6
    %2994 = vperm.xlu0 %2993, %v409
    %v2995 = vpop.permute.xlu0 %2994
    %2997 = vset.pattern.permute.xlu0 6
    %2998 = vperm.xlu0 %2997, %v410
    %v2999 = vpop.permute.xlu0 %2998
    %3001 = vset.pattern.permute.xlu0 6
    %3002 = vperm.xlu0 %3001, %v411
    %v3003 = vpop.permute.xlu0 %3002
    %3005 = vset.pattern.permute.xlu0 6
    %3006 = vperm.xlu0 %3005, %v412
    %v3007 = vpop.permute.xlu0 %3006
    %3009 = vset.pattern.permute.xlu0 6
    %3010 = vperm.xlu0 %3009, %v413
    %v3011 = vpop.permute.xlu0 %3010
    %3013 = vset.pattern.permute.xlu0 6
    %3014 = vperm.xlu0 %3013, %v414
    %v3015 = vpop.permute.xlu0 %3014
    %3017 = vset.pattern.permute.xlu0 6
    %3018 = vperm.xlu0 %3017, %v415
    %v3019 = vpop.permute.xlu0 %3018
    %3021 = vset.pattern.permute.xlu0 6
    %3022 = vperm.xlu0 %3021, %v416
    %v3023 = vpop.permute.xlu0 %3022
    %3025 = vset.pattern.permute.xlu0 6
    %3026 = vperm.xlu0 %3025, %v417
    %v3027 = vpop.permute.xlu0 %3026
    %3029 = vset.pattern.permute.xlu0 6
    %3030 = vperm.xlu0 %3029, %v418
    %v3031 = vpop.permute.xlu0 %3030
    %3033 = vset.pattern.permute.xlu0 6
    %3034 = vperm.xlu0 %3033, %v419
    %v3035 = vpop.permute.xlu0 %3034
    %3037 = vset.pattern.permute.xlu0 6
    %3038 = vperm.xlu0 %3037, %v420
    %v3039 = vpop.permute.xlu0 %3038
    %3041 = vset.pattern.permute.xlu0 6
    %3042 = vperm.xlu0 %3041, %v421
    %v3043 = vpop.permute.xlu0 %3042
    %3045 = vset.pattern.permute.xlu0 6
    %3046 = vperm.xlu0 %3045, %v422
    %v3047 = vpop.permute.xlu0 %3046
    %3049 = vset.pattern.permute.xlu0 6
    %3050 = vperm.xlu0 %3049, %v423
    %v3051 = vpop.permute.xlu0 %3050
    %3053 = vset.pattern.permute.xlu0 6
    %3054 = vperm.xlu0 %3053, %v424
    %v3055 = vpop.permute.xlu0 %3054
    %3057 = vset.pattern.permute.xlu0 6
    %3058 = vperm.xlu0 %3057, %v425
    %v3059 = vpop.permute.xlu0 %3058
    %3061 = vset.pattern.permute.xlu0 6
    %3062 = vperm.xlu0 %3061, %v426
    %v3063 = vpop.permute.xlu0 %3062
    %3065 = vset.pattern.permute.xlu0 6
    %3066 = vperm.xlu0 %3065, %v427
    %v3067 = vpop.permute.xlu0 %3066
    %3069 = vset.pattern.permute.xlu0 6
    %3070 = vperm.xlu0 %3069, %v428
    %v3071 = vpop.permute.xlu0 %3070
    %3073 = vset.pattern.permute.xlu0 6
    %3074 = vperm.xlu0 %3073, %v429
    %v3075 = vpop.permute.xlu0 %3074
    %3077 = vset.pattern.permute.xlu0 6
    %3078 = vperm.xlu0 %3077, %v430
    %v3079 = vpop.permute.xlu0 %3078
    %3081 = vset.pattern.permute.xlu0 6
    %3082 = vperm.xlu0 %3081, %v431
    %v3083 = vpop.permute.xlu0 %3082
    %3085 = vset.pattern.permute.xlu0 6
    %3086 = vperm.xlu0 %3085, %v432
    %v3087 = vpop.permute.xlu0 %3086
    %v3089 = vlaneseq
    %v3090 = vshrl.u32 %v3089, 7
    %v3091 = vsub.s32 6, %v3090
    %v3092 = vrot.slane %v433, %v3091
    %v3093 = vmul.f32 %v2835, %v3092
    %v3094 = vmul.f32 %v2839, %v3092
    %v3095 = vmul.f32 %v2843, %v3092
    %v3096 = vmul.f32 %v2847, %v3092
    %v3097 = vmul.f32 %v2851, %v3092
    %v3098 = vmul.f32 %v2855, %v3092
    %v3099 = vmul.f32 %v2859, %v3092
    %v3100 = vmul.f32 %v2863, %v3092
    %v3101 = vmul.f32 %v2867, %v3092
    %v3102 = vmul.f32 %v2871, %v3092
    %v3103 = vmul.f32 %v2875, %v3092
    %v3104 = vmul.f32 %v2879, %v3092
    %v3105 = vmul.f32 %v2883, %v3092
    %v3106 = vmul.f32 %v2887, %v3092
    %v3107 = vmul.f32 %v2891, %v3092
    %v3108 = vmul.f32 %v2895, %v3092
    %v3109 = vmul.f32 %v2899, %v3092
    %v3110 = vmul.f32 %v2903, %v3092
    %v3111 = vmul.f32 %v2907, %v3092
    %v3112 = vmul.f32 %v2911, %v3092
    %v3113 = vmul.f32 %v2915, %v3092
    %v3114 = vmul.f32 %v2919, %v3092
    %v3115 = vmul.f32 %v2923, %v3092
    %v3116 = vmul.f32 %v2927, %v3092
    %v3117 = vmul.f32 %v2931, %v3092
    %v3118 = vmul.f32 %v2935, %v3092
    %v3119 = vmul.f32 %v2939, %v3092
    %v3120 = vmul.f32 %v2943, %v3092
    %v3121 = vmul.f32 %v2947, %v3092
    %v3122 = vmul.f32 %v2951, %v3092
    %v3123 = vmul.f32 %v2955, %v3092
    %v3124 = vmul.f32 %v2959, %v3092
    %v3125 = vmul.f32 %v2963, %v3092
    %v3126 = vmul.f32 %v2967, %v3092
    %v3127 = vmul.f32 %v2971, %v3092
    %v3128 = vmul.f32 %v2975, %v3092
    %v3129 = vmul.f32 %v2979, %v3092
    %v3130 = vmul.f32 %v2983, %v3092
    %v3131 = vmul.f32 %v2987, %v3092
    %v3132 = vmul.f32 %v2991, %v3092
    %v3133 = vmul.f32 %v2995, %v3092
    %v3134 = vmul.f32 %v2999, %v3092
    %v3135 = vmul.f32 %v3003, %v3092
    %v3136 = vmul.f32 %v3007, %v3092
    %v3137 = vmul.f32 %v3011, %v3092
    %v3138 = vmul.f32 %v3015, %v3092
    %v3139 = vmul.f32 %v3019, %v3092
    %v3140 = vmul.f32 %v3023, %v3092
    %v3141 = vmul.f32 %v3027, %v3092
    %v3142 = vmul.f32 %v3031, %v3092
    %v3143 = vmul.f32 %v3035, %v3092
    %v3144 = vmul.f32 %v3039, %v3092
    %v3145 = vmul.f32 %v3043, %v3092
    %v3146 = vmul.f32 %v3047, %v3092
    %v3147 = vmul.f32 %v3051, %v3092
    %v3148 = vmul.f32 %v3055, %v3092
    %v3149 = vmul.f32 %v3059, %v3092
    %v3150 = vmul.f32 %v3063, %v3092
    %v3151 = vmul.f32 %v3067, %v3092
    %v3152 = vmul.f32 %v3071, %v3092
    %v3153 = vmul.f32 %v3075, %v3092
    %v3154 = vmul.f32 %v3079, %v3092
    %v3155 = vmul.f32 %v3083, %v3092
    %v3156 = vmul.f32 %v3087, %v3092
    %v3157 = vadd.f32 %v2769, %v3093
    %v3158 = vadd.f32 %v2770, %v3094
    %v3159 = vadd.f32 %v2771, %v3095
    %v3160 = vadd.f32 %v2772, %v3096
    %v3161 = vadd.f32 %v2773, %v3097
    %v3162 = vadd.f32 %v2774, %v3098
    %v3163 = vadd.f32 %v2775, %v3099
    %v3164 = vadd.f32 %v2776, %v3100
    %v3165 = vadd.f32 %v2777, %v3101
    %v3166 = vadd.f32 %v2778, %v3102
    %v3167 = vadd.f32 %v2779, %v3103
    %v3168 = vadd.f32 %v2780, %v3104
    %v3169 = vadd.f32 %v2781, %v3105
    %v3170 = vadd.f32 %v2782, %v3106
    %v3171 = vadd.f32 %v2783, %v3107
    %v3172 = vadd.f32 %v2784, %v3108
    %v3173 = vadd.f32 %v2785, %v3109
    %v3174 = vadd.f32 %v2786, %v3110
    %v3175 = vadd.f32 %v2787, %v3111
    %v3176 = vadd.f32 %v2788, %v3112
    %v3177 = vadd.f32 %v2789, %v3113
    %v3178 = vadd.f32 %v2790, %v3114
    %v3179 = vadd.f32 %v2791, %v3115
    %v3180 = vadd.f32 %v2792, %v3116
    %v3181 = vadd.f32 %v2793, %v3117
    %v3182 = vadd.f32 %v2794, %v3118
    %v3183 = vadd.f32 %v2795, %v3119
    %v3184 = vadd.f32 %v2796, %v3120
    %v3185 = vadd.f32 %v2797, %v3121
    %v3186 = vadd.f32 %v2798, %v3122
    %v3187 = vadd.f32 %v2799, %v3123
    %v3188 = vadd.f32 %v2800, %v3124
    %v3189 = vadd.f32 %v2801, %v3125
    %v3190 = vadd.f32 %v2802, %v3126
    %v3191 = vadd.f32 %v2803, %v3127
    %v3192 = vadd.f32 %v2804, %v3128
    %v3193 = vadd.f32 %v2805, %v3129
    %v3194 = vadd.f32 %v2806, %v3130
    %v3195 = vadd.f32 %v2807, %v3131
    %v3196 = vadd.f32 %v2808, %v3132
    %v3197 = vadd.f32 %v2809, %v3133
    %v3198 = vadd.f32 %v2810, %v3134
    %v3199 = vadd.f32 %v2811, %v3135
    %v3200 = vadd.f32 %v2812, %v3136
    %v3201 = vadd.f32 %v2813, %v3137
    %v3202 = vadd.f32 %v2814, %v3138
    %v3203 = vadd.f32 %v2815, %v3139
    %v3204 = vadd.f32 %v2816, %v3140
    %v3205 = vadd.f32 %v2817, %v3141
    %v3206 = vadd.f32 %v2818, %v3142
    %v3207 = vadd.f32 %v2819, %v3143
    %v3208 = vadd.f32 %v2820, %v3144
    %v3209 = vadd.f32 %v2821, %v3145
    %v3210 = vadd.f32 %v2822, %v3146
    %v3211 = vadd.f32 %v2823, %v3147
    %v3212 = vadd.f32 %v2824, %v3148
    %v3213 = vadd.f32 %v2825, %v3149
    %v3214 = vadd.f32 %v2826, %v3150
    %v3215 = vadd.f32 %v2827, %v3151
    %v3216 = vadd.f32 %v2828, %v3152
    %v3217 = vadd.f32 %v2829, %v3153
    %v3218 = vadd.f32 %v2830, %v3154
    %v3219 = vadd.f32 %v2831, %v3155
    %v3220 = vadd.f32 %v2832, %v3156
    %3221 = vset.pattern.permute.xlu0 7
    %3222 = vperm.xlu0 %3221, %v369
    %v3223 = vpop.permute.xlu0 %3222
    %3225 = vset.pattern.permute.xlu0 7
    %3226 = vperm.xlu0 %3225, %v370
    %v3227 = vpop.permute.xlu0 %3226
    %3229 = vset.pattern.permute.xlu0 7
    %3230 = vperm.xlu0 %3229, %v371
    %v3231 = vpop.permute.xlu0 %3230
    %3233 = vset.pattern.permute.xlu0 7
    %3234 = vperm.xlu0 %3233, %v372
    %v3235 = vpop.permute.xlu0 %3234
    %3237 = vset.pattern.permute.xlu0 7
    %3238 = vperm.xlu0 %3237, %v373
    %v3239 = vpop.permute.xlu0 %3238
    %3241 = vset.pattern.permute.xlu0 7
    %3242 = vperm.xlu0 %3241, %v374
    %v3243 = vpop.permute.xlu0 %3242
    %3245 = vset.pattern.permute.xlu0 7
    %3246 = vperm.xlu0 %3245, %v375
    %v3247 = vpop.permute.xlu0 %3246
    %3249 = vset.pattern.permute.xlu0 7
    %3250 = vperm.xlu0 %3249, %v376
    %v3251 = vpop.permute.xlu0 %3250
    %3253 = vset.pattern.permute.xlu0 7
    %3254 = vperm.xlu0 %3253, %v377
    %v3255 = vpop.permute.xlu0 %3254
    %3257 = vset.pattern.permute.xlu0 7
    %3258 = vperm.xlu0 %3257, %v378
    %v3259 = vpop.permute.xlu0 %3258
    %3261 = vset.pattern.permute.xlu0 7
    %3262 = vperm.xlu0 %3261, %v379
    %v3263 = vpop.permute.xlu0 %3262
    %3265 = vset.pattern.permute.xlu0 7
    %3266 = vperm.xlu0 %3265, %v380
    %v3267 = vpop.permute.xlu0 %3266
    %3269 = vset.pattern.permute.xlu0 7
    %3270 = vperm.xlu0 %3269, %v381
    %v3271 = vpop.permute.xlu0 %3270
    %3273 = vset.pattern.permute.xlu0 7
    %3274 = vperm.xlu0 %3273, %v382
    %v3275 = vpop.permute.xlu0 %3274
    %3277 = vset.pattern.permute.xlu0 7
    %3278 = vperm.xlu0 %3277, %v383
    %v3279 = vpop.permute.xlu0 %3278
    %3281 = vset.pattern.permute.xlu0 7
    %3282 = vperm.xlu0 %3281, %v384
    %v3283 = vpop.permute.xlu0 %3282
    %3285 = vset.pattern.permute.xlu0 7
    %3286 = vperm.xlu0 %3285, %v385
    %v3287 = vpop.permute.xlu0 %3286
    %3289 = vset.pattern.permute.xlu0 7
    %3290 = vperm.xlu0 %3289, %v386
    %v3291 = vpop.permute.xlu0 %3290
    %3293 = vset.pattern.permute.xlu0 7
    %3294 = vperm.xlu0 %3293, %v387
    %v3295 = vpop.permute.xlu0 %3294
    %3297 = vset.pattern.permute.xlu0 7
    %3298 = vperm.xlu0 %3297, %v388
    %v3299 = vpop.permute.xlu0 %3298
    %3301 = vset.pattern.permute.xlu0 7
    %3302 = vperm.xlu0 %3301, %v389
    %v3303 = vpop.permute.xlu0 %3302
    %3305 = vset.pattern.permute.xlu0 7
    %3306 = vperm.xlu0 %3305, %v390
    %v3307 = vpop.permute.xlu0 %3306
    %3309 = vset.pattern.permute.xlu0 7
    %3310 = vperm.xlu0 %3309, %v391
    %v3311 = vpop.permute.xlu0 %3310
    %3313 = vset.pattern.permute.xlu0 7
    %3314 = vperm.xlu0 %3313, %v392
    %v3315 = vpop.permute.xlu0 %3314
    %3317 = vset.pattern.permute.xlu0 7
    %3318 = vperm.xlu0 %3317, %v393
    %v3319 = vpop.permute.xlu0 %3318
    %3321 = vset.pattern.permute.xlu0 7
    %3322 = vperm.xlu0 %3321, %v394
    %v3323 = vpop.permute.xlu0 %3322
    %3325 = vset.pattern.permute.xlu0 7
    %3326 = vperm.xlu0 %3325, %v395
    %v3327 = vpop.permute.xlu0 %3326
    %3329 = vset.pattern.permute.xlu0 7
    %3330 = vperm.xlu0 %3329, %v396
    %v3331 = vpop.permute.xlu0 %3330
    %3333 = vset.pattern.permute.xlu0 7
    %3334 = vperm.xlu0 %3333, %v397
    %v3335 = vpop.permute.xlu0 %3334
    %3337 = vset.pattern.permute.xlu0 7
    %3338 = vperm.xlu0 %3337, %v398
    %v3339 = vpop.permute.xlu0 %3338
    %3341 = vset.pattern.permute.xlu0 7
    %3342 = vperm.xlu0 %3341, %v399
    %v3343 = vpop.permute.xlu0 %3342
    %3345 = vset.pattern.permute.xlu0 7
    %3346 = vperm.xlu0 %3345, %v400
    %v3347 = vpop.permute.xlu0 %3346
    %3349 = vset.pattern.permute.xlu0 7
    %3350 = vperm.xlu0 %3349, %v401
    %v3351 = vpop.permute.xlu0 %3350
    %3353 = vset.pattern.permute.xlu0 7
    %3354 = vperm.xlu0 %3353, %v402
    %v3355 = vpop.permute.xlu0 %3354
    %3357 = vset.pattern.permute.xlu0 7
    %3358 = vperm.xlu0 %3357, %v403
    %v3359 = vpop.permute.xlu0 %3358
    %3361 = vset.pattern.permute.xlu0 7
    %3362 = vperm.xlu0 %3361, %v404
    %v3363 = vpop.permute.xlu0 %3362
    %3365 = vset.pattern.permute.xlu0 7
    %3366 = vperm.xlu0 %3365, %v405
    %v3367 = vpop.permute.xlu0 %3366
    %3369 = vset.pattern.permute.xlu0 7
    %3370 = vperm.xlu0 %3369, %v406
    %v3371 = vpop.permute.xlu0 %3370
    %3373 = vset.pattern.permute.xlu0 7
    %3374 = vperm.xlu0 %3373, %v407
    %v3375 = vpop.permute.xlu0 %3374
    %3377 = vset.pattern.permute.xlu0 7
    %3378 = vperm.xlu0 %3377, %v408
    %v3379 = vpop.permute.xlu0 %3378
    %3381 = vset.pattern.permute.xlu0 7
    %3382 = vperm.xlu0 %3381, %v409
    %v3383 = vpop.permute.xlu0 %3382
    %3385 = vset.pattern.permute.xlu0 7
    %3386 = vperm.xlu0 %3385, %v410
    %v3387 = vpop.permute.xlu0 %3386
    %3389 = vset.pattern.permute.xlu0 7
    %3390 = vperm.xlu0 %3389, %v411
    %v3391 = vpop.permute.xlu0 %3390
    %3393 = vset.pattern.permute.xlu0 7
    %3394 = vperm.xlu0 %3393, %v412
    %v3395 = vpop.permute.xlu0 %3394
    %3397 = vset.pattern.permute.xlu0 7
    %3398 = vperm.xlu0 %3397, %v413
    %v3399 = vpop.permute.xlu0 %3398
    %3401 = vset.pattern.permute.xlu0 7
    %3402 = vperm.xlu0 %3401, %v414
    %v3403 = vpop.permute.xlu0 %3402
    %3405 = vset.pattern.permute.xlu0 7
    %3406 = vperm.xlu0 %3405, %v415
    %v3407 = vpop.permute.xlu0 %3406
    %3409 = vset.pattern.permute.xlu0 7
    %3410 = vperm.xlu0 %3409, %v416
    %v3411 = vpop.permute.xlu0 %3410
    %3413 = vset.pattern.permute.xlu0 7
    %3414 = vperm.xlu0 %3413, %v417
    %v3415 = vpop.permute.xlu0 %3414
    %3417 = vset.pattern.permute.xlu0 7
    %3418 = vperm.xlu0 %3417, %v418
    %v3419 = vpop.permute.xlu0 %3418
    %3421 = vset.pattern.permute.xlu0 7
    %3422 = vperm.xlu0 %3421, %v419
    %v3423 = vpop.permute.xlu0 %3422
    %3425 = vset.pattern.permute.xlu0 7
    %3426 = vperm.xlu0 %3425, %v420
    %v3427 = vpop.permute.xlu0 %3426
    %3429 = vset.pattern.permute.xlu0 7
    %3430 = vperm.xlu0 %3429, %v421
    %v3431 = vpop.permute.xlu0 %3430
    %3433 = vset.pattern.permute.xlu0 7
    %3434 = vperm.xlu0 %3433, %v422
    %v3435 = vpop.permute.xlu0 %3434
    %3437 = vset.pattern.permute.xlu0 7
    %3438 = vperm.xlu0 %3437, %v423
    %v3439 = vpop.permute.xlu0 %3438
    %3441 = vset.pattern.permute.xlu0 7
    %3442 = vperm.xlu0 %3441, %v424
    %v3443 = vpop.permute.xlu0 %3442
    %3445 = vset.pattern.permute.xlu0 7
    %3446 = vperm.xlu0 %3445, %v425
    %v3447 = vpop.permute.xlu0 %3446
    %3449 = vset.pattern.permute.xlu0 7
    %3450 = vperm.xlu0 %3449, %v426
    %v3451 = vpop.permute.xlu0 %3450
    %3453 = vset.pattern.permute.xlu0 7
    %3454 = vperm.xlu0 %3453, %v427
    %v3455 = vpop.permute.xlu0 %3454
    %3457 = vset.pattern.permute.xlu0 7
    %3458 = vperm.xlu0 %3457, %v428
    %v3459 = vpop.permute.xlu0 %3458
    %3461 = vset.pattern.permute.xlu0 7
    %3462 = vperm.xlu0 %3461, %v429
    %v3463 = vpop.permute.xlu0 %3462
    %3465 = vset.pattern.permute.xlu0 7
    %3466 = vperm.xlu0 %3465, %v430
    %v3467 = vpop.permute.xlu0 %3466
    %3469 = vset.pattern.permute.xlu0 7
    %3470 = vperm.xlu0 %3469, %v431
    %v3471 = vpop.permute.xlu0 %3470
    %3473 = vset.pattern.permute.xlu0 7
    %3474 = vperm.xlu0 %3473, %v432
    %v3475 = vpop.permute.xlu0 %3474
    %v3477 = vlaneseq
    %v3478 = vshrl.u32 %v3477, 7
    %v3479 = vsub.s32 7, %v3478
    %v3480 = vrot.slane %v433, %v3479
    %v3481 = vmul.f32 %v3223, %v3480
    %v3482 = vmul.f32 %v3227, %v3480
    %v3483 = vmul.f32 %v3231, %v3480
    %v3484 = vmul.f32 %v3235, %v3480
    %v3485 = vmul.f32 %v3239, %v3480
    %v3486 = vmul.f32 %v3243, %v3480
    %v3487 = vmul.f32 %v3247, %v3480
    %v3488 = vmul.f32 %v3251, %v3480
    %v3489 = vmul.f32 %v3255, %v3480
    %v3490 = vmul.f32 %v3259, %v3480
    %v3491 = vmul.f32 %v3263, %v3480
    %v3492 = vmul.f32 %v3267, %v3480
    %v3493 = vmul.f32 %v3271, %v3480
    %v3494 = vmul.f32 %v3275, %v3480
    %v3495 = vmul.f32 %v3279, %v3480
    %v3496 = vmul.f32 %v3283, %v3480
    %v3497 = vmul.f32 %v3287, %v3480
    %v3498 = vmul.f32 %v3291, %v3480
    %v3499 = vmul.f32 %v3295, %v3480
    %v3500 = vmul.f32 %v3299, %v3480
    %v3501 = vmul.f32 %v3303, %v3480
    %v3502 = vmul.f32 %v3307, %v3480
    %v3503 = vmul.f32 %v3311, %v3480
    %v3504 = vmul.f32 %v3315, %v3480
    %v3505 = vmul.f32 %v3319, %v3480
    %v3506 = vmul.f32 %v3323, %v3480
    %v3507 = vmul.f32 %v3327, %v3480
    %v3508 = vmul.f32 %v3331, %v3480
    %v3509 = vmul.f32 %v3335, %v3480
    %v3510 = vmul.f32 %v3339, %v3480
    %v3511 = vmul.f32 %v3343, %v3480
    %v3512 = vmul.f32 %v3347, %v3480
    %v3513 = vmul.f32 %v3351, %v3480
    %v3514 = vmul.f32 %v3355, %v3480
    %v3515 = vmul.f32 %v3359, %v3480
    %v3516 = vmul.f32 %v3363, %v3480
    %v3517 = vmul.f32 %v3367, %v3480
    %v3518 = vmul.f32 %v3371, %v3480
    %v3519 = vmul.f32 %v3375, %v3480
    %v3520 = vmul.f32 %v3379, %v3480
    %v3521 = vmul.f32 %v3383, %v3480
    %v3522 = vmul.f32 %v3387, %v3480
    %v3523 = vmul.f32 %v3391, %v3480
    %v3524 = vmul.f32 %v3395, %v3480
    %v3525 = vmul.f32 %v3399, %v3480
    %v3526 = vmul.f32 %v3403, %v3480
    %v3527 = vmul.f32 %v3407, %v3480
    %v3528 = vmul.f32 %v3411, %v3480
    %v3529 = vmul.f32 %v3415, %v3480
    %v3530 = vmul.f32 %v3419, %v3480
    %v3531 = vmul.f32 %v3423, %v3480
    %v3532 = vmul.f32 %v3427, %v3480
    %v3533 = vmul.f32 %v3431, %v3480
    %v3534 = vmul.f32 %v3435, %v3480
    %v3535 = vmul.f32 %v3439, %v3480
    %v3536 = vmul.f32 %v3443, %v3480
    %v3537 = vmul.f32 %v3447, %v3480
    %v3538 = vmul.f32 %v3451, %v3480
    %v3539 = vmul.f32 %v3455, %v3480
    %v3540 = vmul.f32 %v3459, %v3480
    %v3541 = vmul.f32 %v3463, %v3480
    %v3542 = vmul.f32 %v3467, %v3480
    %v3543 = vmul.f32 %v3471, %v3480
    %v3544 = vmul.f32 %v3475, %v3480
    %v3545 = vadd.f32 %v3157, %v3481
    %v3546 = vadd.f32 %v3158, %v3482
    %v3547 = vadd.f32 %v3159, %v3483
    %v3548 = vadd.f32 %v3160, %v3484
    %v3549 = vadd.f32 %v3161, %v3485
    %v3550 = vadd.f32 %v3162, %v3486
    %v3551 = vadd.f32 %v3163, %v3487
    %v3552 = vadd.f32 %v3164, %v3488
    %v3553 = vadd.f32 %v3165, %v3489
    %v3554 = vadd.f32 %v3166, %v3490
    %v3555 = vadd.f32 %v3167, %v3491
    %v3556 = vadd.f32 %v3168, %v3492
    %v3557 = vadd.f32 %v3169, %v3493
    %v3558 = vadd.f32 %v3170, %v3494
    %v3559 = vadd.f32 %v3171, %v3495
    %v3560 = vadd.f32 %v3172, %v3496
    %v3561 = vadd.f32 %v3173, %v3497
    %v3562 = vadd.f32 %v3174, %v3498
    %v3563 = vadd.f32 %v3175, %v3499
    %v3564 = vadd.f32 %v3176, %v3500
    %v3565 = vadd.f32 %v3177, %v3501
    %v3566 = vadd.f32 %v3178, %v3502
    %v3567 = vadd.f32 %v3179, %v3503
    %v3568 = vadd.f32 %v3180, %v3504
    %v3569 = vadd.f32 %v3181, %v3505
    %v3570 = vadd.f32 %v3182, %v3506
    %v3571 = vadd.f32 %v3183, %v3507
    %v3572 = vadd.f32 %v3184, %v3508
    %v3573 = vadd.f32 %v3185, %v3509
    %v3574 = vadd.f32 %v3186, %v3510
    %v3575 = vadd.f32 %v3187, %v3511
    %v3576 = vadd.f32 %v3188, %v3512
    %v3577 = vadd.f32 %v3189, %v3513
    %v3578 = vadd.f32 %v3190, %v3514
    %v3579 = vadd.f32 %v3191, %v3515
    %v3580 = vadd.f32 %v3192, %v3516
    %v3581 = vadd.f32 %v3193, %v3517
    %v3582 = vadd.f32 %v3194, %v3518
    %v3583 = vadd.f32 %v3195, %v3519
    %v3584 = vadd.f32 %v3196, %v3520
    %v3585 = vadd.f32 %v3197, %v3521
    %v3586 = vadd.f32 %v3198, %v3522
    %v3587 = vadd.f32 %v3199, %v3523
    %v3588 = vadd.f32 %v3200, %v3524
    %v3589 = vadd.f32 %v3201, %v3525
    %v3590 = vadd.f32 %v3202, %v3526
    %v3591 = vadd.f32 %v3203, %v3527
    %v3592 = vadd.f32 %v3204, %v3528
    %v3593 = vadd.f32 %v3205, %v3529
    %v3594 = vadd.f32 %v3206, %v3530
    %v3595 = vadd.f32 %v3207, %v3531
    %v3596 = vadd.f32 %v3208, %v3532
    %v3597 = vadd.f32 %v3209, %v3533
    %v3598 = vadd.f32 %v3210, %v3534
    %v3599 = vadd.f32 %v3211, %v3535
    %v3600 = vadd.f32 %v3212, %v3536
    %v3601 = vadd.f32 %v3213, %v3537
    %v3602 = vadd.f32 %v3214, %v3538
    %v3603 = vadd.f32 %v3215, %v3539
    %v3604 = vadd.f32 %v3216, %v3540
    %v3605 = vadd.f32 %v3217, %v3541
    %v3606 = vadd.f32 %v3218, %v3542
    %v3607 = vadd.f32 %v3219, %v3543
    %v3608 = vadd.f32 %v3220, %v3544
    %vm3609 = vcmask 130048
    %3610 = vst.msk [vmem:[%s5] sm:$0xff] %vm3609, %v3545
    %3611 = vst.msk [vmem:[%s5 + $0x8] sm:$0xff] %vm3609, %v3546
    %3612 = vst.msk [vmem:[%s5 + $0x10] sm:$0xff] %vm3609, %v3547
    %3613 = vst.msk [vmem:[%s5 + $0x18] sm:$0xff] %vm3609, %v3548
    %3614 = vst.msk [vmem:[%s5 + $0x20] sm:$0xff] %vm3609, %v3549
    %3615 = vst.msk [vmem:[%s5 + $0x28] sm:$0xff] %vm3609, %v3550
    %3616 = vst.msk [vmem:[%s5 + $0x30] sm:$0xff] %vm3609, %v3551
    %3617 = vst.msk [vmem:[%s5 + $0x38] sm:$0xff] %vm3609, %v3552
    %3618 = vst.msk [vmem:[%s5 + $0x40] sm:$0xff] %vm3609, %v3553
    %3619 = vst.msk [vmem:[%s5 + $0x48] sm:$0xff] %vm3609, %v3554
    %3620 = vst.msk [vmem:[%s5 + $0x50] sm:$0xff] %vm3609, %v3555
    %3621 = vst.msk [vmem:[%s5 + $0x58] sm:$0xff] %vm3609, %v3556
    %3622 = vst.msk [vmem:[%s5 + $0x60] sm:$0xff] %vm3609, %v3557
    %3623 = vst.msk [vmem:[%s5 + $0x68] sm:$0xff] %vm3609, %v3558
    %3624 = vst.msk [vmem:[%s5 + $0x70] sm:$0xff] %vm3609, %v3559
    %3625 = vst.msk [vmem:[%s5 + $0x78] sm:$0xff] %vm3609, %v3560
    %3626 = vst.msk [vmem:[%s5 + $0x80] sm:$0xff] %vm3609, %v3561
    %3627 = vst.msk [vmem:[%s5 + $0x88] sm:$0xff] %vm3609, %v3562
    %3628 = vst.msk [vmem:[%s5 + $0x90] sm:$0xff] %vm3609, %v3563
    %3629 = vst.msk [vmem:[%s5 + $0x98] sm:$0xff] %vm3609, %v3564
    %3630 = vst.msk [vmem:[%s5 + $0xa0] sm:$0xff] %vm3609, %v3565
    %3631 = vst.msk [vmem:[%s5 + $0xa8] sm:$0xff] %vm3609, %v3566
    %3632 = vst.msk [vmem:[%s5 + $0xb0] sm:$0xff] %vm3609, %v3567
    %3633 = vst.msk [vmem:[%s5 + $0xb8] sm:$0xff] %vm3609, %v3568
    %3634 = vst.msk [vmem:[%s5 + $0xc0] sm:$0xff] %vm3609, %v3569
    %3635 = vst.msk [vmem:[%s5 + $0xc8] sm:$0xff] %vm3609, %v3570
    %3636 = vst.msk [vmem:[%s5 + $0xd0] sm:$0xff] %vm3609, %v3571
    %3637 = vst.msk [vmem:[%s5 + $0xd8] sm:$0xff] %vm3609, %v3572
    %3638 = vst.msk [vmem:[%s5 + $0xe0] sm:$0xff] %vm3609, %v3573
    %3639 = vst.msk [vmem:[%s5 + $0xe8] sm:$0xff] %vm3609, %v3574
    %3640 = vst.msk [vmem:[%s5 + $0xf0] sm:$0xff] %vm3609, %v3575
    %3641 = vst.msk [vmem:[%s5 + $0xf8] sm:$0xff] %vm3609, %v3576
    %3642 = vst.msk [vmem:[%s5 + $0x100] sm:$0xff] %vm3609, %v3577
    %3643 = vst.msk [vmem:[%s5 + $0x108] sm:$0xff] %vm3609, %v3578
    %3644 = vst.msk [vmem:[%s5 + $0x110] sm:$0xff] %vm3609, %v3579
    %3645 = vst.msk [vmem:[%s5 + $0x118] sm:$0xff] %vm3609, %v3580
    %3646 = vst.msk [vmem:[%s5 + $0x120] sm:$0xff] %vm3609, %v3581
    %3647 = vst.msk [vmem:[%s5 + $0x128] sm:$0xff] %vm3609, %v3582
    %3648 = vst.msk [vmem:[%s5 + $0x130] sm:$0xff] %vm3609, %v3583
    %3649 = vst.msk [vmem:[%s5 + $0x138] sm:$0xff] %vm3609, %v3584
    %3650 = vst.msk [vmem:[%s5 + $0x140] sm:$0xff] %vm3609, %v3585
    %3651 = vst.msk [vmem:[%s5 + $0x148] sm:$0xff] %vm3609, %v3586
    %3652 = vst.msk [vmem:[%s5 + $0x150] sm:$0xff] %vm3609, %v3587
    %3653 = vst.msk [vmem:[%s5 + $0x158] sm:$0xff] %vm3609, %v3588
    %3654 = vst.msk [vmem:[%s5 + $0x160] sm:$0xff] %vm3609, %v3589
    %3655 = vst.msk [vmem:[%s5 + $0x168] sm:$0xff] %vm3609, %v3590
    %3656 = vst.msk [vmem:[%s5 + $0x170] sm:$0xff] %vm3609, %v3591
    %3657 = vst.msk [vmem:[%s5 + $0x178] sm:$0xff] %vm3609, %v3592
    %3658 = vst.msk [vmem:[%s5 + $0x180] sm:$0xff] %vm3609, %v3593
    %3659 = vst.msk [vmem:[%s5 + $0x188] sm:$0xff] %vm3609, %v3594
    %3660 = vst.msk [vmem:[%s5 + $0x190] sm:$0xff] %vm3609, %v3595
    %3661 = vst.msk [vmem:[%s5 + $0x198] sm:$0xff] %vm3609, %v3596
    %3662 = vst.msk [vmem:[%s5 + $0x1a0] sm:$0xff] %vm3609, %v3597
    %3663 = vst.msk [vmem:[%s5 + $0x1a8] sm:$0xff] %vm3609, %v3598
    %3664 = vst.msk [vmem:[%s5 + $0x1b0] sm:$0xff] %vm3609, %v3599
    %3665 = vst.msk [vmem:[%s5 + $0x1b8] sm:$0xff] %vm3609, %v3600
    %3666 = vst.msk [vmem:[%s5 + $0x1c0] sm:$0xff] %vm3609, %v3601
    %3667 = vst.msk [vmem:[%s5 + $0x1c8] sm:$0xff] %vm3609, %v3602
    %3668 = vst.msk [vmem:[%s5 + $0x1d0] sm:$0xff] %vm3609, %v3603
    %3669 = vst.msk [vmem:[%s5 + $0x1d8] sm:$0xff] %vm3609, %v3604
    %3670 = vst.msk [vmem:[%s5 + $0x1e0] sm:$0xff] %vm3609, %v3605
    %3671 = vst.msk [vmem:[%s5 + $0x1e8] sm:$0xff] %vm3609, %v3606
    %3672 = vst.msk [vmem:[%s5 + $0x1f0] sm:$0xff] %vm3609, %v3607
    %3673 = vst.msk [vmem:[%s5 + $0x1f8] sm:$0xff] %vm3609, %v3608
    %p3674 = scmp.eq.s32.totalorder 0, 0
    // Predicated region
    $region26: #{_lambda_.8} parent=1 // pred_check
      %p3675 = pneg %p3674
    $region27: #{_lambda_.8} parent=1 // pred_check_branch
      %3677 = sbr.rel (%p3675) target = $region29
    $region28: #{_lambda_.8} parent=1 // pred_region
      %vm3678 = vcmask 122880
      %3679 = vst.msk [vmem:[%s6] sm:$0x1] %vm3678, 0.0
      %3680 = vst.msk [vmem:[%s7] sm:$0x1] %vm3678, 0.0
    $region29: #{_lambda_.8} parent=1 // pred_fallthru
      _
    %v3681 = vld [vmem:[%s6] sm:$0x1]
    %v3682 = vsel %vm3609, %v3545, 0.0
    %v3683 = vsel %vm3609, %v3546, 0.0
    %v3684 = vadd.f32 %v3682, %v3683
    %v3685 = vsel %vm3609, %v3547, 0.0
    %v3686 = vadd.f32 %v3684, %v3685
    %v3687 = vsel %vm3609, %v3548, 0.0
    %v3688 = vadd.f32 %v3686, %v3687
    %v3689 = vsel %vm3609, %v3549, 0.0
    %v3690 = vadd.f32 %v3688, %v3689
    %v3691 = vsel %vm3609, %v3550, 0.0
    %v3692 = vadd.f32 %v3690, %v3691
    %v3693 = vsel %vm3609, %v3551, 0.0
    %v3694 = vadd.f32 %v3692, %v3693
    %v3695 = vsel %vm3609, %v3552, 0.0
    %v3696 = vadd.f32 %v3694, %v3695
    %v3697 = vsel %vm3609, %v3553, 0.0
    %v3698 = vadd.f32 %v3696, %v3697
    %v3699 = vsel %vm3609, %v3554, 0.0
    %v3700 = vadd.f32 %v3698, %v3699
    %v3701 = vsel %vm3609, %v3555, 0.0
    %v3702 = vadd.f32 %v3700, %v3701
    %v3703 = vsel %vm3609, %v3556, 0.0
    %v3704 = vadd.f32 %v3702, %v3703
    %v3705 = vsel %vm3609, %v3557, 0.0
    %v3706 = vadd.f32 %v3704, %v3705
    %v3707 = vsel %vm3609, %v3558, 0.0
    %v3708 = vadd.f32 %v3706, %v3707
    %v3709 = vsel %vm3609, %v3559, 0.0
    %v3710 = vadd.f32 %v3708, %v3709
    %v3711 = vsel %vm3609, %v3560, 0.0
    %v3712 = vadd.f32 %v3710, %v3711
    %v3713 = vsel %vm3609, %v3561, 0.0
    %v3714 = vadd.f32 %v3712, %v3713
    %v3715 = vsel %vm3609, %v3562, 0.0
    %v3716 = vadd.f32 %v3714, %v3715
    %v3717 = vsel %vm3609, %v3563, 0.0
    %v3718 = vadd.f32 %v3716, %v3717
    %v3719 = vsel %vm3609, %v3564, 0.0
    %v3720 = vadd.f32 %v3718, %v3719
    %v3721 = vsel %vm3609, %v3565, 0.0
    %v3722 = vadd.f32 %v3720, %v3721
    %v3723 = vsel %vm3609, %v3566, 0.0
    %v3724 = vadd.f32 %v3722, %v3723
    %v3725 = vsel %vm3609, %v3567, 0.0
    %v3726 = vadd.f32 %v3724, %v3725
    %v3727 = vsel %vm3609, %v3568, 0.0
    %v3728 = vadd.f32 %v3726, %v3727
    %v3729 = vsel %vm3609, %v3569, 0.0
    %v3730 = vadd.f32 %v3728, %v3729
    %v3731 = vsel %vm3609, %v3570, 0.0
    %v3732 = vadd.f32 %v3730, %v3731
    %v3733 = vsel %vm3609, %v3571, 0.0
    %v3734 = vadd.f32 %v3732, %v3733
    %v3735 = vsel %vm3609, %v3572, 0.0
    %v3736 = vadd.f32 %v3734, %v3735
    %v3737 = vsel %vm3609, %v3573, 0.0
    %v3738 = vadd.f32 %v3736, %v3737
    %v3739 = vsel %vm3609, %v3574, 0.0
    %v3740 = vadd.f32 %v3738, %v3739
    %v3741 = vsel %vm3609, %v3575, 0.0
    %v3742 = vadd.f32 %v3740, %v3741
    %v3743 = vsel %vm3609, %v3576, 0.0
    %v3744 = vadd.f32 %v3742, %v3743
    %v3745 = vsel %vm3609, %v3577, 0.0
    %v3746 = vadd.f32 %v3744, %v3745
    %v3747 = vsel %vm3609, %v3578, 0.0
    %v3748 = vadd.f32 %v3746, %v3747
    %v3749 = vsel %vm3609, %v3579, 0.0
    %v3750 = vadd.f32 %v3748, %v3749
    %v3751 = vsel %vm3609, %v3580, 0.0
    %v3752 = vadd.f32 %v3750, %v3751
    %v3753 = vsel %vm3609, %v3581, 0.0
    %v3754 = vadd.f32 %v3752, %v3753
    %v3755 = vsel %vm3609, %v3582, 0.0
    %v3756 = vadd.f32 %v3754, %v3755
    %v3757 = vsel %vm3609, %v3583, 0.0
    %v3758 = vadd.f32 %v3756, %v3757
    %v3759 = vsel %vm3609, %v3584, 0.0
    %v3760 = vadd.f32 %v3758, %v3759
    %v3761 = vsel %vm3609, %v3585, 0.0
    %v3762 = vadd.f32 %v3760, %v3761
    %v3763 = vsel %vm3609, %v3586, 0.0
    %v3764 = vadd.f32 %v3762, %v3763
    %v3765 = vsel %vm3609, %v3587, 0.0
    %v3766 = vadd.f32 %v3764, %v3765
    %v3767 = vsel %vm3609, %v3588, 0.0
    %v3768 = vadd.f32 %v3766, %v3767
    %v3769 = vsel %vm3609, %v3589, 0.0
    %v3770 = vadd.f32 %v3768, %v3769
    %v3771 = vsel %vm3609, %v3590, 0.0
    %v3772 = vadd.f32 %v3770, %v3771
    %v3773 = vsel %vm3609, %v3591, 0.0
    %v3774 = vadd.f32 %v3772, %v3773
    %v3775 = vsel %vm3609, %v3592, 0.0
    %v3776 = vadd.f32 %v3774, %v3775
    %v3777 = vsel %vm3609, %v3593, 0.0
    %v3778 = vadd.f32 %v3776, %v3777
    %v3779 = vsel %vm3609, %v3594, 0.0
    %v3780 = vadd.f32 %v3778, %v3779
    %v3781 = vsel %vm3609, %v3595, 0.0
    %v3782 = vadd.f32 %v3780, %v3781
    %v3783 = vsel %vm3609, %v3596, 0.0
    %v3784 = vadd.f32 %v3782, %v3783
    %v3785 = vsel %vm3609, %v3597, 0.0
    %v3786 = vadd.f32 %v3784, %v3785
    %v3787 = vsel %vm3609, %v3598, 0.0
    %v3788 = vadd.f32 %v3786, %v3787
    %v3789 = vsel %vm3609, %v3599, 0.0
    %v3790 = vadd.f32 %v3788, %v3789
    %v3791 = vsel %vm3609, %v3600, 0.0
    %v3792 = vadd.f32 %v3790, %v3791
    %v3793 = vsel %vm3609, %v3601, 0.0
    %v3794 = vadd.f32 %v3792, %v3793
    %v3795 = vsel %vm3609, %v3602, 0.0
    %v3796 = vadd.f32 %v3794, %v3795
    %v3797 = vsel %vm3609, %v3603, 0.0
    %v3798 = vadd.f32 %v3796, %v3797
    %v3799 = vsel %vm3609, %v3604, 0.0
    %v3800 = vadd.f32 %v3798, %v3799
    %v3801 = vsel %vm3609, %v3605, 0.0
    %v3802 = vadd.f32 %v3800, %v3801
    %v3803 = vsel %vm3609, %v3606, 0.0
    %v3804 = vadd.f32 %v3802, %v3803
    %v3805 = vsel %vm3609, %v3607, 0.0
    %v3806 = vadd.f32 %v3804, %v3805
    %v3807 = vsel %vm3609, %v3608, 0.0
    %v3808 = vadd.f32 %v3806, %v3807
    %v3809 = vrot.slane %v3808, 4
    %v3810 = vadd.f32 %v3808, %v3809
    %v3811 = vrot.slane %v3810, 2
    %v3812 = vadd.f32 %v3810, %v3811
    %v3813 = vrot.slane %v3812, 1
    %v3814 = vadd.f32 %v3812, %v3813
    %v3815 = vadd.f32 %v3681, %v3814
    %vm3816 = vcmask 122880
    %3817 = vst.msk [vmem:[%s6] sm:$0x1] %vm3816, %v3815
    %v3818 = vld [vmem:[%s7] sm:$0x1]
    %v3819 = vmul.f32 %v3545, %v3545
    %v3820 = vmul.f32 %v3546, %v3546
    %v3821 = vmul.f32 %v3547, %v3547
    %v3822 = vmul.f32 %v3548, %v3548
    %v3823 = vmul.f32 %v3549, %v3549
    %v3824 = vmul.f32 %v3550, %v3550
    %v3825 = vmul.f32 %v3551, %v3551
    %v3826 = vmul.f32 %v3552, %v3552
    %v3827 = vmul.f32 %v3553, %v3553
    %v3828 = vmul.f32 %v3554, %v3554
    %v3829 = vmul.f32 %v3555, %v3555
    %v3830 = vmul.f32 %v3556, %v3556
    %v3831 = vmul.f32 %v3557, %v3557
    %v3832 = vmul.f32 %v3558, %v3558
    %v3833 = vmul.f32 %v3559, %v3559
    %v3834 = vmul.f32 %v3560, %v3560
    %v3835 = vmul.f32 %v3561, %v3561
    %v3836 = vmul.f32 %v3562, %v3562
    %v3837 = vmul.f32 %v3563, %v3563
    %v3838 = vmul.f32 %v3564, %v3564
    %v3839 = vmul.f32 %v3565, %v3565
    %v3840 = vmul.f32 %v3566, %v3566
    %v3841 = vmul.f32 %v3567, %v3567
    %v3842 = vmul.f32 %v3568, %v3568
    %v3843 = vmul.f32 %v3569, %v3569
    %v3844 = vmul.f32 %v3570, %v3570
    %v3845 = vmul.f32 %v3571, %v3571
    %v3846 = vmul.f32 %v3572, %v3572
    %v3847 = vmul.f32 %v3573, %v3573
    %v3848 = vmul.f32 %v3574, %v3574
    %v3849 = vmul.f32 %v3575, %v3575
    %v3850 = vmul.f32 %v3576, %v3576
    %v3851 = vmul.f32 %v3577, %v3577
    %v3852 = vmul.f32 %v3578, %v3578
    %v3853 = vmul.f32 %v3579, %v3579
    %v3854 = vmul.f32 %v3580, %v3580
    %v3855 = vmul.f32 %v3581, %v3581
    %v3856 = vmul.f32 %v3582, %v3582
    %v3857 = vmul.f32 %v3583, %v3583
    %v3858 = vmul.f32 %v3584, %v3584
    %v3859 = vmul.f32 %v3585, %v3585
    %v3860 = vmul.f32 %v3586, %v3586
    %v3861 = vmul.f32 %v3587, %v3587
    %v3862 = vmul.f32 %v3588, %v3588
    %v3863 = vmul.f32 %v3589, %v3589
    %v3864 = vmul.f32 %v3590, %v3590
    %v3865 = vmul.f32 %v3591, %v3591
    %v3866 = vmul.f32 %v3592, %v3592
    %v3867 = vmul.f32 %v3593, %v3593
    %v3868 = vmul.f32 %v3594, %v3594
    %v3869 = vmul.f32 %v3595, %v3595
    %v3870 = vmul.f32 %v3596, %v3596
    %v3871 = vmul.f32 %v3597, %v3597
    %v3872 = vmul.f32 %v3598, %v3598
    %v3873 = vmul.f32 %v3599, %v3599
    %v3874 = vmul.f32 %v3600, %v3600
    %v3875 = vmul.f32 %v3601, %v3601
    %v3876 = vmul.f32 %v3602, %v3602
    %v3877 = vmul.f32 %v3603, %v3603
    %v3878 = vmul.f32 %v3604, %v3604
    %v3879 = vmul.f32 %v3605, %v3605
    %v3880 = vmul.f32 %v3606, %v3606
    %v3881 = vmul.f32 %v3607, %v3607
    %v3882 = vmul.f32 %v3608, %v3608
    %v3883 = vsel %vm3609, %v3819, 0.0
    %v3884 = vsel %vm3609, %v3820, 0.0
    %v3885 = vadd.f32 %v3883, %v3884
    %v3886 = vsel %vm3609, %v3821, 0.0
    %v3887 = vadd.f32 %v3885, %v3886
    %v3888 = vsel %vm3609, %v3822, 0.0
    %v3889 = vadd.f32 %v3887, %v3888
    %v3890 = vsel %vm3609, %v3823, 0.0
    %v3891 = vadd.f32 %v3889, %v3890
    %v3892 = vsel %vm3609, %v3824, 0.0
    %v3893 = vadd.f32 %v3891, %v3892
    %v3894 = vsel %vm3609, %v3825, 0.0
    %v3895 = vadd.f32 %v3893, %v3894
    %v3896 = vsel %vm3609, %v3826, 0.0
    %v3897 = vadd.f32 %v3895, %v3896
    %v3898 = vsel %vm3609, %v3827, 0.0
    %v3899 = vadd.f32 %v3897, %v3898
    %v3900 = vsel %vm3609, %v3828, 0.0
    %v3901 = vadd.f32 %v3899, %v3900
    %v3902 = vsel %vm3609, %v3829, 0.0
    %v3903 = vadd.f32 %v3901, %v3902
    %v3904 = vsel %vm3609, %v3830, 0.0
    %v3905 = vadd.f32 %v3903, %v3904
    %v3906 = vsel %vm3609, %v3831, 0.0
    %v3907 = vadd.f32 %v3905, %v3906
    %v3908 = vsel %vm3609, %v3832, 0.0
    %v3909 = vadd.f32 %v3907, %v3908
    %v3910 = vsel %vm3609, %v3833, 0.0
    %v3911 = vadd.f32 %v3909, %v3910
    %v3912 = vsel %vm3609, %v3834, 0.0
    %v3913 = vadd.f32 %v3911, %v3912
    %v3914 = vsel %vm3609, %v3835, 0.0
    %v3915 = vadd.f32 %v3913, %v3914
    %v3916 = vsel %vm3609, %v3836, 0.0
    %v3917 = vadd.f32 %v3915, %v3916
    %v3918 = vsel %vm3609, %v3837, 0.0
    %v3919 = vadd.f32 %v3917, %v3918
    %v3920 = vsel %vm3609, %v3838, 0.0
    %v3921 = vadd.f32 %v3919, %v3920
    %v3922 = vsel %vm3609, %v3839, 0.0
    %v3923 = vadd.f32 %v3921, %v3922
    %v3924 = vsel %vm3609, %v3840, 0.0
    %v3925 = vadd.f32 %v3923, %v3924
    %v3926 = vsel %vm3609, %v3841, 0.0
    %v3927 = vadd.f32 %v3925, %v3926
    %v3928 = vsel %vm3609, %v3842, 0.0
    %v3929 = vadd.f32 %v3927, %v3928
    %v3930 = vsel %vm3609, %v3843, 0.0
    %v3931 = vadd.f32 %v3929, %v3930
    %v3932 = vsel %vm3609, %v3844, 0.0
    %v3933 = vadd.f32 %v3931, %v3932
    %v3934 = vsel %vm3609, %v3845, 0.0
    %v3935 = vadd.f32 %v3933, %v3934
    %v3936 = vsel %vm3609, %v3846, 0.0
    %v3937 = vadd.f32 %v3935, %v3936
    %v3938 = vsel %vm3609, %v3847, 0.0
    %v3939 = vadd.f32 %v3937, %v3938
    %v3940 = vsel %vm3609, %v3848, 0.0
    %v3941 = vadd.f32 %v3939, %v3940
    %v3942 = vsel %vm3609, %v3849, 0.0
    %v3943 = vadd.f32 %v3941, %v3942
    %v3944 = vsel %vm3609, %v3850, 0.0
    %v3945 = vadd.f32 %v3943, %v3944
    %v3946 = vsel %vm3609, %v3851, 0.0
    %v3947 = vadd.f32 %v3945, %v3946
    %v3948 = vsel %vm3609, %v3852, 0.0
    %v3949 = vadd.f32 %v3947, %v3948
    %v3950 = vsel %vm3609, %v3853, 0.0
    %v3951 = vadd.f32 %v3949, %v3950
    %v3952 = vsel %vm3609, %v3854, 0.0
    %v3953 = vadd.f32 %v3951, %v3952
    %v3954 = vsel %vm3609, %v3855, 0.0
    %v3955 = vadd.f32 %v3953, %v3954
    %v3956 = vsel %vm3609, %v3856, 0.0
    %v3957 = vadd.f32 %v3955, %v3956
    %v3958 = vsel %vm3609, %v3857, 0.0
    %v3959 = vadd.f32 %v3957, %v3958
    %v3960 = vsel %vm3609, %v3858, 0.0
    %v3961 = vadd.f32 %v3959, %v3960
    %v3962 = vsel %vm3609, %v3859, 0.0
    %v3963 = vadd.f32 %v3961, %v3962
    %v3964 = vsel %vm3609, %v3860, 0.0
    %v3965 = vadd.f32 %v3963, %v3964
    %v3966 = vsel %vm3609, %v3861, 0.0
    %v3967 = vadd.f32 %v3965, %v3966
    %v3968 = vsel %vm3609, %v3862, 0.0
    %v3969 = vadd.f32 %v3967, %v3968
    %v3970 = vsel %vm3609, %v3863, 0.0
    %v3971 = vadd.f32 %v3969, %v3970
    %v3972 = vsel %vm3609, %v3864, 0.0
    %v3973 = vadd.f32 %v3971, %v3972
    %v3974 = vsel %vm3609, %v3865, 0.0
    %v3975 = vadd.f32 %v3973, %v3974
    %v3976 = vsel %vm3609, %v3866, 0.0
    %v3977 = vadd.f32 %v3975, %v3976
    %v3978 = vsel %vm3609, %v3867, 0.0
    %v3979 = vadd.f32 %v3977, %v3978
    %v3980 = vsel %vm3609, %v3868, 0.0
    %v3981 = vadd.f32 %v3979, %v3980
    %v3982 = vsel %vm3609, %v3869, 0.0
    %v3983 = vadd.f32 %v3981, %v3982
    %v3984 = vsel %vm3609, %v3870, 0.0
    %v3985 = vadd.f32 %v3983, %v3984
    %v3986 = vsel %vm3609, %v3871, 0.0
    %v3987 = vadd.f32 %v3985, %v3986
    %v3988 = vsel %vm3609, %v3872, 0.0
    %v3989 = vadd.f32 %v3987, %v3988
    %v3990 = vsel %vm3609, %v3873, 0.0
    %v3991 = vadd.f32 %v3989, %v3990
    %v3992 = vsel %vm3609, %v3874, 0.0
    %v3993 = vadd.f32 %v3991, %v3992
    %v3994 = vsel %vm3609, %v3875, 0.0
    %v3995 = vadd.f32 %v3993, %v3994
    %v3996 = vsel %vm3609, %v3876, 0.0
    %v3997 = vadd.f32 %v3995, %v3996
    %v3998 = vsel %vm3609, %v3877, 0.0
    %v3999 = vadd.f32 %v3997, %v3998
    %v4000 = vsel %vm3609, %v3878, 0.0
    %v4001 = vadd.f32 %v3999, %v4000
    %v4002 = vsel %vm3609, %v3879, 0.0
    %v4003 = vadd.f32 %v4001, %v4002
    %v4004 = vsel %vm3609, %v3880, 0.0
    %v4005 = vadd.f32 %v4003, %v4004
    %v4006 = vsel %vm3609, %v3881, 0.0
    %v4007 = vadd.f32 %v4005, %v4006
    %v4008 = vsel %vm3609, %v3882, 0.0
    %v4009 = vadd.f32 %v4007, %v4008
    %v4010 = vrot.slane %v4009, 4
    %v4011 = vadd.f32 %v4009, %v4010
    %v4012 = vrot.slane %v4011, 2
    %v4013 = vadd.f32 %v4011, %v4012
    %v4014 = vrot.slane %v4013, 1
    %v4015 = vadd.f32 %v4013, %v4014
    %v4016 = vadd.f32 %v3818, %v4015
    %4017 = vst.msk [vmem:[%s7] sm:$0x1] %vm3816, %v4016
    // Predicated region
    $region30: #{_lambda_.8} parent=1 // pred_check
      _
    $region31: #{_lambda_.8} parent=1 // pred_check_branch
      %4019 = sbr.rel (0) target = $region33
    $region32: #{_lambda_.8} parent=1 // pred_region
      _
    $region33: #{_lambda_.8} parent=1 // pred_fallthru
      _
    // Predicated region
    $region34: #{_lambda_.8} parent=1 // pred_check
      _
    $region35: #{_lambda_.8} parent=1 // pred_check_branch
      %4021 = sbr.rel (0) target = $region37
    $region36: #{_lambda_.8} parent=1 // pred_region
      _
    $region37: #{_lambda_.8} parent=1 // pred_fallthru
      _
    // Predicated region
    $region38: #{_lambda_.8} parent=1 // pred_check
      _
    $region39: #{_lambda_.8} parent=1 // pred_check_branch
      %4023 = sbr.rel (0) target = $region41
    $region40: #{_lambda_.8} parent=1 // pred_region
      _
    $region41: #{_lambda_.8} parent=1 // pred_fallthru
      _
    // Predicated region
    $region42: #{_lambda_.8} parent=1 // pred_check
      _
    $region43: #{_lambda_.8} parent=1 // pred_check_branch
      %4025 = sbr.rel (0) target = $region45
    $region44: #{_lambda_.8} parent=1 // pred_region
      _
    $region45: #{_lambda_.8} parent=1 // pred_fallthru
      _
    // Predicated region
    $region46: #{_lambda_.8} parent=1 // pred_check
      _
    $region47: #{_lambda_.8} parent=1 // pred_check_branch
      %4027 = sbr.rel (0) target = $region49
    $region48: #{_lambda_.8} parent=1 // pred_region
      _
    $region49: #{_lambda_.8} parent=1 // pred_fallthru
      _
    // Predicated region
    $region50: #{_lambda_.8} parent=1 // pred_check
      _
    $region51: #{_lambda_.8} parent=1 // pred_check_branch
      %4029 = sbr.rel (0) target = $region53
    $region52: #{_lambda_.8} parent=1 // pred_region
      _
    $region53: #{_lambda_.8} parent=1 // pred_fallthru
      _
    %4030 = vsyncpa [#allocation3], 1

// kernel: _lambda_.9
$region0: #{_lambda_.9}
  #allocation0 [shape = 'u32[]', space=smem, size = 0x4, offset = 0x4, fixed_abs, tag = 'smem constant byte address 0x4 - core index']
  #allocation1 [shape = 'u32[144,128]{1,0:T(1,128)}', space=vmem, size = 0x12000, scoped, tag = 'internal scratch']
  %s0 = inlined_call_operand.vmem [shape: f32[2048,4], index: 0, kind: input, shape index: {}]
  %s1 = inlined_call_operand.vmem [shape: f32[1,4], index: 1, kind: input, shape index: {}]
  %s2 = inlined_call_operand.vmem [shape: f32[1,4], index: 2, kind: input, shape index: {}]
  %s3 = inlined_call_operand.vmem [shape: f32[4,4], index: 3, kind: input, shape index: {}]
  %s4 = inlined_call_operand.vmem [shape: f32[1,4], index: 4, kind: input, shape index: {}]
  %s5 = inlined_call_operand.vmem [shape: f32[2048,4], index: 5, kind: output, shape index: {}]
  %s6 = sld [smem:[#allocation0]]
  $region53: #{_lambda_.9} parent=0
    _
  %s8 = ssub.s32 1, %s6
  %s9 = scalar_select 0, %s8, %s6
  loop: start=0, step=1, limit=4
  $region2: #{_lambda_.9} parent=0 // loop_pre_header
    _
  $region3: #{_lambda_.9} parent=0 // loop_header
    %s11 = sphi 0, %s15
    %p12 = scmp.ge.s32.totalorder %s11, 4
    %s21 = sphi 0, %s23
    %s24 = sphi 0, %s21
    %s25 = sphi 0, %s24
    %s41 = sphi 0, %s25
    %s45 = sphi 0, %s45
    %s47 = sphi 0, %s45
    %s48 = sphi 0, %s47
    %s62 = sphi 0, %s48
    %s66 = sphi 0, %s66
    %s68 = sphi 0, %s66
    %s69 = sphi 0, %s68
    %s83 = sphi 0, %s69
    %s87 = sphi 0, %s87
    %s89 = sphi 0, %s87
    %s90 = sphi 0, %s89
    %s104 = sphi 0, %s90
    %s108 = sphi 0, %s108
    %s110 = sphi 0, %s108
    %s111 = sphi 0, %s110
    %s125 = sphi 0, %s111
    %s131 = sphi 0, %s133
    %s134 = sphi 0, %s131
    %s135 = sphi 0, %s134
    %s151 = sphi 0, %s135
  $region4: #{_lambda_.9} parent=0 // loop_header_branch
    %14 = sbr.rel (%p12) target = $region8
  $region5: #{_lambda_.9} parent=0 // loop_body
    %s16 = ssub.s32 %s11, 1
    %s17 = ssub.s32 %s11, 2
    %s18 = sadd.s32 %s11, 1
    %s19 = ssub.s32 %s11, %s18
    %p20 = scmp.eq.s32.totalorder %s19, 0
    %s22 = sadd.s32 %s21, 1
    %s23 = scalar_select %p20, %s21, %s22
    %p26 = pneg %p20
    %p27 = scmp.eq.s32.totalorder %s11, 1
    %p28 = por %p26, %p27
    %p29 = scmp.ne.s32.totalorder %s21, %s24
    %p30 = scmp.eq.s32.totalorder %s11, 0
    %p31 = por %p29, %p30
    %p32 = scmp.ne.s32.totalorder %s21, %s24
    %p33 = scmp.eq.s32.totalorder %s16, 1
    %p34 = por %p32, %p33
    %p35 = scmp.ne.s32.totalorder %s24, %s25
    %p36 = scmp.eq.s32.totalorder %s16, 0
    %p37 = por %p35, %p36
    %p38 = scmp.ne.s32.totalorder %s24, %s25
    %p39 = scmp.eq.s32.totalorder %s17, 1
    %p40 = por %p38, %p39
    %p42 = scmp.ne.s32.totalorder %s25, %s41
    %p43 = scmp.eq.s32.totalorder %s17, 0
    %p44 = por %p42, %p43
    %s46 = sadd.s32 %s45, 1
    %p49 = scmp.eq.s32.totalorder %s11, 1
    %p50 = scmp.ne.s32.totalorder %s45, %s47
    %p51 = scmp.eq.s32.totalorder %s11, 0
    %p52 = por %p50, %p51
    %p53 = scmp.ne.s32.totalorder %s45, %s47
    %p54 = scmp.eq.s32.totalorder %s16, 1
    %p55 = por %p53, %p54
    %p56 = scmp.ne.s32.totalorder %s47, %s48
    %p57 = scmp.eq.s32.totalorder %s16, 0
    %p58 = por %p56, %p57
    %p59 = scmp.ne.s32.totalorder %s47, %s48
    %p60 = scmp.eq.s32.totalorder %s17, 1
    %p61 = por %p59, %p60
    %p63 = scmp.ne.s32.totalorder %s48, %s62
    %p64 = scmp.eq.s32.totalorder %s17, 0
    %p65 = por %p63, %p64
    %s67 = sadd.s32 %s66, 1
    %p70 = scmp.eq.s32.totalorder %s11, 1
    %p71 = scmp.ne.s32.totalorder %s66, %s68
    %p72 = scmp.eq.s32.totalorder %s11, 0
    %p73 = por %p71, %p72
    %p74 = scmp.ne.s32.totalorder %s66, %s68
    %p75 = scmp.eq.s32.totalorder %s16, 1
    %p76 = por %p74, %p75
    %p77 = scmp.ne.s32.totalorder %s68, %s69
    %p78 = scmp.eq.s32.totalorder %s16, 0
    %p79 = por %p77, %p78
    %p80 = scmp.ne.s32.totalorder %s68, %s69
    %p81 = scmp.eq.s32.totalorder %s17, 1
    %p82 = por %p80, %p81
    %p84 = scmp.ne.s32.totalorder %s69, %s83
    %p85 = scmp.eq.s32.totalorder %s17, 0
    %p86 = por %p84, %p85
    %s88 = sadd.s32 %s87, 1
    %p91 = scmp.eq.s32.totalorder %s11, 1
    %p92 = scmp.ne.s32.totalorder %s87, %s89
    %p93 = scmp.eq.s32.totalorder %s11, 0
    %p94 = por %p92, %p93
    %p95 = scmp.ne.s32.totalorder %s87, %s89
    %p96 = scmp.eq.s32.totalorder %s16, 1
    %p97 = por %p95, %p96
    %p98 = scmp.ne.s32.totalorder %s89, %s90
    %p99 = scmp.eq.s32.totalorder %s16, 0
    %p100 = por %p98, %p99
    %p101 = scmp.ne.s32.totalorder %s89, %s90
    %p102 = scmp.eq.s32.totalorder %s17, 1
    %p103 = por %p101, %p102
    %p105 = scmp.ne.s32.totalorder %s90, %s104
    %p106 = scmp.eq.s32.totalorder %s17, 0
    %p107 = por %p105, %p106
    %s109 = sadd.s32 %s108, 1
    %p112 = scmp.eq.s32.totalorder %s11, 1
    %p113 = scmp.ne.s32.totalorder %s108, %s110
    %p114 = scmp.eq.s32.totalorder %s11, 0
    %p115 = por %p113, %p114
    %p116 = scmp.ne.s32.totalorder %s108, %s110
    %p117 = scmp.eq.s32.totalorder %s16, 1
    %p118 = por %p116, %p117
    %p119 = scmp.ne.s32.totalorder %s110, %s111
    %p120 = scmp.eq.s32.totalorder %s16, 0
    %p121 = por %p119, %p120
    %p122 = scmp.ne.s32.totalorder %s110, %s111
    %p123 = scmp.eq.s32.totalorder %s17, 1
    %p124 = por %p122, %p123
    %p126 = scmp.ne.s32.totalorder %s111, %s125
    %p127 = scmp.eq.s32.totalorder %s17, 0
    %p128 = por %p126, %p127
    %s129 = ssub.s32 %s11, %s18
    %p130 = scmp.eq.s32.totalorder %s129, 0
    %s132 = sadd.s32 %s131, 1
    %s133 = scalar_select %p130, %s131, %s132
    %p136 = pneg %p130
    %p137 = scmp.eq.s32.totalorder %s11, 1
    %p138 = por %p136, %p137
    %p139 = scmp.ne.s32.totalorder %s131, %s134
    %p140 = scmp.eq.s32.totalorder %s11, 0
    %p141 = por %p139, %p140
    %p142 = scmp.ne.s32.totalorder %s131, %s134
    %p143 = scmp.eq.s32.totalorder %s16, 1
    %p144 = por %p142, %p143
    %p145 = scmp.ne.s32.totalorder %s134, %s135
    %p146 = scmp.eq.s32.totalorder %s16, 0
    %p147 = por %p145, %p146
    %p148 = scmp.ne.s32.totalorder %s134, %s135
    %p149 = scmp.eq.s32.totalorder %s17, 1
    %p150 = por %p148, %p149
    %p152 = scmp.ne.s32.totalorder %s135, %s151
    %p153 = scmp.eq.s32.totalorder %s17, 0
    %p154 = por %p152, %p153
    %p155 = scmp.le.s32.totalorder 1, %s11
    %p156 = scmp.lt.s32.totalorder %s11, 3
    %p157 = pnand %p155, %p156
    %p158 = pneg %p157
    // Predicated region
    $region9: #{_lambda_.9} parent=5 // pred_check
      _
    $region10: #{_lambda_.9} parent=5 // pred_check_branch
      %160 = sbr.rel (%p157) target = $region12
    $region11: #{_lambda_.9} parent=5 // pred_region
      %s161 = ssub.s32 %s11, 1
      // Predicated region
      $region13: #{_lambda_.9} parent=11 // pred_check
        %p162 = pneg %p58
      $region14: #{_lambda_.9} parent=11 // pred_check_branch
        %164 = sbr.rel (%p162) target = $region16
      $region15: #{_lambda_.9} parent=11 // pred_region
        _
      $region16: #{_lambda_.9} parent=11 // pred_fallthru
        _
      // Predicated region
      $region17: #{_lambda_.9} parent=11 // pred_check
        %p165 = pneg %p79
      $region18: #{_lambda_.9} parent=11 // pred_check_branch
        %167 = sbr.rel (%p165) target = $region20
      $region19: #{_lambda_.9} parent=11 // pred_region
        _
      $region20: #{_lambda_.9} parent=11 // pred_fallthru
        _
      // Predicated region
      $region21: #{_lambda_.9} parent=11 // pred_check
        %p168 = pneg %p100
      $region22: #{_lambda_.9} parent=11 // pred_check_branch
        %170 = sbr.rel (%p168) target = $region24
      $region23: #{_lambda_.9} parent=11 // pred_region
        _
      $region24: #{_lambda_.9} parent=11 // pred_fallthru
        _
      // Predicated region
      $region25: #{_lambda_.9} parent=11 // pred_check
        %p171 = pneg %p121
      $region26: #{_lambda_.9} parent=11 // pred_check_branch
        %173 = sbr.rel (%p171) target = $region28
      $region27: #{_lambda_.9} parent=11 // pred_region
        _
      $region28: #{_lambda_.9} parent=11 // pred_fallthru
        _
    $region12: #{_lambda_.9} parent=5 // pred_fallthru
      _
    %p174 = scmp.lt.s32.totalorder %s11, 2
    // Predicated region
    $region29: #{_lambda_.9} parent=5 // pred_check
      %p175 = pneg %p174
    $region30: #{_lambda_.9} parent=5 // pred_check_branch
      %177 = sbr.rel (%p175) target = $region32
    $region31: #{_lambda_.9} parent=5 // pred_region
      // Predicated region
      $region33: #{_lambda_.9} parent=31 // pred_check
        %p178 = pneg %p31
      $region34: #{_lambda_.9} parent=31 // pred_check_branch
        %180 = sbr.rel (%p178) target = $region36
      $region35: #{_lambda_.9} parent=31 // pred_region
        %s181 = smul.u32 128, %s11
        %p182 = scmp.lt.s32.totalorder %s181, 255
        %s183 = scalar_select %p182, %s181, 255
        %s184 = smul.addr %s183, 8
        %s185 = scalar_lea.vmem %s0, %s184
        %s186 = smul.u32 128, %s11
      $region36: #{_lambda_.9} parent=31 // pred_fallthru
        _
    $region32: #{_lambda_.9} parent=5 // pred_fallthru
      _
    %p187 = scmp.le.s32.totalorder 1, %s11
    %p188 = scmp.lt.s32.totalorder %s11, 3
    %p189 = pnand %p187, %p188
    %p190 = pneg %p189
    // Predicated region
    $region37: #{_lambda_.9} parent=5 // pred_check
      _
    $region38: #{_lambda_.9} parent=5 // pred_check_branch
      %192 = sbr.rel (%p189) target = $region40
    $region39: #{_lambda_.9} parent=5 // pred_region
      %s193 = ssub.s32 %s11, 1
      %s194 = smul.u32 128, %s16
      %p195 = scmp.lt.s32.totalorder %s194, 255
      %s196 = scalar_select %p195, %s194, 255
      %s197 = smul.addr %s196, 8
      %s198 = scalar_lea.vmem %s0, %s197
      %p199 = pneg %p37
      %p200 = pneg %p34
      %p201 = pneg %p58
      %p202 = pneg %p55
      %p203 = pneg %p79
      %p204 = pneg %p76
      %p205 = pneg %p100
      %p206 = pneg %p97
      %p207 = pneg %p121
      %p208 = pneg %p118
      %p209 = pneg %p147
      %p210 = pneg %p144
      %s211 = smul.u32 128, %s16
      %p212 = scmp.lt.s32.totalorder %s211, 255
      %s213 = scalar_select %p212, %s211, 255
      %s214 = smul.addr %s213, 8
      %s215 = scalar_lea.vmem %s5, %s214
      %s216 = smul.u32 128, %s16
      %p217 = scmp.lt.s32.totalorder %s216, 255
      %s218 = scalar_select %p217, %s216, 255
      %s219 = smul.addr %s218, 8
      %s220 = scalar_lea.vmem %s0, %s219
      %s221 = smul.u32 128, %s16
      %s222 = smul.u32 128, %s16
      %p223 = scmp.lt.s32.totalorder %s222, 255
      %s224 = scalar_select %p223, %s222, 255
      %s225 = smul.addr %s224, 8
      %s226 = scalar_lea.vmem %s5, %s225
      %s227 = smul.u32 128, %s16
      %v228 = vld [vmem:[%s220] sm:$0xff]
      %v229 = vld [vmem:[%s220 + $0x8] sm:$0xff]
      %v230 = vld [vmem:[%s220 + $0x10] sm:$0xff]
      %v231 = vld [vmem:[%s220 + $0x18] sm:$0xff]
      %v232 = vld [vmem:[%s220 + $0x20] sm:$0xff]
      %v233 = vld [vmem:[%s220 + $0x28] sm:$0xff]
      %v234 = vld [vmem:[%s220 + $0x30] sm:$0xff]
      %v235 = vld [vmem:[%s220 + $0x38] sm:$0xff]
      %v236 = vld [vmem:[%s220 + $0x40] sm:$0xff]
      %v237 = vld [vmem:[%s220 + $0x48] sm:$0xff]
      %v238 = vld [vmem:[%s220 + $0x50] sm:$0xff]
      %v239 = vld [vmem:[%s220 + $0x58] sm:$0xff]
      %v240 = vld [vmem:[%s220 + $0x60] sm:$0xff]
      %v241 = vld [vmem:[%s220 + $0x68] sm:$0xff]
      %v242 = vld [vmem:[%s220 + $0x70] sm:$0xff]
      %v243 = vld [vmem:[%s220 + $0x78] sm:$0xff]
      %v244 = vld [vmem:[%s220 + $0x80] sm:$0xff]
      %v245 = vld [vmem:[%s220 + $0x88] sm:$0xff]
      %v246 = vld [vmem:[%s220 + $0x90] sm:$0xff]
      %v247 = vld [vmem:[%s220 + $0x98] sm:$0xff]
      %v248 = vld [vmem:[%s220 + $0xa0] sm:$0xff]
      %v249 = vld [vmem:[%s220 + $0xa8] sm:$0xff]
      %v250 = vld [vmem:[%s220 + $0xb0] sm:$0xff]
      %v251 = vld [vmem:[%s220 + $0xb8] sm:$0xff]
      %v252 = vld [vmem:[%s220 + $0xc0] sm:$0xff]
      %v253 = vld [vmem:[%s220 + $0xc8] sm:$0xff]
      %v254 = vld [vmem:[%s220 + $0xd0] sm:$0xff]
      %v255 = vld [vmem:[%s220 + $0xd8] sm:$0xff]
      %v256 = vld [vmem:[%s220 + $0xe0] sm:$0xff]
      %v257 = vld [vmem:[%s220 + $0xe8] sm:$0xff]
      %v258 = vld [vmem:[%s220 + $0xf0] sm:$0xff]
      %v259 = vld [vmem:[%s220 + $0xf8] sm:$0xff]
      %v260 = vld [vmem:[%s220 + $0x100] sm:$0xff]
      %v261 = vld [vmem:[%s220 + $0x108] sm:$0xff]
      %v262 = vld [vmem:[%s220 + $0x110] sm:$0xff]
      %v263 = vld [vmem:[%s220 + $0x118] sm:$0xff]
      %v264 = vld [vmem:[%s220 + $0x120] sm:$0xff]
      %v265 = vld [vmem:[%s220 + $0x128] sm:$0xff]
      %v266 = vld [vmem:[%s220 + $0x130] sm:$0xff]
      %v267 = vld [vmem:[%s220 + $0x138] sm:$0xff]
      %v268 = vld [vmem:[%s220 + $0x140] sm:$0xff]
      %v269 = vld [vmem:[%s220 + $0x148] sm:$0xff]
      %v270 = vld [vmem:[%s220 + $0x150] sm:$0xff]
      %v271 = vld [vmem:[%s220 + $0x158] sm:$0xff]
      %v272 = vld [vmem:[%s220 + $0x160] sm:$0xff]
      %v273 = vld [vmem:[%s220 + $0x168] sm:$0xff]
      %v274 = vld [vmem:[%s220 + $0x170] sm:$0xff]
      %v275 = vld [vmem:[%s220 + $0x178] sm:$0xff]
      %v276 = vld [vmem:[%s220 + $0x180] sm:$0xff]
      %v277 = vld [vmem:[%s220 + $0x188] sm:$0xff]
      %v278 = vld [vmem:[%s220 + $0x190] sm:$0xff]
      %v279 = vld [vmem:[%s220 + $0x198] sm:$0xff]
      %v280 = vld [vmem:[%s220 + $0x1a0] sm:$0xff]
      %v281 = vld [vmem:[%s220 + $0x1a8] sm:$0xff]
      %v282 = vld [vmem:[%s220 + $0x1b0] sm:$0xff]
      %v283 = vld [vmem:[%s220 + $0x1b8] sm:$0xff]
      %v284 = vld [vmem:[%s220 + $0x1c0] sm:$0xff]
      %v285 = vld [vmem:[%s220 + $0x1c8] sm:$0xff]
      %v286 = vld [vmem:[%s220 + $0x1d0] sm:$0xff]
      %v287 = vld [vmem:[%s220 + $0x1d8] sm:$0xff]
      %v288 = vld [vmem:[%s220 + $0x1e0] sm:$0xff]
      %v289 = vld [vmem:[%s220 + $0x1e8] sm:$0xff]
      %v290 = vld [vmem:[%s220 + $0x1f0] sm:$0xff]
      %v291 = vld [vmem:[%s220 + $0x1f8] sm:$0xff]
      %v292 = vld [vmem:[%s220 + $0x200] sm:$0xff]
      %v293 = vld [vmem:[%s220 + $0x208] sm:$0xff]
      %v294 = vld [vmem:[%s220 + $0x210] sm:$0xff]
      %v295 = vld [vmem:[%s220 + $0x218] sm:$0xff]
      %v296 = vld [vmem:[%s220 + $0x220] sm:$0xff]
      %v297 = vld [vmem:[%s220 + $0x228] sm:$0xff]
      %v298 = vld [vmem:[%s220 + $0x230] sm:$0xff]
      %v299 = vld [vmem:[%s220 + $0x238] sm:$0xff]
      %v300 = vld [vmem:[%s220 + $0x240] sm:$0xff]
      %v301 = vld [vmem:[%s220 + $0x248] sm:$0xff]
      %v302 = vld [vmem:[%s220 + $0x250] sm:$0xff]
      %v303 = vld [vmem:[%s220 + $0x258] sm:$0xff]
      %v304 = vld [vmem:[%s220 + $0x260] sm:$0xff]
      %v305 = vld [vmem:[%s220 + $0x268] sm:$0xff]
      %v306 = vld [vmem:[%s220 + $0x270] sm:$0xff]
      %v307 = vld [vmem:[%s220 + $0x278] sm:$0xff]
      %v308 = vld [vmem:[%s220 + $0x280] sm:$0xff]
      %v309 = vld [vmem:[%s220 + $0x288] sm:$0xff]
      %v310 = vld [vmem:[%s220 + $0x290] sm:$0xff]
      %v311 = vld [vmem:[%s220 + $0x298] sm:$0xff]
      %v312 = vld [vmem:[%s220 + $0x2a0] sm:$0xff]
      %v313 = vld [vmem:[%s220 + $0x2a8] sm:$0xff]
      %v314 = vld [vmem:[%s220 + $0x2b0] sm:$0xff]
      %v315 = vld [vmem:[%s220 + $0x2b8] sm:$0xff]
      %v316 = vld [vmem:[%s220 + $0x2c0] sm:$0xff]
      %v317 = vld [vmem:[%s220 + $0x2c8] sm:$0xff]
      %v318 = vld [vmem:[%s220 + $0x2d0] sm:$0xff]
      %v319 = vld [vmem:[%s220 + $0x2d8] sm:$0xff]
      %v320 = vld [vmem:[%s220 + $0x2e0] sm:$0xff]
      %v321 = vld [vmem:[%s220 + $0x2e8] sm:$0xff]
      %v322 = vld [vmem:[%s220 + $0x2f0] sm:$0xff]
      %v323 = vld [vmem:[%s220 + $0x2f8] sm:$0xff]
      %v324 = vld [vmem:[%s220 + $0x300] sm:$0xff]
      %v325 = vld [vmem:[%s220 + $0x308] sm:$0xff]
      %v326 = vld [vmem:[%s220 + $0x310] sm:$0xff]
      %v327 = vld [vmem:[%s220 + $0x318] sm:$0xff]
      %v328 = vld [vmem:[%s220 + $0x320] sm:$0xff]
      %v329 = vld [vmem:[%s220 + $0x328] sm:$0xff]
      %v330 = vld [vmem:[%s220 + $0x330] sm:$0xff]
      %v331 = vld [vmem:[%s220 + $0x338] sm:$0xff]
      %v332 = vld [vmem:[%s220 + $0x340] sm:$0xff]
      %v333 = vld [vmem:[%s220 + $0x348] sm:$0xff]
      %v334 = vld [vmem:[%s220 + $0x350] sm:$0xff]
      %v335 = vld [vmem:[%s220 + $0x358] sm:$0xff]
      %v336 = vld [vmem:[%s220 + $0x360] sm:$0xff]
      %v337 = vld [vmem:[%s220 + $0x368] sm:$0xff]
      %v338 = vld [vmem:[%s220 + $0x370] sm:$0xff]
      %v339 = vld [vmem:[%s220 + $0x378] sm:$0xff]
      %v340 = vld [vmem:[%s220 + $0x380] sm:$0xff]
      %v341 = vld [vmem:[%s220 + $0x388] sm:$0xff]
      %v342 = vld [vmem:[%s220 + $0x390] sm:$0xff]
      %v343 = vld [vmem:[%s220 + $0x398] sm:$0xff]
      %v344 = vld [vmem:[%s220 + $0x3a0] sm:$0xff]
      %v345 = vld [vmem:[%s220 + $0x3a8] sm:$0xff]
      %v346 = vld [vmem:[%s220 + $0x3b0] sm:$0xff]
      %v347 = vld [vmem:[%s220 + $0x3b8] sm:$0xff]
      %v348 = vld [vmem:[%s220 + $0x3c0] sm:$0xff]
      %v349 = vld [vmem:[%s220 + $0x3c8] sm:$0xff]
      %v350 = vld [vmem:[%s220 + $0x3d0] sm:$0xff]
      %v351 = vld [vmem:[%s220 + $0x3d8] sm:$0xff]
      %v352 = vld [vmem:[%s220 + $0x3e0] sm:$0xff]
      %v353 = vld [vmem:[%s220 + $0x3e8] sm:$0xff]
      %v354 = vld [vmem:[%s220 + $0x3f0] sm:$0xff]
      %v355 = vld [vmem:[%s220 + $0x3f8] sm:$0xff]
      %v356 = vld [vmem:[%s1] sm:$0x1]
      %v358 = vlaneseq
      %v359 = vshrl.u32 %v358, 7
      %v360 = vsub.s32 0, %v359
      %v361 = vrot.slane %v356, %v360
      %v363 = vmul.f32 %v228, %v361
      %v364 = vmul.f32 %v229, %v361
      %v365 = vmul.f32 %v230, %v361
      %v366 = vmul.f32 %v231, %v361
      %v367 = vmul.f32 %v232, %v361
      %v368 = vmul.f32 %v233, %v361
      %v369 = vmul.f32 %v234, %v361
      %v370 = vmul.f32 %v235, %v361
      %v371 = vmul.f32 %v236, %v361
      %v372 = vmul.f32 %v237, %v361
      %v373 = vmul.f32 %v238, %v361
      %v374 = vmul.f32 %v239, %v361
      %v375 = vmul.f32 %v240, %v361
      %v376 = vmul.f32 %v241, %v361
      %v377 = vmul.f32 %v242, %v361
      %v378 = vmul.f32 %v243, %v361
      %v379 = vmul.f32 %v244, %v361
      %v380 = vmul.f32 %v245, %v361
      %v381 = vmul.f32 %v246, %v361
      %v382 = vmul.f32 %v247, %v361
      %v383 = vmul.f32 %v248, %v361
      %v384 = vmul.f32 %v249, %v361
      %v385 = vmul.f32 %v250, %v361
      %v386 = vmul.f32 %v251, %v361
      %v387 = vmul.f32 %v252, %v361
      %v388 = vmul.f32 %v253, %v361
      %v389 = vmul.f32 %v254, %v361
      %v390 = vmul.f32 %v255, %v361
      %v391 = vmul.f32 %v256, %v361
      %v392 = vmul.f32 %v257, %v361
      %v393 = vmul.f32 %v258, %v361
      %v394 = vmul.f32 %v259, %v361
      %v395 = vmul.f32 %v260, %v361
      %v396 = vmul.f32 %v261, %v361
      %v397 = vmul.f32 %v262, %v361
      %v398 = vmul.f32 %v263, %v361
      %v399 = vmul.f32 %v264, %v361
      %v400 = vmul.f32 %v265, %v361
      %v401 = vmul.f32 %v266, %v361
      %v402 = vmul.f32 %v267, %v361
      %v403 = vmul.f32 %v268, %v361
      %v404 = vmul.f32 %v269, %v361
      %v405 = vmul.f32 %v270, %v361
      %v406 = vmul.f32 %v271, %v361
      %v407 = vmul.f32 %v272, %v361
      %v408 = vmul.f32 %v273, %v361
      %v409 = vmul.f32 %v274, %v361
      %v410 = vmul.f32 %v275, %v361
      %v411 = vmul.f32 %v276, %v361
      %v412 = vmul.f32 %v277, %v361
      %v413 = vmul.f32 %v278, %v361
      %v414 = vmul.f32 %v279, %v361
      %v415 = vmul.f32 %v280, %v361
      %v416 = vmul.f32 %v281, %v361
      %v417 = vmul.f32 %v282, %v361
      %v418 = vmul.f32 %v283, %v361
      %v419 = vmul.f32 %v284, %v361
      %v420 = vmul.f32 %v285, %v361
      %v421 = vmul.f32 %v286, %v361
      %v422 = vmul.f32 %v287, %v361
      %v423 = vmul.f32 %v288, %v361
      %v424 = vmul.f32 %v289, %v361
      %v425 = vmul.f32 %v290, %v361
      %v426 = vmul.f32 %v291, %v361
      %v427 = vmul.f32 %v292, %v361
      %v428 = vmul.f32 %v293, %v361
      %v429 = vmul.f32 %v294, %v361
      %v430 = vmul.f32 %v295, %v361
      %v431 = vmul.f32 %v296, %v361
      %v432 = vmul.f32 %v297, %v361
      %v433 = vmul.f32 %v298, %v361
      %v434 = vmul.f32 %v299, %v361
      %v435 = vmul.f32 %v300, %v361
      %v436 = vmul.f32 %v301, %v361
      %v437 = vmul.f32 %v302, %v361
      %v438 = vmul.f32 %v303, %v361
      %v439 = vmul.f32 %v304, %v361
      %v440 = vmul.f32 %v305, %v361
      %v441 = vmul.f32 %v306, %v361
      %v442 = vmul.f32 %v307, %v361
      %v443 = vmul.f32 %v308, %v361
      %v444 = vmul.f32 %v309, %v361
      %v445 = vmul.f32 %v310, %v361
      %v446 = vmul.f32 %v311, %v361
      %v447 = vmul.f32 %v312, %v361
      %v448 = vmul.f32 %v313, %v361
      %v449 = vmul.f32 %v314, %v361
      %v450 = vmul.f32 %v315, %v361
      %v451 = vmul.f32 %v316, %v361
      %v452 = vmul.f32 %v317, %v361
      %v453 = vmul.f32 %v318, %v361
      %v454 = vmul.f32 %v319, %v361
      %v455 = vmul.f32 %v320, %v361
      %v456 = vmul.f32 %v321, %v361
      %v457 = vmul.f32 %v322, %v361
      %v458 = vmul.f32 %v323, %v361
      %v459 = vmul.f32 %v324, %v361
      %v460 = vmul.f32 %v325, %v361
      %v461 = vmul.f32 %v326, %v361
      %v462 = vmul.f32 %v327, %v361
      %v463 = vmul.f32 %v328, %v361
      %v464 = vmul.f32 %v329, %v361
      %v465 = vmul.f32 %v330, %v361
      %v466 = vmul.f32 %v331, %v361
      %v467 = vmul.f32 %v332, %v361
      %v468 = vmul.f32 %v333, %v361
      %v469 = vmul.f32 %v334, %v361
      %v470 = vmul.f32 %v335, %v361
      %v471 = vmul.f32 %v336, %v361
      %v472 = vmul.f32 %v337, %v361
      %v473 = vmul.f32 %v338, %v361
      %v474 = vmul.f32 %v339, %v361
      %v475 = vmul.f32 %v340, %v361
      %v476 = vmul.f32 %v341, %v361
      %v477 = vmul.f32 %v342, %v361
      %v478 = vmul.f32 %v343, %v361
      %v479 = vmul.f32 %v344, %v361
      %v480 = vmul.f32 %v345, %v361
      %v481 = vmul.f32 %v346, %v361
      %v482 = vmul.f32 %v347, %v361
      %v483 = vmul.f32 %v348, %v361
      %v484 = vmul.f32 %v349, %v361
      %v485 = vmul.f32 %v350, %v361
      %v486 = vmul.f32 %v351, %v361
      %v487 = vmul.f32 %v352, %v361
      %v488 = vmul.f32 %v353, %v361
      %v489 = vmul.f32 %v354, %v361
      %v490 = vmul.f32 %v355, %v361
      %v491 = vld [vmem:[%s2] sm:$0x1]
      %v493 = vlaneseq
      %v494 = vshrl.u32 %v493, 7
      %v495 = vsub.s32 0, %v494
      %v496 = vrot.slane %v491, %v495
      %v498 = vadd.f32 %v363, %v496
      %v499 = vadd.f32 %v364, %v496
      %v500 = vadd.f32 %v365, %v496
      %v501 = vadd.f32 %v366, %v496
      %v502 = vadd.f32 %v367, %v496
      %v503 = vadd.f32 %v368, %v496
      %v504 = vadd.f32 %v369, %v496
      %v505 = vadd.f32 %v370, %v496
      %v506 = vadd.f32 %v371, %v496
      %v507 = vadd.f32 %v372, %v496
      %v508 = vadd.f32 %v373, %v496
      %v509 = vadd.f32 %v374, %v496
      %v510 = vadd.f32 %v375, %v496
      %v511 = vadd.f32 %v376, %v496
      %v512 = vadd.f32 %v377, %v496
      %v513 = vadd.f32 %v378, %v496
      %v514 = vadd.f32 %v379, %v496
      %v515 = vadd.f32 %v380, %v496
      %v516 = vadd.f32 %v381, %v496
      %v517 = vadd.f32 %v382, %v496
      %v518 = vadd.f32 %v383, %v496
      %v519 = vadd.f32 %v384, %v496
      %v520 = vadd.f32 %v385, %v496
      %v521 = vadd.f32 %v386, %v496
      %v522 = vadd.f32 %v387, %v496
      %v523 = vadd.f32 %v388, %v496
      %v524 = vadd.f32 %v389, %v496
      %v525 = vadd.f32 %v390, %v496
      %v526 = vadd.f32 %v391, %v496
      %v527 = vadd.f32 %v392, %v496
      %v528 = vadd.f32 %v393, %v496
      %v529 = vadd.f32 %v394, %v496
      %v530 = vadd.f32 %v395, %v496
      %v531 = vadd.f32 %v396, %v496
      %v532 = vadd.f32 %v397, %v496
      %v533 = vadd.f32 %v398, %v496
      %v534 = vadd.f32 %v399, %v496
      %v535 = vadd.f32 %v400, %v496
      %v536 = vadd.f32 %v401, %v496
      %v537 = vadd.f32 %v402, %v496
      %v538 = vadd.f32 %v403, %v496
      %v539 = vadd.f32 %v404, %v496
      %v540 = vadd.f32 %v405, %v496
      %v541 = vadd.f32 %v406, %v496
      %v542 = vadd.f32 %v407, %v496
      %v543 = vadd.f32 %v408, %v496
      %v544 = vadd.f32 %v409, %v496
      %v545 = vadd.f32 %v410, %v496
      %v546 = vadd.f32 %v411, %v496
      %v547 = vadd.f32 %v412, %v496
      %v548 = vadd.f32 %v413, %v496
      %v549 = vadd.f32 %v414, %v496
      %v550 = vadd.f32 %v415, %v496
      %v551 = vadd.f32 %v416, %v496
      %v552 = vadd.f32 %v417, %v496
      %v553 = vadd.f32 %v418, %v496
      %v554 = vadd.f32 %v419, %v496
      %v555 = vadd.f32 %v420, %v496
      %v556 = vadd.f32 %v421, %v496
      %v557 = vadd.f32 %v422, %v496
      %v558 = vadd.f32 %v423, %v496
      %v559 = vadd.f32 %v424, %v496
      %v560 = vadd.f32 %v425, %v496
      %v561 = vadd.f32 %v426, %v496
      %v562 = vadd.f32 %v427, %v496
      %v563 = vadd.f32 %v428, %v496
      %v564 = vadd.f32 %v429, %v496
      %v565 = vadd.f32 %v430, %v496
      %v566 = vadd.f32 %v431, %v496
      %v567 = vadd.f32 %v432, %v496
      %v568 = vadd.f32 %v433, %v496
      %v569 = vadd.f32 %v434, %v496
      %v570 = vadd.f32 %v435, %v496
      %v571 = vadd.f32 %v436, %v496
      %v572 = vadd.f32 %v437, %v496
      %v573 = vadd.f32 %v438, %v496
      %v574 = vadd.f32 %v439, %v496
      %v575 = vadd.f32 %v440, %v496
      %v576 = vadd.f32 %v441, %v496
      %v577 = vadd.f32 %v442, %v496
      %v578 = vadd.f32 %v443, %v496
      %v579 = vadd.f32 %v444, %v496
      %v580 = vadd.f32 %v445, %v496
      %v581 = vadd.f32 %v446, %v496
      %v582 = vadd.f32 %v447, %v496
      %v583 = vadd.f32 %v448, %v496
      %v584 = vadd.f32 %v449, %v496
      %v585 = vadd.f32 %v450, %v496
      %v586 = vadd.f32 %v451, %v496
      %v587 = vadd.f32 %v452, %v496
      %v588 = vadd.f32 %v453, %v496
      %v589 = vadd.f32 %v454, %v496
      %v590 = vadd.f32 %v455, %v496
      %v591 = vadd.f32 %v456, %v496
      %v592 = vadd.f32 %v457, %v496
      %v593 = vadd.f32 %v458, %v496
      %v594 = vadd.f32 %v459, %v496
      %v595 = vadd.f32 %v460, %v496
      %v596 = vadd.f32 %v461, %v496
      %v597 = vadd.f32 %v462, %v496
      %v598 = vadd.f32 %v463, %v496
      %v599 = vadd.f32 %v464, %v496
      %v600 = vadd.f32 %v465, %v496
      %v601 = vadd.f32 %v466, %v496
      %v602 = vadd.f32 %v467, %v496
      %v603 = vadd.f32 %v468, %v496
      %v604 = vadd.f32 %v469, %v496
      %v605 = vadd.f32 %v470, %v496
      %v606 = vadd.f32 %v471, %v496
      %v607 = vadd.f32 %v472, %v496
      %v608 = vadd.f32 %v473, %v496
      %v609 = vadd.f32 %v474, %v496
      %v610 = vadd.f32 %v475, %v496
      %v611 = vadd.f32 %v476, %v496
      %v612 = vadd.f32 %v477, %v496
      %v613 = vadd.f32 %v478, %v496
      %v614 = vadd.f32 %v479, %v496
      %v615 = vadd.f32 %v480, %v496
      %v616 = vadd.f32 %v481, %v496
      %v617 = vadd.f32 %v482, %v496
      %v618 = vadd.f32 %v483, %v496
      %v619 = vadd.f32 %v484, %v496
      %v620 = vadd.f32 %v485, %v496
      %v621 = vadd.f32 %v486, %v496
      %v622 = vadd.f32 %v487, %v496
      %v623 = vadd.f32 %v488, %v496
      %v624 = vadd.f32 %v489, %v496
      %v625 = vadd.f32 %v490, %v496
      %vm626 = vcmp.gt.f32.partialorder %v498, 0.0
      %vm627 = vcmp.gt.f32.partialorder %v499, 0.0
      %vm628 = vcmp.gt.f32.partialorder %v500, 0.0
      %vm629 = vcmp.gt.f32.partialorder %v501, 0.0
      %vm630 = vcmp.gt.f32.partialorder %v502, 0.0
      %vm631 = vcmp.gt.f32.partialorder %v503, 0.0
      %vm632 = vcmp.gt.f32.partialorder %v504, 0.0
      %vm633 = vcmp.gt.f32.partialorder %v505, 0.0
      %vm634 = vcmp.gt.f32.partialorder %v506, 0.0
      %vm635 = vcmp.gt.f32.partialorder %v507, 0.0
      %vm636 = vcmp.gt.f32.partialorder %v508, 0.0
      %vm637 = vcmp.gt.f32.partialorder %v509, 0.0
      %vm638 = vcmp.gt.f32.partialorder %v510, 0.0
      %vm639 = vcmp.gt.f32.partialorder %v511, 0.0
      %vm640 = vcmp.gt.f32.partialorder %v512, 0.0
      %vm641 = vcmp.gt.f32.partialorder %v513, 0.0
      %vm642 = vcmp.gt.f32.partialorder %v514, 0.0
      %vm643 = vcmp.gt.f32.partialorder %v515, 0.0
      %vm644 = vcmp.gt.f32.partialorder %v516, 0.0
      %vm645 = vcmp.gt.f32.partialorder %v517, 0.0
      %vm646 = vcmp.gt.f32.partialorder %v518, 0.0
      %vm647 = vcmp.gt.f32.partialorder %v519, 0.0
      %vm648 = vcmp.gt.f32.partialorder %v520, 0.0
      %vm649 = vcmp.gt.f32.partialorder %v521, 0.0
      %vm650 = vcmp.gt.f32.partialorder %v522, 0.0
      %vm651 = vcmp.gt.f32.partialorder %v523, 0.0
      %vm652 = vcmp.gt.f32.partialorder %v524, 0.0
      %vm653 = vcmp.gt.f32.partialorder %v525, 0.0
      %vm654 = vcmp.gt.f32.partialorder %v526, 0.0
      %vm655 = vcmp.gt.f32.partialorder %v527, 0.0
      %vm656 = vcmp.gt.f32.partialorder %v528, 0.0
      %vm657 = vcmp.gt.f32.partialorder %v529, 0.0
      %vm658 = vcmp.gt.f32.partialorder %v530, 0.0
      %vm659 = vcmp.gt.f32.partialorder %v531, 0.0
      %vm660 = vcmp.gt.f32.partialorder %v532, 0.0
      %vm661 = vcmp.gt.f32.partialorder %v533, 0.0
      %vm662 = vcmp.gt.f32.partialorder %v534, 0.0
      %vm663 = vcmp.gt.f32.partialorder %v535, 0.0
      %vm664 = vcmp.gt.f32.partialorder %v536, 0.0
      %vm665 = vcmp.gt.f32.partialorder %v537, 0.0
      %vm666 = vcmp.gt.f32.partialorder %v538, 0.0
      %vm667 = vcmp.gt.f32.partialorder %v539, 0.0
      %vm668 = vcmp.gt.f32.partialorder %v540, 0.0
      %vm669 = vcmp.gt.f32.partialorder %v541, 0.0
      %vm670 = vcmp.gt.f32.partialorder %v542, 0.0
      %vm671 = vcmp.gt.f32.partialorder %v543, 0.0
      %vm672 = vcmp.gt.f32.partialorder %v544, 0.0
      %vm673 = vcmp.gt.f32.partialorder %v545, 0.0
      %vm674 = vcmp.gt.f32.partialorder %v546, 0.0
      %vm675 = vcmp.gt.f32.partialorder %v547, 0.0
      %vm676 = vcmp.gt.f32.partialorder %v548, 0.0
      %vm677 = vcmp.gt.f32.partialorder %v549, 0.0
      %vm678 = vcmp.gt.f32.partialorder %v550, 0.0
      %vm679 = vcmp.gt.f32.partialorder %v551, 0.0
      %vm680 = vcmp.gt.f32.partialorder %v552, 0.0
      %vm681 = vcmp.gt.f32.partialorder %v553, 0.0
      %vm682 = vcmp.gt.f32.partialorder %v554, 0.0
      %vm683 = vcmp.gt.f32.partialorder %v555, 0.0
      %vm684 = vcmp.gt.f32.partialorder %v556, 0.0
      %vm685 = vcmp.gt.f32.partialorder %v557, 0.0
      %vm686 = vcmp.gt.f32.partialorder %v558, 0.0
      %vm687 = vcmp.gt.f32.partialorder %v559, 0.0
      %vm688 = vcmp.gt.f32.partialorder %v560, 0.0
      %vm689 = vcmp.gt.f32.partialorder %v561, 0.0
      %vm690 = vcmp.gt.f32.partialorder %v562, 0.0
      %vm691 = vcmp.gt.f32.partialorder %v563, 0.0
      %vm692 = vcmp.gt.f32.partialorder %v564, 0.0
      %vm693 = vcmp.gt.f32.partialorder %v565, 0.0
      %vm694 = vcmp.gt.f32.partialorder %v566, 0.0
      %vm695 = vcmp.gt.f32.partialorder %v567, 0.0
      %vm696 = vcmp.gt.f32.partialorder %v568, 0.0
      %vm697 = vcmp.gt.f32.partialorder %v569, 0.0
      %vm698 = vcmp.gt.f32.partialorder %v570, 0.0
      %vm699 = vcmp.gt.f32.partialorder %v571, 0.0
      %vm700 = vcmp.gt.f32.partialorder %v572, 0.0
      %vm701 = vcmp.gt.f32.partialorder %v573, 0.0
      %vm702 = vcmp.gt.f32.partialorder %v574, 0.0
      %vm703 = vcmp.gt.f32.partialorder %v575, 0.0
      %vm704 = vcmp.gt.f32.partialorder %v576, 0.0
      %vm705 = vcmp.gt.f32.partialorder %v577, 0.0
      %vm706 = vcmp.gt.f32.partialorder %v578, 0.0
      %vm707 = vcmp.gt.f32.partialorder %v579, 0.0
      %vm708 = vcmp.gt.f32.partialorder %v580, 0.0
      %vm709 = vcmp.gt.f32.partialorder %v581, 0.0
      %vm710 = vcmp.gt.f32.partialorder %v582, 0.0
      %vm711 = vcmp.gt.f32.partialorder %v583, 0.0
      %vm712 = vcmp.gt.f32.partialorder %v584, 0.0
      %vm713 = vcmp.gt.f32.partialorder %v585, 0.0
      %vm714 = vcmp.gt.f32.partialorder %v586, 0.0
      %vm715 = vcmp.gt.f32.partialorder %v587, 0.0
      %vm716 = vcmp.gt.f32.partialorder %v588, 0.0
      %vm717 = vcmp.gt.f32.partialorder %v589, 0.0
      %vm718 = vcmp.gt.f32.partialorder %v590, 0.0
      %vm719 = vcmp.gt.f32.partialorder %v591, 0.0
      %vm720 = vcmp.gt.f32.partialorder %v592, 0.0
      %vm721 = vcmp.gt.f32.partialorder %v593, 0.0
      %vm722 = vcmp.gt.f32.partialorder %v594, 0.0
      %vm723 = vcmp.gt.f32.partialorder %v595, 0.0
      %vm724 = vcmp.gt.f32.partialorder %v596, 0.0
      %vm725 = vcmp.gt.f32.partialorder %v597, 0.0
      %vm726 = vcmp.gt.f32.partialorder %v598, 0.0
      %vm727 = vcmp.gt.f32.partialorder %v599, 0.0
      %vm728 = vcmp.gt.f32.partialorder %v600, 0.0
      %vm729 = vcmp.gt.f32.partialorder %v601, 0.0
      %vm730 = vcmp.gt.f32.partialorder %v602, 0.0
      %vm731 = vcmp.gt.f32.partialorder %v603, 0.0
      %vm732 = vcmp.gt.f32.partialorder %v604, 0.0
      %vm733 = vcmp.gt.f32.partialorder %v605, 0.0
      %vm734 = vcmp.gt.f32.partialorder %v606, 0.0
      %vm735 = vcmp.gt.f32.partialorder %v607, 0.0
      %vm736 = vcmp.gt.f32.partialorder %v608, 0.0
      %vm737 = vcmp.gt.f32.partialorder %v609, 0.0
      %vm738 = vcmp.gt.f32.partialorder %v610, 0.0
      %vm739 = vcmp.gt.f32.partialorder %v611, 0.0
      %vm740 = vcmp.gt.f32.partialorder %v612, 0.0
      %vm741 = vcmp.gt.f32.partialorder %v613, 0.0
      %vm742 = vcmp.gt.f32.partialorder %v614, 0.0
      %vm743 = vcmp.gt.f32.partialorder %v615, 0.0
      %vm744 = vcmp.gt.f32.partialorder %v616, 0.0
      %vm745 = vcmp.gt.f32.partialorder %v617, 0.0
      %vm746 = vcmp.gt.f32.partialorder %v618, 0.0
      %vm747 = vcmp.gt.f32.partialorder %v619, 0.0
      %vm748 = vcmp.gt.f32.partialorder %v620, 0.0
      %vm749 = vcmp.gt.f32.partialorder %v621, 0.0
      %vm750 = vcmp.gt.f32.partialorder %v622, 0.0
      %vm751 = vcmp.gt.f32.partialorder %v623, 0.0
      %vm752 = vcmp.gt.f32.partialorder %v624, 0.0
      %vm753 = vcmp.gt.f32.partialorder %v625, 0.0
      %v754 = vmul.f32 %v498, 0.01
      %v755 = vmul.f32 %v499, 0.01
      %v756 = vmul.f32 %v500, 0.01
      %v757 = vmul.f32 %v501, 0.01
      %v758 = vmul.f32 %v502, 0.01
      %v759 = vmul.f32 %v503, 0.01
      %v760 = vmul.f32 %v504, 0.01
      %v761 = vmul.f32 %v505, 0.01
      %v762 = vmul.f32 %v506, 0.01
      %v763 = vmul.f32 %v507, 0.01
      %v764 = vmul.f32 %v508, 0.01
      %v765 = vmul.f32 %v509, 0.01
      %v766 = vmul.f32 %v510, 0.01
      %v767 = vmul.f32 %v511, 0.01
      %v768 = vmul.f32 %v512, 0.01
      %v769 = vmul.f32 %v513, 0.01
      %v770 = vmul.f32 %v514, 0.01
      %v771 = vmul.f32 %v515, 0.01
      %v772 = vmul.f32 %v516, 0.01
      %v773 = vmul.f32 %v517, 0.01
      %v774 = vmul.f32 %v518, 0.01
      %v775 = vmul.f32 %v519, 0.01
      %v776 = vmul.f32 %v520, 0.01
      %v777 = vmul.f32 %v521, 0.01
      %v778 = vmul.f32 %v522, 0.01
      %v779 = vmul.f32 %v523, 0.01
      %v780 = vmul.f32 %v524, 0.01
      %v781 = vmul.f32 %v525, 0.01
      %v782 = vmul.f32 %v526, 0.01
      %v783 = vmul.f32 %v527, 0.01
      %v784 = vmul.f32 %v528, 0.01
      %v785 = vmul.f32 %v529, 0.01
      %v786 = vmul.f32 %v530, 0.01
      %v787 = vmul.f32 %v531, 0.01
      %v788 = vmul.f32 %v532, 0.01
      %v789 = vmul.f32 %v533, 0.01
      %v790 = vmul.f32 %v534, 0.01
      %v791 = vmul.f32 %v535, 0.01
      %v792 = vmul.f32 %v536, 0.01
      %v793 = vmul.f32 %v537, 0.01
      %v794 = vmul.f32 %v538, 0.01
      %v795 = vmul.f32 %v539, 0.01
      %v796 = vmul.f32 %v540, 0.01
      %v797 = vmul.f32 %v541, 0.01
      %v798 = vmul.f32 %v542, 0.01
      %v799 = vmul.f32 %v543, 0.01
      %v800 = vmul.f32 %v544, 0.01
      %v801 = vmul.f32 %v545, 0.01
      %v802 = vmul.f32 %v546, 0.01
      %v803 = vmul.f32 %v547, 0.01
      %v804 = vmul.f32 %v548, 0.01
      %v805 = vmul.f32 %v549, 0.01
      %v806 = vmul.f32 %v550, 0.01
      %v807 = vmul.f32 %v551, 0.01
      %v808 = vmul.f32 %v552, 0.01
      %v809 = vmul.f32 %v553, 0.01
      %v810 = vmul.f32 %v554, 0.01
      %v811 = vmul.f32 %v555, 0.01
      %v812 = vmul.f32 %v556, 0.01
      %v813 = vmul.f32 %v557, 0.01
      %v814 = vmul.f32 %v558, 0.01
      %v815 = vmul.f32 %v559, 0.01
      %v816 = vmul.f32 %v560, 0.01
      %v817 = vmul.f32 %v561, 0.01
      %v818 = vmul.f32 %v562, 0.01
      %v819 = vmul.f32 %v563, 0.01
      %v820 = vmul.f32 %v564, 0.01
      %v821 = vmul.f32 %v565, 0.01
      %v822 = vmul.f32 %v566, 0.01
      %v823 = vmul.f32 %v567, 0.01
      %v824 = vmul.f32 %v568, 0.01
      %v825 = vmul.f32 %v569, 0.01
      %v826 = vmul.f32 %v570, 0.01
      %v827 = vmul.f32 %v571, 0.01
      %v828 = vmul.f32 %v572, 0.01
      %v829 = vmul.f32 %v573, 0.01
      %v830 = vmul.f32 %v574, 0.01
      %v831 = vmul.f32 %v575, 0.01
      %v832 = vmul.f32 %v576, 0.01
      %v833 = vmul.f32 %v577, 0.01
      %v834 = vmul.f32 %v578, 0.01
      %v835 = vmul.f32 %v579, 0.01
      %v836 = vmul.f32 %v580, 0.01
      %v837 = vmul.f32 %v581, 0.01
      %v838 = vmul.f32 %v582, 0.01
      %v839 = vmul.f32 %v583, 0.01
      %v840 = vmul.f32 %v584, 0.01
      %v841 = vmul.f32 %v585, 0.01
      %v842 = vmul.f32 %v586, 0.01
      %v843 = vmul.f32 %v587, 0.01
      %v844 = vmul.f32 %v588, 0.01
      %v845 = vmul.f32 %v589, 0.01
      %v846 = vmul.f32 %v590, 0.01
      %v847 = vmul.f32 %v591, 0.01
      %v848 = vmul.f32 %v592, 0.01
      %v849 = vmul.f32 %v593, 0.01
      %v850 = vmul.f32 %v594, 0.01
      %v851 = vmul.f32 %v595, 0.01
      %v852 = vmul.f32 %v596, 0.01
      %v853 = vmul.f32 %v597, 0.01
      %v854 = vmul.f32 %v598, 0.01
      %v855 = vmul.f32 %v599, 0.01
      %v856 = vmul.f32 %v600, 0.01
      %v857 = vmul.f32 %v601, 0.01
      %v858 = vmul.f32 %v602, 0.01
      %v859 = vmul.f32 %v603, 0.01
      %v860 = vmul.f32 %v604, 0.01
      %v861 = vmul.f32 %v605, 0.01
      %v862 = vmul.f32 %v606, 0.01
      %v863 = vmul.f32 %v607, 0.01
      %v864 = vmul.f32 %v608, 0.01
      %v865 = vmul.f32 %v609, 0.01
      %v866 = vmul.f32 %v610, 0.01
      %v867 = vmul.f32 %v611, 0.01
      %v868 = vmul.f32 %v612, 0.01
      %v869 = vmul.f32 %v613, 0.01
      %v870 = vmul.f32 %v614, 0.01
      %v871 = vmul.f32 %v615, 0.01
      %v872 = vmul.f32 %v616, 0.01
      %v873 = vmul.f32 %v617, 0.01
      %v874 = vmul.f32 %v618, 0.01
      %v875 = vmul.f32 %v619, 0.01
      %v876 = vmul.f32 %v620, 0.01
      %v877 = vmul.f32 %v621, 0.01
      %v878 = vmul.f32 %v622, 0.01
      %v879 = vmul.f32 %v623, 0.01
      %v880 = vmul.f32 %v624, 0.01
      %v881 = vmul.f32 %v625, 0.01
      %v882 = vsel %vm626, %v498, %v754
      %v883 = vsel %vm627, %v499, %v755
      %v884 = vsel %vm628, %v500, %v756
      %v885 = vsel %vm629, %v501, %v757
      %v886 = vsel %vm630, %v502, %v758
      %v887 = vsel %vm631, %v503, %v759
      %v888 = vsel %vm632, %v504, %v760
      %v889 = vsel %vm633, %v505, %v761
      %v890 = vsel %vm634, %v506, %v762
      %v891 = vsel %vm635, %v507, %v763
      %v892 = vsel %vm636, %v508, %v764
      %v893 = vsel %vm637, %v509, %v765
      %v894 = vsel %vm638, %v510, %v766
      %v895 = vsel %vm639, %v511, %v767
      %v896 = vsel %vm640, %v512, %v768
      %v897 = vsel %vm641, %v513, %v769
      %v898 = vsel %vm642, %v514, %v770
      %v899 = vsel %vm643, %v515, %v771
      %v900 = vsel %vm644, %v516, %v772
      %v901 = vsel %vm645, %v517, %v773
      %v902 = vsel %vm646, %v518, %v774
      %v903 = vsel %vm647, %v519, %v775
      %v904 = vsel %vm648, %v520, %v776
      %v905 = vsel %vm649, %v521, %v777
      %v906 = vsel %vm650, %v522, %v778
      %v907 = vsel %vm651, %v523, %v779
      %v908 = vsel %vm652, %v524, %v780
      %v909 = vsel %vm653, %v525, %v781
      %v910 = vsel %vm654, %v526, %v782
      %v911 = vsel %vm655, %v527, %v783
      %v912 = vsel %vm656, %v528, %v784
      %v913 = vsel %vm657, %v529, %v785
      %v914 = vsel %vm658, %v530, %v786
      %v915 = vsel %vm659, %v531, %v787
      %v916 = vsel %vm660, %v532, %v788
      %v917 = vsel %vm661, %v533, %v789
      %v918 = vsel %vm662, %v534, %v790
      %v919 = vsel %vm663, %v535, %v791
      %v920 = vsel %vm664, %v536, %v792
      %v921 = vsel %vm665, %v537, %v793
      %v922 = vsel %vm666, %v538, %v794
      %v923 = vsel %vm667, %v539, %v795
      %v924 = vsel %vm668, %v540, %v796
      %v925 = vsel %vm669, %v541, %v797
      %v926 = vsel %vm670, %v542, %v798
      %v927 = vsel %vm671, %v543, %v799
      %v928 = vsel %vm672, %v544, %v800
      %v929 = vsel %vm673, %v545, %v801
      %v930 = vsel %vm674, %v546, %v802
      %v931 = vsel %vm675, %v547, %v803
      %v932 = vsel %vm676, %v548, %v804
      %v933 = vsel %vm677, %v549, %v805
      %v934 = vsel %vm678, %v550, %v806
      %v935 = vsel %vm679, %v551, %v807
      %v936 = vsel %vm680, %v552, %v808
      %v937 = vsel %vm681, %v553, %v809
      %v938 = vsel %vm682, %v554, %v810
      %v939 = vsel %vm683, %v555, %v811
      %v940 = vsel %vm684, %v556, %v812
      %v941 = vsel %vm685, %v557, %v813
      %v942 = vsel %vm686, %v558, %v814
      %v943 = vsel %vm687, %v559, %v815
      %v944 = vsel %vm688, %v560, %v816
      %v945 = vsel %vm689, %v561, %v817
      %v946 = vsel %vm690, %v562, %v818
      %v947 = vsel %vm691, %v563, %v819
      %v948 = vsel %vm692, %v564, %v820
      %v949 = vsel %vm693, %v565, %v821
      %v950 = vsel %vm694, %v566, %v822
      %v951 = vsel %vm695, %v567, %v823
      %v952 = vsel %vm696, %v568, %v824
      %v953 = vsel %vm697, %v569, %v825
      %v954 = vsel %vm698, %v570, %v826
      %v955 = vsel %vm699, %v571, %v827
      %v956 = vsel %vm700, %v572, %v828
      %v957 = vsel %vm701, %v573, %v829
      %v958 = vsel %vm702, %v574, %v830
      %v959 = vsel %vm703, %v575, %v831
      %v960 = vsel %vm704, %v576, %v832
      %v961 = vsel %vm705, %v577, %v833
      %v962 = vsel %vm706, %v578, %v834
      %v963 = vsel %vm707, %v579, %v835
      %v964 = vsel %vm708, %v580, %v836
      %v965 = vsel %vm709, %v581, %v837
      %v966 = vsel %vm710, %v582, %v838
      %v967 = vsel %vm711, %v583, %v839
      %v968 = vsel %vm712, %v584, %v840
      %v969 = vsel %vm713, %v585, %v841
      %v970 = vsel %vm714, %v586, %v842
      %v971 = vsel %vm715, %v587, %v843
      %v972 = vsel %vm716, %v588, %v844
      %v973 = vsel %vm717, %v589, %v845
      %v974 = vsel %vm718, %v590, %v846
      %v975 = vsel %vm719, %v591, %v847
      %v976 = vsel %vm720, %v592, %v848
      %v977 = vsel %vm721, %v593, %v849
      %v978 = vsel %vm722, %v594, %v850
      %v979 = vsel %vm723, %v595, %v851
      %v980 = vsel %vm724, %v596, %v852
      %v981 = vsel %vm725, %v597, %v853
      %v982 = vsel %vm726, %v598, %v854
      %v983 = vsel %vm727, %v599, %v855
      %v984 = vsel %vm728, %v600, %v856
      %v985 = vsel %vm729, %v601, %v857
      %v986 = vsel %vm730, %v602, %v858
      %v987 = vsel %vm731, %v603, %v859
      %v988 = vsel %vm732, %v604, %v860
      %v989 = vsel %vm733, %v605, %v861
      %v990 = vsel %vm734, %v606, %v862
      %v991 = vsel %vm735, %v607, %v863
      %v992 = vsel %vm736, %v608, %v864
      %v993 = vsel %vm737, %v609, %v865
      %v994 = vsel %vm738, %v610, %v866
      %v995 = vsel %vm739, %v611, %v867
      %v996 = vsel %vm740, %v612, %v868
      %v997 = vsel %vm741, %v613, %v869
      %v998 = vsel %vm742, %v614, %v870
      %v999 = vsel %vm743, %v615, %v871
      %v1000 = vsel %vm744, %v616, %v872
      %v1001 = vsel %vm745, %v617, %v873
      %v1002 = vsel %vm746, %v618, %v874
      %v1003 = vsel %vm747, %v619, %v875
      %v1004 = vsel %vm748, %v620, %v876
      %v1005 = vsel %vm749, %v621, %v877
      %v1006 = vsel %vm750, %v622, %v878
      %v1007 = vsel %vm751, %v623, %v879
      %v1008 = vsel %vm752, %v624, %v880
      %v1009 = vsel %vm753, %v625, %v881
      %v1010 = vld [vmem:[%s3] sm:$0xf]
      %v1011 = vld [vmem:[%s4] sm:$0x1]
      %1013 = vset.pattern.permute.xlu0 0
      %1014 = vperm.xlu0 %1013, %v882
      %v1015 = vpop.permute.xlu0 %1014
      %1018 = vset.pattern.permute.xlu0 0
      %1019 = vperm.xlu0 %1018, %v883
      %v1020 = vpop.permute.xlu0 %1019
      %1023 = vset.pattern.permute.xlu0 0
      %1024 = vperm.xlu0 %1023, %v884
      %v1025 = vpop.permute.xlu0 %1024
      %1028 = vset.pattern.permute.xlu0 0
      %1029 = vperm.xlu0 %1028, %v885
      %v1030 = vpop.permute.xlu0 %1029
      %1033 = vset.pattern.permute.xlu0 0
      %1034 = vperm.xlu0 %1033, %v886
      %v1035 = vpop.permute.xlu0 %1034
      %1038 = vset.pattern.permute.xlu0 0
      %1039 = vperm.xlu0 %1038, %v887
      %v1040 = vpop.permute.xlu0 %1039
      %1043 = vset.pattern.permute.xlu0 0
      %1044 = vperm.xlu0 %1043, %v888
      %v1045 = vpop.permute.xlu0 %1044
      %1048 = vset.pattern.permute.xlu0 0
      %1049 = vperm.xlu0 %1048, %v889
      %v1050 = vpop.permute.xlu0 %1049
      %1053 = vset.pattern.permute.xlu0 0
      %1054 = vperm.xlu0 %1053, %v890
      %v1055 = vpop.permute.xlu0 %1054
      %1058 = vset.pattern.permute.xlu0 0
      %1059 = vperm.xlu0 %1058, %v891
      %v1060 = vpop.permute.xlu0 %1059
      %1063 = vset.pattern.permute.xlu0 0
      %1064 = vperm.xlu0 %1063, %v892
      %v1065 = vpop.permute.xlu0 %1064
      %1068 = vset.pattern.permute.xlu0 0
      %1069 = vperm.xlu0 %1068, %v893
      %v1070 = vpop.permute.xlu0 %1069
      %1073 = vset.pattern.permute.xlu0 0
      %1074 = vperm.xlu0 %1073, %v894
      %v1075 = vpop.permute.xlu0 %1074
      %1078 = vset.pattern.permute.xlu0 0
      %1079 = vperm.xlu0 %1078, %v895
      %v1080 = vpop.permute.xlu0 %1079
      %1083 = vset.pattern.permute.xlu0 0
      %1084 = vperm.xlu0 %1083, %v896
      %v1085 = vpop.permute.xlu0 %1084
      %1088 = vset.pattern.permute.xlu0 0
      %1089 = vperm.xlu0 %1088, %v897
      %v1090 = vpop.permute.xlu0 %1089
      %1093 = vset.pattern.permute.xlu0 0
      %1094 = vperm.xlu0 %1093, %v898
      %v1095 = vpop.permute.xlu0 %1094
      %1098 = vset.pattern.permute.xlu0 0
      %1099 = vperm.xlu0 %1098, %v899
      %v1100 = vpop.permute.xlu0 %1099
      %1103 = vset.pattern.permute.xlu0 0
      %1104 = vperm.xlu0 %1103, %v900
      %v1105 = vpop.permute.xlu0 %1104
      %1108 = vset.pattern.permute.xlu0 0
      %1109 = vperm.xlu0 %1108, %v901
      %v1110 = vpop.permute.xlu0 %1109
      %1113 = vset.pattern.permute.xlu0 0
      %1114 = vperm.xlu0 %1113, %v902
      %v1115 = vpop.permute.xlu0 %1114
      %1118 = vset.pattern.permute.xlu0 0
      %1119 = vperm.xlu0 %1118, %v903
      %v1120 = vpop.permute.xlu0 %1119
      %1123 = vset.pattern.permute.xlu0 0
      %1124 = vperm.xlu0 %1123, %v904
      %v1125 = vpop.permute.xlu0 %1124
      %1128 = vset.pattern.permute.xlu0 0
      %1129 = vperm.xlu0 %1128, %v905
      %v1130 = vpop.permute.xlu0 %1129
      %1133 = vset.pattern.permute.xlu0 0
      %1134 = vperm.xlu0 %1133, %v906
      %v1135 = vpop.permute.xlu0 %1134
      %1138 = vset.pattern.permute.xlu0 0
      %1139 = vperm.xlu0 %1138, %v907
      %v1140 = vpop.permute.xlu0 %1139
      %1143 = vset.pattern.permute.xlu0 0
      %1144 = vperm.xlu0 %1143, %v908
      %v1145 = vpop.permute.xlu0 %1144
      %1148 = vset.pattern.permute.xlu0 0
      %1149 = vperm.xlu0 %1148, %v909
      %v1150 = vpop.permute.xlu0 %1149
      %1153 = vset.pattern.permute.xlu0 0
      %1154 = vperm.xlu0 %1153, %v910
      %v1155 = vpop.permute.xlu0 %1154
      %1158 = vset.pattern.permute.xlu0 0
      %1159 = vperm.xlu0 %1158, %v911
      %v1160 = vpop.permute.xlu0 %1159
      %1163 = vset.pattern.permute.xlu0 0
      %1164 = vperm.xlu0 %1163, %v912
      %v1165 = vpop.permute.xlu0 %1164
      %1168 = vset.pattern.permute.xlu0 0
      %1169 = vperm.xlu0 %1168, %v913
      %v1170 = vpop.permute.xlu0 %1169
      %1173 = vset.pattern.permute.xlu0 0
      %1174 = vperm.xlu0 %1173, %v914
      %v1175 = vpop.permute.xlu0 %1174
      %1178 = vset.pattern.permute.xlu0 0
      %1179 = vperm.xlu0 %1178, %v915
      %v1180 = vpop.permute.xlu0 %1179
      %1183 = vset.pattern.permute.xlu0 0
      %1184 = vperm.xlu0 %1183, %v916
      %v1185 = vpop.permute.xlu0 %1184
      %1188 = vset.pattern.permute.xlu0 0
      %1189 = vperm.xlu0 %1188, %v917
      %v1190 = vpop.permute.xlu0 %1189
      %1193 = vset.pattern.permute.xlu0 0
      %1194 = vperm.xlu0 %1193, %v918
      %v1195 = vpop.permute.xlu0 %1194
      %1198 = vset.pattern.permute.xlu0 0
      %1199 = vperm.xlu0 %1198, %v919
      %v1200 = vpop.permute.xlu0 %1199
      %1203 = vset.pattern.permute.xlu0 0
      %1204 = vperm.xlu0 %1203, %v920
      %v1205 = vpop.permute.xlu0 %1204
      %1208 = vset.pattern.permute.xlu0 0
      %1209 = vperm.xlu0 %1208, %v921
      %v1210 = vpop.permute.xlu0 %1209
      %1213 = vset.pattern.permute.xlu0 0
      %1214 = vperm.xlu0 %1213, %v922
      %v1215 = vpop.permute.xlu0 %1214
      %1218 = vset.pattern.permute.xlu0 0
      %1219 = vperm.xlu0 %1218, %v923
      %v1220 = vpop.permute.xlu0 %1219
      %1223 = vset.pattern.permute.xlu0 0
      %1224 = vperm.xlu0 %1223, %v924
      %v1225 = vpop.permute.xlu0 %1224
      %1228 = vset.pattern.permute.xlu0 0
      %1229 = vperm.xlu0 %1228, %v925
      %v1230 = vpop.permute.xlu0 %1229
      %1233 = vset.pattern.permute.xlu0 0
      %1234 = vperm.xlu0 %1233, %v926
      %v1235 = vpop.permute.xlu0 %1234
      %1238 = vset.pattern.permute.xlu0 0
      %1239 = vperm.xlu0 %1238, %v927
      %v1240 = vpop.permute.xlu0 %1239
      %1243 = vset.pattern.permute.xlu0 0
      %1244 = vperm.xlu0 %1243, %v928
      %v1245 = vpop.permute.xlu0 %1244
      %1248 = vset.pattern.permute.xlu0 0
      %1249 = vperm.xlu0 %1248, %v929
      %v1250 = vpop.permute.xlu0 %1249
      %1253 = vset.pattern.permute.xlu0 0
      %1254 = vperm.xlu0 %1253, %v930
      %v1255 = vpop.permute.xlu0 %1254
      %1258 = vset.pattern.permute.xlu0 0
      %1259 = vperm.xlu0 %1258, %v931
      %v1260 = vpop.permute.xlu0 %1259
      %1263 = vset.pattern.permute.xlu0 0
      %1264 = vperm.xlu0 %1263, %v932
      %v1265 = vpop.permute.xlu0 %1264
      %1268 = vset.pattern.permute.xlu0 0
      %1269 = vperm.xlu0 %1268, %v933
      %v1270 = vpop.permute.xlu0 %1269
      %1273 = vset.pattern.permute.xlu0 0
      %1274 = vperm.xlu0 %1273, %v934
      %v1275 = vpop.permute.xlu0 %1274
      %1278 = vset.pattern.permute.xlu0 0
      %1279 = vperm.xlu0 %1278, %v935
      %v1280 = vpop.permute.xlu0 %1279
      %1283 = vset.pattern.permute.xlu0 0
      %1284 = vperm.xlu0 %1283, %v936
      %v1285 = vpop.permute.xlu0 %1284
      %1288 = vset.pattern.permute.xlu0 0
      %1289 = vperm.xlu0 %1288, %v937
      %v1290 = vpop.permute.xlu0 %1289
      %1293 = vset.pattern.permute.xlu0 0
      %1294 = vperm.xlu0 %1293, %v938
      %v1295 = vpop.permute.xlu0 %1294
      %1298 = vset.pattern.permute.xlu0 0
      %1299 = vperm.xlu0 %1298, %v939
      %v1300 = vpop.permute.xlu0 %1299
      %1303 = vset.pattern.permute.xlu0 0
      %1304 = vperm.xlu0 %1303, %v940
      %v1305 = vpop.permute.xlu0 %1304
      %1308 = vset.pattern.permute.xlu0 0
      %1309 = vperm.xlu0 %1308, %v941
      %v1310 = vpop.permute.xlu0 %1309
      %1313 = vset.pattern.permute.xlu0 0
      %1314 = vperm.xlu0 %1313, %v942
      %v1315 = vpop.permute.xlu0 %1314
      %1318 = vset.pattern.permute.xlu0 0
      %1319 = vperm.xlu0 %1318, %v943
      %v1320 = vpop.permute.xlu0 %1319
      %1323 = vset.pattern.permute.xlu0 0
      %1324 = vperm.xlu0 %1323, %v944
      %v1325 = vpop.permute.xlu0 %1324
      %1328 = vset.pattern.permute.xlu0 0
      %1329 = vperm.xlu0 %1328, %v945
      %v1330 = vpop.permute.xlu0 %1329
      %1333 = vset.pattern.permute.xlu0 0
      %1334 = vperm.xlu0 %1333, %v946
      %v1335 = vpop.permute.xlu0 %1334
      %1338 = vset.pattern.permute.xlu0 0
      %1339 = vperm.xlu0 %1338, %v947
      %v1340 = vpop.permute.xlu0 %1339
      %1343 = vset.pattern.permute.xlu0 0
      %1344 = vperm.xlu0 %1343, %v948
      %v1345 = vpop.permute.xlu0 %1344
      %1348 = vset.pattern.permute.xlu0 0
      %1349 = vperm.xlu0 %1348, %v949
      %v1350 = vpop.permute.xlu0 %1349
      %1353 = vset.pattern.permute.xlu0 0
      %1354 = vperm.xlu0 %1353, %v950
      %v1355 = vpop.permute.xlu0 %1354
      %1358 = vset.pattern.permute.xlu0 0
      %1359 = vperm.xlu0 %1358, %v951
      %v1360 = vpop.permute.xlu0 %1359
      %1363 = vset.pattern.permute.xlu0 0
      %1364 = vperm.xlu0 %1363, %v952
      %v1365 = vpop.permute.xlu0 %1364
      %1368 = vset.pattern.permute.xlu0 0
      %1369 = vperm.xlu0 %1368, %v953
      %v1370 = vpop.permute.xlu0 %1369
      %1373 = vset.pattern.permute.xlu0 0
      %1374 = vperm.xlu0 %1373, %v954
      %v1375 = vpop.permute.xlu0 %1374
      %1378 = vset.pattern.permute.xlu0 0
      %1379 = vperm.xlu0 %1378, %v955
      %v1380 = vpop.permute.xlu0 %1379
      %1383 = vset.pattern.permute.xlu0 0
      %1384 = vperm.xlu0 %1383, %v956
      %v1385 = vpop.permute.xlu0 %1384
      %1388 = vset.pattern.permute.xlu0 0
      %1389 = vperm.xlu0 %1388, %v957
      %v1390 = vpop.permute.xlu0 %1389
      %1393 = vset.pattern.permute.xlu0 0
      %1394 = vperm.xlu0 %1393, %v958
      %v1395 = vpop.permute.xlu0 %1394
      %1398 = vset.pattern.permute.xlu0 0
      %1399 = vperm.xlu0 %1398, %v959
      %v1400 = vpop.permute.xlu0 %1399
      %1403 = vset.pattern.permute.xlu0 0
      %1404 = vperm.xlu0 %1403, %v960
      %v1405 = vpop.permute.xlu0 %1404
      %1408 = vset.pattern.permute.xlu0 0
      %1409 = vperm.xlu0 %1408, %v961
      %v1410 = vpop.permute.xlu0 %1409
      %1413 = vset.pattern.permute.xlu0 0
      %1414 = vperm.xlu0 %1413, %v962
      %v1415 = vpop.permute.xlu0 %1414
      %1418 = vset.pattern.permute.xlu0 0
      %1419 = vperm.xlu0 %1418, %v963
      %v1420 = vpop.permute.xlu0 %1419
      %1423 = vset.pattern.permute.xlu0 0
      %1424 = vperm.xlu0 %1423, %v964
      %v1425 = vpop.permute.xlu0 %1424
      %1428 = vset.pattern.permute.xlu0 0
      %1429 = vperm.xlu0 %1428, %v965
      %v1430 = vpop.permute.xlu0 %1429
      %1433 = vset.pattern.permute.xlu0 0
      %1434 = vperm.xlu0 %1433, %v966
      %v1435 = vpop.permute.xlu0 %1434
      %1438 = vset.pattern.permute.xlu0 0
      %1439 = vperm.xlu0 %1438, %v967
      %v1440 = vpop.permute.xlu0 %1439
      %1443 = vset.pattern.permute.xlu0 0
      %1444 = vperm.xlu0 %1443, %v968
      %v1445 = vpop.permute.xlu0 %1444
      %1448 = vset.pattern.permute.xlu0 0
      %1449 = vperm.xlu0 %1448, %v969
      %v1450 = vpop.permute.xlu0 %1449
      %1453 = vset.pattern.permute.xlu0 0
      %1454 = vperm.xlu0 %1453, %v970
      %v1455 = vpop.permute.xlu0 %1454
      %1458 = vset.pattern.permute.xlu0 0
      %1459 = vperm.xlu0 %1458, %v971
      %v1460 = vpop.permute.xlu0 %1459
      %1463 = vset.pattern.permute.xlu0 0
      %1464 = vperm.xlu0 %1463, %v972
      %v1465 = vpop.permute.xlu0 %1464
      %1468 = vset.pattern.permute.xlu0 0
      %1469 = vperm.xlu0 %1468, %v973
      %v1470 = vpop.permute.xlu0 %1469
      %1473 = vset.pattern.permute.xlu0 0
      %1474 = vperm.xlu0 %1473, %v974
      %v1475 = vpop.permute.xlu0 %1474
      %1478 = vset.pattern.permute.xlu0 0
      %1479 = vperm.xlu0 %1478, %v975
      %v1480 = vpop.permute.xlu0 %1479
      %1483 = vset.pattern.permute.xlu0 0
      %1484 = vperm.xlu0 %1483, %v976
      %v1485 = vpop.permute.xlu0 %1484
      %1488 = vset.pattern.permute.xlu0 0
      %1489 = vperm.xlu0 %1488, %v977
      %v1490 = vpop.permute.xlu0 %1489
      %1493 = vset.pattern.permute.xlu0 0
      %1494 = vperm.xlu0 %1493, %v978
      %v1495 = vpop.permute.xlu0 %1494
      %1498 = vset.pattern.permute.xlu0 0
      %1499 = vperm.xlu0 %1498, %v979
      %v1500 = vpop.permute.xlu0 %1499
      %1503 = vset.pattern.permute.xlu0 0
      %1504 = vperm.xlu0 %1503, %v980
      %v1505 = vpop.permute.xlu0 %1504
      %1508 = vset.pattern.permute.xlu0 0
      %1509 = vperm.xlu0 %1508, %v981
      %v1510 = vpop.permute.xlu0 %1509
      %1513 = vset.pattern.permute.xlu0 0
      %1514 = vperm.xlu0 %1513, %v982
      %v1515 = vpop.permute.xlu0 %1514
      %1518 = vset.pattern.permute.xlu0 0
      %1519 = vperm.xlu0 %1518, %v983
      %v1520 = vpop.permute.xlu0 %1519
      %1523 = vset.pattern.permute.xlu0 0
      %1524 = vperm.xlu0 %1523, %v984
      %v1525 = vpop.permute.xlu0 %1524
      %1528 = vset.pattern.permute.xlu0 0
      %1529 = vperm.xlu0 %1528, %v985
      %v1530 = vpop.permute.xlu0 %1529
      %1533 = vset.pattern.permute.xlu0 0
      %1534 = vperm.xlu0 %1533, %v986
      %v1535 = vpop.permute.xlu0 %1534
      %1538 = vset.pattern.permute.xlu0 0
      %1539 = vperm.xlu0 %1538, %v987
      %v1540 = vpop.permute.xlu0 %1539
      %1543 = vset.pattern.permute.xlu0 0
      %1544 = vperm.xlu0 %1543, %v988
      %v1545 = vpop.permute.xlu0 %1544
      %1548 = vset.pattern.permute.xlu0 0
      %1549 = vperm.xlu0 %1548, %v989
      %v1550 = vpop.permute.xlu0 %1549
      %1553 = vset.pattern.permute.xlu0 0
      %1554 = vperm.xlu0 %1553, %v990
      %v1555 = vpop.permute.xlu0 %1554
      %1558 = vset.pattern.permute.xlu0 0
      %1559 = vperm.xlu0 %1558, %v991
      %v1560 = vpop.permute.xlu0 %1559
      %1563 = vset.pattern.permute.xlu0 0
      %1564 = vperm.xlu0 %1563, %v992
      %v1565 = vpop.permute.xlu0 %1564
      %1568 = vset.pattern.permute.xlu0 0
      %1569 = vperm.xlu0 %1568, %v993
      %v1570 = vpop.permute.xlu0 %1569
      %1573 = vset.pattern.permute.xlu0 0
      %1574 = vperm.xlu0 %1573, %v994
      %v1575 = vpop.permute.xlu0 %1574
      %1578 = vset.pattern.permute.xlu0 0
      %1579 = vperm.xlu0 %1578, %v995
      %v1580 = vpop.permute.xlu0 %1579
      %1583 = vset.pattern.permute.xlu0 0
      %1584 = vperm.xlu0 %1583, %v996
      %v1585 = vpop.permute.xlu0 %1584
      %1588 = vset.pattern.permute.xlu0 0
      %1589 = vperm.xlu0 %1588, %v997
      %v1590 = vpop.permute.xlu0 %1589
      %1593 = vset.pattern.permute.xlu0 0
      %1594 = vperm.xlu0 %1593, %v998
      %v1595 = vpop.permute.xlu0 %1594
      %1598 = vset.pattern.permute.xlu0 0
      %1599 = vperm.xlu0 %1598, %v999
      %v1600 = vpop.permute.xlu0 %1599
      %1603 = vset.pattern.permute.xlu0 0
      %1604 = vperm.xlu0 %1603, %v1000
      %v1605 = vpop.permute.xlu0 %1604
      %1608 = vset.pattern.permute.xlu0 0
      %1609 = vperm.xlu0 %1608, %v1001
      %v1610 = vpop.permute.xlu0 %1609
      %1613 = vset.pattern.permute.xlu0 0
      %1614 = vperm.xlu0 %1613, %v1002
      %v1615 = vpop.permute.xlu0 %1614
      %1618 = vset.pattern.permute.xlu0 0
      %1619 = vperm.xlu0 %1618, %v1003
      %v1620 = vpop.permute.xlu0 %1619
      %1623 = vset.pattern.permute.xlu0 0
      %1624 = vperm.xlu0 %1623, %v1004
      %v1625 = vpop.permute.xlu0 %1624
      %1628 = vset.pattern.permute.xlu0 0
      %1629 = vperm.xlu0 %1628, %v1005
      %v1630 = vpop.permute.xlu0 %1629
      %1633 = vset.pattern.permute.xlu0 0
      %1634 = vperm.xlu0 %1633, %v1006
      %v1635 = vpop.permute.xlu0 %1634
      %1638 = vset.pattern.permute.xlu0 0
      %1639 = vperm.xlu0 %1638, %v1007
      %v1640 = vpop.permute.xlu0 %1639
      %1643 = vset.pattern.permute.xlu0 0
      %1644 = vperm.xlu0 %1643, %v1008
      %v1645 = vpop.permute.xlu0 %1644
      %1648 = vset.pattern.permute.xlu0 0
      %1649 = vperm.xlu0 %1648, %v1009
      %v1650 = vpop.permute.xlu0 %1649
      %v1652 = vlaneseq
      %v1653 = vshrl.u32 %v1652, 7
      %v1654 = vsub.s32 0, %v1653
      %v1655 = vrot.slane %v1010, %v1654
      %v1656 = vmul.f32 %v1015, %v1655
      %v1657 = vmul.f32 %v1020, %v1655
      %v1658 = vmul.f32 %v1025, %v1655
      %v1659 = vmul.f32 %v1030, %v1655
      %v1660 = vmul.f32 %v1035, %v1655
      %v1661 = vmul.f32 %v1040, %v1655
      %v1662 = vmul.f32 %v1045, %v1655
      %v1663 = vmul.f32 %v1050, %v1655
      %v1664 = vmul.f32 %v1055, %v1655
      %v1665 = vmul.f32 %v1060, %v1655
      %v1666 = vmul.f32 %v1065, %v1655
      %v1667 = vmul.f32 %v1070, %v1655
      %v1668 = vmul.f32 %v1075, %v1655
      %v1669 = vmul.f32 %v1080, %v1655
      %v1670 = vmul.f32 %v1085, %v1655
      %v1671 = vmul.f32 %v1090, %v1655
      %v1672 = vmul.f32 %v1095, %v1655
      %v1673 = vmul.f32 %v1100, %v1655
      %v1674 = vmul.f32 %v1105, %v1655
      %v1675 = vmul.f32 %v1110, %v1655
      %v1676 = vmul.f32 %v1115, %v1655
      %v1677 = vmul.f32 %v1120, %v1655
      %v1678 = vmul.f32 %v1125, %v1655
      %v1679 = vmul.f32 %v1130, %v1655
      %v1680 = vmul.f32 %v1135, %v1655
      %v1681 = vmul.f32 %v1140, %v1655
      %v1682 = vmul.f32 %v1145, %v1655
      %v1683 = vmul.f32 %v1150, %v1655
      %v1684 = vmul.f32 %v1155, %v1655
      %v1685 = vmul.f32 %v1160, %v1655
      %v1686 = vmul.f32 %v1165, %v1655
      %v1687 = vmul.f32 %v1170, %v1655
      %v1688 = vmul.f32 %v1175, %v1655
      %v1689 = vmul.f32 %v1180, %v1655
      %v1690 = vmul.f32 %v1185, %v1655
      %v1691 = vmul.f32 %v1190, %v1655
      %v1692 = vmul.f32 %v1195, %v1655
      %v1693 = vmul.f32 %v1200, %v1655
      %v1694 = vmul.f32 %v1205, %v1655
      %v1695 = vmul.f32 %v1210, %v1655
      %v1696 = vmul.f32 %v1215, %v1655
      %v1697 = vmul.f32 %v1220, %v1655
      %v1698 = vmul.f32 %v1225, %v1655
      %v1699 = vmul.f32 %v1230, %v1655
      %v1700 = vmul.f32 %v1235, %v1655
      %v1701 = vmul.f32 %v1240, %v1655
      %v1702 = vmul.f32 %v1245, %v1655
      %v1703 = vmul.f32 %v1250, %v1655
      %v1704 = vmul.f32 %v1255, %v1655
      %v1705 = vmul.f32 %v1260, %v1655
      %v1706 = vmul.f32 %v1265, %v1655
      %v1707 = vmul.f32 %v1270, %v1655
      %v1708 = vmul.f32 %v1275, %v1655
      %v1709 = vmul.f32 %v1280, %v1655
      %v1710 = vmul.f32 %v1285, %v1655
      %v1711 = vmul.f32 %v1290, %v1655
      %v1712 = vmul.f32 %v1295, %v1655
      %v1713 = vmul.f32 %v1300, %v1655
      %v1714 = vmul.f32 %v1305, %v1655
      %v1715 = vmul.f32 %v1310, %v1655
      %v1716 = vmul.f32 %v1315, %v1655
      %v1717 = vmul.f32 %v1320, %v1655
      %v1718 = vmul.f32 %v1325, %v1655
      %v1719 = vmul.f32 %v1330, %v1655
      %v1720 = vmul.f32 %v1335, %v1655
      %v1721 = vmul.f32 %v1340, %v1655
      %v1722 = vmul.f32 %v1345, %v1655
      %v1723 = vmul.f32 %v1350, %v1655
      %v1724 = vmul.f32 %v1355, %v1655
      %v1725 = vmul.f32 %v1360, %v1655
      %v1726 = vmul.f32 %v1365, %v1655
      %v1727 = vmul.f32 %v1370, %v1655
      %v1728 = vmul.f32 %v1375, %v1655
      %v1729 = vmul.f32 %v1380, %v1655
      %v1730 = vmul.f32 %v1385, %v1655
      %v1731 = vmul.f32 %v1390, %v1655
      %v1732 = vmul.f32 %v1395, %v1655
      %v1733 = vmul.f32 %v1400, %v1655
      %v1734 = vmul.f32 %v1405, %v1655
      %v1735 = vmul.f32 %v1410, %v1655
      %v1736 = vmul.f32 %v1415, %v1655
      %v1737 = vmul.f32 %v1420, %v1655
      %v1738 = vmul.f32 %v1425, %v1655
      %v1739 = vmul.f32 %v1430, %v1655
      %v1740 = vmul.f32 %v1435, %v1655
      %v1741 = vmul.f32 %v1440, %v1655
      %v1742 = vmul.f32 %v1445, %v1655
      %v1743 = vmul.f32 %v1450, %v1655
      %v1744 = vmul.f32 %v1455, %v1655
      %v1745 = vmul.f32 %v1460, %v1655
      %v1746 = vmul.f32 %v1465, %v1655
      %v1747 = vmul.f32 %v1470, %v1655
      %v1748 = vmul.f32 %v1475, %v1655
      %v1749 = vmul.f32 %v1480, %v1655
      %v1750 = vmul.f32 %v1485, %v1655
      %v1751 = vmul.f32 %v1490, %v1655
      %v1752 = vmul.f32 %v1495, %v1655
      %v1753 = vmul.f32 %v1500, %v1655
      %v1754 = vmul.f32 %v1505, %v1655
      %v1755 = vmul.f32 %v1510, %v1655
      %v1756 = vmul.f32 %v1515, %v1655
      %v1757 = vmul.f32 %v1520, %v1655
      %v1758 = vmul.f32 %v1525, %v1655
      %v1759 = vmul.f32 %v1530, %v1655
      %v1760 = vmul.f32 %v1535, %v1655
      %v1761 = vmul.f32 %v1540, %v1655
      %v1762 = vmul.f32 %v1545, %v1655
      %v1763 = vmul.f32 %v1550, %v1655
      %v1764 = vmul.f32 %v1555, %v1655
      %v1765 = vmul.f32 %v1560, %v1655
      %v1766 = vmul.f32 %v1565, %v1655
      %v1767 = vmul.f32 %v1570, %v1655
      %v1768 = vmul.f32 %v1575, %v1655
      %v1769 = vmul.f32 %v1580, %v1655
      %v1770 = vmul.f32 %v1585, %v1655
      %v1771 = vmul.f32 %v1590, %v1655
      %v1772 = vmul.f32 %v1595, %v1655
      %v1773 = vmul.f32 %v1600, %v1655
      %v1774 = vmul.f32 %v1605, %v1655
      %v1775 = vmul.f32 %v1610, %v1655
      %v1776 = vmul.f32 %v1615, %v1655
      %v1777 = vmul.f32 %v1620, %v1655
      %v1778 = vmul.f32 %v1625, %v1655
      %v1779 = vmul.f32 %v1630, %v1655
      %v1780 = vmul.f32 %v1635, %v1655
      %v1781 = vmul.f32 %v1640, %v1655
      %v1782 = vmul.f32 %v1645, %v1655
      %v1783 = vmul.f32 %v1650, %v1655
      %v1785 = vlaneseq
      %v1786 = vshrl.u32 %v1785, 7
      %v1787 = vsub.s32 0, %v1786
      %v1788 = vrot.slane %v1011, %v1787
      %v1790 = vadd.f32 %v1788, %v1656
      %v1791 = vadd.f32 %v1788, %v1657
      %v1792 = vadd.f32 %v1788, %v1658
      %v1793 = vadd.f32 %v1788, %v1659
      %v1794 = vadd.f32 %v1788, %v1660
      %v1795 = vadd.f32 %v1788, %v1661
      %v1796 = vadd.f32 %v1788, %v1662
      %v1797 = vadd.f32 %v1788, %v1663
      %v1798 = vadd.f32 %v1788, %v1664
      %v1799 = vadd.f32 %v1788, %v1665
      %v1800 = vadd.f32 %v1788, %v1666
      %v1801 = vadd.f32 %v1788, %v1667
      %v1802 = vadd.f32 %v1788, %v1668
      %v1803 = vadd.f32 %v1788, %v1669
      %v1804 = vadd.f32 %v1788, %v1670
      %v1805 = vadd.f32 %v1788, %v1671
      %v1806 = vadd.f32 %v1788, %v1672
      %v1807 = vadd.f32 %v1788, %v1673
      %v1808 = vadd.f32 %v1788, %v1674
      %v1809 = vadd.f32 %v1788, %v1675
      %v1810 = vadd.f32 %v1788, %v1676
      %v1811 = vadd.f32 %v1788, %v1677
      %v1812 = vadd.f32 %v1788, %v1678
      %v1813 = vadd.f32 %v1788, %v1679
      %v1814 = vadd.f32 %v1788, %v1680
      %v1815 = vadd.f32 %v1788, %v1681
      %v1816 = vadd.f32 %v1788, %v1682
      %v1817 = vadd.f32 %v1788, %v1683
      %v1818 = vadd.f32 %v1788, %v1684
      %v1819 = vadd.f32 %v1788, %v1685
      %v1820 = vadd.f32 %v1788, %v1686
      %v1821 = vadd.f32 %v1788, %v1687
      %v1822 = vadd.f32 %v1788, %v1688
      %v1823 = vadd.f32 %v1788, %v1689
      %v1824 = vadd.f32 %v1788, %v1690
      %v1825 = vadd.f32 %v1788, %v1691
      %v1826 = vadd.f32 %v1788, %v1692
      %v1827 = vadd.f32 %v1788, %v1693
      %v1828 = vadd.f32 %v1788, %v1694
      %v1829 = vadd.f32 %v1788, %v1695
      %v1830 = vadd.f32 %v1788, %v1696
      %v1831 = vadd.f32 %v1788, %v1697
      %v1832 = vadd.f32 %v1788, %v1698
      %v1833 = vadd.f32 %v1788, %v1699
      %v1834 = vadd.f32 %v1788, %v1700
      %v1835 = vadd.f32 %v1788, %v1701
      %v1836 = vadd.f32 %v1788, %v1702
      %v1837 = vadd.f32 %v1788, %v1703
      %v1838 = vadd.f32 %v1788, %v1704
      %v1839 = vadd.f32 %v1788, %v1705
      %v1840 = vadd.f32 %v1788, %v1706
      %v1841 = vadd.f32 %v1788, %v1707
      %v1842 = vadd.f32 %v1788, %v1708
      %v1843 = vadd.f32 %v1788, %v1709
      %v1844 = vadd.f32 %v1788, %v1710
      %v1845 = vadd.f32 %v1788, %v1711
      %v1846 = vadd.f32 %v1788, %v1712
      %v1847 = vadd.f32 %v1788, %v1713
      %v1848 = vadd.f32 %v1788, %v1714
      %v1849 = vadd.f32 %v1788, %v1715
      %v1850 = vadd.f32 %v1788, %v1716
      %v1851 = vadd.f32 %v1788, %v1717
      %v1852 = vadd.f32 %v1788, %v1718
      %v1853 = vadd.f32 %v1788, %v1719
      %v1854 = vadd.f32 %v1788, %v1720
      %v1855 = vadd.f32 %v1788, %v1721
      %v1856 = vadd.f32 %v1788, %v1722
      %v1857 = vadd.f32 %v1788, %v1723
      %v1858 = vadd.f32 %v1788, %v1724
      %v1859 = vadd.f32 %v1788, %v1725
      %v1860 = vadd.f32 %v1788, %v1726
      %v1861 = vadd.f32 %v1788, %v1727
      %v1862 = vadd.f32 %v1788, %v1728
      %v1863 = vadd.f32 %v1788, %v1729
      %v1864 = vadd.f32 %v1788, %v1730
      %v1865 = vadd.f32 %v1788, %v1731
      %v1866 = vadd.f32 %v1788, %v1732
      %v1867 = vadd.f32 %v1788, %v1733
      %v1868 = vadd.f32 %v1788, %v1734
      %v1869 = vadd.f32 %v1788, %v1735
      %v1870 = vadd.f32 %v1788, %v1736
      %v1871 = vadd.f32 %v1788, %v1737
      %v1872 = vadd.f32 %v1788, %v1738
      %v1873 = vadd.f32 %v1788, %v1739
      %v1874 = vadd.f32 %v1788, %v1740
      %v1875 = vadd.f32 %v1788, %v1741
      %v1876 = vadd.f32 %v1788, %v1742
      %v1877 = vadd.f32 %v1788, %v1743
      %v1878 = vadd.f32 %v1788, %v1744
      %v1879 = vadd.f32 %v1788, %v1745
      %v1880 = vadd.f32 %v1788, %v1746
      %v1881 = vadd.f32 %v1788, %v1747
      %v1882 = vadd.f32 %v1788, %v1748
      %v1883 = vadd.f32 %v1788, %v1749
      %v1884 = vadd.f32 %v1788, %v1750
      %v1885 = vadd.f32 %v1788, %v1751
      %v1886 = vadd.f32 %v1788, %v1752
      %v1887 = vadd.f32 %v1788, %v1753
      %v1888 = vadd.f32 %v1788, %v1754
      %v1889 = vadd.f32 %v1788, %v1755
      %v1890 = vadd.f32 %v1788, %v1756
      %v1891 = vadd.f32 %v1788, %v1757
      %v1892 = vadd.f32 %v1788, %v1758
      %v1893 = vadd.f32 %v1788, %v1759
      %v1894 = vadd.f32 %v1788, %v1760
      %v1895 = vadd.f32 %v1788, %v1761
      %v1896 = vadd.f32 %v1788, %v1762
      %v1897 = vadd.f32 %v1788, %v1763
      %v1898 = vadd.f32 %v1788, %v1764
      %v1899 = vadd.f32 %v1788, %v1765
      %v1900 = vadd.f32 %v1788, %v1766
      %v1901 = vadd.f32 %v1788, %v1767
      %v1902 = vadd.f32 %v1788, %v1768
      %v1903 = vadd.f32 %v1788, %v1769
      %v1904 = vadd.f32 %v1788, %v1770
      %v1905 = vadd.f32 %v1788, %v1771
      %v1906 = vadd.f32 %v1788, %v1772
      %v1907 = vadd.f32 %v1788, %v1773
      %v1908 = vadd.f32 %v1788, %v1774
      %v1909 = vadd.f32 %v1788, %v1775
      %v1910 = vadd.f32 %v1788, %v1776
      %v1911 = vadd.f32 %v1788, %v1777
      %v1912 = vadd.f32 %v1788, %v1778
      %v1913 = vadd.f32 %v1788, %v1779
      %v1914 = vadd.f32 %v1788, %v1780
      %v1915 = vadd.f32 %v1788, %v1781
      %v1916 = vadd.f32 %v1788, %v1782
      %v1917 = vadd.f32 %v1788, %v1783
      %1918 = vset.pattern.permute.xlu0 1
      %1919 = vperm.xlu0 %1918, %v882
      %v1920 = vpop.permute.xlu0 %1919
      %1922 = vset.pattern.permute.xlu0 1
      %1923 = vperm.xlu0 %1922, %v883
      %v1924 = vpop.permute.xlu0 %1923
      %1926 = vset.pattern.permute.xlu0 1
      %1927 = vperm.xlu0 %1926, %v884
      %v1928 = vpop.permute.xlu0 %1927
      %1930 = vset.pattern.permute.xlu0 1
      %1931 = vperm.xlu0 %1930, %v885
      %v1932 = vpop.permute.xlu0 %1931
      %1934 = vset.pattern.permute.xlu0 1
      %1935 = vperm.xlu0 %1934, %v886
      %v1936 = vpop.permute.xlu0 %1935
      %1938 = vset.pattern.permute.xlu0 1
      %1939 = vperm.xlu0 %1938, %v887
      %v1940 = vpop.permute.xlu0 %1939
      %1942 = vset.pattern.permute.xlu0 1
      %1943 = vperm.xlu0 %1942, %v888
      %v1944 = vpop.permute.xlu0 %1943
      %1946 = vset.pattern.permute.xlu0 1
      %1947 = vperm.xlu0 %1946, %v889
      %v1948 = vpop.permute.xlu0 %1947
      %1950 = vset.pattern.permute.xlu0 1
      %1951 = vperm.xlu0 %1950, %v890
      %v1952 = vpop.permute.xlu0 %1951
      %1954 = vset.pattern.permute.xlu0 1
      %1955 = vperm.xlu0 %1954, %v891
      %v1956 = vpop.permute.xlu0 %1955
      %1958 = vset.pattern.permute.xlu0 1
      %1959 = vperm.xlu0 %1958, %v892
      %v1960 = vpop.permute.xlu0 %1959
      %1962 = vset.pattern.permute.xlu0 1
      %1963 = vperm.xlu0 %1962, %v893
      %v1964 = vpop.permute.xlu0 %1963
      %1966 = vset.pattern.permute.xlu0 1
      %1967 = vperm.xlu0 %1966, %v894
      %v1968 = vpop.permute.xlu0 %1967
      %1970 = vset.pattern.permute.xlu0 1
      %1971 = vperm.xlu0 %1970, %v895
      %v1972 = vpop.permute.xlu0 %1971
      %1974 = vset.pattern.permute.xlu0 1
      %1975 = vperm.xlu0 %1974, %v896
      %v1976 = vpop.permute.xlu0 %1975
      %1978 = vset.pattern.permute.xlu0 1
      %1979 = vperm.xlu0 %1978, %v897
      %v1980 = vpop.permute.xlu0 %1979
      %1982 = vset.pattern.permute.xlu0 1
      %1983 = vperm.xlu0 %1982, %v898
      %v1984 = vpop.permute.xlu0 %1983
      %1986 = vset.pattern.permute.xlu0 1
      %1987 = vperm.xlu0 %1986, %v899
      %v1988 = vpop.permute.xlu0 %1987
      %1990 = vset.pattern.permute.xlu0 1
      %1991 = vperm.xlu0 %1990, %v900
      %v1992 = vpop.permute.xlu0 %1991
      %1994 = vset.pattern.permute.xlu0 1
      %1995 = vperm.xlu0 %1994, %v901
      %v1996 = vpop.permute.xlu0 %1995
      %1998 = vset.pattern.permute.xlu0 1
      %1999 = vperm.xlu0 %1998, %v902
      %v2000 = vpop.permute.xlu0 %1999
      %2002 = vset.pattern.permute.xlu0 1
      %2003 = vperm.xlu0 %2002, %v903
      %v2004 = vpop.permute.xlu0 %2003
      %2006 = vset.pattern.permute.xlu0 1
      %2007 = vperm.xlu0 %2006, %v904
      %v2008 = vpop.permute.xlu0 %2007
      %2010 = vset.pattern.permute.xlu0 1
      %2011 = vperm.xlu0 %2010, %v905
      %v2012 = vpop.permute.xlu0 %2011
      %2014 = vset.pattern.permute.xlu0 1
      %2015 = vperm.xlu0 %2014, %v906
      %v2016 = vpop.permute.xlu0 %2015
      %2018 = vset.pattern.permute.xlu0 1
      %2019 = vperm.xlu0 %2018, %v907
      %v2020 = vpop.permute.xlu0 %2019
      %2022 = vset.pattern.permute.xlu0 1
      %2023 = vperm.xlu0 %2022, %v908
      %v2024 = vpop.permute.xlu0 %2023
      %2026 = vset.pattern.permute.xlu0 1
      %2027 = vperm.xlu0 %2026, %v909
      %v2028 = vpop.permute.xlu0 %2027
      %2030 = vset.pattern.permute.xlu0 1
      %2031 = vperm.xlu0 %2030, %v910
      %v2032 = vpop.permute.xlu0 %2031
      %2034 = vset.pattern.permute.xlu0 1
      %2035 = vperm.xlu0 %2034, %v911
      %v2036 = vpop.permute.xlu0 %2035
      %2038 = vset.pattern.permute.xlu0 1
      %2039 = vperm.xlu0 %2038, %v912
      %v2040 = vpop.permute.xlu0 %2039
      %2042 = vset.pattern.permute.xlu0 1
      %2043 = vperm.xlu0 %2042, %v913
      %v2044 = vpop.permute.xlu0 %2043
      %2046 = vset.pattern.permute.xlu0 1
      %2047 = vperm.xlu0 %2046, %v914
      %v2048 = vpop.permute.xlu0 %2047
      %2050 = vset.pattern.permute.xlu0 1
      %2051 = vperm.xlu0 %2050, %v915
      %v2052 = vpop.permute.xlu0 %2051
      %2054 = vset.pattern.permute.xlu0 1
      %2055 = vperm.xlu0 %2054, %v916
      %v2056 = vpop.permute.xlu0 %2055
      %2058 = vset.pattern.permute.xlu0 1
      %2059 = vperm.xlu0 %2058, %v917
      %v2060 = vpop.permute.xlu0 %2059
      %2062 = vset.pattern.permute.xlu0 1
      %2063 = vperm.xlu0 %2062, %v918
      %v2064 = vpop.permute.xlu0 %2063
      %2066 = vset.pattern.permute.xlu0 1
      %2067 = vperm.xlu0 %2066, %v919
      %v2068 = vpop.permute.xlu0 %2067
      %2070 = vset.pattern.permute.xlu0 1
      %2071 = vperm.xlu0 %2070, %v920
      %v2072 = vpop.permute.xlu0 %2071
      %2074 = vset.pattern.permute.xlu0 1
      %2075 = vperm.xlu0 %2074, %v921
      %v2076 = vpop.permute.xlu0 %2075
      %2078 = vset.pattern.permute.xlu0 1
      %2079 = vperm.xlu0 %2078, %v922
      %v2080 = vpop.permute.xlu0 %2079
      %2082 = vset.pattern.permute.xlu0 1
      %2083 = vperm.xlu0 %2082, %v923
      %v2084 = vpop.permute.xlu0 %2083
      %2086 = vset.pattern.permute.xlu0 1
      %2087 = vperm.xlu0 %2086, %v924
      %v2088 = vpop.permute.xlu0 %2087
      %2090 = vset.pattern.permute.xlu0 1
      %2091 = vperm.xlu0 %2090, %v925
      %v2092 = vpop.permute.xlu0 %2091
      %2094 = vset.pattern.permute.xlu0 1
      %2095 = vperm.xlu0 %2094, %v926
      %v2096 = vpop.permute.xlu0 %2095
      %2098 = vset.pattern.permute.xlu0 1
      %2099 = vperm.xlu0 %2098, %v927
      %v2100 = vpop.permute.xlu0 %2099
      %2102 = vset.pattern.permute.xlu0 1
      %2103 = vperm.xlu0 %2102, %v928
      %v2104 = vpop.permute.xlu0 %2103
      %2106 = vset.pattern.permute.xlu0 1
      %2107 = vperm.xlu0 %2106, %v929
      %v2108 = vpop.permute.xlu0 %2107
      %2110 = vset.pattern.permute.xlu0 1
      %2111 = vperm.xlu0 %2110, %v930
      %v2112 = vpop.permute.xlu0 %2111
      %2114 = vset.pattern.permute.xlu0 1
      %2115 = vperm.xlu0 %2114, %v931
      %v2116 = vpop.permute.xlu0 %2115
      %2118 = vset.pattern.permute.xlu0 1
      %2119 = vperm.xlu0 %2118, %v932
      %v2120 = vpop.permute.xlu0 %2119
      %2122 = vset.pattern.permute.xlu0 1
      %2123 = vperm.xlu0 %2122, %v933
      %v2124 = vpop.permute.xlu0 %2123
      %2126 = vset.pattern.permute.xlu0 1
      %2127 = vperm.xlu0 %2126, %v934
      %v2128 = vpop.permute.xlu0 %2127
      %2130 = vset.pattern.permute.xlu0 1
      %2131 = vperm.xlu0 %2130, %v935
      %v2132 = vpop.permute.xlu0 %2131
      %2134 = vset.pattern.permute.xlu0 1
      %2135 = vperm.xlu0 %2134, %v936
      %v2136 = vpop.permute.xlu0 %2135
      %2138 = vset.pattern.permute.xlu0 1
      %2139 = vperm.xlu0 %2138, %v937
      %v2140 = vpop.permute.xlu0 %2139
      %2142 = vset.pattern.permute.xlu0 1
      %2143 = vperm.xlu0 %2142, %v938
      %v2144 = vpop.permute.xlu0 %2143
      %2146 = vset.pattern.permute.xlu0 1
      %2147 = vperm.xlu0 %2146, %v939
      %v2148 = vpop.permute.xlu0 %2147
      %2150 = vset.pattern.permute.xlu0 1
      %2151 = vperm.xlu0 %2150, %v940
      %v2152 = vpop.permute.xlu0 %2151
      %2154 = vset.pattern.permute.xlu0 1
      %2155 = vperm.xlu0 %2154, %v941
      %v2156 = vpop.permute.xlu0 %2155
      %2158 = vset.pattern.permute.xlu0 1
      %2159 = vperm.xlu0 %2158, %v942
      %v2160 = vpop.permute.xlu0 %2159
      %2162 = vset.pattern.permute.xlu0 1
      %2163 = vperm.xlu0 %2162, %v943
      %v2164 = vpop.permute.xlu0 %2163
      %2166 = vset.pattern.permute.xlu0 1
      %2167 = vperm.xlu0 %2166, %v944
      %v2168 = vpop.permute.xlu0 %2167
      %2170 = vset.pattern.permute.xlu0 1
      %2171 = vperm.xlu0 %2170, %v945
      %v2172 = vpop.permute.xlu0 %2171
      %2174 = vset.pattern.permute.xlu0 1
      %2175 = vperm.xlu0 %2174, %v946
      %v2176 = vpop.permute.xlu0 %2175
      %2178 = vset.pattern.permute.xlu0 1
      %2179 = vperm.xlu0 %2178, %v947
      %v2180 = vpop.permute.xlu0 %2179
      %2182 = vset.pattern.permute.xlu0 1
      %2183 = vperm.xlu0 %2182, %v948
      %v2184 = vpop.permute.xlu0 %2183
      %2186 = vset.pattern.permute.xlu0 1
      %2187 = vperm.xlu0 %2186, %v949
      %v2188 = vpop.permute.xlu0 %2187
      %2190 = vset.pattern.permute.xlu0 1
      %2191 = vperm.xlu0 %2190, %v950
      %v2192 = vpop.permute.xlu0 %2191
      %2194 = vset.pattern.permute.xlu0 1
      %2195 = vperm.xlu0 %2194, %v951
      %v2196 = vpop.permute.xlu0 %2195
      %2198 = vset.pattern.permute.xlu0 1
      %2199 = vperm.xlu0 %2198, %v952
      %v2200 = vpop.permute.xlu0 %2199
      %2202 = vset.pattern.permute.xlu0 1
      %2203 = vperm.xlu0 %2202, %v953
      %v2204 = vpop.permute.xlu0 %2203
      %2206 = vset.pattern.permute.xlu0 1
      %2207 = vperm.xlu0 %2206, %v954
      %v2208 = vpop.permute.xlu0 %2207
      %2210 = vset.pattern.permute.xlu0 1
      %2211 = vperm.xlu0 %2210, %v955
      %v2212 = vpop.permute.xlu0 %2211
      %2214 = vset.pattern.permute.xlu0 1
      %2215 = vperm.xlu0 %2214, %v956
      %v2216 = vpop.permute.xlu0 %2215
      %2218 = vset.pattern.permute.xlu0 1
      %2219 = vperm.xlu0 %2218, %v957
      %v2220 = vpop.permute.xlu0 %2219
      %2222 = vset.pattern.permute.xlu0 1
      %2223 = vperm.xlu0 %2222, %v958
      %v2224 = vpop.permute.xlu0 %2223
      %2226 = vset.pattern.permute.xlu0 1
      %2227 = vperm.xlu0 %2226, %v959
      %v2228 = vpop.permute.xlu0 %2227
      %2230 = vset.pattern.permute.xlu0 1
      %2231 = vperm.xlu0 %2230, %v960
      %v2232 = vpop.permute.xlu0 %2231
      %2234 = vset.pattern.permute.xlu0 1
      %2235 = vperm.xlu0 %2234, %v961
      %v2236 = vpop.permute.xlu0 %2235
      %2238 = vset.pattern.permute.xlu0 1
      %2239 = vperm.xlu0 %2238, %v962
      %v2240 = vpop.permute.xlu0 %2239
      %2242 = vset.pattern.permute.xlu0 1
      %2243 = vperm.xlu0 %2242, %v963
      %v2244 = vpop.permute.xlu0 %2243
      %2246 = vset.pattern.permute.xlu0 1
      %2247 = vperm.xlu0 %2246, %v964
      %v2248 = vpop.permute.xlu0 %2247
      %2250 = vset.pattern.permute.xlu0 1
      %2251 = vperm.xlu0 %2250, %v965
      %v2252 = vpop.permute.xlu0 %2251
      %2254 = vset.pattern.permute.xlu0 1
      %2255 = vperm.xlu0 %2254, %v966
      %v2256 = vpop.permute.xlu0 %2255
      %2258 = vset.pattern.permute.xlu0 1
      %2259 = vperm.xlu0 %2258, %v967
      %v2260 = vpop.permute.xlu0 %2259
      %2262 = vset.pattern.permute.xlu0 1
      %2263 = vperm.xlu0 %2262, %v968
      %v2264 = vpop.permute.xlu0 %2263
      %2266 = vset.pattern.permute.xlu0 1
      %2267 = vperm.xlu0 %2266, %v969
      %v2268 = vpop.permute.xlu0 %2267
      %2270 = vset.pattern.permute.xlu0 1
      %2271 = vperm.xlu0 %2270, %v970
      %v2272 = vpop.permute.xlu0 %2271
      %2274 = vset.pattern.permute.xlu0 1
      %2275 = vperm.xlu0 %2274, %v971
      %v2276 = vpop.permute.xlu0 %2275
      %2278 = vset.pattern.permute.xlu0 1
      %2279 = vperm.xlu0 %2278, %v972
      %v2280 = vpop.permute.xlu0 %2279
      %2282 = vset.pattern.permute.xlu0 1
      %2283 = vperm.xlu0 %2282, %v973
      %v2284 = vpop.permute.xlu0 %2283
      %2286 = vset.pattern.permute.xlu0 1
      %2287 = vperm.xlu0 %2286, %v974
      %v2288 = vpop.permute.xlu0 %2287
      %2290 = vset.pattern.permute.xlu0 1
      %2291 = vperm.xlu0 %2290, %v975
      %v2292 = vpop.permute.xlu0 %2291
      %2294 = vset.pattern.permute.xlu0 1
      %2295 = vperm.xlu0 %2294, %v976
      %v2296 = vpop.permute.xlu0 %2295
      %2298 = vset.pattern.permute.xlu0 1
      %2299 = vperm.xlu0 %2298, %v977
      %v2300 = vpop.permute.xlu0 %2299
      %2302 = vset.pattern.permute.xlu0 1
      %2303 = vperm.xlu0 %2302, %v978
      %v2304 = vpop.permute.xlu0 %2303
      %2306 = vset.pattern.permute.xlu0 1
      %2307 = vperm.xlu0 %2306, %v979
      %v2308 = vpop.permute.xlu0 %2307
      %2310 = vset.pattern.permute.xlu0 1
      %2311 = vperm.xlu0 %2310, %v980
      %v2312 = vpop.permute.xlu0 %2311
      %2314 = vset.pattern.permute.xlu0 1
      %2315 = vperm.xlu0 %2314, %v981
      %v2316 = vpop.permute.xlu0 %2315
      %2318 = vset.pattern.permute.xlu0 1
      %2319 = vperm.xlu0 %2318, %v982
      %v2320 = vpop.permute.xlu0 %2319
      %2322 = vset.pattern.permute.xlu0 1
      %2323 = vperm.xlu0 %2322, %v983
      %v2324 = vpop.permute.xlu0 %2323
      %2326 = vset.pattern.permute.xlu0 1
      %2327 = vperm.xlu0 %2326, %v984
      %v2328 = vpop.permute.xlu0 %2327
      %2330 = vset.pattern.permute.xlu0 1
      %2331 = vperm.xlu0 %2330, %v985
      %v2332 = vpop.permute.xlu0 %2331
      %2334 = vset.pattern.permute.xlu0 1
      %2335 = vperm.xlu0 %2334, %v986
      %v2336 = vpop.permute.xlu0 %2335
      %2338 = vset.pattern.permute.xlu0 1
      %2339 = vperm.xlu0 %2338, %v987
      %v2340 = vpop.permute.xlu0 %2339
      %2342 = vset.pattern.permute.xlu0 1
      %2343 = vperm.xlu0 %2342, %v988
      %v2344 = vpop.permute.xlu0 %2343
      %2346 = vset.pattern.permute.xlu0 1
      %2347 = vperm.xlu0 %2346, %v989
      %v2348 = vpop.permute.xlu0 %2347
      %2350 = vset.pattern.permute.xlu0 1
      %2351 = vperm.xlu0 %2350, %v990
      %v2352 = vpop.permute.xlu0 %2351
      %2354 = vset.pattern.permute.xlu0 1
      %2355 = vperm.xlu0 %2354, %v991
      %v2356 = vpop.permute.xlu0 %2355
      %2358 = vset.pattern.permute.xlu0 1
      %2359 = vperm.xlu0 %2358, %v992
      %v2360 = vpop.permute.xlu0 %2359
      %2362 = vset.pattern.permute.xlu0 1
      %2363 = vperm.xlu0 %2362, %v993
      %v2364 = vpop.permute.xlu0 %2363
      %2366 = vset.pattern.permute.xlu0 1
      %2367 = vperm.xlu0 %2366, %v994
      %v2368 = vpop.permute.xlu0 %2367
      %2370 = vset.pattern.permute.xlu0 1
      %2371 = vperm.xlu0 %2370, %v995
      %v2372 = vpop.permute.xlu0 %2371
      %2374 = vset.pattern.permute.xlu0 1
      %2375 = vperm.xlu0 %2374, %v996
      %v2376 = vpop.permute.xlu0 %2375
      %2378 = vset.pattern.permute.xlu0 1
      %2379 = vperm.xlu0 %2378, %v997
      %v2380 = vpop.permute.xlu0 %2379
      %2382 = vset.pattern.permute.xlu0 1
      %2383 = vperm.xlu0 %2382, %v998
      %v2384 = vpop.permute.xlu0 %2383
      %2386 = vset.pattern.permute.xlu0 1
      %2387 = vperm.xlu0 %2386, %v999
      %v2388 = vpop.permute.xlu0 %2387
      %2390 = vset.pattern.permute.xlu0 1
      %2391 = vperm.xlu0 %2390, %v1000
      %v2392 = vpop.permute.xlu0 %2391
      %2394 = vset.pattern.permute.xlu0 1
      %2395 = vperm.xlu0 %2394, %v1001
      %v2396 = vpop.permute.xlu0 %2395
      %2398 = vset.pattern.permute.xlu0 1
      %2399 = vperm.xlu0 %2398, %v1002
      %v2400 = vpop.permute.xlu0 %2399
      %2402 = vset.pattern.permute.xlu0 1
      %2403 = vperm.xlu0 %2402, %v1003
      %v2404 = vpop.permute.xlu0 %2403
      %2406 = vset.pattern.permute.xlu0 1
      %2407 = vperm.xlu0 %2406, %v1004
      %v2408 = vpop.permute.xlu0 %2407
      %2410 = vset.pattern.permute.xlu0 1
      %2411 = vperm.xlu0 %2410, %v1005
      %v2412 = vpop.permute.xlu0 %2411
      %2414 = vset.pattern.permute.xlu0 1
      %2415 = vperm.xlu0 %2414, %v1006
      %v2416 = vpop.permute.xlu0 %2415
      %2418 = vset.pattern.permute.xlu0 1
      %2419 = vperm.xlu0 %2418, %v1007
      %v2420 = vpop.permute.xlu0 %2419
      %2422 = vset.pattern.permute.xlu0 1
      %2423 = vperm.xlu0 %2422, %v1008
      %v2424 = vpop.permute.xlu0 %2423
      %2426 = vset.pattern.permute.xlu0 1
      %2427 = vperm.xlu0 %2426, %v1009
      %v2428 = vpop.permute.xlu0 %2427
      %v2430 = vlaneseq
      %v2431 = vshrl.u32 %v2430, 7
      %v2432 = vsub.s32 1, %v2431
      %v2433 = vrot.slane %v1010, %v2432
      %v2434 = vmul.f32 %v1920, %v2433
      %v2435 = vmul.f32 %v1924, %v2433
      %v2436 = vmul.f32 %v1928, %v2433
      %v2437 = vmul.f32 %v1932, %v2433
      %v2438 = vmul.f32 %v1936, %v2433
      %v2439 = vmul.f32 %v1940, %v2433
      %v2440 = vmul.f32 %v1944, %v2433
      %v2441 = vmul.f32 %v1948, %v2433
      %v2442 = vmul.f32 %v1952, %v2433
      %v2443 = vmul.f32 %v1956, %v2433
      %v2444 = vmul.f32 %v1960, %v2433
      %v2445 = vmul.f32 %v1964, %v2433
      %v2446 = vmul.f32 %v1968, %v2433
      %v2447 = vmul.f32 %v1972, %v2433
      %v2448 = vmul.f32 %v1976, %v2433
      %v2449 = vmul.f32 %v1980, %v2433
      %v2450 = vmul.f32 %v1984, %v2433
      %v2451 = vmul.f32 %v1988, %v2433
      %v2452 = vmul.f32 %v1992, %v2433
      %v2453 = vmul.f32 %v1996, %v2433
      %v2454 = vmul.f32 %v2000, %v2433
      %v2455 = vmul.f32 %v2004, %v2433
      %v2456 = vmul.f32 %v2008, %v2433
      %v2457 = vmul.f32 %v2012, %v2433
      %v2458 = vmul.f32 %v2016, %v2433
      %v2459 = vmul.f32 %v2020, %v2433
      %v2460 = vmul.f32 %v2024, %v2433
      %v2461 = vmul.f32 %v2028, %v2433
      %v2462 = vmul.f32 %v2032, %v2433
      %v2463 = vmul.f32 %v2036, %v2433
      %v2464 = vmul.f32 %v2040, %v2433
      %v2465 = vmul.f32 %v2044, %v2433
      %v2466 = vmul.f32 %v2048, %v2433
      %v2467 = vmul.f32 %v2052, %v2433
      %v2468 = vmul.f32 %v2056, %v2433
      %v2469 = vmul.f32 %v2060, %v2433
      %v2470 = vmul.f32 %v2064, %v2433
      %v2471 = vmul.f32 %v2068, %v2433
      %v2472 = vmul.f32 %v2072, %v2433
      %v2473 = vmul.f32 %v2076, %v2433
      %v2474 = vmul.f32 %v2080, %v2433
      %v2475 = vmul.f32 %v2084, %v2433
      %v2476 = vmul.f32 %v2088, %v2433
      %v2477 = vmul.f32 %v2092, %v2433
      %v2478 = vmul.f32 %v2096, %v2433
      %v2479 = vmul.f32 %v2100, %v2433
      %v2480 = vmul.f32 %v2104, %v2433
      %v2481 = vmul.f32 %v2108, %v2433
      %v2482 = vmul.f32 %v2112, %v2433
      %v2483 = vmul.f32 %v2116, %v2433
      %v2484 = vmul.f32 %v2120, %v2433
      %v2485 = vmul.f32 %v2124, %v2433
      %v2486 = vmul.f32 %v2128, %v2433
      %v2487 = vmul.f32 %v2132, %v2433
      %v2488 = vmul.f32 %v2136, %v2433
      %v2489 = vmul.f32 %v2140, %v2433
      %v2490 = vmul.f32 %v2144, %v2433
      %v2491 = vmul.f32 %v2148, %v2433
      %v2492 = vmul.f32 %v2152, %v2433
      %v2493 = vmul.f32 %v2156, %v2433
      %v2494 = vmul.f32 %v2160, %v2433
      %v2495 = vmul.f32 %v2164, %v2433
      %v2496 = vmul.f32 %v2168, %v2433
      %v2497 = vmul.f32 %v2172, %v2433
      %v2498 = vmul.f32 %v2176, %v2433
      %v2499 = vmul.f32 %v2180, %v2433
      %v2500 = vmul.f32 %v2184, %v2433
      %v2501 = vmul.f32 %v2188, %v2433
      %v2502 = vmul.f32 %v2192, %v2433
      %v2503 = vmul.f32 %v2196, %v2433
      %v2504 = vmul.f32 %v2200, %v2433
      %v2505 = vmul.f32 %v2204, %v2433
      %v2506 = vmul.f32 %v2208, %v2433
      %v2507 = vmul.f32 %v2212, %v2433
      %v2508 = vmul.f32 %v2216, %v2433
      %v2509 = vmul.f32 %v2220, %v2433
      %v2510 = vmul.f32 %v2224, %v2433
      %v2511 = vmul.f32 %v2228, %v2433
      %v2512 = vmul.f32 %v2232, %v2433
      %v2513 = vmul.f32 %v2236, %v2433
      %v2514 = vmul.f32 %v2240, %v2433
      %v2515 = vmul.f32 %v2244, %v2433
      %v2516 = vmul.f32 %v2248, %v2433
      %v2517 = vmul.f32 %v2252, %v2433
      %v2518 = vmul.f32 %v2256, %v2433
      %v2519 = vmul.f32 %v2260, %v2433
      %v2520 = vmul.f32 %v2264, %v2433
      %v2521 = vmul.f32 %v2268, %v2433
      %v2522 = vmul.f32 %v2272, %v2433
      %v2523 = vmul.f32 %v2276, %v2433
      %v2524 = vmul.f32 %v2280, %v2433
      %v2525 = vmul.f32 %v2284, %v2433
      %v2526 = vmul.f32 %v2288, %v2433
      %v2527 = vmul.f32 %v2292, %v2433
      %v2528 = vmul.f32 %v2296, %v2433
      %v2529 = vmul.f32 %v2300, %v2433
      %v2530 = vmul.f32 %v2304, %v2433
      %v2531 = vmul.f32 %v2308, %v2433
      %v2532 = vmul.f32 %v2312, %v2433
      %v2533 = vmul.f32 %v2316, %v2433
      %v2534 = vmul.f32 %v2320, %v2433
      %v2535 = vmul.f32 %v2324, %v2433
      %v2536 = vmul.f32 %v2328, %v2433
      %v2537 = vmul.f32 %v2332, %v2433
      %v2538 = vmul.f32 %v2336, %v2433
      %v2539 = vmul.f32 %v2340, %v2433
      %v2540 = vmul.f32 %v2344, %v2433
      %v2541 = vmul.f32 %v2348, %v2433
      %v2542 = vmul.f32 %v2352, %v2433
      %v2543 = vmul.f32 %v2356, %v2433
      %v2544 = vmul.f32 %v2360, %v2433
      %v2545 = vmul.f32 %v2364, %v2433
      %v2546 = vmul.f32 %v2368, %v2433
      %v2547 = vmul.f32 %v2372, %v2433
      %v2548 = vmul.f32 %v2376, %v2433
      %v2549 = vmul.f32 %v2380, %v2433
      %v2550 = vmul.f32 %v2384, %v2433
      %v2551 = vmul.f32 %v2388, %v2433
      %v2552 = vmul.f32 %v2392, %v2433
      %v2553 = vmul.f32 %v2396, %v2433
      %v2554 = vmul.f32 %v2400, %v2433
      %v2555 = vmul.f32 %v2404, %v2433
      %v2556 = vmul.f32 %v2408, %v2433
      %v2557 = vmul.f32 %v2412, %v2433
      %v2558 = vmul.f32 %v2416, %v2433
      %v2559 = vmul.f32 %v2420, %v2433
      %v2560 = vmul.f32 %v2424, %v2433
      %v2561 = vmul.f32 %v2428, %v2433
      %v2562 = vadd.f32 %v1790, %v2434
      %v2563 = vadd.f32 %v1791, %v2435
      %v2564 = vadd.f32 %v1792, %v2436
      %v2565 = vadd.f32 %v1793, %v2437
      %v2566 = vadd.f32 %v1794, %v2438
      %v2567 = vadd.f32 %v1795, %v2439
      %v2568 = vadd.f32 %v1796, %v2440
      %v2569 = vadd.f32 %v1797, %v2441
      %v2570 = vadd.f32 %v1798, %v2442
      %v2571 = vadd.f32 %v1799, %v2443
      %v2572 = vadd.f32 %v1800, %v2444
      %v2573 = vadd.f32 %v1801, %v2445
      %v2574 = vadd.f32 %v1802, %v2446
      %v2575 = vadd.f32 %v1803, %v2447
      %v2576 = vadd.f32 %v1804, %v2448
      %v2577 = vadd.f32 %v1805, %v2449
      %v2578 = vadd.f32 %v1806, %v2450
      %v2579 = vadd.f32 %v1807, %v2451
      %v2580 = vadd.f32 %v1808, %v2452
      %v2581 = vadd.f32 %v1809, %v2453
      %v2582 = vadd.f32 %v1810, %v2454
      %v2583 = vadd.f32 %v1811, %v2455
      %v2584 = vadd.f32 %v1812, %v2456
      %v2585 = vadd.f32 %v1813, %v2457
      %v2586 = vadd.f32 %v1814, %v2458
      %v2587 = vadd.f32 %v1815, %v2459
      %v2588 = vadd.f32 %v1816, %v2460
      %v2589 = vadd.f32 %v1817, %v2461
      %v2590 = vadd.f32 %v1818, %v2462
      %v2591 = vadd.f32 %v1819, %v2463
      %v2592 = vadd.f32 %v1820, %v2464
      %v2593 = vadd.f32 %v1821, %v2465
      %v2594 = vadd.f32 %v1822, %v2466
      %v2595 = vadd.f32 %v1823, %v2467
      %v2596 = vadd.f32 %v1824, %v2468
      %v2597 = vadd.f32 %v1825, %v2469
      %v2598 = vadd.f32 %v1826, %v2470
      %v2599 = vadd.f32 %v1827, %v2471
      %v2600 = vadd.f32 %v1828, %v2472
      %v2601 = vadd.f32 %v1829, %v2473
      %v2602 = vadd.f32 %v1830, %v2474
      %v2603 = vadd.f32 %v1831, %v2475
      %v2604 = vadd.f32 %v1832, %v2476
      %v2605 = vadd.f32 %v1833, %v2477
      %v2606 = vadd.f32 %v1834, %v2478
      %v2607 = vadd.f32 %v1835, %v2479
      %v2608 = vadd.f32 %v1836, %v2480
      %v2609 = vadd.f32 %v1837, %v2481
      %v2610 = vadd.f32 %v1838, %v2482
      %v2611 = vadd.f32 %v1839, %v2483
      %v2612 = vadd.f32 %v1840, %v2484
      %v2613 = vadd.f32 %v1841, %v2485
      %v2614 = vadd.f32 %v1842, %v2486
      %v2615 = vadd.f32 %v1843, %v2487
      %v2616 = vadd.f32 %v1844, %v2488
      %v2617 = vadd.f32 %v1845, %v2489
      %v2618 = vadd.f32 %v1846, %v2490
      %v2619 = vadd.f32 %v1847, %v2491
      %v2620 = vadd.f32 %v1848, %v2492
      %v2621 = vadd.f32 %v1849, %v2493
      %v2622 = vadd.f32 %v1850, %v2494
      %v2623 = vadd.f32 %v1851, %v2495
      %v2624 = vadd.f32 %v1852, %v2496
      %v2625 = vadd.f32 %v1853, %v2497
      %v2626 = vadd.f32 %v1854, %v2498
      %v2627 = vadd.f32 %v1855, %v2499
      %v2628 = vadd.f32 %v1856, %v2500
      %v2629 = vadd.f32 %v1857, %v2501
      %v2630 = vadd.f32 %v1858, %v2502
      %v2631 = vadd.f32 %v1859, %v2503
      %v2632 = vadd.f32 %v1860, %v2504
      %v2633 = vadd.f32 %v1861, %v2505
      %v2634 = vadd.f32 %v1862, %v2506
      %v2635 = vadd.f32 %v1863, %v2507
      %v2636 = vadd.f32 %v1864, %v2508
      %v2637 = vadd.f32 %v1865, %v2509
      %v2638 = vadd.f32 %v1866, %v2510
      %v2639 = vadd.f32 %v1867, %v2511
      %v2640 = vadd.f32 %v1868, %v2512
      %v2641 = vadd.f32 %v1869, %v2513
      %v2642 = vadd.f32 %v1870, %v2514
      %v2643 = vadd.f32 %v1871, %v2515
      %v2644 = vadd.f32 %v1872, %v2516
      %v2645 = vadd.f32 %v1873, %v2517
      %v2646 = vadd.f32 %v1874, %v2518
      %v2647 = vadd.f32 %v1875, %v2519
      %v2648 = vadd.f32 %v1876, %v2520
      %v2649 = vadd.f32 %v1877, %v2521
      %v2650 = vadd.f32 %v1878, %v2522
      %v2651 = vadd.f32 %v1879, %v2523
      %v2652 = vadd.f32 %v1880, %v2524
      %v2653 = vadd.f32 %v1881, %v2525
      %v2654 = vadd.f32 %v1882, %v2526
      %v2655 = vadd.f32 %v1883, %v2527
      %v2656 = vadd.f32 %v1884, %v2528
      %v2657 = vadd.f32 %v1885, %v2529
      %v2658 = vadd.f32 %v1886, %v2530
      %v2659 = vadd.f32 %v1887, %v2531
      %v2660 = vadd.f32 %v1888, %v2532
      %v2661 = vadd.f32 %v1889, %v2533
      %v2662 = vadd.f32 %v1890, %v2534
      %v2663 = vadd.f32 %v1891, %v2535
      %v2664 = vadd.f32 %v1892, %v2536
      %v2665 = vadd.f32 %v1893, %v2537
      %v2666 = vadd.f32 %v1894, %v2538
      %v2667 = vadd.f32 %v1895, %v2539
      %v2668 = vadd.f32 %v1896, %v2540
      %v2669 = vadd.f32 %v1897, %v2541
      %v2670 = vadd.f32 %v1898, %v2542
      %v2671 = vadd.f32 %v1899, %v2543
      %v2672 = vadd.f32 %v1900, %v2544
      %v2673 = vadd.f32 %v1901, %v2545
      %v2674 = vadd.f32 %v1902, %v2546
      %v2675 = vadd.f32 %v1903, %v2547
      %v2676 = vadd.f32 %v1904, %v2548
      %v2677 = vadd.f32 %v1905, %v2549
      %v2678 = vadd.f32 %v1906, %v2550
      %v2679 = vadd.f32 %v1907, %v2551
      %v2680 = vadd.f32 %v1908, %v2552
      %v2681 = vadd.f32 %v1909, %v2553
      %v2682 = vadd.f32 %v1910, %v2554
      %v2683 = vadd.f32 %v1911, %v2555
      %v2684 = vadd.f32 %v1912, %v2556
      %v2685 = vadd.f32 %v1913, %v2557
      %v2686 = vadd.f32 %v1914, %v2558
      %v2687 = vadd.f32 %v1915, %v2559
      %v2688 = vadd.f32 %v1916, %v2560
      %v2689 = vadd.f32 %v1917, %v2561
      %2690 = vset.pattern.permute.xlu0 2
      %2691 = vperm.xlu0 %2690, %v882
      %v2692 = vpop.permute.xlu0 %2691
      %2694 = vset.pattern.permute.xlu0 2
      %2695 = vperm.xlu0 %2694, %v883
      %v2696 = vpop.permute.xlu0 %2695
      %2698 = vset.pattern.permute.xlu0 2
      %2699 = vperm.xlu0 %2698, %v884
      %v2700 = vpop.permute.xlu0 %2699
      %2702 = vset.pattern.permute.xlu0 2
      %2703 = vperm.xlu0 %2702, %v885
      %v2704 = vpop.permute.xlu0 %2703
      %2706 = vset.pattern.permute.xlu0 2
      %2707 = vperm.xlu0 %2706, %v886
      %v2708 = vpop.permute.xlu0 %2707
      %2710 = vset.pattern.permute.xlu0 2
      %2711 = vperm.xlu0 %2710, %v887
      %v2712 = vpop.permute.xlu0 %2711
      %2714 = vset.pattern.permute.xlu0 2
      %2715 = vperm.xlu0 %2714, %v888
      %v2716 = vpop.permute.xlu0 %2715
      %2718 = vset.pattern.permute.xlu0 2
      %2719 = vperm.xlu0 %2718, %v889
      %v2720 = vpop.permute.xlu0 %2719
      %2722 = vset.pattern.permute.xlu0 2
      %2723 = vperm.xlu0 %2722, %v890
      %v2724 = vpop.permute.xlu0 %2723
      %2726 = vset.pattern.permute.xlu0 2
      %2727 = vperm.xlu0 %2726, %v891
      %v2728 = vpop.permute.xlu0 %2727
      %2730 = vset.pattern.permute.xlu0 2
      %2731 = vperm.xlu0 %2730, %v892
      %v2732 = vpop.permute.xlu0 %2731
      %2734 = vset.pattern.permute.xlu0 2
      %2735 = vperm.xlu0 %2734, %v893
      %v2736 = vpop.permute.xlu0 %2735
      %2738 = vset.pattern.permute.xlu0 2
      %2739 = vperm.xlu0 %2738, %v894
      %v2740 = vpop.permute.xlu0 %2739
      %2742 = vset.pattern.permute.xlu0 2
      %2743 = vperm.xlu0 %2742, %v895
      %v2744 = vpop.permute.xlu0 %2743
      %2746 = vset.pattern.permute.xlu0 2
      %2747 = vperm.xlu0 %2746, %v896
      %v2748 = vpop.permute.xlu0 %2747
      %2750 = vset.pattern.permute.xlu0 2
      %2751 = vperm.xlu0 %2750, %v897
      %v2752 = vpop.permute.xlu0 %2751
      %2754 = vset.pattern.permute.xlu0 2
      %2755 = vperm.xlu0 %2754, %v898
      %v2756 = vpop.permute.xlu0 %2755
      %2758 = vset.pattern.permute.xlu0 2
      %2759 = vperm.xlu0 %2758, %v899
      %v2760 = vpop.permute.xlu0 %2759
      %2762 = vset.pattern.permute.xlu0 2
      %2763 = vperm.xlu0 %2762, %v900
      %v2764 = vpop.permute.xlu0 %2763
      %2766 = vset.pattern.permute.xlu0 2
      %2767 = vperm.xlu0 %2766, %v901
      %v2768 = vpop.permute.xlu0 %2767
      %2770 = vset.pattern.permute.xlu0 2
      %2771 = vperm.xlu0 %2770, %v902
      %v2772 = vpop.permute.xlu0 %2771
      %2774 = vset.pattern.permute.xlu0 2
      %2775 = vperm.xlu0 %2774, %v903
      %v2776 = vpop.permute.xlu0 %2775
      %2778 = vset.pattern.permute.xlu0 2
      %2779 = vperm.xlu0 %2778, %v904
      %v2780 = vpop.permute.xlu0 %2779
      %2782 = vset.pattern.permute.xlu0 2
      %2783 = vperm.xlu0 %2782, %v905
      %v2784 = vpop.permute.xlu0 %2783
      %2786 = vset.pattern.permute.xlu0 2
      %2787 = vperm.xlu0 %2786, %v906
      %v2788 = vpop.permute.xlu0 %2787
      %2790 = vset.pattern.permute.xlu0 2
      %2791 = vperm.xlu0 %2790, %v907
      %v2792 = vpop.permute.xlu0 %2791
      %2794 = vset.pattern.permute.xlu0 2
      %2795 = vperm.xlu0 %2794, %v908
      %v2796 = vpop.permute.xlu0 %2795
      %2798 = vset.pattern.permute.xlu0 2
      %2799 = vperm.xlu0 %2798, %v909
      %v2800 = vpop.permute.xlu0 %2799
      %2802 = vset.pattern.permute.xlu0 2
      %2803 = vperm.xlu0 %2802, %v910
      %v2804 = vpop.permute.xlu0 %2803
      %2806 = vset.pattern.permute.xlu0 2
      %2807 = vperm.xlu0 %2806, %v911
      %v2808 = vpop.permute.xlu0 %2807
      %2810 = vset.pattern.permute.xlu0 2
      %2811 = vperm.xlu0 %2810, %v912
      %v2812 = vpop.permute.xlu0 %2811
      %2814 = vset.pattern.permute.xlu0 2
      %2815 = vperm.xlu0 %2814, %v913
      %v2816 = vpop.permute.xlu0 %2815
      %2818 = vset.pattern.permute.xlu0 2
      %2819 = vperm.xlu0 %2818, %v914
      %v2820 = vpop.permute.xlu0 %2819
      %2822 = vset.pattern.permute.xlu0 2
      %2823 = vperm.xlu0 %2822, %v915
      %v2824 = vpop.permute.xlu0 %2823
      %2826 = vset.pattern.permute.xlu0 2
      %2827 = vperm.xlu0 %2826, %v916
      %v2828 = vpop.permute.xlu0 %2827
      %2830 = vset.pattern.permute.xlu0 2
      %2831 = vperm.xlu0 %2830, %v917
      %v2832 = vpop.permute.xlu0 %2831
      %2834 = vset.pattern.permute.xlu0 2
      %2835 = vperm.xlu0 %2834, %v918
      %v2836 = vpop.permute.xlu0 %2835
      %2838 = vset.pattern.permute.xlu0 2
      %2839 = vperm.xlu0 %2838, %v919
      %v2840 = vpop.permute.xlu0 %2839
      %2842 = vset.pattern.permute.xlu0 2
      %2843 = vperm.xlu0 %2842, %v920
      %v2844 = vpop.permute.xlu0 %2843
      %2846 = vset.pattern.permute.xlu0 2
      %2847 = vperm.xlu0 %2846, %v921
      %v2848 = vpop.permute.xlu0 %2847
      %2850 = vset.pattern.permute.xlu0 2
      %2851 = vperm.xlu0 %2850, %v922
      %v2852 = vpop.permute.xlu0 %2851
      %2854 = vset.pattern.permute.xlu0 2
      %2855 = vperm.xlu0 %2854, %v923
      %v2856 = vpop.permute.xlu0 %2855
      %2858 = vset.pattern.permute.xlu0 2
      %2859 = vperm.xlu0 %2858, %v924
      %v2860 = vpop.permute.xlu0 %2859
      %2862 = vset.pattern.permute.xlu0 2
      %2863 = vperm.xlu0 %2862, %v925
      %v2864 = vpop.permute.xlu0 %2863
      %2866 = vset.pattern.permute.xlu0 2
      %2867 = vperm.xlu0 %2866, %v926
      %v2868 = vpop.permute.xlu0 %2867
      %2870 = vset.pattern.permute.xlu0 2
      %2871 = vperm.xlu0 %2870, %v927
      %v2872 = vpop.permute.xlu0 %2871
      %2874 = vset.pattern.permute.xlu0 2
      %2875 = vperm.xlu0 %2874, %v928
      %v2876 = vpop.permute.xlu0 %2875
      %2878 = vset.pattern.permute.xlu0 2
      %2879 = vperm.xlu0 %2878, %v929
      %v2880 = vpop.permute.xlu0 %2879
      %2882 = vset.pattern.permute.xlu0 2
      %2883 = vperm.xlu0 %2882, %v930
      %v2884 = vpop.permute.xlu0 %2883
      %2886 = vset.pattern.permute.xlu0 2
      %2887 = vperm.xlu0 %2886, %v931
      %v2888 = vpop.permute.xlu0 %2887
      %2890 = vset.pattern.permute.xlu0 2
      %2891 = vperm.xlu0 %2890, %v932
      %v2892 = vpop.permute.xlu0 %2891
      %2894 = vset.pattern.permute.xlu0 2
      %2895 = vperm.xlu0 %2894, %v933
      %v2896 = vpop.permute.xlu0 %2895
      %2898 = vset.pattern.permute.xlu0 2
      %2899 = vperm.xlu0 %2898, %v934
      %v2900 = vpop.permute.xlu0 %2899
      %2902 = vset.pattern.permute.xlu0 2
      %2903 = vperm.xlu0 %2902, %v935
      %v2904 = vpop.permute.xlu0 %2903
      %2906 = vset.pattern.permute.xlu0 2
      %2907 = vperm.xlu0 %2906, %v936
      %v2908 = vpop.permute.xlu0 %2907
      %2910 = vset.pattern.permute.xlu0 2
      %2911 = vperm.xlu0 %2910, %v937
      %v2912 = vpop.permute.xlu0 %2911
      %2914 = vset.pattern.permute.xlu0 2
      %2915 = vperm.xlu0 %2914, %v938
      %v2916 = vpop.permute.xlu0 %2915
      %2918 = vset.pattern.permute.xlu0 2
      %2919 = vperm.xlu0 %2918, %v939
      %v2920 = vpop.permute.xlu0 %2919
      %2922 = vset.pattern.permute.xlu0 2
      %2923 = vperm.xlu0 %2922, %v940
      %v2924 = vpop.permute.xlu0 %2923
      %2926 = vset.pattern.permute.xlu0 2
      %2927 = vperm.xlu0 %2926, %v941
      %v2928 = vpop.permute.xlu0 %2927
      %2930 = vset.pattern.permute.xlu0 2
      %2931 = vperm.xlu0 %2930, %v942
      %v2932 = vpop.permute.xlu0 %2931
      %2934 = vset.pattern.permute.xlu0 2
      %2935 = vperm.xlu0 %2934, %v943
      %v2936 = vpop.permute.xlu0 %2935
      %2938 = vset.pattern.permute.xlu0 2
      %2939 = vperm.xlu0 %2938, %v944
      %v2940 = vpop.permute.xlu0 %2939
      %2942 = vset.pattern.permute.xlu0 2
      %2943 = vperm.xlu0 %2942, %v945
      %v2944 = vpop.permute.xlu0 %2943
      %2946 = vset.pattern.permute.xlu0 2
      %2947 = vperm.xlu0 %2946, %v946
      %v2948 = vpop.permute.xlu0 %2947
      %2950 = vset.pattern.permute.xlu0 2
      %2951 = vperm.xlu0 %2950, %v947
      %v2952 = vpop.permute.xlu0 %2951
      %2954 = vset.pattern.permute.xlu0 2
      %2955 = vperm.xlu0 %2954, %v948
      %v2956 = vpop.permute.xlu0 %2955
      %2958 = vset.pattern.permute.xlu0 2
      %2959 = vperm.xlu0 %2958, %v949
      %v2960 = vpop.permute.xlu0 %2959
      %2962 = vset.pattern.permute.xlu0 2
      %2963 = vperm.xlu0 %2962, %v950
      %v2964 = vpop.permute.xlu0 %2963
      %2966 = vset.pattern.permute.xlu0 2
      %2967 = vperm.xlu0 %2966, %v951
      %v2968 = vpop.permute.xlu0 %2967
      %2970 = vset.pattern.permute.xlu0 2
      %2971 = vperm.xlu0 %2970, %v952
      %v2972 = vpop.permute.xlu0 %2971
      %2974 = vset.pattern.permute.xlu0 2
      %2975 = vperm.xlu0 %2974, %v953
      %v2976 = vpop.permute.xlu0 %2975
      %2978 = vset.pattern.permute.xlu0 2
      %2979 = vperm.xlu0 %2978, %v954
      %v2980 = vpop.permute.xlu0 %2979
      %2982 = vset.pattern.permute.xlu0 2
      %2983 = vperm.xlu0 %2982, %v955
      %v2984 = vpop.permute.xlu0 %2983
      %2986 = vset.pattern.permute.xlu0 2
      %2987 = vperm.xlu0 %2986, %v956
      %v2988 = vpop.permute.xlu0 %2987
      %2990 = vset.pattern.permute.xlu0 2
      %2991 = vperm.xlu0 %2990, %v957
      %v2992 = vpop.permute.xlu0 %2991
      %2994 = vset.pattern.permute.xlu0 2
      %2995 = vperm.xlu0 %2994, %v958
      %v2996 = vpop.permute.xlu0 %2995
      %2998 = vset.pattern.permute.xlu0 2
      %2999 = vperm.xlu0 %2998, %v959
      %v3000 = vpop.permute.xlu0 %2999
      %3002 = vset.pattern.permute.xlu0 2
      %3003 = vperm.xlu0 %3002, %v960
      %v3004 = vpop.permute.xlu0 %3003
      %3006 = vset.pattern.permute.xlu0 2
      %3007 = vperm.xlu0 %3006, %v961
      %v3008 = vpop.permute.xlu0 %3007
      %3010 = vset.pattern.permute.xlu0 2
      %3011 = vperm.xlu0 %3010, %v962
      %v3012 = vpop.permute.xlu0 %3011
      %3014 = vset.pattern.permute.xlu0 2
      %3015 = vperm.xlu0 %3014, %v963
      %v3016 = vpop.permute.xlu0 %3015
      %3018 = vset.pattern.permute.xlu0 2
      %3019 = vperm.xlu0 %3018, %v964
      %v3020 = vpop.permute.xlu0 %3019
      %3022 = vset.pattern.permute.xlu0 2
      %3023 = vperm.xlu0 %3022, %v965
      %v3024 = vpop.permute.xlu0 %3023
      %3026 = vset.pattern.permute.xlu0 2
      %3027 = vperm.xlu0 %3026, %v966
      %v3028 = vpop.permute.xlu0 %3027
      %3030 = vset.pattern.permute.xlu0 2
      %3031 = vperm.xlu0 %3030, %v967
      %v3032 = vpop.permute.xlu0 %3031
      %3034 = vset.pattern.permute.xlu0 2
      %3035 = vperm.xlu0 %3034, %v968
      %v3036 = vpop.permute.xlu0 %3035
      %3038 = vset.pattern.permute.xlu0 2
      %3039 = vperm.xlu0 %3038, %v969
      %v3040 = vpop.permute.xlu0 %3039
      %3042 = vset.pattern.permute.xlu0 2
      %3043 = vperm.xlu0 %3042, %v970
      %v3044 = vpop.permute.xlu0 %3043
      %3046 = vset.pattern.permute.xlu0 2
      %3047 = vperm.xlu0 %3046, %v971
      %v3048 = vpop.permute.xlu0 %3047
      %3050 = vset.pattern.permute.xlu0 2
      %3051 = vperm.xlu0 %3050, %v972
      %v3052 = vpop.permute.xlu0 %3051
      %3054 = vset.pattern.permute.xlu0 2
      %3055 = vperm.xlu0 %3054, %v973
      %v3056 = vpop.permute.xlu0 %3055
      %3058 = vset.pattern.permute.xlu0 2
      %3059 = vperm.xlu0 %3058, %v974
      %v3060 = vpop.permute.xlu0 %3059
      %3062 = vset.pattern.permute.xlu0 2
      %3063 = vperm.xlu0 %3062, %v975
      %v3064 = vpop.permute.xlu0 %3063
      %3066 = vset.pattern.permute.xlu0 2
      %3067 = vperm.xlu0 %3066, %v976
      %v3068 = vpop.permute.xlu0 %3067
      %3070 = vset.pattern.permute.xlu0 2
      %3071 = vperm.xlu0 %3070, %v977
      %v3072 = vpop.permute.xlu0 %3071
      %3074 = vset.pattern.permute.xlu0 2
      %3075 = vperm.xlu0 %3074, %v978
      %v3076 = vpop.permute.xlu0 %3075
      %3078 = vset.pattern.permute.xlu0 2
      %3079 = vperm.xlu0 %3078, %v979
      %v3080 = vpop.permute.xlu0 %3079
      %3082 = vset.pattern.permute.xlu0 2
      %3083 = vperm.xlu0 %3082, %v980
      %v3084 = vpop.permute.xlu0 %3083
      %3086 = vset.pattern.permute.xlu0 2
      %3087 = vperm.xlu0 %3086, %v981
      %v3088 = vpop.permute.xlu0 %3087
      %3090 = vset.pattern.permute.xlu0 2
      %3091 = vperm.xlu0 %3090, %v982
      %v3092 = vpop.permute.xlu0 %3091
      %3094 = vset.pattern.permute.xlu0 2
      %3095 = vperm.xlu0 %3094, %v983
      %v3096 = vpop.permute.xlu0 %3095
      %3098 = vset.pattern.permute.xlu0 2
      %3099 = vperm.xlu0 %3098, %v984
      %v3100 = vpop.permute.xlu0 %3099
      %3102 = vset.pattern.permute.xlu0 2
      %3103 = vperm.xlu0 %3102, %v985
      %v3104 = vpop.permute.xlu0 %3103
      %3106 = vset.pattern.permute.xlu0 2
      %3107 = vperm.xlu0 %3106, %v986
      %v3108 = vpop.permute.xlu0 %3107
      %3110 = vset.pattern.permute.xlu0 2
      %3111 = vperm.xlu0 %3110, %v987
      %v3112 = vpop.permute.xlu0 %3111
      %3114 = vset.pattern.permute.xlu0 2
      %3115 = vperm.xlu0 %3114, %v988
      %v3116 = vpop.permute.xlu0 %3115
      %3118 = vset.pattern.permute.xlu0 2
      %3119 = vperm.xlu0 %3118, %v989
      %v3120 = vpop.permute.xlu0 %3119
      %3122 = vset.pattern.permute.xlu0 2
      %3123 = vperm.xlu0 %3122, %v990
      %v3124 = vpop.permute.xlu0 %3123
      %3126 = vset.pattern.permute.xlu0 2
      %3127 = vperm.xlu0 %3126, %v991
      %v3128 = vpop.permute.xlu0 %3127
      %3130 = vset.pattern.permute.xlu0 2
      %3131 = vperm.xlu0 %3130, %v992
      %v3132 = vpop.permute.xlu0 %3131
      %3134 = vset.pattern.permute.xlu0 2
      %3135 = vperm.xlu0 %3134, %v993
      %v3136 = vpop.permute.xlu0 %3135
      %3138 = vset.pattern.permute.xlu0 2
      %3139 = vperm.xlu0 %3138, %v994
      %v3140 = vpop.permute.xlu0 %3139
      %3142 = vset.pattern.permute.xlu0 2
      %3143 = vperm.xlu0 %3142, %v995
      %v3144 = vpop.permute.xlu0 %3143
      %3146 = vset.pattern.permute.xlu0 2
      %3147 = vperm.xlu0 %3146, %v996
      %v3148 = vpop.permute.xlu0 %3147
      %3150 = vset.pattern.permute.xlu0 2
      %3151 = vperm.xlu0 %3150, %v997
      %v3152 = vpop.permute.xlu0 %3151
      %3154 = vset.pattern.permute.xlu0 2
      %3155 = vperm.xlu0 %3154, %v998
      %v3156 = vpop.permute.xlu0 %3155
      %3158 = vset.pattern.permute.xlu0 2
      %3159 = vperm.xlu0 %3158, %v999
      %v3160 = vpop.permute.xlu0 %3159
      %3162 = vset.pattern.permute.xlu0 2
      %3163 = vperm.xlu0 %3162, %v1000
      %v3164 = vpop.permute.xlu0 %3163
      %3166 = vset.pattern.permute.xlu0 2
      %3167 = vperm.xlu0 %3166, %v1001
      %v3168 = vpop.permute.xlu0 %3167
      %3170 = vset.pattern.permute.xlu0 2
      %3171 = vperm.xlu0 %3170, %v1002
      %v3172 = vpop.permute.xlu0 %3171
      %3174 = vset.pattern.permute.xlu0 2
      %3175 = vperm.xlu0 %3174, %v1003
      %v3176 = vpop.permute.xlu0 %3175
      %3178 = vset.pattern.permute.xlu0 2
      %3179 = vperm.xlu0 %3178, %v1004
      %v3180 = vpop.permute.xlu0 %3179
      %3182 = vset.pattern.permute.xlu0 2
      %3183 = vperm.xlu0 %3182, %v1005
      %v3184 = vpop.permute.xlu0 %3183
      %3186 = vset.pattern.permute.xlu0 2
      %3187 = vperm.xlu0 %3186, %v1006
      %v3188 = vpop.permute.xlu0 %3187
      %3190 = vset.pattern.permute.xlu0 2
      %3191 = vperm.xlu0 %3190, %v1007
      %v3192 = vpop.permute.xlu0 %3191
      %3194 = vset.pattern.permute.xlu0 2
      %3195 = vperm.xlu0 %3194, %v1008
      %v3196 = vpop.permute.xlu0 %3195
      %3198 = vset.pattern.permute.xlu0 2
      %3199 = vperm.xlu0 %3198, %v1009
      %v3200 = vpop.permute.xlu0 %3199
      %v3202 = vlaneseq
      %v3203 = vshrl.u32 %v3202, 7
      %v3204 = vsub.s32 2, %v3203
      %v3205 = vrot.slane %v1010, %v3204
      %v3206 = vmul.f32 %v2692, %v3205
      %v3207 = vmul.f32 %v2696, %v3205
      %v3208 = vmul.f32 %v2700, %v3205
      %v3209 = vmul.f32 %v2704, %v3205
      %v3210 = vmul.f32 %v2708, %v3205
      %v3211 = vmul.f32 %v2712, %v3205
      %v3212 = vmul.f32 %v2716, %v3205
      %v3213 = vmul.f32 %v2720, %v3205
      %v3214 = vmul.f32 %v2724, %v3205
      %v3215 = vmul.f32 %v2728, %v3205
      %v3216 = vmul.f32 %v2732, %v3205
      %v3217 = vmul.f32 %v2736, %v3205
      %v3218 = vmul.f32 %v2740, %v3205
      %v3219 = vmul.f32 %v2744, %v3205
      %v3220 = vmul.f32 %v2748, %v3205
      %v3221 = vmul.f32 %v2752, %v3205
      %v3222 = vmul.f32 %v2756, %v3205
      %v3223 = vmul.f32 %v2760, %v3205
      %v3224 = vmul.f32 %v2764, %v3205
      %v3225 = vmul.f32 %v2768, %v3205
      %v3226 = vmul.f32 %v2772, %v3205
      %v3227 = vmul.f32 %v2776, %v3205
      %v3228 = vmul.f32 %v2780, %v3205
      %v3229 = vmul.f32 %v2784, %v3205
      %v3230 = vmul.f32 %v2788, %v3205
      %v3231 = vmul.f32 %v2792, %v3205
      %v3232 = vmul.f32 %v2796, %v3205
      %v3233 = vmul.f32 %v2800, %v3205
      %v3234 = vmul.f32 %v2804, %v3205
      %v3235 = vmul.f32 %v2808, %v3205
      %v3236 = vmul.f32 %v2812, %v3205
      %v3237 = vmul.f32 %v2816, %v3205
      %v3238 = vmul.f32 %v2820, %v3205
      %v3239 = vmul.f32 %v2824, %v3205
      %v3240 = vmul.f32 %v2828, %v3205
      %v3241 = vmul.f32 %v2832, %v3205
      %v3242 = vmul.f32 %v2836, %v3205
      %v3243 = vmul.f32 %v2840, %v3205
      %v3244 = vmul.f32 %v2844, %v3205
      %v3245 = vmul.f32 %v2848, %v3205
      %v3246 = vmul.f32 %v2852, %v3205
      %v3247 = vmul.f32 %v2856, %v3205
      %v3248 = vmul.f32 %v2860, %v3205
      %v3249 = vmul.f32 %v2864, %v3205
      %v3250 = vmul.f32 %v2868, %v3205
      %v3251 = vmul.f32 %v2872, %v3205
      %v3252 = vmul.f32 %v2876, %v3205
      %v3253 = vmul.f32 %v2880, %v3205
      %v3254 = vmul.f32 %v2884, %v3205
      %v3255 = vmul.f32 %v2888, %v3205
      %v3256 = vmul.f32 %v2892, %v3205
      %v3257 = vmul.f32 %v2896, %v3205
      %v3258 = vmul.f32 %v2900, %v3205
      %v3259 = vmul.f32 %v2904, %v3205
      %v3260 = vmul.f32 %v2908, %v3205
      %v3261 = vmul.f32 %v2912, %v3205
      %v3262 = vmul.f32 %v2916, %v3205
      %v3263 = vmul.f32 %v2920, %v3205
      %v3264 = vmul.f32 %v2924, %v3205
      %v3265 = vmul.f32 %v2928, %v3205
      %v3266 = vmul.f32 %v2932, %v3205
      %v3267 = vmul.f32 %v2936, %v3205
      %v3268 = vmul.f32 %v2940, %v3205
      %v3269 = vmul.f32 %v2944, %v3205
      %v3270 = vmul.f32 %v2948, %v3205
      %v3271 = vmul.f32 %v2952, %v3205
      %v3272 = vmul.f32 %v2956, %v3205
      %v3273 = vmul.f32 %v2960, %v3205
      %v3274 = vmul.f32 %v2964, %v3205
      %v3275 = vmul.f32 %v2968, %v3205
      %v3276 = vmul.f32 %v2972, %v3205
      %v3277 = vmul.f32 %v2976, %v3205
      %v3278 = vmul.f32 %v2980, %v3205
      %v3279 = vmul.f32 %v2984, %v3205
      %v3280 = vmul.f32 %v2988, %v3205
      %v3281 = vmul.f32 %v2992, %v3205
      %v3282 = vmul.f32 %v2996, %v3205
      %v3283 = vmul.f32 %v3000, %v3205
      %v3284 = vmul.f32 %v3004, %v3205
      %v3285 = vmul.f32 %v3008, %v3205
      %v3286 = vmul.f32 %v3012, %v3205
      %v3287 = vmul.f32 %v3016, %v3205
      %v3288 = vmul.f32 %v3020, %v3205
      %v3289 = vmul.f32 %v3024, %v3205
      %v3290 = vmul.f32 %v3028, %v3205
      %v3291 = vmul.f32 %v3032, %v3205
      %v3292 = vmul.f32 %v3036, %v3205
      %v3293 = vmul.f32 %v3040, %v3205
      %v3294 = vmul.f32 %v3044, %v3205
      %v3295 = vmul.f32 %v3048, %v3205
      %v3296 = vmul.f32 %v3052, %v3205
      %v3297 = vmul.f32 %v3056, %v3205
      %v3298 = vmul.f32 %v3060, %v3205
      %v3299 = vmul.f32 %v3064, %v3205
      %v3300 = vmul.f32 %v3068, %v3205
      %v3301 = vmul.f32 %v3072, %v3205
      %v3302 = vmul.f32 %v3076, %v3205
      %v3303 = vmul.f32 %v3080, %v3205
      %v3304 = vmul.f32 %v3084, %v3205
      %v3305 = vmul.f32 %v3088, %v3205
      %v3306 = vmul.f32 %v3092, %v3205
      %v3307 = vmul.f32 %v3096, %v3205
      %v3308 = vmul.f32 %v3100, %v3205
      %v3309 = vmul.f32 %v3104, %v3205
      %v3310 = vmul.f32 %v3108, %v3205
      %v3311 = vmul.f32 %v3112, %v3205
      %v3312 = vmul.f32 %v3116, %v3205
      %v3313 = vmul.f32 %v3120, %v3205
      %v3314 = vmul.f32 %v3124, %v3205
      %v3315 = vmul.f32 %v3128, %v3205
      %v3316 = vmul.f32 %v3132, %v3205
      %v3317 = vmul.f32 %v3136, %v3205
      %v3318 = vmul.f32 %v3140, %v3205
      %v3319 = vmul.f32 %v3144, %v3205
      %v3320 = vmul.f32 %v3148, %v3205
      %v3321 = vmul.f32 %v3152, %v3205
      %v3322 = vmul.f32 %v3156, %v3205
      %v3323 = vmul.f32 %v3160, %v3205
      %v3324 = vmul.f32 %v3164, %v3205
      %v3325 = vmul.f32 %v3168, %v3205
      %v3326 = vmul.f32 %v3172, %v3205
      %v3327 = vmul.f32 %v3176, %v3205
      %v3328 = vmul.f32 %v3180, %v3205
      %v3329 = vmul.f32 %v3184, %v3205
      %v3330 = vmul.f32 %v3188, %v3205
      %v3331 = vmul.f32 %v3192, %v3205
      %v3332 = vmul.f32 %v3196, %v3205
      %v3333 = vmul.f32 %v3200, %v3205
      %v3334 = vadd.f32 %v2562, %v3206
      %v3335 = vadd.f32 %v2563, %v3207
      %v3336 = vadd.f32 %v2564, %v3208
      %v3337 = vadd.f32 %v2565, %v3209
      %v3338 = vadd.f32 %v2566, %v3210
      %v3339 = vadd.f32 %v2567, %v3211
      %v3340 = vadd.f32 %v2568, %v3212
      %v3341 = vadd.f32 %v2569, %v3213
      %v3342 = vadd.f32 %v2570, %v3214
      %v3343 = vadd.f32 %v2571, %v3215
      %v3344 = vadd.f32 %v2572, %v3216
      %v3345 = vadd.f32 %v2573, %v3217
      %v3346 = vadd.f32 %v2574, %v3218
      %v3347 = vadd.f32 %v2575, %v3219
      %v3348 = vadd.f32 %v2576, %v3220
      %v3349 = vadd.f32 %v2577, %v3221
      %v3350 = vadd.f32 %v2578, %v3222
      %v3351 = vadd.f32 %v2579, %v3223
      %v3352 = vadd.f32 %v2580, %v3224
      %v3353 = vadd.f32 %v2581, %v3225
      %v3354 = vadd.f32 %v2582, %v3226
      %v3355 = vadd.f32 %v2583, %v3227
      %v3356 = vadd.f32 %v2584, %v3228
      %v3357 = vadd.f32 %v2585, %v3229
      %v3358 = vadd.f32 %v2586, %v3230
      %v3359 = vadd.f32 %v2587, %v3231
      %v3360 = vadd.f32 %v2588, %v3232
      %v3361 = vadd.f32 %v2589, %v3233
      %v3362 = vadd.f32 %v2590, %v3234
      %v3363 = vadd.f32 %v2591, %v3235
      %v3364 = vadd.f32 %v2592, %v3236
      %v3365 = vadd.f32 %v2593, %v3237
      %v3366 = vadd.f32 %v2594, %v3238
      %v3367 = vadd.f32 %v2595, %v3239
      %v3368 = vadd.f32 %v2596, %v3240
      %v3369 = vadd.f32 %v2597, %v3241
      %v3370 = vadd.f32 %v2598, %v3242
      %v3371 = vadd.f32 %v2599, %v3243
      %v3372 = vadd.f32 %v2600, %v3244
      %v3373 = vadd.f32 %v2601, %v3245
      %v3374 = vadd.f32 %v2602, %v3246
      %v3375 = vadd.f32 %v2603, %v3247
      %v3376 = vadd.f32 %v2604, %v3248
      %v3377 = vadd.f32 %v2605, %v3249
      %v3378 = vadd.f32 %v2606, %v3250
      %v3379 = vadd.f32 %v2607, %v3251
      %v3380 = vadd.f32 %v2608, %v3252
      %v3381 = vadd.f32 %v2609, %v3253
      %v3382 = vadd.f32 %v2610, %v3254
      %v3383 = vadd.f32 %v2611, %v3255
      %v3384 = vadd.f32 %v2612, %v3256
      %v3385 = vadd.f32 %v2613, %v3257
      %v3386 = vadd.f32 %v2614, %v3258
      %v3387 = vadd.f32 %v2615, %v3259
      %v3388 = vadd.f32 %v2616, %v3260
      %v3389 = vadd.f32 %v2617, %v3261
      %v3390 = vadd.f32 %v2618, %v3262
      %v3391 = vadd.f32 %v2619, %v3263
      %v3392 = vadd.f32 %v2620, %v3264
      %v3393 = vadd.f32 %v2621, %v3265
      %v3394 = vadd.f32 %v2622, %v3266
      %v3395 = vadd.f32 %v2623, %v3267
      %v3396 = vadd.f32 %v2624, %v3268
      %v3397 = vadd.f32 %v2625, %v3269
      %v3398 = vadd.f32 %v2626, %v3270
      %v3399 = vadd.f32 %v2627, %v3271
      %v3400 = vadd.f32 %v2628, %v3272
      %v3401 = vadd.f32 %v2629, %v3273
      %v3402 = vadd.f32 %v2630, %v3274
      %v3403 = vadd.f32 %v2631, %v3275
      %v3404 = vadd.f32 %v2632, %v3276
      %v3405 = vadd.f32 %v2633, %v3277
      %v3406 = vadd.f32 %v2634, %v3278
      %v3407 = vadd.f32 %v2635, %v3279
      %v3408 = vadd.f32 %v2636, %v3280
      %v3409 = vadd.f32 %v2637, %v3281
      %v3410 = vadd.f32 %v2638, %v3282
      %v3411 = vadd.f32 %v2639, %v3283
      %v3412 = vadd.f32 %v2640, %v3284
      %v3413 = vadd.f32 %v2641, %v3285
      %v3414 = vadd.f32 %v2642, %v3286
      %v3415 = vadd.f32 %v2643, %v3287
      %v3416 = vadd.f32 %v2644, %v3288
      %v3417 = vadd.f32 %v2645, %v3289
      %v3418 = vadd.f32 %v2646, %v3290
      %v3419 = vadd.f32 %v2647, %v3291
      %v3420 = vadd.f32 %v2648, %v3292
      %v3421 = vadd.f32 %v2649, %v3293
      %v3422 = vadd.f32 %v2650, %v3294
      %v3423 = vadd.f32 %v2651, %v3295
      %v3424 = vadd.f32 %v2652, %v3296
      %v3425 = vadd.f32 %v2653, %v3297
      %v3426 = vadd.f32 %v2654, %v3298
      %v3427 = vadd.f32 %v2655, %v3299
      %v3428 = vadd.f32 %v2656, %v3300
      %v3429 = vadd.f32 %v2657, %v3301
      %v3430 = vadd.f32 %v2658, %v3302
      %v3431 = vadd.f32 %v2659, %v3303
      %v3432 = vadd.f32 %v2660, %v3304
      %v3433 = vadd.f32 %v2661, %v3305
      %v3434 = vadd.f32 %v2662, %v3306
      %v3435 = vadd.f32 %v2663, %v3307
      %v3436 = vadd.f32 %v2664, %v3308
      %v3437 = vadd.f32 %v2665, %v3309
      %v3438 = vadd.f32 %v2666, %v3310
      %v3439 = vadd.f32 %v2667, %v3311
      %v3440 = vadd.f32 %v2668, %v3312
      %v3441 = vadd.f32 %v2669, %v3313
      %v3442 = vadd.f32 %v2670, %v3314
      %v3443 = vadd.f32 %v2671, %v3315
      %v3444 = vadd.f32 %v2672, %v3316
      %v3445 = vadd.f32 %v2673, %v3317
      %v3446 = vadd.f32 %v2674, %v3318
      %v3447 = vadd.f32 %v2675, %v3319
      %v3448 = vadd.f32 %v2676, %v3320
      %v3449 = vadd.f32 %v2677, %v3321
      %v3450 = vadd.f32 %v2678, %v3322
      %v3451 = vadd.f32 %v2679, %v3323
      %v3452 = vadd.f32 %v2680, %v3324
      %v3453 = vadd.f32 %v2681, %v3325
      %v3454 = vadd.f32 %v2682, %v3326
      %v3455 = vadd.f32 %v2683, %v3327
      %v3456 = vadd.f32 %v2684, %v3328
      %v3457 = vadd.f32 %v2685, %v3329
      %v3458 = vadd.f32 %v2686, %v3330
      %v3459 = vadd.f32 %v2687, %v3331
      %v3460 = vadd.f32 %v2688, %v3332
      %v3461 = vadd.f32 %v2689, %v3333
      %3462 = vset.pattern.permute.xlu0 3
      %3463 = vperm.xlu0 %3462, %v882
      %v3464 = vpop.permute.xlu0 %3463
      %3466 = vset.pattern.permute.xlu0 3
      %3467 = vperm.xlu0 %3466, %v883
      %v3468 = vpop.permute.xlu0 %3467
      %3470 = vset.pattern.permute.xlu0 3
      %3471 = vperm.xlu0 %3470, %v884
      %v3472 = vpop.permute.xlu0 %3471
      %3474 = vset.pattern.permute.xlu0 3
      %3475 = vperm.xlu0 %3474, %v885
      %v3476 = vpop.permute.xlu0 %3475
      %3478 = vset.pattern.permute.xlu0 3
      %3479 = vperm.xlu0 %3478, %v886
      %v3480 = vpop.permute.xlu0 %3479
      %3482 = vset.pattern.permute.xlu0 3
      %3483 = vperm.xlu0 %3482, %v887
      %v3484 = vpop.permute.xlu0 %3483
      %3486 = vset.pattern.permute.xlu0 3
      %3487 = vperm.xlu0 %3486, %v888
      %v3488 = vpop.permute.xlu0 %3487
      %3490 = vset.pattern.permute.xlu0 3
      %3491 = vperm.xlu0 %3490, %v889
      %v3492 = vpop.permute.xlu0 %3491
      %3494 = vset.pattern.permute.xlu0 3
      %3495 = vperm.xlu0 %3494, %v890
      %v3496 = vpop.permute.xlu0 %3495
      %3498 = vset.pattern.permute.xlu0 3
      %3499 = vperm.xlu0 %3498, %v891
      %v3500 = vpop.permute.xlu0 %3499
      %3502 = vset.pattern.permute.xlu0 3
      %3503 = vperm.xlu0 %3502, %v892
      %v3504 = vpop.permute.xlu0 %3503
      %3506 = vset.pattern.permute.xlu0 3
      %3507 = vperm.xlu0 %3506, %v893
      %v3508 = vpop.permute.xlu0 %3507
      %3510 = vset.pattern.permute.xlu0 3
      %3511 = vperm.xlu0 %3510, %v894
      %v3512 = vpop.permute.xlu0 %3511
      %3514 = vset.pattern.permute.xlu0 3
      %3515 = vperm.xlu0 %3514, %v895
      %v3516 = vpop.permute.xlu0 %3515
      %3518 = vset.pattern.permute.xlu0 3
      %3519 = vperm.xlu0 %3518, %v896
      %v3520 = vpop.permute.xlu0 %3519
      %3522 = vset.pattern.permute.xlu0 3
      %3523 = vperm.xlu0 %3522, %v897
      %v3524 = vpop.permute.xlu0 %3523
      %3526 = vset.pattern.permute.xlu0 3
      %3527 = vperm.xlu0 %3526, %v898
      %v3528 = vpop.permute.xlu0 %3527
      %3530 = vset.pattern.permute.xlu0 3
      %3531 = vperm.xlu0 %3530, %v899
      %v3532 = vpop.permute.xlu0 %3531
      %3534 = vset.pattern.permute.xlu0 3
      %3535 = vperm.xlu0 %3534, %v900
      %v3536 = vpop.permute.xlu0 %3535
      %3538 = vset.pattern.permute.xlu0 3
      %3539 = vperm.xlu0 %3538, %v901
      %v3540 = vpop.permute.xlu0 %3539
      %3542 = vset.pattern.permute.xlu0 3
      %3543 = vperm.xlu0 %3542, %v902
      %v3544 = vpop.permute.xlu0 %3543
      %3546 = vset.pattern.permute.xlu0 3
      %3547 = vperm.xlu0 %3546, %v903
      %v3548 = vpop.permute.xlu0 %3547
      %3550 = vset.pattern.permute.xlu0 3
      %3551 = vperm.xlu0 %3550, %v904
      %v3552 = vpop.permute.xlu0 %3551
      %3554 = vset.pattern.permute.xlu0 3
      %3555 = vperm.xlu0 %3554, %v905
      %v3556 = vpop.permute.xlu0 %3555
      %3558 = vset.pattern.permute.xlu0 3
      %3559 = vperm.xlu0 %3558, %v906
      %v3560 = vpop.permute.xlu0 %3559
      %3562 = vset.pattern.permute.xlu0 3
      %3563 = vperm.xlu0 %3562, %v907
      %v3564 = vpop.permute.xlu0 %3563
      %3566 = vset.pattern.permute.xlu0 3
      %3567 = vperm.xlu0 %3566, %v908
      %v3568 = vpop.permute.xlu0 %3567
      %3570 = vset.pattern.permute.xlu0 3
      %3571 = vperm.xlu0 %3570, %v909
      %v3572 = vpop.permute.xlu0 %3571
      %3574 = vset.pattern.permute.xlu0 3
      %3575 = vperm.xlu0 %3574, %v910
      %v3576 = vpop.permute.xlu0 %3575
      %3578 = vset.pattern.permute.xlu0 3
      %3579 = vperm.xlu0 %3578, %v911
      %v3580 = vpop.permute.xlu0 %3579
      %3582 = vset.pattern.permute.xlu0 3
      %3583 = vperm.xlu0 %3582, %v912
      %v3584 = vpop.permute.xlu0 %3583
      %3586 = vset.pattern.permute.xlu0 3
      %3587 = vperm.xlu0 %3586, %v913
      %v3588 = vpop.permute.xlu0 %3587
      %3590 = vset.pattern.permute.xlu0 3
      %3591 = vperm.xlu0 %3590, %v914
      %v3592 = vpop.permute.xlu0 %3591
      %3594 = vset.pattern.permute.xlu0 3
      %3595 = vperm.xlu0 %3594, %v915
      %v3596 = vpop.permute.xlu0 %3595
      %3598 = vset.pattern.permute.xlu0 3
      %3599 = vperm.xlu0 %3598, %v916
      %v3600 = vpop.permute.xlu0 %3599
      %3602 = vset.pattern.permute.xlu0 3
      %3603 = vperm.xlu0 %3602, %v917
      %v3604 = vpop.permute.xlu0 %3603
      %3606 = vset.pattern.permute.xlu0 3
      %3607 = vperm.xlu0 %3606, %v918
      %v3608 = vpop.permute.xlu0 %3607
      %3610 = vset.pattern.permute.xlu0 3
      %3611 = vperm.xlu0 %3610, %v919
      %v3612 = vpop.permute.xlu0 %3611
      %3614 = vset.pattern.permute.xlu0 3
      %3615 = vperm.xlu0 %3614, %v920
      %v3616 = vpop.permute.xlu0 %3615
      %3618 = vset.pattern.permute.xlu0 3
      %3619 = vperm.xlu0 %3618, %v921
      %v3620 = vpop.permute.xlu0 %3619
      %3622 = vset.pattern.permute.xlu0 3
      %3623 = vperm.xlu0 %3622, %v922
      %v3624 = vpop.permute.xlu0 %3623
      %3626 = vset.pattern.permute.xlu0 3
      %3627 = vperm.xlu0 %3626, %v923
      %v3628 = vpop.permute.xlu0 %3627
      %3630 = vset.pattern.permute.xlu0 3
      %3631 = vperm.xlu0 %3630, %v924
      %v3632 = vpop.permute.xlu0 %3631
      %3634 = vset.pattern.permute.xlu0 3
      %3635 = vperm.xlu0 %3634, %v925
      %v3636 = vpop.permute.xlu0 %3635
      %3638 = vset.pattern.permute.xlu0 3
      %3639 = vperm.xlu0 %3638, %v926
      %v3640 = vpop.permute.xlu0 %3639
      %3642 = vset.pattern.permute.xlu0 3
      %3643 = vperm.xlu0 %3642, %v927
      %v3644 = vpop.permute.xlu0 %3643
      %3646 = vset.pattern.permute.xlu0 3
      %3647 = vperm.xlu0 %3646, %v928
      %v3648 = vpop.permute.xlu0 %3647
      %3650 = vset.pattern.permute.xlu0 3
      %3651 = vperm.xlu0 %3650, %v929
      %v3652 = vpop.permute.xlu0 %3651
      %3654 = vset.pattern.permute.xlu0 3
      %3655 = vperm.xlu0 %3654, %v930
      %v3656 = vpop.permute.xlu0 %3655
      %3658 = vset.pattern.permute.xlu0 3
      %3659 = vperm.xlu0 %3658, %v931
      %v3660 = vpop.permute.xlu0 %3659
      %3662 = vset.pattern.permute.xlu0 3
      %3663 = vperm.xlu0 %3662, %v932
      %v3664 = vpop.permute.xlu0 %3663
      %3666 = vset.pattern.permute.xlu0 3
      %3667 = vperm.xlu0 %3666, %v933
      %v3668 = vpop.permute.xlu0 %3667
      %3670 = vset.pattern.permute.xlu0 3
      %3671 = vperm.xlu0 %3670, %v934
      %v3672 = vpop.permute.xlu0 %3671
      %3674 = vset.pattern.permute.xlu0 3
      %3675 = vperm.xlu0 %3674, %v935
      %v3676 = vpop.permute.xlu0 %3675
      %3678 = vset.pattern.permute.xlu0 3
      %3679 = vperm.xlu0 %3678, %v936
      %v3680 = vpop.permute.xlu0 %3679
      %3682 = vset.pattern.permute.xlu0 3
      %3683 = vperm.xlu0 %3682, %v937
      %v3684 = vpop.permute.xlu0 %3683
      %3686 = vset.pattern.permute.xlu0 3
      %3687 = vperm.xlu0 %3686, %v938
      %v3688 = vpop.permute.xlu0 %3687
      %3690 = vset.pattern.permute.xlu0 3
      %3691 = vperm.xlu0 %3690, %v939
      %v3692 = vpop.permute.xlu0 %3691
      %3694 = vset.pattern.permute.xlu0 3
      %3695 = vperm.xlu0 %3694, %v940
      %v3696 = vpop.permute.xlu0 %3695
      %3698 = vset.pattern.permute.xlu0 3
      %3699 = vperm.xlu0 %3698, %v941
      %v3700 = vpop.permute.xlu0 %3699
      %3702 = vset.pattern.permute.xlu0 3
      %3703 = vperm.xlu0 %3702, %v942
      %v3704 = vpop.permute.xlu0 %3703
      %3706 = vset.pattern.permute.xlu0 3
      %3707 = vperm.xlu0 %3706, %v943
      %v3708 = vpop.permute.xlu0 %3707
      %3710 = vset.pattern.permute.xlu0 3
      %3711 = vperm.xlu0 %3710, %v944
      %v3712 = vpop.permute.xlu0 %3711
      %3714 = vset.pattern.permute.xlu0 3
      %3715 = vperm.xlu0 %3714, %v945
      %v3716 = vpop.permute.xlu0 %3715
      %3718 = vset.pattern.permute.xlu0 3
      %3719 = vperm.xlu0 %3718, %v946
      %v3720 = vpop.permute.xlu0 %3719
      %3722 = vset.pattern.permute.xlu0 3
      %3723 = vperm.xlu0 %3722, %v947
      %v3724 = vpop.permute.xlu0 %3723
      %3726 = vset.pattern.permute.xlu0 3
      %3727 = vperm.xlu0 %3726, %v948
      %v3728 = vpop.permute.xlu0 %3727
      %3730 = vset.pattern.permute.xlu0 3
      %3731 = vperm.xlu0 %3730, %v949
      %v3732 = vpop.permute.xlu0 %3731
      %3734 = vset.pattern.permute.xlu0 3
      %3735 = vperm.xlu0 %3734, %v950
      %v3736 = vpop.permute.xlu0 %3735
      %3738 = vset.pattern.permute.xlu0 3
      %3739 = vperm.xlu0 %3738, %v951
      %v3740 = vpop.permute.xlu0 %3739
      %3742 = vset.pattern.permute.xlu0 3
      %3743 = vperm.xlu0 %3742, %v952
      %v3744 = vpop.permute.xlu0 %3743
      %3746 = vset.pattern.permute.xlu0 3
      %3747 = vperm.xlu0 %3746, %v953
      %v3748 = vpop.permute.xlu0 %3747
      %3750 = vset.pattern.permute.xlu0 3
      %3751 = vperm.xlu0 %3750, %v954
      %v3752 = vpop.permute.xlu0 %3751
      %3754 = vset.pattern.permute.xlu0 3
      %3755 = vperm.xlu0 %3754, %v955
      %v3756 = vpop.permute.xlu0 %3755
      %3758 = vset.pattern.permute.xlu0 3
      %3759 = vperm.xlu0 %3758, %v956
      %v3760 = vpop.permute.xlu0 %3759
      %3762 = vset.pattern.permute.xlu0 3
      %3763 = vperm.xlu0 %3762, %v957
      %v3764 = vpop.permute.xlu0 %3763
      %3766 = vset.pattern.permute.xlu0 3
      %3767 = vperm.xlu0 %3766, %v958
      %v3768 = vpop.permute.xlu0 %3767
      %3770 = vset.pattern.permute.xlu0 3
      %3771 = vperm.xlu0 %3770, %v959
      %v3772 = vpop.permute.xlu0 %3771
      %3774 = vset.pattern.permute.xlu0 3
      %3775 = vperm.xlu0 %3774, %v960
      %v3776 = vpop.permute.xlu0 %3775
      %3778 = vset.pattern.permute.xlu0 3
      %3779 = vperm.xlu0 %3778, %v961
      %v3780 = vpop.permute.xlu0 %3779
      %3782 = vset.pattern.permute.xlu0 3
      %3783 = vperm.xlu0 %3782, %v962
      %v3784 = vpop.permute.xlu0 %3783
      %3786 = vset.pattern.permute.xlu0 3
      %3787 = vperm.xlu0 %3786, %v963
      %v3788 = vpop.permute.xlu0 %3787
      %3790 = vset.pattern.permute.xlu0 3
      %3791 = vperm.xlu0 %3790, %v964
      %v3792 = vpop.permute.xlu0 %3791
      %3794 = vset.pattern.permute.xlu0 3
      %3795 = vperm.xlu0 %3794, %v965
      %v3796 = vpop.permute.xlu0 %3795
      %3798 = vset.pattern.permute.xlu0 3
      %3799 = vperm.xlu0 %3798, %v966
      %v3800 = vpop.permute.xlu0 %3799
      %3802 = vset.pattern.permute.xlu0 3
      %3803 = vperm.xlu0 %3802, %v967
      %v3804 = vpop.permute.xlu0 %3803
      %3806 = vset.pattern.permute.xlu0 3
      %3807 = vperm.xlu0 %3806, %v968
      %v3808 = vpop.permute.xlu0 %3807
      %3810 = vset.pattern.permute.xlu0 3
      %3811 = vperm.xlu0 %3810, %v969
      %v3812 = vpop.permute.xlu0 %3811
      %3814 = vset.pattern.permute.xlu0 3
      %3815 = vperm.xlu0 %3814, %v970
      %v3816 = vpop.permute.xlu0 %3815
      %3818 = vset.pattern.permute.xlu0 3
      %3819 = vperm.xlu0 %3818, %v971
      %v3820 = vpop.permute.xlu0 %3819
      %3822 = vset.pattern.permute.xlu0 3
      %3823 = vperm.xlu0 %3822, %v972
      %v3824 = vpop.permute.xlu0 %3823
      %3826 = vset.pattern.permute.xlu0 3
      %3827 = vperm.xlu0 %3826, %v973
      %v3828 = vpop.permute.xlu0 %3827
      %3830 = vset.pattern.permute.xlu0 3
      %3831 = vperm.xlu0 %3830, %v974
      %v3832 = vpop.permute.xlu0 %3831
      %3834 = vset.pattern.permute.xlu0 3
      %3835 = vperm.xlu0 %3834, %v975
      %v3836 = vpop.permute.xlu0 %3835
      %3838 = vset.pattern.permute.xlu0 3
      %3839 = vperm.xlu0 %3838, %v976
      %v3840 = vpop.permute.xlu0 %3839
      %3842 = vset.pattern.permute.xlu0 3
      %3843 = vperm.xlu0 %3842, %v977
      %v3844 = vpop.permute.xlu0 %3843
      %3846 = vset.pattern.permute.xlu0 3
      %3847 = vperm.xlu0 %3846, %v978
      %v3848 = vpop.permute.xlu0 %3847
      %3850 = vset.pattern.permute.xlu0 3
      %3851 = vperm.xlu0 %3850, %v979
      %v3852 = vpop.permute.xlu0 %3851
      %3854 = vset.pattern.permute.xlu0 3
      %3855 = vperm.xlu0 %3854, %v980
      %v3856 = vpop.permute.xlu0 %3855
      %3858 = vset.pattern.permute.xlu0 3
      %3859 = vperm.xlu0 %3858, %v981
      %v3860 = vpop.permute.xlu0 %3859
      %3862 = vset.pattern.permute.xlu0 3
      %3863 = vperm.xlu0 %3862, %v982
      %v3864 = vpop.permute.xlu0 %3863
      %3866 = vset.pattern.permute.xlu0 3
      %3867 = vperm.xlu0 %3866, %v983
      %v3868 = vpop.permute.xlu0 %3867
      %3870 = vset.pattern.permute.xlu0 3
      %3871 = vperm.xlu0 %3870, %v984
      %v3872 = vpop.permute.xlu0 %3871
      %3874 = vset.pattern.permute.xlu0 3
      %3875 = vperm.xlu0 %3874, %v985
      %v3876 = vpop.permute.xlu0 %3875
      %3878 = vset.pattern.permute.xlu0 3
      %3879 = vperm.xlu0 %3878, %v986
      %v3880 = vpop.permute.xlu0 %3879
      %3882 = vset.pattern.permute.xlu0 3
      %3883 = vperm.xlu0 %3882, %v987
      %v3884 = vpop.permute.xlu0 %3883
      %3886 = vset.pattern.permute.xlu0 3
      %3887 = vperm.xlu0 %3886, %v988
      %v3888 = vpop.permute.xlu0 %3887
      %3890 = vset.pattern.permute.xlu0 3
      %3891 = vperm.xlu0 %3890, %v989
      %v3892 = vpop.permute.xlu0 %3891
      %3894 = vset.pattern.permute.xlu0 3
      %3895 = vperm.xlu0 %3894, %v990
      %v3896 = vpop.permute.xlu0 %3895
      %3898 = vset.pattern.permute.xlu0 3
      %3899 = vperm.xlu0 %3898, %v991
      %v3900 = vpop.permute.xlu0 %3899
      %3902 = vset.pattern.permute.xlu0 3
      %3903 = vperm.xlu0 %3902, %v992
      %v3904 = vpop.permute.xlu0 %3903
      %3906 = vset.pattern.permute.xlu0 3
      %3907 = vperm.xlu0 %3906, %v993
      %v3908 = vpop.permute.xlu0 %3907
      %3910 = vset.pattern.permute.xlu0 3
      %3911 = vperm.xlu0 %3910, %v994
      %v3912 = vpop.permute.xlu0 %3911
      %3914 = vset.pattern.permute.xlu0 3
      %3915 = vperm.xlu0 %3914, %v995
      %v3916 = vpop.permute.xlu0 %3915
      %3918 = vset.pattern.permute.xlu0 3
      %3919 = vperm.xlu0 %3918, %v996
      %v3920 = vpop.permute.xlu0 %3919
      %3922 = vset.pattern.permute.xlu0 3
      %3923 = vperm.xlu0 %3922, %v997
      %v3924 = vpop.permute.xlu0 %3923
      %3926 = vset.pattern.permute.xlu0 3
      %3927 = vperm.xlu0 %3926, %v998
      %v3928 = vpop.permute.xlu0 %3927
      %3930 = vset.pattern.permute.xlu0 3
      %3931 = vperm.xlu0 %3930, %v999
      %v3932 = vpop.permute.xlu0 %3931
      %3934 = vset.pattern.permute.xlu0 3
      %3935 = vperm.xlu0 %3934, %v1000
      %v3936 = vpop.permute.xlu0 %3935
      %3938 = vset.pattern.permute.xlu0 3
      %3939 = vperm.xlu0 %3938, %v1001
      %v3940 = vpop.permute.xlu0 %3939
      %3942 = vset.pattern.permute.xlu0 3
      %3943 = vperm.xlu0 %3942, %v1002
      %v3944 = vpop.permute.xlu0 %3943
      %3946 = vset.pattern.permute.xlu0 3
      %3947 = vperm.xlu0 %3946, %v1003
      %v3948 = vpop.permute.xlu0 %3947
      %3950 = vset.pattern.permute.xlu0 3
      %3951 = vperm.xlu0 %3950, %v1004
      %v3952 = vpop.permute.xlu0 %3951
      %3954 = vset.pattern.permute.xlu0 3
      %3955 = vperm.xlu0 %3954, %v1005
      %v3956 = vpop.permute.xlu0 %3955
      %3958 = vset.pattern.permute.xlu0 3
      %3959 = vperm.xlu0 %3958, %v1006
      %v3960 = vpop.permute.xlu0 %3959
      %3962 = vset.pattern.permute.xlu0 3
      %3963 = vperm.xlu0 %3962, %v1007
      %v3964 = vpop.permute.xlu0 %3963
      %3966 = vset.pattern.permute.xlu0 3
      %3967 = vperm.xlu0 %3966, %v1008
      %v3968 = vpop.permute.xlu0 %3967
      %3970 = vset.pattern.permute.xlu0 3
      %3971 = vperm.xlu0 %3970, %v1009
      %v3972 = vpop.permute.xlu0 %3971
      %v3974 = vlaneseq
      %v3975 = vshrl.u32 %v3974, 7
      %v3976 = vsub.s32 3, %v3975
      %v3977 = vrot.slane %v1010, %v3976
      %v3978 = vmul.f32 %v3464, %v3977
      %v3979 = vmul.f32 %v3468, %v3977
      %v3980 = vmul.f32 %v3472, %v3977
      %v3981 = vmul.f32 %v3476, %v3977
      %v3982 = vmul.f32 %v3480, %v3977
      %v3983 = vmul.f32 %v3484, %v3977
      %v3984 = vmul.f32 %v3488, %v3977
      %v3985 = vmul.f32 %v3492, %v3977
      %v3986 = vmul.f32 %v3496, %v3977
      %v3987 = vmul.f32 %v3500, %v3977
      %v3988 = vmul.f32 %v3504, %v3977
      %v3989 = vmul.f32 %v3508, %v3977
      %v3990 = vmul.f32 %v3512, %v3977
      %v3991 = vmul.f32 %v3516, %v3977
      %v3992 = vmul.f32 %v3520, %v3977
      %v3993 = vmul.f32 %v3524, %v3977
      %v3994 = vmul.f32 %v3528, %v3977
      %v3995 = vmul.f32 %v3532, %v3977
      %v3996 = vmul.f32 %v3536, %v3977
      %v3997 = vmul.f32 %v3540, %v3977
      %v3998 = vmul.f32 %v3544, %v3977
      %v3999 = vmul.f32 %v3548, %v3977
      %v4000 = vmul.f32 %v3552, %v3977
      %v4001 = vmul.f32 %v3556, %v3977
      %v4002 = vmul.f32 %v3560, %v3977
      %v4003 = vmul.f32 %v3564, %v3977
      %v4004 = vmul.f32 %v3568, %v3977
      %v4005 = vmul.f32 %v3572, %v3977
      %v4006 = vmul.f32 %v3576, %v3977
      %v4007 = vmul.f32 %v3580, %v3977
      %v4008 = vmul.f32 %v3584, %v3977
      %v4009 = vmul.f32 %v3588, %v3977
      %v4010 = vmul.f32 %v3592, %v3977
      %v4011 = vmul.f32 %v3596, %v3977
      %v4012 = vmul.f32 %v3600, %v3977
      %v4013 = vmul.f32 %v3604, %v3977
      %v4014 = vmul.f32 %v3608, %v3977
      %v4015 = vmul.f32 %v3612, %v3977
      %v4016 = vmul.f32 %v3616, %v3977
      %v4017 = vmul.f32 %v3620, %v3977
      %v4018 = vmul.f32 %v3624, %v3977
      %v4019 = vmul.f32 %v3628, %v3977
      %v4020 = vmul.f32 %v3632, %v3977
      %v4021 = vmul.f32 %v3636, %v3977
      %v4022 = vmul.f32 %v3640, %v3977
      %v4023 = vmul.f32 %v3644, %v3977
      %v4024 = vmul.f32 %v3648, %v3977
      %v4025 = vmul.f32 %v3652, %v3977
      %v4026 = vmul.f32 %v3656, %v3977
      %v4027 = vmul.f32 %v3660, %v3977
      %v4028 = vmul.f32 %v3664, %v3977
      %v4029 = vmul.f32 %v3668, %v3977
      %v4030 = vmul.f32 %v3672, %v3977
      %v4031 = vmul.f32 %v3676, %v3977
      %v4032 = vmul.f32 %v3680, %v3977
      %v4033 = vmul.f32 %v3684, %v3977
      %v4034 = vmul.f32 %v3688, %v3977
      %v4035 = vmul.f32 %v3692, %v3977
      %v4036 = vmul.f32 %v3696, %v3977
      %v4037 = vmul.f32 %v3700, %v3977
      %v4038 = vmul.f32 %v3704, %v3977
      %v4039 = vmul.f32 %v3708, %v3977
      %v4040 = vmul.f32 %v3712, %v3977
      %v4041 = vmul.f32 %v3716, %v3977
      %v4042 = vmul.f32 %v3720, %v3977
      %v4043 = vmul.f32 %v3724, %v3977
      %v4044 = vmul.f32 %v3728, %v3977
      %v4045 = vmul.f32 %v3732, %v3977
      %v4046 = vmul.f32 %v3736, %v3977
      %v4047 = vmul.f32 %v3740, %v3977
      %v4048 = vmul.f32 %v3744, %v3977
      %v4049 = vmul.f32 %v3748, %v3977
      %v4050 = vmul.f32 %v3752, %v3977
      %v4051 = vmul.f32 %v3756, %v3977
      %v4052 = vmul.f32 %v3760, %v3977
      %v4053 = vmul.f32 %v3764, %v3977
      %v4054 = vmul.f32 %v3768, %v3977
      %v4055 = vmul.f32 %v3772, %v3977
      %v4056 = vmul.f32 %v3776, %v3977
      %v4057 = vmul.f32 %v3780, %v3977
      %v4058 = vmul.f32 %v3784, %v3977
      %v4059 = vmul.f32 %v3788, %v3977
      %v4060 = vmul.f32 %v3792, %v3977
      %v4061 = vmul.f32 %v3796, %v3977
      %v4062 = vmul.f32 %v3800, %v3977
      %v4063 = vmul.f32 %v3804, %v3977
      %v4064 = vmul.f32 %v3808, %v3977
      %v4065 = vmul.f32 %v3812, %v3977
      %v4066 = vmul.f32 %v3816, %v3977
      %v4067 = vmul.f32 %v3820, %v3977
      %v4068 = vmul.f32 %v3824, %v3977
      %v4069 = vmul.f32 %v3828, %v3977
      %v4070 = vmul.f32 %v3832, %v3977
      %v4071 = vmul.f32 %v3836, %v3977
      %v4072 = vmul.f32 %v3840, %v3977
      %v4073 = vmul.f32 %v3844, %v3977
      %v4074 = vmul.f32 %v3848, %v3977
      %v4075 = vmul.f32 %v3852, %v3977
      %v4076 = vmul.f32 %v3856, %v3977
      %v4077 = vmul.f32 %v3860, %v3977
      %v4078 = vmul.f32 %v3864, %v3977
      %v4079 = vmul.f32 %v3868, %v3977
      %v4080 = vmul.f32 %v3872, %v3977
      %v4081 = vmul.f32 %v3876, %v3977
      %v4082 = vmul.f32 %v3880, %v3977
      %v4083 = vmul.f32 %v3884, %v3977
      %v4084 = vmul.f32 %v3888, %v3977
      %v4085 = vmul.f32 %v3892, %v3977
      %v4086 = vmul.f32 %v3896, %v3977
      %v4087 = vmul.f32 %v3900, %v3977
      %v4088 = vmul.f32 %v3904, %v3977
      %v4089 = vmul.f32 %v3908, %v3977
      %v4090 = vmul.f32 %v3912, %v3977
      %v4091 = vmul.f32 %v3916, %v3977
      %v4092 = vmul.f32 %v3920, %v3977
      %v4093 = vmul.f32 %v3924, %v3977
      %v4094 = vmul.f32 %v3928, %v3977
      %v4095 = vmul.f32 %v3932, %v3977
      %v4096 = vmul.f32 %v3936, %v3977
      %v4097 = vmul.f32 %v3940, %v3977
      %v4098 = vmul.f32 %v3944, %v3977
      %v4099 = vmul.f32 %v3948, %v3977
      %v4100 = vmul.f32 %v3952, %v3977
      %v4101 = vmul.f32 %v3956, %v3977
      %v4102 = vmul.f32 %v3960, %v3977
      %v4103 = vmul.f32 %v3964, %v3977
      %v4104 = vmul.f32 %v3968, %v3977
      %v4105 = vmul.f32 %v3972, %v3977
      %v4106 = vadd.f32 %v3334, %v3978
      %v4107 = vadd.f32 %v3335, %v3979
      %v4108 = vadd.f32 %v3336, %v3980
      %v4109 = vadd.f32 %v3337, %v3981
      %v4110 = vadd.f32 %v3338, %v3982
      %v4111 = vadd.f32 %v3339, %v3983
      %v4112 = vadd.f32 %v3340, %v3984
      %v4113 = vadd.f32 %v3341, %v3985
      %v4114 = vadd.f32 %v3342, %v3986
      %v4115 = vadd.f32 %v3343, %v3987
      %v4116 = vadd.f32 %v3344, %v3988
      %v4117 = vadd.f32 %v3345, %v3989
      %v4118 = vadd.f32 %v3346, %v3990
      %v4119 = vadd.f32 %v3347, %v3991
      %v4120 = vadd.f32 %v3348, %v3992
      %v4121 = vadd.f32 %v3349, %v3993
      %v4122 = vadd.f32 %v3350, %v3994
      %v4123 = vadd.f32 %v3351, %v3995
      %v4124 = vadd.f32 %v3352, %v3996
      %v4125 = vadd.f32 %v3353, %v3997
      %v4126 = vadd.f32 %v3354, %v3998
      %v4127 = vadd.f32 %v3355, %v3999
      %v4128 = vadd.f32 %v3356, %v4000
      %v4129 = vadd.f32 %v3357, %v4001
      %v4130 = vadd.f32 %v3358, %v4002
      %v4131 = vadd.f32 %v3359, %v4003
      %v4132 = vadd.f32 %v3360, %v4004
      %v4133 = vadd.f32 %v3361, %v4005
      %v4134 = vadd.f32 %v3362, %v4006
      %v4135 = vadd.f32 %v3363, %v4007
      %v4136 = vadd.f32 %v3364, %v4008
      %v4137 = vadd.f32 %v3365, %v4009
      %v4138 = vadd.f32 %v3366, %v4010
      %v4139 = vadd.f32 %v3367, %v4011
      %v4140 = vadd.f32 %v3368, %v4012
      %v4141 = vadd.f32 %v3369, %v4013
      %v4142 = vadd.f32 %v3370, %v4014
      %v4143 = vadd.f32 %v3371, %v4015
      %v4144 = vadd.f32 %v3372, %v4016
      %v4145 = vadd.f32 %v3373, %v4017
      %v4146 = vadd.f32 %v3374, %v4018
      %v4147 = vadd.f32 %v3375, %v4019
      %v4148 = vadd.f32 %v3376, %v4020
      %v4149 = vadd.f32 %v3377, %v4021
      %v4150 = vadd.f32 %v3378, %v4022
      %v4151 = vadd.f32 %v3379, %v4023
      %v4152 = vadd.f32 %v3380, %v4024
      %v4153 = vadd.f32 %v3381, %v4025
      %v4154 = vadd.f32 %v3382, %v4026
      %v4155 = vadd.f32 %v3383, %v4027
      %v4156 = vadd.f32 %v3384, %v4028
      %v4157 = vadd.f32 %v3385, %v4029
      %v4158 = vadd.f32 %v3386, %v4030
      %v4159 = vadd.f32 %v3387, %v4031
      %v4160 = vadd.f32 %v3388, %v4032
      %v4161 = vadd.f32 %v3389, %v4033
      %v4162 = vadd.f32 %v3390, %v4034
      %v4163 = vadd.f32 %v3391, %v4035
      %v4164 = vadd.f32 %v3392, %v4036
      %v4165 = vadd.f32 %v3393, %v4037
      %v4166 = vadd.f32 %v3394, %v4038
      %v4167 = vadd.f32 %v3395, %v4039
      %v4168 = vadd.f32 %v3396, %v4040
      %v4169 = vadd.f32 %v3397, %v4041
      %v4170 = vadd.f32 %v3398, %v4042
      %v4171 = vadd.f32 %v3399, %v4043
      %v4172 = vadd.f32 %v3400, %v4044
      %v4173 = vadd.f32 %v3401, %v4045
      %v4174 = vadd.f32 %v3402, %v4046
      %v4175 = vadd.f32 %v3403, %v4047
      %v4176 = vadd.f32 %v3404, %v4048
      %v4177 = vadd.f32 %v3405, %v4049
      %v4178 = vadd.f32 %v3406, %v4050
      %v4179 = vadd.f32 %v3407, %v4051
      %v4180 = vadd.f32 %v3408, %v4052
      %v4181 = vadd.f32 %v3409, %v4053
      %v4182 = vadd.f32 %v3410, %v4054
      %v4183 = vadd.f32 %v3411, %v4055
      %v4184 = vadd.f32 %v3412, %v4056
      %v4185 = vadd.f32 %v3413, %v4057
      %v4186 = vadd.f32 %v3414, %v4058
      %v4187 = vadd.f32 %v3415, %v4059
      %v4188 = vadd.f32 %v3416, %v4060
      %v4189 = vadd.f32 %v3417, %v4061
      %v4190 = vadd.f32 %v3418, %v4062
      %v4191 = vadd.f32 %v3419, %v4063
      %v4192 = vadd.f32 %v3420, %v4064
      %v4193 = vadd.f32 %v3421, %v4065
      %v4194 = vadd.f32 %v3422, %v4066
      %v4195 = vadd.f32 %v3423, %v4067
      %v4196 = vadd.f32 %v3424, %v4068
      %v4197 = vadd.f32 %v3425, %v4069
      %v4198 = vadd.f32 %v3426, %v4070
      %v4199 = vadd.f32 %v3427, %v4071
      %v4200 = vadd.f32 %v3428, %v4072
      %v4201 = vadd.f32 %v3429, %v4073
      %v4202 = vadd.f32 %v3430, %v4074
      %v4203 = vadd.f32 %v3431, %v4075
      %v4204 = vadd.f32 %v3432, %v4076
      %v4205 = vadd.f32 %v3433, %v4077
      %v4206 = vadd.f32 %v3434, %v4078
      %v4207 = vadd.f32 %v3435, %v4079
      %v4208 = vadd.f32 %v3436, %v4080
      %v4209 = vadd.f32 %v3437, %v4081
      %v4210 = vadd.f32 %v3438, %v4082
      %v4211 = vadd.f32 %v3439, %v4083
      %v4212 = vadd.f32 %v3440, %v4084
      %v4213 = vadd.f32 %v3441, %v4085
      %v4214 = vadd.f32 %v3442, %v4086
      %v4215 = vadd.f32 %v3443, %v4087
      %v4216 = vadd.f32 %v3444, %v4088
      %v4217 = vadd.f32 %v3445, %v4089
      %v4218 = vadd.f32 %v3446, %v4090
      %v4219 = vadd.f32 %v3447, %v4091
      %v4220 = vadd.f32 %v3448, %v4092
      %v4221 = vadd.f32 %v3449, %v4093
      %v4222 = vadd.f32 %v3450, %v4094
      %v4223 = vadd.f32 %v3451, %v4095
      %v4224 = vadd.f32 %v3452, %v4096
      %v4225 = vadd.f32 %v3453, %v4097
      %v4226 = vadd.f32 %v3454, %v4098
      %v4227 = vadd.f32 %v3455, %v4099
      %v4228 = vadd.f32 %v3456, %v4100
      %v4229 = vadd.f32 %v3457, %v4101
      %v4230 = vadd.f32 %v3458, %v4102
      %v4231 = vadd.f32 %v3459, %v4103
      %v4232 = vadd.f32 %v3460, %v4104
      %v4233 = vadd.f32 %v3461, %v4105
      %vm4234 = vcmask 31744
      %4235 = vst.msk [vmem:[%s226] sm:$0xff] %vm4234, %v4106
      %4236 = vst.msk [vmem:[%s226 + $0x8] sm:$0xff] %vm4234, %v4107
      %4237 = vst.msk [vmem:[%s226 + $0x10] sm:$0xff] %vm4234, %v4108
      %4238 = vst.msk [vmem:[%s226 + $0x18] sm:$0xff] %vm4234, %v4109
      %4239 = vst.msk [vmem:[%s226 + $0x20] sm:$0xff] %vm4234, %v4110
      %4240 = vst.msk [vmem:[%s226 + $0x28] sm:$0xff] %vm4234, %v4111
      %4241 = vst.msk [vmem:[%s226 + $0x30] sm:$0xff] %vm4234, %v4112
      %4242 = vst.msk [vmem:[%s226 + $0x38] sm:$0xff] %vm4234, %v4113
      %4243 = vst.msk [vmem:[%s226 + $0x40] sm:$0xff] %vm4234, %v4114
      %4244 = vst.msk [vmem:[%s226 + $0x48] sm:$0xff] %vm4234, %v4115
      %4245 = vst.msk [vmem:[%s226 + $0x50] sm:$0xff] %vm4234, %v4116
      %4246 = vst.msk [vmem:[%s226 + $0x58] sm:$0xff] %vm4234, %v4117
      %4247 = vst.msk [vmem:[%s226 + $0x60] sm:$0xff] %vm4234, %v4118
      %4248 = vst.msk [vmem:[%s226 + $0x68] sm:$0xff] %vm4234, %v4119
      %4249 = vst.msk [vmem:[%s226 + $0x70] sm:$0xff] %vm4234, %v4120
      %4250 = vst.msk [vmem:[%s226 + $0x78] sm:$0xff] %vm4234, %v4121
      %4251 = vst.msk [vmem:[%s226 + $0x80] sm:$0xff] %vm4234, %v4122
      %4252 = vst.msk [vmem:[%s226 + $0x88] sm:$0xff] %vm4234, %v4123
      %4253 = vst.msk [vmem:[%s226 + $0x90] sm:$0xff] %vm4234, %v4124
      %4254 = vst.msk [vmem:[%s226 + $0x98] sm:$0xff] %vm4234, %v4125
      %4255 = vst.msk [vmem:[%s226 + $0xa0] sm:$0xff] %vm4234, %v4126
      %4256 = vst.msk [vmem:[%s226 + $0xa8] sm:$0xff] %vm4234, %v4127
      %4257 = vst.msk [vmem:[%s226 + $0xb0] sm:$0xff] %vm4234, %v4128
      %4258 = vst.msk [vmem:[%s226 + $0xb8] sm:$0xff] %vm4234, %v4129
      %4259 = vst.msk [vmem:[%s226 + $0xc0] sm:$0xff] %vm4234, %v4130
      %4260 = vst.msk [vmem:[%s226 + $0xc8] sm:$0xff] %vm4234, %v4131
      %4261 = vst.msk [vmem:[%s226 + $0xd0] sm:$0xff] %vm4234, %v4132
      %4262 = vst.msk [vmem:[%s226 + $0xd8] sm:$0xff] %vm4234, %v4133
      %4263 = vst.msk [vmem:[%s226 + $0xe0] sm:$0xff] %vm4234, %v4134
      %4264 = vst.msk [vmem:[%s226 + $0xe8] sm:$0xff] %vm4234, %v4135
      %4265 = vst.msk [vmem:[%s226 + $0xf0] sm:$0xff] %vm4234, %v4136
      %4266 = vst.msk [vmem:[%s226 + $0xf8] sm:$0xff] %vm4234, %v4137
      %4267 = vst.msk [vmem:[%s226 + $0x100] sm:$0xff] %vm4234, %v4138
      %4268 = vst.msk [vmem:[%s226 + $0x108] sm:$0xff] %vm4234, %v4139
      %4269 = vst.msk [vmem:[%s226 + $0x110] sm:$0xff] %vm4234, %v4140
      %4270 = vst.msk [vmem:[%s226 + $0x118] sm:$0xff] %vm4234, %v4141
      %4271 = vst.msk [vmem:[%s226 + $0x120] sm:$0xff] %vm4234, %v4142
      %4272 = vst.msk [vmem:[%s226 + $0x128] sm:$0xff] %vm4234, %v4143
      %4273 = vst.msk [vmem:[%s226 + $0x130] sm:$0xff] %vm4234, %v4144
      %4274 = vst.msk [vmem:[%s226 + $0x138] sm:$0xff] %vm4234, %v4145
      %4275 = vst.msk [vmem:[%s226 + $0x140] sm:$0xff] %vm4234, %v4146
      %4276 = vst.msk [vmem:[%s226 + $0x148] sm:$0xff] %vm4234, %v4147
      %4277 = vst.msk [vmem:[%s226 + $0x150] sm:$0xff] %vm4234, %v4148
      %4278 = vst.msk [vmem:[%s226 + $0x158] sm:$0xff] %vm4234, %v4149
      %4279 = vst.msk [vmem:[%s226 + $0x160] sm:$0xff] %vm4234, %v4150
      %4280 = vst.msk [vmem:[%s226 + $0x168] sm:$0xff] %vm4234, %v4151
      %4281 = vst.msk [vmem:[%s226 + $0x170] sm:$0xff] %vm4234, %v4152
      %4282 = vst.msk [vmem:[%s226 + $0x178] sm:$0xff] %vm4234, %v4153
      %4283 = vst.msk [vmem:[%s226 + $0x180] sm:$0xff] %vm4234, %v4154
      %4284 = vst.msk [vmem:[%s226 + $0x188] sm:$0xff] %vm4234, %v4155
      %4285 = vst.msk [vmem:[%s226 + $0x190] sm:$0xff] %vm4234, %v4156
      %4286 = vst.msk [vmem:[%s226 + $0x198] sm:$0xff] %vm4234, %v4157
      %4287 = vst.msk [vmem:[%s226 + $0x1a0] sm:$0xff] %vm4234, %v4158
      %4288 = vst.msk [vmem:[%s226 + $0x1a8] sm:$0xff] %vm4234, %v4159
      %4289 = vst.msk [vmem:[%s226 + $0x1b0] sm:$0xff] %vm4234, %v4160
      %4290 = vst.msk [vmem:[%s226 + $0x1b8] sm:$0xff] %vm4234, %v4161
      %4291 = vst.msk [vmem:[%s226 + $0x1c0] sm:$0xff] %vm4234, %v4162
      %4292 = vst.msk [vmem:[%s226 + $0x1c8] sm:$0xff] %vm4234, %v4163
      %4293 = vst.msk [vmem:[%s226 + $0x1d0] sm:$0xff] %vm4234, %v4164
      %4294 = vst.msk [vmem:[%s226 + $0x1d8] sm:$0xff] %vm4234, %v4165
      %4295 = vst.msk [vmem:[%s226 + $0x1e0] sm:$0xff] %vm4234, %v4166
      %4296 = vst.msk [vmem:[%s226 + $0x1e8] sm:$0xff] %vm4234, %v4167
      %4297 = vst.msk [vmem:[%s226 + $0x1f0] sm:$0xff] %vm4234, %v4168
      %4298 = vst.msk [vmem:[%s226 + $0x1f8] sm:$0xff] %vm4234, %v4169
      %4299 = vst.msk [vmem:[%s226 + $0x200] sm:$0xff] %vm4234, %v4170
      %4300 = vst.msk [vmem:[%s226 + $0x208] sm:$0xff] %vm4234, %v4171
      %4301 = vst.msk [vmem:[%s226 + $0x210] sm:$0xff] %vm4234, %v4172
      %4302 = vst.msk [vmem:[%s226 + $0x218] sm:$0xff] %vm4234, %v4173
      %4303 = vst.msk [vmem:[%s226 + $0x220] sm:$0xff] %vm4234, %v4174
      %4304 = vst.msk [vmem:[%s226 + $0x228] sm:$0xff] %vm4234, %v4175
      %4305 = vst.msk [vmem:[%s226 + $0x230] sm:$0xff] %vm4234, %v4176
      %4306 = vst.msk [vmem:[%s226 + $0x238] sm:$0xff] %vm4234, %v4177
      %4307 = vst.msk [vmem:[%s226 + $0x240] sm:$0xff] %vm4234, %v4178
      %4308 = vst.msk [vmem:[%s226 + $0x248] sm:$0xff] %vm4234, %v4179
      %4309 = vst.msk [vmem:[%s226 + $0x250] sm:$0xff] %vm4234, %v4180
      %4310 = vst.msk [vmem:[%s226 + $0x258] sm:$0xff] %vm4234, %v4181
      %4311 = vst.msk [vmem:[%s226 + $0x260] sm:$0xff] %vm4234, %v4182
      %4312 = vst.msk [vmem:[%s226 + $0x268] sm:$0xff] %vm4234, %v4183
      %4313 = vst.msk [vmem:[%s226 + $0x270] sm:$0xff] %vm4234, %v4184
      %4314 = vst.msk [vmem:[%s226 + $0x278] sm:$0xff] %vm4234, %v4185
      %4315 = vst.msk [vmem:[%s226 + $0x280] sm:$0xff] %vm4234, %v4186
      %4316 = vst.msk [vmem:[%s226 + $0x288] sm:$0xff] %vm4234, %v4187
      %4317 = vst.msk [vmem:[%s226 + $0x290] sm:$0xff] %vm4234, %v4188
      %4318 = vst.msk [vmem:[%s226 + $0x298] sm:$0xff] %vm4234, %v4189
      %4319 = vst.msk [vmem:[%s226 + $0x2a0] sm:$0xff] %vm4234, %v4190
      %4320 = vst.msk [vmem:[%s226 + $0x2a8] sm:$0xff] %vm4234, %v4191
      %4321 = vst.msk [vmem:[%s226 + $0x2b0] sm:$0xff] %vm4234, %v4192
      %4322 = vst.msk [vmem:[%s226 + $0x2b8] sm:$0xff] %vm4234, %v4193
      %4323 = vst.msk [vmem:[%s226 + $0x2c0] sm:$0xff] %vm4234, %v4194
      %4324 = vst.msk [vmem:[%s226 + $0x2c8] sm:$0xff] %vm4234, %v4195
      %4325 = vst.msk [vmem:[%s226 + $0x2d0] sm:$0xff] %vm4234, %v4196
      %4326 = vst.msk [vmem:[%s226 + $0x2d8] sm:$0xff] %vm4234, %v4197
      %4327 = vst.msk [vmem:[%s226 + $0x2e0] sm:$0xff] %vm4234, %v4198
      %4328 = vst.msk [vmem:[%s226 + $0x2e8] sm:$0xff] %vm4234, %v4199
      %4329 = vst.msk [vmem:[%s226 + $0x2f0] sm:$0xff] %vm4234, %v4200
      %4330 = vst.msk [vmem:[%s226 + $0x2f8] sm:$0xff] %vm4234, %v4201
      %4331 = vst.msk [vmem:[%s226 + $0x300] sm:$0xff] %vm4234, %v4202
      %4332 = vst.msk [vmem:[%s226 + $0x308] sm:$0xff] %vm4234, %v4203
      %4333 = vst.msk [vmem:[%s226 + $0x310] sm:$0xff] %vm4234, %v4204
      %4334 = vst.msk [vmem:[%s226 + $0x318] sm:$0xff] %vm4234, %v4205
      %4335 = vst.msk [vmem:[%s226 + $0x320] sm:$0xff] %vm4234, %v4206
      %4336 = vst.msk [vmem:[%s226 + $0x328] sm:$0xff] %vm4234, %v4207
      %4337 = vst.msk [vmem:[%s226 + $0x330] sm:$0xff] %vm4234, %v4208
      %4338 = vst.msk [vmem:[%s226 + $0x338] sm:$0xff] %vm4234, %v4209
      %4339 = vst.msk [vmem:[%s226 + $0x340] sm:$0xff] %vm4234, %v4210
      %4340 = vst.msk [vmem:[%s226 + $0x348] sm:$0xff] %vm4234, %v4211
      %4341 = vst.msk [vmem:[%s226 + $0x350] sm:$0xff] %vm4234, %v4212
      %4342 = vst.msk [vmem:[%s226 + $0x358] sm:$0xff] %vm4234, %v4213
      %4343 = vst.msk [vmem:[%s226 + $0x360] sm:$0xff] %vm4234, %v4214
      %4344 = vst.msk [vmem:[%s226 + $0x368] sm:$0xff] %vm4234, %v4215
      %4345 = vst.msk [vmem:[%s226 + $0x370] sm:$0xff] %vm4234, %v4216
      %4346 = vst.msk [vmem:[%s226 + $0x378] sm:$0xff] %vm4234, %v4217
      %4347 = vst.msk [vmem:[%s226 + $0x380] sm:$0xff] %vm4234, %v4218
      %4348 = vst.msk [vmem:[%s226 + $0x388] sm:$0xff] %vm4234, %v4219
      %4349 = vst.msk [vmem:[%s226 + $0x390] sm:$0xff] %vm4234, %v4220
      %4350 = vst.msk [vmem:[%s226 + $0x398] sm:$0xff] %vm4234, %v4221
      %4351 = vst.msk [vmem:[%s226 + $0x3a0] sm:$0xff] %vm4234, %v4222
      %4352 = vst.msk [vmem:[%s226 + $0x3a8] sm:$0xff] %vm4234, %v4223
      %4353 = vst.msk [vmem:[%s226 + $0x3b0] sm:$0xff] %vm4234, %v4224
      %4354 = vst.msk [vmem:[%s226 + $0x3b8] sm:$0xff] %vm4234, %v4225
      %4355 = vst.msk [vmem:[%s226 + $0x3c0] sm:$0xff] %vm4234, %v4226
      %4356 = vst.msk [vmem:[%s226 + $0x3c8] sm:$0xff] %vm4234, %v4227
      %4357 = vst.msk [vmem:[%s226 + $0x3d0] sm:$0xff] %vm4234, %v4228
      %4358 = vst.msk [vmem:[%s226 + $0x3d8] sm:$0xff] %vm4234, %v4229
      %4359 = vst.msk [vmem:[%s226 + $0x3e0] sm:$0xff] %vm4234, %v4230
      %4360 = vst.msk [vmem:[%s226 + $0x3e8] sm:$0xff] %vm4234, %v4231
      %4361 = vst.msk [vmem:[%s226 + $0x3f0] sm:$0xff] %vm4234, %v4232
      %4362 = vst.msk [vmem:[%s226 + $0x3f8] sm:$0xff] %vm4234, %v4233
      %s4363 = smul.u32 128, %s16
      %p4364 = scmp.lt.s32.totalorder %s4363, 255
      %s4365 = scalar_select %p4364, %s4363, 255
      %s4366 = smul.addr %s4365, 8
      %s4367 = scalar_lea.vmem %s5, %s4366
      // Predicated region
      $region41: #{_lambda_.9} parent=39 // pred_check
        %p4368 = pneg %p144
      $region42: #{_lambda_.9} parent=39 // pred_check_branch
        %4370 = sbr.rel (%p4368) target = $region44
      $region43: #{_lambda_.9} parent=39 // pred_region
        %s4371 = smul.u32 128, %s16
      $region44: #{_lambda_.9} parent=39 // pred_fallthru
        _
    $region40: #{_lambda_.9} parent=5 // pred_fallthru
      _
    %p4372 = scmp.le.s32.totalorder 2, %s11
    // Predicated region
    $region45: #{_lambda_.9} parent=5 // pred_check
      %p4373 = pneg %p4372
    $region46: #{_lambda_.9} parent=5 // pred_check_branch
      %4375 = sbr.rel (%p4373) target = $region48
    $region47: #{_lambda_.9} parent=5 // pred_region
      %s4376 = ssub.s32 %s11, 2
      // Predicated region
      $region49: #{_lambda_.9} parent=47 // pred_check
        %p4377 = pneg %p150
      $region50: #{_lambda_.9} parent=47 // pred_check_branch
        %4379 = sbr.rel (%p4377) target = $region52
      $region51: #{_lambda_.9} parent=47 // pred_region
        %s4380 = smul.u32 128, %s17
        %p4381 = scmp.lt.s32.totalorder %s4380, 255
        %s4382 = scalar_select %p4381, %s4380, 255
        %s4383 = smul.addr %s4382, 8
        %s4384 = scalar_lea.vmem %s5, %s4383
      $region52: #{_lambda_.9} parent=47 // pred_fallthru
        _
    $region48: #{_lambda_.9} parent=5 // pred_fallthru
      _
  $region6: #{_lambda_.9} parent=0 // loop_footer
    %s15 = sadd.s32 1, %s11
  $region7: #{_lambda_.9} parent=0 // loop_footer_branch
    %10 = sbr.rel target = $region3
  $region8: #{_lambda_.9} parent=0 // loop_exit
    _

</llo_original>
